<compile_context>
chip_gen: v7x
topology: tpu7x:2x2x1
jax: 0.10.0
libtpu: 0.0.40
codegen_flags: <defaults>
</compile_context>

<pallas_src>
import functools

import jax
import jax.numpy as jnp
from jax import lax
from jax.experimental import pallas as pl
from jax.experimental.pallas import tpu as pltpu


def _qap_kernel(qs_ref, w1_ref, b1_ref, lnw_ref, lnb_ref, w2_ref, b2_ref,
                keys_ref, knorm_ref, pe_ref, o_ref, *,
                pool_size, top_k, beta, length_min, length_max, embed_dim, tile_n):
    # qs_ref   : (B, 1)        quality scores
    # w1_ref   : (1, D2)  b1_ref: (1, D2)      Linear(1 -> D2)   (weight stored transposed)
    # lnw_ref  : (1, D2)  lnb_ref: (1, D2)     LayerNorm(D2) affine
    # w2_ref   : (D2, D)  b2_ref: (1, D)       Linear(D2 -> D)   (weight stored transposed)
    # keys_ref : (P, D)                        prompt_keys
    # knorm_ref: (1, P)                        precomputed ||prompt_keys||_2 (wrapper-side)
    # pe_ref   : (P, tile_n)                   prompt_embeddings viewed as (P, L*D), one N-tile
    # o_ref    : (B, tile_n)                   output tile of the flattened (B, L*D) result
    B = qs_ref.shape[0]
    P = pool_size
    D = embed_dim

    qs = qs_ref[...].astype(jnp.float32)                                   # (B, 1)

    # ---- quality_proj: Linear(1->D2) -> LayerNorm -> ReLU -> Linear(D2->D) ----
    h = qs * w1_ref[...] + b1_ref[...]                                     # (B, D2)
    mu = jnp.mean(h, axis=-1, keepdims=True)
    var = jnp.mean((h - mu) * (h - mu), axis=-1, keepdims=True)
    h = (h - mu) / jnp.sqrt(var + 1e-5)
    h = h * lnw_ref[...] + lnb_ref[...]
    h = jnp.maximum(h, 0.0)
    query = jnp.dot(h, w2_ref[...], preferred_element_type=jnp.float32) + b2_ref[...]  # (B, D)

    # ---- cosine similarity against the prompt key pool (key norms precomputed) ----
    keys = keys_ref[...].astype(jnp.float32)                               # (P, D)
    dots = jnp.einsum('bd,pd->bp', query, keys,
                      preferred_element_type=jnp.float32)                  # (B, P)
    nq = jnp.sqrt(jnp.sum(query * query, axis=-1, keepdims=True))          # (B, 1)
    nk_row = knorm_ref[...]                                                # (1, P)
    sims = dots / jnp.maximum(nq * nk_row, 1e-8)                           # (B, P)

    # ---- quality-scaled softmax over the pool axis ----
    qsum = jnp.sum(qs, axis=0, keepdims=True)                              # (1, 1)
    scale = 1.0 + beta * (qsum / B)                                        # (1, 1)
    logits = sims * scale
    m = jnp.max(logits, axis=1, keepdims=True)
    e = jnp.exp(logits - m)
    weights = e / jnp.sum(e, axis=1, keepdims=True)                        # (B, P)

    # ---- top-k selection as a weight mask (iterative argmax, first-index tie-break) ----
    col = lax.broadcasted_iota(jnp.int32, (B, P), 1)
    selected = jnp.zeros((B, P), dtype=jnp.bool_)
    for _ in range(top_k):
        cur = jnp.where(selected, -1.0, weights)          # softmax weights are > 0
        row_max = jnp.max(cur, axis=1, keepdims=True)
        cand = jnp.min(jnp.where(cur == row_max, col, P), axis=1, keepdims=True)
        selected = jnp.logical_or(selected, col == cand)
    w_sel = jnp.where(selected, weights, 0.0)                              # (B, P)

    # ---- per-sample dynamic length -> column threshold in the flattened (L*D) axis ----
    len_f = length_min + (length_max - length_min) * (1.0 - qs / 5.0)      # (B, 1)
    lengths = jnp.clip(len_f.astype(jnp.int32), length_min, length_max)    # (B, 1)  int() truncation
    thresh = lengths * D                                                   # (B, 1)

    # ---- weighted prompt sum: one lane-dense MXU matmul per tile ----
    out = jnp.dot(w_sel, pe_ref[...], preferred_element_type=jnp.float32)  # (B, tile_n)

    # ---- zero-pad positions t >= length: tile-local iota vs. (thresh - tile_start) ----
    n0 = pl.program_id(0) * tile_n
    rel_thresh = thresh - n0                                               # (B, 1) scalar-ish
    lcol = lax.broadcasted_iota(jnp.int32, (B, tile_n), 1)
    out = jnp.where(lcol < rel_thresh, out, 0.0)
    o_ref[...] = out.astype(o_ref.dtype)


def _pick_tile_n(ld, pool, batch, *, bytes_per_elem=4, vmem_budget_bytes=24 << 20):
    """Pick a lane-dense tile for the flattened (L*D) axis.

    Prefers the largest tile whose grid is an even number of steps (so the
    'parallel' axis can feed both v7x TensorCores), subject to the double-
    buffered pe + out tiles fitting the VMEM budget.
    """
    if ld % 128 != 0:
        return ld  # full-extent block (exempt from the (8,128) rule)

    def fits(t):
        return 2 * (pool + batch) * t * bytes_per_elem <= vmem_budget_bytes

    divisors = [t for t in range(128, ld + 1, 128) if ld % t == 0 and fits(t)]
    if not divisors:
        return 128
    even_grid = [t for t in divisors if (ld // t) % 2 == 0]
    return max(even_grid) if even_grid else max(divisors)


def quality_aware_prompt(x_embed, quality_score, params, *,
                         length_min=5, length_max=64, top_k=5, beta=0.5):
    """x_embed: [B, S, D]; quality_score: [B, 1]. Returns dict like the PyTorch module."""
    # TODO(synk): only the quality_score-provided path is implemented; the quality_score=None
    # fallback (query = x_embed.mean(1)) and the unused frequency-table bookkeeping are omitted.
    B = x_embed.shape[0]
    P, L, D = params["prompt_embeddings"].shape
    D2 = params["w1"].shape[1]
    LD = L * D

    pe_flat = params["prompt_embeddings"].reshape(P, LD)      # free, contiguous reshape
    key_norms = jnp.sqrt(jnp.sum(params["prompt_keys"].astype(jnp.float32) ** 2,
                                 axis=-1)).reshape(1, P)      # parameter-only: precompute once

    tile_n = _pick_tile_n(LD, P, B)
    grid = (LD // tile_n,)

    kernel = functools.partial(
        _qap_kernel, pool_size=P, top_k=top_k, beta=beta,
        length_min=length_min, length_max=length_max, embed_dim=D, tile_n=tile_n)

    cost = pl.CostEstimate(
        flops=int(2 * B * P * LD + 2 * B * D2 * D + 2 * B * D * P),
        transcendentals=int(B * P + 4 * B),
        bytes_accessed=int(4 * (P * LD + B * LD + P * D + D2 * D + 6 * D2 + 2 * D + P + B)),
    )

    out_flat = pl.pallas_call(
        kernel,
        out_shape=jax.ShapeDtypeStruct((B, LD), jnp.float32),
        grid_spec=pltpu.PrefetchScalarGridSpec(
            num_scalar_prefetch=0,
            grid=grid,
            in_specs=[
                pl.BlockSpec((B, 1), lambda j: (0, 0)),         # quality_score
                pl.BlockSpec((1, D2), lambda j: (0, 0)),        # w1
                pl.BlockSpec((1, D2), lambda j: (0, 0)),        # b1
                pl.BlockSpec((1, D2), lambda j: (0, 0)),        # ln_w
                pl.BlockSpec((1, D2), lambda j: (0, 0)),        # ln_b
                pl.BlockSpec((D2, D), lambda j: (0, 0)),        # w2
                pl.BlockSpec((1, D), lambda j: (0, 0)),         # b2
                pl.BlockSpec((P, D), lambda j: (0, 0)),         # prompt_keys
                pl.BlockSpec((1, P), lambda j: (0, 0)),         # precomputed key norms
                pl.BlockSpec((P, tile_n), lambda j: (0, j)),    # prompt_embeddings (flattened)
            ],
            out_specs=pl.BlockSpec((B, tile_n), lambda j: (0, j)),
        ),
        compiler_params=pltpu.CompilerParams(
            dimension_semantics=("parallel",)),
        cost_estimate=cost,
    )(quality_score, params["w1"], params["b1"], params["ln_w"], params["ln_b"],
      params["w2"], params["b2"], params["prompt_keys"], key_norms, pe_flat)

    return {
        "prompted_embedding_e": out_flat.reshape(B, L, D),
        "prompt_loss": jnp.zeros((), jnp.float32),
    }


def _reference(x_embed, quality_score, params, *, length_min, length_max, top_k, beta):
    """Pure-JAX reference mirroring the PyTorch forward."""
    B = x_embed.shape[0]
    P, L, D = params["prompt_embeddings"].shape
    hi = jax.lax.Precision.HIGHEST

    q = quality_score.astype(jnp.float32)                                  # (B, 1)
    h = jnp.dot(q, params["w1"], precision=hi) + params["b1"]              # (B, D2)
    mu = jnp.mean(h, axis=-1, keepdims=True)
    var = jnp.mean((h - mu) ** 2, axis=-1, keepdims=True)
    h = (h - mu) / jnp.sqrt(var + 1e-5) * params["ln_w"] + params["ln_b"]
    h = jax.nn.relu(h)
    query = jnp.dot(h, params["w2"], precision=hi) + params["b2"]          # (B, D)

    keys = params["prompt_keys"]
    dots = jnp.dot(query, keys.T, precision=hi)                            # (B, P)
    nq = jnp.sqrt(jnp.sum(query ** 2, axis=-1, keepdims=True))
    nk = jnp.sqrt(jnp.sum(keys ** 2, axis=-1))
    sims = dots / jnp.maximum(nq * nk[None, :], 1e-8)

    scale = 1.0 + beta * q.mean()
    weights = jax.nn.softmax(sims * scale, axis=1)                         # (B, P)

    outs = []
    for b in range(B):
        mu_b = q[b, 0]
        len_f = length_min + (length_max - length_min) * (1.0 - mu_b / 5.0)
        length = jnp.clip(len_f.astype(jnp.int32), length_min, length_max)
        vals, idxs = jax.lax.top_k(weights[b], top_k)
        sel = params["prompt_embeddings"][idxs]                            # (k, L, D)
        tmask = jnp.arange(L)[None, :, None] < length
        sel = jnp.where(tmask, sel, 0.0)
        outs.append((sel * vals[:, None, None]).sum(0))                    # (L, D)
    return jnp.stack(outs, 0)


if __name__ == "__main__":
    B, SEQ = 2, 8
    POOL, EMBED, LMIN, LMAX, TOPK, BETA = 20, 512, 5, 64, 5, 0.5
    D2 = EMBED // 2

    key = jax.random.PRNGKey(0)
    ks = jax.random.split(key, 10)

    x_embed = jax.random.normal(ks[0], (B, SEQ, EMBED), jnp.float32)
    quality_score = jax.random.uniform(ks[1], (B, 1), jnp.float32, 0.0, 5.0)

    params = {
        # quality_proj: Linear(1 -> D2), LayerNorm(D2), ReLU, Linear(D2 -> EMBED)
        "w1": jax.random.normal(ks[2], (1, D2), jnp.float32) * 0.5,
        "b1": jax.random.normal(ks[3], (1, D2), jnp.float32) * 0.1,
        "ln_w": 1.0 + 0.1 * jax.random.normal(ks[4], (1, D2), jnp.float32),
        "ln_b": 0.1 * jax.random.normal(ks[5], (1, D2), jnp.float32),
        "w2": jax.random.normal(ks[6], (D2, EMBED), jnp.float32) * (D2 ** -0.5),
        "b2": 0.1 * jax.random.normal(ks[7], (1, EMBED), jnp.float32),
        # prompt pool
        "prompt_keys": jax.random.normal(ks[8], (POOL, EMBED), jnp.float32) * (EMBED ** -0.5),
        "prompt_embeddings": jax.random.normal(ks[9], (POOL, LMAX, EMBED), jnp.float32) * 0.1,
    }

    out = quality_aware_prompt(x_embed, quality_score, params,
                               length_min=LMIN, length_max=LMAX, top_k=TOPK, beta=BETA)
    emb = jax.block_until_ready(out["prompted_embedding_e"])

    ref = _reference(x_embed, quality_score, params,
                     length_min=LMIN, length_max=LMAX, top_k=TOPK, beta=BETA)

    assert emb.shape == (B, LMAX, EMBED)
    max_err = jnp.max(jnp.abs(emb - ref))
    assert jnp.allclose(emb, ref, atol=1e-4, rtol=1e-3), f"max abs err = {max_err}"

    print("KERNEL_OK")
</pallas_src>

<mosaic_0001>
module attributes {stable_mosaic.version = 11 : i64} {
  func.func @_qap_kernel(%arg0: i32, %arg1: memref<2x1xf32, #tpu.memory_space<vmem>>, %arg2: memref<1x256xf32, #tpu.memory_space<vmem>>, %arg3: memref<1x256xf32, #tpu.memory_space<vmem>>, %arg4: memref<1x256xf32, #tpu.memory_space<vmem>>, %arg5: memref<1x256xf32, #tpu.memory_space<vmem>>, %arg6: memref<256x512xf32, #tpu.memory_space<vmem>>, %arg7: memref<1x512xf32, #tpu.memory_space<vmem>>, %arg8: memref<20x512xf32, #tpu.memory_space<vmem>>, %arg9: memref<1x20xf32, #tpu.memory_space<vmem>>, %arg10: memref<20x16384xf32, #tpu.memory_space<vmem>>, %arg11: memref<2x16384xf32, #tpu.memory_space<vmem>>) attributes {dimension_semantics = [#tpu.dimension_semantics<parallel>], iteration_bounds = array<i64: 2>, scalar_prefetch = 0 : i64, scratch_operands = 0 : i64, tpu.core_type = #tpu.core_type<tc>, window_params = [{pipeline_mode = #tpu.pipeline_mode<synchronous>, transform_indices = @transform_0, window_bounds = array<i64: 2, 1>}, {pipeline_mode = #tpu.pipeline_mode<synchronous>, transform_indices = @transform_1, window_bounds = array<i64: 1, 256>}, {pipeline_mode = #tpu.pipeline_mode<synchronous>, transform_indices = @transform_2, window_bounds = array<i64: 1, 256>}, {pipeline_mode = #tpu.pipeline_mode<synchronous>, transform_indices = @transform_3, window_bounds = array<i64: 1, 256>}, {pipeline_mode = #tpu.pipeline_mode<synchronous>, transform_indices = @transform_4, window_bounds = array<i64: 1, 256>}, {pipeline_mode = #tpu.pipeline_mode<synchronous>, transform_indices = @transform_5, window_bounds = array<i64: 256, 512>}, {pipeline_mode = #tpu.pipeline_mode<synchronous>, transform_indices = @transform_6, window_bounds = array<i64: 1, 512>}, {pipeline_mode = #tpu.pipeline_mode<synchronous>, transform_indices = @transform_7, window_bounds = array<i64: 20, 512>}, {pipeline_mode = #tpu.pipeline_mode<synchronous>, transform_indices = @transform_8, window_bounds = array<i64: 1, 20>}, {transform_indices = @transform_9, window_bounds = array<i64: 20, 16384>}, {transform_indices = @transform_10, window_bounds = array<i64: 2, 16384>}]} {
    %c0 = arith.constant 0 : index
    %c0_0 = arith.constant 0 : index
    %0 = vector.load %arg1[%c0, %c0_0] : memref<2x1xf32, #tpu.memory_space<vmem>>, vector<2x1xf32>
    %c0_1 = arith.constant 0 : index
    %c0_2 = arith.constant 0 : index
    %1 = vector.load %arg2[%c0_1, %c0_2] : memref<1x256xf32, #tpu.memory_space<vmem>>, vector<1x256xf32>
    %2 = vector.broadcast %0 : vector<2x1xf32> to vector<2x256xf32>
    %3 = vector.broadcast %1 : vector<1x256xf32> to vector<2x256xf32>
    %4 = arith.mulf %2, %3 : vector<2x256xf32>
    %c0_3 = arith.constant 0 : index
    %c0_4 = arith.constant 0 : index
    %5 = vector.load %arg3[%c0_3, %c0_4] : memref<1x256xf32, #tpu.memory_space<vmem>>, vector<1x256xf32>
    %6 = vector.broadcast %5 : vector<1x256xf32> to vector<2x256xf32>
    %7 = arith.addf %4, %6 : vector<2x256xf32>
    %cst = arith.constant dense<0.000000e+00> : vector<2xf32>
    %8 = vector.multi_reduction <add>, %7, %cst [1] : vector<2x256xf32> to vector<2xf32>
    %9 = vector.shape_cast %8 : vector<2xf32> to vector<2x1xf32>
    %cst_5 = arith.constant 2.560000e+02 : f32
    %10 = vector.broadcast %cst_5 : f32 to vector<2x1xf32>
    %11 = arith.divf %9, %10 : vector<2x1xf32>
    %12 = vector.broadcast %11 : vector<2x1xf32> to vector<2x256xf32>
    %13 = arith.subf %7, %12 : vector<2x256xf32>
    %14 = vector.broadcast %11 : vector<2x1xf32> to vector<2x256xf32>
    %15 = arith.subf %7, %14 : vector<2x256xf32>
    %16 = arith.mulf %13, %15 : vector<2x256xf32>
    %cst_6 = arith.constant dense<0.000000e+00> : vector<2xf32>
    %17 = vector.multi_reduction <add>, %16, %cst_6 [1] : vector<2x256xf32> to vector<2xf32>
    %18 = vector.shape_cast %17 : vector<2xf32> to vector<2x1xf32>
    %cst_7 = arith.constant 2.560000e+02 : f32
    %19 = vector.broadcast %cst_7 : f32 to vector<2x1xf32>
    %20 = arith.divf %18, %19 : vector<2x1xf32>
    %21 = vector.broadcast %11 : vector<2x1xf32> to vector<2x256xf32>
    %22 = arith.subf %7, %21 : vector<2x256xf32>
    %cst_8 = arith.constant 9.99999974E-6 : f32
    %23 = vector.broadcast %cst_8 : f32 to vector<2x1xf32>
    %24 = arith.addf %20, %23 : vector<2x1xf32>
    %25 = math.sqrt %24 : vector<2x1xf32>
    %26 = vector.broadcast %25 : vector<2x1xf32> to vector<2x256xf32>
    %27 = arith.divf %22, %26 : vector<2x256xf32>
    %c0_9 = arith.constant 0 : index
    %c0_10 = arith.constant 0 : index
    %28 = vector.load %arg4[%c0_9, %c0_10] : memref<1x256xf32, #tpu.memory_space<vmem>>, vector<1x256xf32>
    %29 = vector.broadcast %28 : vector<1x256xf32> to vector<2x256xf32>
    %30 = arith.mulf %27, %29 : vector<2x256xf32>
    %c0_11 = arith.constant 0 : index
    %c0_12 = arith.constant 0 : index
    %31 = vector.load %arg5[%c0_11, %c0_12] : memref<1x256xf32, #tpu.memory_space<vmem>>, vector<1x256xf32>
    %32 = vector.broadcast %31 : vector<1x256xf32> to vector<2x256xf32>
    %33 = arith.addf %30, %32 : vector<2x256xf32>
    %cst_13 = arith.constant 0.000000e+00 : f32
    %34 = vector.broadcast %cst_13 : f32 to vector<2x256xf32>
    %35 = arith.maximumf %33, %34 : vector<2x256xf32>
    %c0_14 = arith.constant 0 : index
    %c0_15 = arith.constant 0 : index
    %36 = vector.load %arg6[%c0_14, %c0_15] : memref<256x512xf32, #tpu.memory_space<vmem>>, vector<256x512xf32>
    %cst_16 = arith.constant dense<0.000000e+00> : vector<2x512xf32>
    %37 = tpu.matmul %35, %36, %cst_16 {dimension_numbers = #tpu.dot_dimension_numbers<[1], [0], [0], [1], [0, 0, 1, 1], [], []>} : vector<2x256xf32>, vector<256x512xf32>, vector<2x512xf32> -> vector<2x512xf32>
    %c0_17 = arith.constant 0 : index
    %c0_18 = arith.constant 0 : index
    %38 = vector.load %arg7[%c0_17, %c0_18] : memref<1x512xf32, #tpu.memory_space<vmem>>, vector<1x512xf32>
    %39 = vector.broadcast %38 : vector<1x512xf32> to vector<2x512xf32>
    %40 = arith.addf %37, %39 : vector<2x512xf32>
    %c0_19 = arith.constant 0 : index
    %c0_20 = arith.constant 0 : index
    %41 = vector.load %arg8[%c0_19, %c0_20] : memref<20x512xf32, #tpu.memory_space<vmem>>, vector<20x512xf32>
    "tpu.trace_start"() <{level = 10 : i32, message = "bd,pd->bp"}> : () -> ()
    %cst_21 = arith.constant dense<0.000000e+00> : vector<2x20xf32>
    %42 = tpu.matmul %40, %41, %cst_21 {dimension_numbers = #tpu.dot_dimension_numbers<[1], [1], [0], [0], [0, 0, 1, 0], [], []>} : vector<2x512xf32>, vector<20x512xf32>, vector<2x20xf32> -> vector<2x20xf32>
    "tpu.trace_stop"() : () -> ()
    %43 = arith.mulf %40, %40 : vector<2x512xf32>
    %cst_22 = arith.constant dense<0.000000e+00> : vector<2xf32>
    %44 = vector.multi_reduction <add>, %43, %cst_22 [1] : vector<2x512xf32> to vector<2xf32>
    %45 = vector.shape_cast %44 : vector<2xf32> to vector<2x1xf32>
    %46 = math.sqrt %45 : vector<2x1xf32>
    %c0_23 = arith.constant 0 : index
    %c0_24 = arith.constant 0 : index
    %47 = vector.load %arg9[%c0_23, %c0_24] : memref<1x20xf32, #tpu.memory_space<vmem>>, vector<1x20xf32>
    %48 = vector.broadcast %46 : vector<2x1xf32> to vector<2x20xf32>
    %49 = vector.broadcast %47 : vector<1x20xf32> to vector<2x20xf32>
    %50 = arith.mulf %48, %49 : vector<2x20xf32>
    %cst_25 = arith.constant 9.99999993E-9 : f32
    %51 = vector.broadcast %cst_25 : f32 to vector<2x20xf32>
    %52 = arith.maximumf %50, %51 : vector<2x20xf32>
    %53 = arith.divf %42, %52 : vector<2x20xf32>
    %cst_26 = arith.constant dense<0.000000e+00> : vector<1xf32>
    %54 = vector.multi_reduction <add>, %0, %cst_26 [0] : vector<2x1xf32> to vector<1xf32>
    %55 = vector.shape_cast %54 : vector<1xf32> to vector<1x1xf32>
    %cst_27 = arith.constant 2.000000e+00 : f32
    %56 = vector.broadcast %cst_27 : f32 to vector<1x1xf32>
    %57 = arith.divf %55, %56 : vector<1x1xf32>
    %cst_28 = arith.constant 5.000000e-01 : f32
    %58 = vector.broadcast %cst_28 : f32 to vector<1x1xf32>
    %59 = arith.mulf %58, %57 : vector<1x1xf32>
    %cst_29 = arith.constant 1.000000e+00 : f32
    %60 = vector.broadcast %cst_29 : f32 to vector<1x1xf32>
    %61 = arith.addf %60, %59 : vector<1x1xf32>
    %62 = vector.broadcast %61 : vector<1x1xf32> to vector<2x20xf32>
    %63 = arith.mulf %53, %62 : vector<2x20xf32>
    %cst_30 = arith.constant dense<0xFF800000> : vector<2xf32>
    %64 = vector.multi_reduction <maximumf>, %63, %cst_30 [1] : vector<2x20xf32> to vector<2xf32>
    %65 = vector.shape_cast %64 : vector<2xf32> to vector<2x1xf32>
    %66 = vector.broadcast %65 : vector<2x1xf32> to vector<2x20xf32>
    %67 = arith.subf %63, %66 : vector<2x20xf32>
    %68 = math.exp %67 : vector<2x20xf32>
    %cst_31 = arith.constant dense<0.000000e+00> : vector<2xf32>
    %69 = vector.multi_reduction <add>, %68, %cst_31 [1] : vector<2x20xf32> to vector<2xf32>
    %70 = vector.shape_cast %69 : vector<2xf32> to vector<2x1xf32>
    %71 = vector.broadcast %70 : vector<2x1xf32> to vector<2x20xf32>
    %72 = arith.divf %68, %71 : vector<2x20xf32>
    %73 = tpu.iota {dimensions = array<i32: 1>} : vector<2x20xi32>
    %false = arith.constant false
    %74 = vector.broadcast %false : i1 to vector<2x20xi1>
    %cst_32 = arith.constant -1.000000e+00 : f32
    %75 = vector.broadcast %cst_32 : f32 to vector<2x20xf32>
    %76 = arith.select %74, %75, %72 : vector<2x20xi1>, vector<2x20xf32>
    %cst_33 = arith.constant dense<0xFF800000> : vector<2xf32>
    %77 = vector.multi_reduction <maximumf>, %76, %cst_33 [1] : vector<2x20xf32> to vector<2xf32>
    %78 = vector.shape_cast %77 : vector<2xf32> to vector<2x1xf32>
    %79 = vector.broadcast %78 : vector<2x1xf32> to vector<2x20xf32>
    %80 = arith.cmpf oeq, %76, %79 : vector<2x20xf32>
    %c20_i32 = arith.constant 20 : i32
    %81 = vector.broadcast %c20_i32 : i32 to vector<2x20xi32>
    %82 = arith.select %80, %73, %81 : vector<2x20xi1>, vector<2x20xi32>
    %cst_34 = arith.constant dense<2147483647> : vector<2xi32>
    %83 = vector.multi_reduction <minsi>, %82, %cst_34 [1] : vector<2x20xi32> to vector<2xi32>
    %84 = vector.shape_cast %83 : vector<2xi32> to vector<2x1xi32>
    %85 = vector.broadcast %84 : vector<2x1xi32> to vector<2x20xi32>
    %86 = arith.cmpi eq, %73, %85 : vector<2x20xi32>
    %87 = arith.ori %74, %86 : vector<2x20xi1>
    %cst_35 = arith.constant -1.000000e+00 : f32
    %88 = vector.broadcast %cst_35 : f32 to vector<2x20xf32>
    %89 = arith.select %87, %88, %72 : vector<2x20xi1>, vector<2x20xf32>
    %cst_36 = arith.constant dense<0xFF800000> : vector<2xf32>
    %90 = vector.multi_reduction <maximumf>, %89, %cst_36 [1] : vector<2x20xf32> to vector<2xf32>
    %91 = vector.shape_cast %90 : vector<2xf32> to vector<2x1xf32>
    %92 = vector.broadcast %91 : vector<2x1xf32> to vector<2x20xf32>
    %93 = arith.cmpf oeq, %89, %92 : vector<2x20xf32>
    %c20_i32_37 = arith.constant 20 : i32
    %94 = vector.broadcast %c20_i32_37 : i32 to vector<2x20xi32>
    %95 = arith.select %93, %73, %94 : vector<2x20xi1>, vector<2x20xi32>
    %cst_38 = arith.constant dense<2147483647> : vector<2xi32>
    %96 = vector.multi_reduction <minsi>, %95, %cst_38 [1] : vector<2x20xi32> to vector<2xi32>
    %97 = vector.shape_cast %96 : vector<2xi32> to vector<2x1xi32>
    %98 = vector.broadcast %97 : vector<2x1xi32> to vector<2x20xi32>
    %99 = arith.cmpi eq, %73, %98 : vector<2x20xi32>
    %100 = arith.ori %87, %99 : vector<2x20xi1>
    %cst_39 = arith.constant -1.000000e+00 : f32
    %101 = vector.broadcast %cst_39 : f32 to vector<2x20xf32>
    %102 = arith.select %100, %101, %72 : vector<2x20xi1>, vector<2x20xf32>
    %cst_40 = arith.constant dense<0xFF800000> : vector<2xf32>
    %103 = vector.multi_reduction <maximumf>, %102, %cst_40 [1] : vector<2x20xf32> to vector<2xf32>
    %104 = vector.shape_cast %103 : vector<2xf32> to vector<2x1xf32>
    %105 = vector.broadcast %104 : vector<2x1xf32> to vector<2x20xf32>
    %106 = arith.cmpf oeq, %102, %105 : vector<2x20xf32>
    %c20_i32_41 = arith.constant 20 : i32
    %107 = vector.broadcast %c20_i32_41 : i32 to vector<2x20xi32>
    %108 = arith.select %106, %73, %107 : vector<2x20xi1>, vector<2x20xi32>
    %cst_42 = arith.constant dense<2147483647> : vector<2xi32>
    %109 = vector.multi_reduction <minsi>, %108, %cst_42 [1] : vector<2x20xi32> to vector<2xi32>
    %110 = vector.shape_cast %109 : vector<2xi32> to vector<2x1xi32>
    %111 = vector.broadcast %110 : vector<2x1xi32> to vector<2x20xi32>
    %112 = arith.cmpi eq, %73, %111 : vector<2x20xi32>
    %113 = arith.ori %100, %112 : vector<2x20xi1>
    %cst_43 = arith.constant -1.000000e+00 : f32
    %114 = vector.broadcast %cst_43 : f32 to vector<2x20xf32>
    %115 = arith.select %113, %114, %72 : vector<2x20xi1>, vector<2x20xf32>
    %cst_44 = arith.constant dense<0xFF800000> : vector<2xf32>
    %116 = vector.multi_reduction <maximumf>, %115, %cst_44 [1] : vector<2x20xf32> to vector<2xf32>
    %117 = vector.shape_cast %116 : vector<2xf32> to vector<2x1xf32>
    %118 = vector.broadcast %117 : vector<2x1xf32> to vector<2x20xf32>
    %119 = arith.cmpf oeq, %115, %118 : vector<2x20xf32>
    %c20_i32_45 = arith.constant 20 : i32
    %120 = vector.broadcast %c20_i32_45 : i32 to vector<2x20xi32>
    %121 = arith.select %119, %73, %120 : vector<2x20xi1>, vector<2x20xi32>
    %cst_46 = arith.constant dense<2147483647> : vector<2xi32>
    %122 = vector.multi_reduction <minsi>, %121, %cst_46 [1] : vector<2x20xi32> to vector<2xi32>
    %123 = vector.shape_cast %122 : vector<2xi32> to vector<2x1xi32>
    %124 = vector.broadcast %123 : vector<2x1xi32> to vector<2x20xi32>
    %125 = arith.cmpi eq, %73, %124 : vector<2x20xi32>
    %126 = arith.ori %113, %125 : vector<2x20xi1>
    %cst_47 = arith.constant -1.000000e+00 : f32
    %127 = vector.broadcast %cst_47 : f32 to vector<2x20xf32>
    %128 = arith.select %126, %127, %72 : vector<2x20xi1>, vector<2x20xf32>
    %cst_48 = arith.constant dense<0xFF800000> : vector<2xf32>
    %129 = vector.multi_reduction <maximumf>, %128, %cst_48 [1] : vector<2x20xf32> to vector<2xf32>
    %130 = vector.shape_cast %129 : vector<2xf32> to vector<2x1xf32>
    %131 = vector.broadcast %130 : vector<2x1xf32> to vector<2x20xf32>
    %132 = arith.cmpf oeq, %128, %131 : vector<2x20xf32>
    %c20_i32_49 = arith.constant 20 : i32
    %133 = vector.broadcast %c20_i32_49 : i32 to vector<2x20xi32>
    %134 = arith.select %132, %73, %133 : vector<2x20xi1>, vector<2x20xi32>
    %cst_50 = arith.constant dense<2147483647> : vector<2xi32>
    %135 = vector.multi_reduction <minsi>, %134, %cst_50 [1] : vector<2x20xi32> to vector<2xi32>
    %136 = vector.shape_cast %135 : vector<2xi32> to vector<2x1xi32>
    %137 = vector.broadcast %136 : vector<2x1xi32> to vector<2x20xi32>
    %138 = arith.cmpi eq, %73, %137 : vector<2x20xi32>
    %139 = arith.ori %126, %138 : vector<2x20xi1>
    %cst_51 = arith.constant 0.000000e+00 : f32
    %140 = vector.broadcast %cst_51 : f32 to vector<2x20xf32>
    %141 = arith.select %139, %72, %140 : vector<2x20xi1>, vector<2x20xf32>
    %cst_52 = arith.constant 5.000000e+00 : f32
    %142 = vector.broadcast %cst_52 : f32 to vector<2x1xf32>
    %143 = arith.divf %0, %142 : vector<2x1xf32>
    %cst_53 = arith.constant 1.000000e+00 : f32
    %144 = vector.broadcast %cst_53 : f32 to vector<2x1xf32>
    %145 = arith.subf %144, %143 : vector<2x1xf32>
    %cst_54 = arith.constant 5.900000e+01 : f32
    %146 = vector.broadcast %cst_54 : f32 to vector<2x1xf32>
    %147 = arith.mulf %146, %145 : vector<2x1xf32>
    %cst_55 = arith.constant 5.000000e+00 : f32
    %148 = vector.broadcast %cst_55 : f32 to vector<2x1xf32>
    %149 = arith.addf %148, %147 : vector<2x1xf32>
    %150 = arith.fptosi %149 : vector<2x1xf32> to vector<2x1xi32>
    %c5_i32 = arith.constant 5 : i32
    %c64_i32 = arith.constant 64 : i32
    %151 = vector.broadcast %c5_i32 : i32 to vector<2x1xi32>
    %152 = arith.maxsi %151, %150 : vector<2x1xi32>
    %153 = vector.broadcast %c64_i32 : i32 to vector<2x1xi32>
    %154 = arith.minsi %153, %152 : vector<2x1xi32>
    %c512_i32 = arith.constant 512 : i32
    %155 = vector.broadcast %c512_i32 : i32 to vector<2x1xi32>
    %156 = arith.muli %154, %155 : vector<2x1xi32>
    %c0_56 = arith.constant 0 : index
    %c0_57 = arith.constant 0 : index
    %157 = vector.load %arg10[%c0_56, %c0_57] : memref<20x16384xf32, #tpu.memory_space<vmem>>, vector<20x16384xf32>
    %cst_58 = arith.constant dense<0.000000e+00> : vector<2x16384xf32>
    %158 = tpu.matmul %141, %157, %cst_58 {dimension_numbers = #tpu.dot_dimension_numbers<[1], [0], [0], [1], [0, 0, 1, 1], [], []>} : vector<2x20xf32>, vector<20x16384xf32>, vector<2x16384xf32> -> vector<2x16384xf32>
    %c16384_i32 = arith.constant 16384 : i32
    %159 = arith.muli %arg0, %c16384_i32 : i32
    %160 = vector.broadcast %159 : i32 to vector<2x1xi32>
    %161 = arith.subi %156, %160 : vector<2x1xi32>
    %162 = tpu.iota {dimensions = array<i32: 1>} : vector<2x16384xi32>
    %163 = vector.broadcast %161 : vector<2x1xi32> to vector<2x16384xi32>
    %164 = arith.cmpi slt, %162, %163 : vector<2x16384xi32>
    %cst_59 = arith.constant 0.000000e+00 : f32
    %165 = vector.broadcast %cst_59 : f32 to vector<2x16384xf32>
    %166 = arith.select %164, %158, %165 : vector<2x16384xi1>, vector<2x16384xf32>
    %c0_60 = arith.constant 0 : index
    %c0_61 = arith.constant 0 : index
    %167 = vector.load %arg11[%c0_60, %c0_61] : memref<2x16384xf32, #tpu.memory_space<vmem>>, vector<2x16384xf32>
    tpu.vector_store %arg11[%c0_60, %c0_61], %166 {strides = array<i32>} : memref<2x16384xf32, #tpu.memory_space<vmem>>, vector<2x16384xf32>,
    return
  }
  func.func @transform_0(%arg0: i32) -> (i32, i32) {
    %c0_i32 = arith.constant 0 : i32
    %c0_i32_0 = arith.constant 0 : i32
    %c0_i32_1 = arith.constant 0 : i32
    return %c0_i32, %c0_i32_0 : i32, i32
  }
  func.func @transform_1(%arg0: i32) -> (i32, i32) {
    %c0_i32 = arith.constant 0 : i32
    %c0_i32_0 = arith.constant 0 : i32
    %c0_i32_1 = arith.constant 0 : i32
    return %c0_i32, %c0_i32_0 : i32, i32
  }
  func.func @transform_2(%arg0: i32) -> (i32, i32) {
    %c0_i32 = arith.constant 0 : i32
    %c0_i32_0 = arith.constant 0 : i32
    %c0_i32_1 = arith.constant 0 : i32
    return %c0_i32, %c0_i32_0 : i32, i32
  }
  func.func @transform_3(%arg0: i32) -> (i32, i32) {
    %c0_i32 = arith.constant 0 : i32
    %c0_i32_0 = arith.constant 0 : i32
    %c0_i32_1 = arith.constant 0 : i32
    return %c0_i32, %c0_i32_0 : i32, i32
  }
  func.func @transform_4(%arg0: i32) -> (i32, i32) {
    %c0_i32 = arith.constant 0 : i32
    %c0_i32_0 = arith.constant 0 : i32
    %c0_i32_1 = arith.constant 0 : i32
    return %c0_i32, %c0_i32_0 : i32, i32
  }
  func.func @transform_5(%arg0: i32) -> (i32, i32) {
    %c0_i32 = arith.constant 0 : i32
    %c0_i32_0 = arith.constant 0 : i32
    %c0_i32_1 = arith.constant 0 : i32
    return %c0_i32, %c0_i32_0 : i32, i32
  }
  func.func @transform_6(%arg0: i32) -> (i32, i32) {
    %c0_i32 = arith.constant 0 : i32
    %c0_i32_0 = arith.constant 0 : i32
    %c0_i32_1 = arith.constant 0 : i32
    return %c0_i32, %c0_i32_0 : i32, i32
  }
  func.func @transform_7(%arg0: i32) -> (i32, i32) {
    %c0_i32 = arith.constant 0 : i32
    %c0_i32_0 = arith.constant 0 : i32
    %c0_i32_1 = arith.constant 0 : i32
    return %c0_i32, %c0_i32_0 : i32, i32
  }
  func.func @transform_8(%arg0: i32) -> (i32, i32) {
    %c0_i32 = arith.constant 0 : i32
    %c0_i32_0 = arith.constant 0 : i32
    %c0_i32_1 = arith.constant 0 : i32
    return %c0_i32, %c0_i32_0 : i32, i32
  }
  func.func @transform_9(%arg0: i32) -> (i32, i32) {
    %c0_i32 = arith.constant 0 : i32
    %c0_i32_0 = arith.constant 0 : i32
    return %c0_i32, %arg0 : i32, i32
  }
  func.func @transform_10(%arg0: i32) -> (i32, i32) {
    %c0_i32 = arith.constant 0 : i32
    %c0_i32_0 = arith.constant 0 : i32
    return %c0_i32, %arg0 : i32, i32
  }
}

</mosaic_0001>

<llo_original>
// kernel: tpu_custom_call.1
$region0: #{tpu_custom_call.1}
  #allocation0 [shape = 'u32[]', space=smem, size = 0x4, offset = 0x4, fixed_abs, tag = 'smem constant byte address 0x4 - core index']
  #allocation1 [shape = 'u32[144,128]{1,0:T(1,128)}', space=vmem, size = 0x12000, scoped, tag = 'internal scratch']
  %s0 = inlined_call_operand.vmem [shape: f32[2,1], index: 0, kind: input, shape index: {}]
  %s1 = inlined_call_operand.hbm [shape: f32[1,256], index: 1, kind: input, shape index: {}]
  %s2 = inlined_call_operand.hbm [shape: f32[1,256], index: 2, kind: input, shape index: {}]
  %s3 = inlined_call_operand.hbm [shape: f32[1,256], index: 3, kind: input, shape index: {}]
  %s4 = inlined_call_operand.hbm [shape: f32[1,256], index: 4, kind: input, shape index: {}]
  %s5 = inlined_call_operand.hbm [shape: f32[256,512], index: 5, kind: input, shape index: {}]
  %s6 = inlined_call_operand.hbm [shape: f32[1,512], index: 6, kind: input, shape index: {}]
  %s7 = inlined_call_operand.hbm [shape: f32[20,512], index: 7, kind: input, shape index: {}]
  %s8 = inlined_call_operand.hbm [shape: f32[1,20], index: 8, kind: input, shape index: {}]
  %s9 = inlined_call_operand.hbm [shape: f32[20,32768], index: 9, kind: input, shape index: {}]
  %s10 = inlined_call_operand.hbm [shape: f32[2,32768], index: 10, kind: output, shape index: {}]
  %s11 = sld [smem:[#allocation0]]
  $region109: #{tpu_custom_call.1} parent=0
    _
  %s13 = ssub.s32 1, %s11
  %s14 = scalar_select 0, %s13, %s11
  $region1: #{tpu_custom_call.1} parent=0
    #allocation2 [shape = 'u8[1024]{0}', space=vmem, size = 0x400, scoped, tag = 'input window, operand 1, single buffered']
    #allocation3 [shape = 's32[2]{0}', space=sflag, size = 0x8, scoped, tag = 'scoped memory for tpu_custom_call.1']
    #allocation4 [shape = 's32[2]{0}', space=sflag, size = 0x8, scoped, tag = 'scoped memory for tpu_custom_call.1']
    #allocation5 [shape = 'u8[1024]{0}', space=vmem, size = 0x400, scoped, tag = 'input window, operand 2, single buffered']
    #allocation6 [shape = 's32[1]{0}', space=sflag, size = 0x4, scoped, tag = 'scoped memory for tpu_custom_call.1']
    #allocation7 [shape = 'u8[1024]{0}', space=vmem, size = 0x400, scoped, tag = 'input window, operand 3, single buffered']
    #allocation8 [shape = 'u8[1024]{0}', space=vmem, size = 0x400, scoped, tag = 'input window, operand 4, single buffered']
    #allocation9 [shape = 's32[1]{0}', space=sflag, size = 0x4, scoped, tag = 'scoped memory for tpu_custom_call.1']
    #allocation10 [shape = 'u8[524288]{0}', space=vmem, size = 0x80000, scoped, tag = 'input window, operand 5, single buffered']
    #allocation11 [shape = 'u8[2048]{0}', space=vmem, size = 0x800, scoped, tag = 'input window, operand 6, single buffered']
    #allocation12 [shape = 's32[1]{0}', space=sflag, size = 0x4, scoped, tag = 'scoped memory for tpu_custom_call.1']
    #allocation13 [shape = 'u8[49152]{0}', space=vmem, size = 0xc000, scoped, tag = 'input window, operand 7, single buffered']
    #allocation14 [shape = 'u8[512]{0}', space=vmem, size = 0x400, scoped, tag = 'input window, operand 8, single buffered']
    #allocation15 [shape = 's32[1]{0}', space=sflag, size = 0x4, scoped, tag = 'scoped memory for tpu_custom_call.1']
    #allocation16 [shape = 'u8[3145728]{0}', space=vmem, size = 0x300000, scoped, tag = 'input window, operand 9']
    #allocation17 [shape = 'u8[262144]{0}', space=vmem, size = 0x40000, scoped, tag = 'output window, operand 0']
    %15 = vsyncpa [#allocation3], 0
    %16 = vsyncpa [#allocation6], 0
    %17 = vsyncpa [#allocation9], 0
    %18 = vsyncpa [#allocation12], 0
    %19 = vsyncpa [#allocation15], 0
    %20 = vsyncpa [#allocation4], 0
    %s21 = scalar_lea.sflag [#allocation4], 1
    %22 = vsyncpa %s21, 0
    loop: start=0, step=1, limit=4
    $region2: #{tpu_custom_call.1} parent=1 // loop_pre_header
      _
    $region3: #{tpu_custom_call.1} parent=1 // loop_header
      %s24 = sphi 0, %s28
      %p25 = scmp.ge.s32.totalorder %s24, 4
      %s32 = sphi 0, %s32
      %s34 = sphi 0, %s32
      %s35 = sphi 0, %s34
      %s49 = sphi 0, %s35
      %s53 = sphi 0, %s53
      %s55 = sphi 0, %s53
      %s56 = sphi 0, %s55
      %s70 = sphi 0, %s56
      %s74 = sphi 0, %s74
      %s76 = sphi 0, %s74
      %s77 = sphi 0, %s76
      %s91 = sphi 0, %s77
      %s95 = sphi 0, %s95
      %s97 = sphi 0, %s95
      %s98 = sphi 0, %s97
      %s112 = sphi 0, %s98
      %s116 = sphi 0, %s116
      %s118 = sphi 0, %s116
      %s119 = sphi 0, %s118
      %s133 = sphi 0, %s119
      %s137 = sphi 0, %s137
      %s139 = sphi 0, %s137
      %s140 = sphi 0, %s139
      %s154 = sphi 0, %s140
      %s158 = sphi 0, %s158
      %s160 = sphi 0, %s158
      %s161 = sphi 0, %s160
      %s175 = sphi 0, %s161
      %s179 = sphi 0, %s179
      %s181 = sphi 0, %s179
      %s182 = sphi 0, %s181
      %s196 = sphi 0, %s182
      %s200 = sphi 0, %s200
      %s202 = sphi 0, %s200
      %s203 = sphi 0, %s202
      %s217 = sphi 0, %s203
      %s223 = sphi 0, %s225
      %s226 = sphi 0, %s223
      %s227 = sphi 0, %s226
      %s243 = sphi 0, %s227
      %s249 = sphi 0, %s251
      %s252 = sphi 0, %s249
      %s253 = sphi 0, %s252
      %s269 = sphi 0, %s253
    $region4: #{tpu_custom_call.1} parent=1 // loop_header_branch
      %27 = sbr.rel (%p25) target = $region8
    $region5: #{tpu_custom_call.1} parent=1 // loop_body
      %s29 = ssub.s32 %s24, 1
      %s30 = ssub.s32 %s24, 2
      %s31 = sadd.s32 %s24, 1
      %s33 = sadd.s32 %s32, 1
      %p36 = scmp.eq.s32.totalorder %s24, 1
      %p37 = scmp.ne.s32.totalorder %s32, %s34
      %p38 = scmp.eq.s32.totalorder %s24, 0
      %p39 = por %p37, %p38
      %p40 = scmp.ne.s32.totalorder %s32, %s34
      %p41 = scmp.eq.s32.totalorder %s29, 1
      %p42 = por %p40, %p41
      %p43 = scmp.ne.s32.totalorder %s34, %s35
      %p44 = scmp.eq.s32.totalorder %s29, 0
      %p45 = por %p43, %p44
      %p46 = scmp.ne.s32.totalorder %s34, %s35
      %p47 = scmp.eq.s32.totalorder %s30, 1
      %p48 = por %p46, %p47
      %p50 = scmp.ne.s32.totalorder %s35, %s49
      %p51 = scmp.eq.s32.totalorder %s30, 0
      %p52 = por %p50, %p51
      %s54 = sadd.s32 %s53, 1
      %p57 = scmp.eq.s32.totalorder %s24, 1
      %p58 = scmp.ne.s32.totalorder %s53, %s55
      %p59 = scmp.eq.s32.totalorder %s24, 0
      %p60 = por %p58, %p59
      %p61 = scmp.ne.s32.totalorder %s53, %s55
      %p62 = scmp.eq.s32.totalorder %s29, 1
      %p63 = por %p61, %p62
      %p64 = scmp.ne.s32.totalorder %s55, %s56
      %p65 = scmp.eq.s32.totalorder %s29, 0
      %p66 = por %p64, %p65
      %p67 = scmp.ne.s32.totalorder %s55, %s56
      %p68 = scmp.eq.s32.totalorder %s30, 1
      %p69 = por %p67, %p68
      %p71 = scmp.ne.s32.totalorder %s56, %s70
      %p72 = scmp.eq.s32.totalorder %s30, 0
      %p73 = por %p71, %p72
      %s75 = sadd.s32 %s74, 1
      %p78 = scmp.eq.s32.totalorder %s24, 1
      %p79 = scmp.ne.s32.totalorder %s74, %s76
      %p80 = scmp.eq.s32.totalorder %s24, 0
      %p81 = por %p79, %p80
      %p82 = scmp.ne.s32.totalorder %s74, %s76
      %p83 = scmp.eq.s32.totalorder %s29, 1
      %p84 = por %p82, %p83
      %p85 = scmp.ne.s32.totalorder %s76, %s77
      %p86 = scmp.eq.s32.totalorder %s29, 0
      %p87 = por %p85, %p86
      %p88 = scmp.ne.s32.totalorder %s76, %s77
      %p89 = scmp.eq.s32.totalorder %s30, 1
      %p90 = por %p88, %p89
      %p92 = scmp.ne.s32.totalorder %s77, %s91
      %p93 = scmp.eq.s32.totalorder %s30, 0
      %p94 = por %p92, %p93
      %s96 = sadd.s32 %s95, 1
      %p99 = scmp.eq.s32.totalorder %s24, 1
      %p100 = scmp.ne.s32.totalorder %s95, %s97
      %p101 = scmp.eq.s32.totalorder %s24, 0
      %p102 = por %p100, %p101
      %p103 = scmp.ne.s32.totalorder %s95, %s97
      %p104 = scmp.eq.s32.totalorder %s29, 1
      %p105 = por %p103, %p104
      %p106 = scmp.ne.s32.totalorder %s97, %s98
      %p107 = scmp.eq.s32.totalorder %s29, 0
      %p108 = por %p106, %p107
      %p109 = scmp.ne.s32.totalorder %s97, %s98
      %p110 = scmp.eq.s32.totalorder %s30, 1
      %p111 = por %p109, %p110
      %p113 = scmp.ne.s32.totalorder %s98, %s112
      %p114 = scmp.eq.s32.totalorder %s30, 0
      %p115 = por %p113, %p114
      %s117 = sadd.s32 %s116, 1
      %p120 = scmp.eq.s32.totalorder %s24, 1
      %p121 = scmp.ne.s32.totalorder %s116, %s118
      %p122 = scmp.eq.s32.totalorder %s24, 0
      %p123 = por %p121, %p122
      %p124 = scmp.ne.s32.totalorder %s116, %s118
      %p125 = scmp.eq.s32.totalorder %s29, 1
      %p126 = por %p124, %p125
      %p127 = scmp.ne.s32.totalorder %s118, %s119
      %p128 = scmp.eq.s32.totalorder %s29, 0
      %p129 = por %p127, %p128
      %p130 = scmp.ne.s32.totalorder %s118, %s119
      %p131 = scmp.eq.s32.totalorder %s30, 1
      %p132 = por %p130, %p131
      %p134 = scmp.ne.s32.totalorder %s119, %s133
      %p135 = scmp.eq.s32.totalorder %s30, 0
      %p136 = por %p134, %p135
      %s138 = sadd.s32 %s137, 1
      %p141 = scmp.eq.s32.totalorder %s24, 1
      %p142 = scmp.ne.s32.totalorder %s137, %s139
      %p143 = scmp.eq.s32.totalorder %s24, 0
      %p144 = por %p142, %p143
      %p145 = scmp.ne.s32.totalorder %s137, %s139
      %p146 = scmp.eq.s32.totalorder %s29, 1
      %p147 = por %p145, %p146
      %p148 = scmp.ne.s32.totalorder %s139, %s140
      %p149 = scmp.eq.s32.totalorder %s29, 0
      %p150 = por %p148, %p149
      %p151 = scmp.ne.s32.totalorder %s139, %s140
      %p152 = scmp.eq.s32.totalorder %s30, 1
      %p153 = por %p151, %p152
      %p155 = scmp.ne.s32.totalorder %s140, %s154
      %p156 = scmp.eq.s32.totalorder %s30, 0
      %p157 = por %p155, %p156
      %s159 = sadd.s32 %s158, 1
      %p162 = scmp.eq.s32.totalorder %s24, 1
      %p163 = scmp.ne.s32.totalorder %s158, %s160
      %p164 = scmp.eq.s32.totalorder %s24, 0
      %p165 = por %p163, %p164
      %p166 = scmp.ne.s32.totalorder %s158, %s160
      %p167 = scmp.eq.s32.totalorder %s29, 1
      %p168 = por %p166, %p167
      %p169 = scmp.ne.s32.totalorder %s160, %s161
      %p170 = scmp.eq.s32.totalorder %s29, 0
      %p171 = por %p169, %p170
      %p172 = scmp.ne.s32.totalorder %s160, %s161
      %p173 = scmp.eq.s32.totalorder %s30, 1
      %p174 = por %p172, %p173
      %p176 = scmp.ne.s32.totalorder %s161, %s175
      %p177 = scmp.eq.s32.totalorder %s30, 0
      %p178 = por %p176, %p177
      %s180 = sadd.s32 %s179, 1
      %p183 = scmp.eq.s32.totalorder %s24, 1
      %p184 = scmp.ne.s32.totalorder %s179, %s181
      %p185 = scmp.eq.s32.totalorder %s24, 0
      %p186 = por %p184, %p185
      %p187 = scmp.ne.s32.totalorder %s179, %s181
      %p188 = scmp.eq.s32.totalorder %s29, 1
      %p189 = por %p187, %p188
      %p190 = scmp.ne.s32.totalorder %s181, %s182
      %p191 = scmp.eq.s32.totalorder %s29, 0
      %p192 = por %p190, %p191
      %p193 = scmp.ne.s32.totalorder %s181, %s182
      %p194 = scmp.eq.s32.totalorder %s30, 1
      %p195 = por %p193, %p194
      %p197 = scmp.ne.s32.totalorder %s182, %s196
      %p198 = scmp.eq.s32.totalorder %s30, 0
      %p199 = por %p197, %p198
      %s201 = sadd.s32 %s200, 1
      %p204 = scmp.eq.s32.totalorder %s24, 1
      %p205 = scmp.ne.s32.totalorder %s200, %s202
      %p206 = scmp.eq.s32.totalorder %s24, 0
      %p207 = por %p205, %p206
      %p208 = scmp.ne.s32.totalorder %s200, %s202
      %p209 = scmp.eq.s32.totalorder %s29, 1
      %p210 = por %p208, %p209
      %p211 = scmp.ne.s32.totalorder %s202, %s203
      %p212 = scmp.eq.s32.totalorder %s29, 0
      %p213 = por %p211, %p212
      %p214 = scmp.ne.s32.totalorder %s202, %s203
      %p215 = scmp.eq.s32.totalorder %s30, 1
      %p216 = por %p214, %p215
      %p218 = scmp.ne.s32.totalorder %s203, %s217
      %p219 = scmp.eq.s32.totalorder %s30, 0
      %p220 = por %p218, %p219
      %s221 = ssub.s32 %s24, %s31
      %p222 = scmp.eq.s32.totalorder %s221, 0
      %s224 = sadd.s32 %s223, 1
      %s225 = scalar_select %p222, %s223, %s224
      %p228 = pneg %p222
      %p229 = scmp.eq.s32.totalorder %s24, 1
      %p230 = por %p228, %p229
      %p231 = scmp.ne.s32.totalorder %s223, %s226
      %p232 = scmp.eq.s32.totalorder %s24, 0
      %p233 = por %p231, %p232
      %p234 = scmp.ne.s32.totalorder %s223, %s226
      %p235 = scmp.eq.s32.totalorder %s29, 1
      %p236 = por %p234, %p235
      %p237 = scmp.ne.s32.totalorder %s226, %s227
      %p238 = scmp.eq.s32.totalorder %s29, 0
      %p239 = por %p237, %p238
      %p240 = scmp.ne.s32.totalorder %s226, %s227
      %p241 = scmp.eq.s32.totalorder %s30, 1
      %p242 = por %p240, %p241
      %p244 = scmp.ne.s32.totalorder %s227, %s243
      %p245 = scmp.eq.s32.totalorder %s30, 0
      %p246 = por %p244, %p245
      %s247 = ssub.s32 %s24, %s31
      %p248 = scmp.eq.s32.totalorder %s247, 0
      %s250 = sadd.s32 %s249, 1
      %s251 = scalar_select %p248, %s249, %s250
      %p254 = pneg %p248
      %p255 = scmp.eq.s32.totalorder %s24, 1
      %p256 = por %p254, %p255
      %p257 = scmp.ne.s32.totalorder %s249, %s252
      %p258 = scmp.eq.s32.totalorder %s24, 0
      %p259 = por %p257, %p258
      %p260 = scmp.ne.s32.totalorder %s249, %s252
      %p261 = scmp.eq.s32.totalorder %s29, 1
      %p262 = por %p260, %p261
      %p263 = scmp.ne.s32.totalorder %s252, %s253
      %p264 = scmp.eq.s32.totalorder %s29, 0
      %p265 = por %p263, %p264
      %p266 = scmp.ne.s32.totalorder %s252, %s253
      %p267 = scmp.eq.s32.totalorder %s30, 1
      %p268 = por %p266, %p267
      %p270 = scmp.ne.s32.totalorder %s253, %s269
      %p271 = scmp.eq.s32.totalorder %s30, 0
      %p272 = por %p270, %p271
      %p273 = scmp.le.s32.totalorder 1, %s24
      %p274 = scmp.lt.s32.totalorder %s24, 3
      %p275 = pnand %p273, %p274
      %p276 = pneg %p275
      // Predicated region
      $region9: #{tpu_custom_call.1} parent=5 // pred_check
        _
      $region10: #{tpu_custom_call.1} parent=5 // pred_check_branch
        %278 = sbr.rel (%p275) target = $region12
      $region11: #{tpu_custom_call.1} parent=5 // pred_region
        %s279 = ssub.s32 %s24, 1
        // Predicated region
        $region13: #{tpu_custom_call.1} parent=11 // pred_check
          %p280 = pneg %p45
        $region14: #{tpu_custom_call.1} parent=11 // pred_check_branch
          %282 = sbr.rel (%p280) target = $region16
        $region15: #{tpu_custom_call.1} parent=11 // pred_region
          _
        $region16: #{tpu_custom_call.1} parent=11 // pred_fallthru
          _
        // Predicated region
        $region17: #{tpu_custom_call.1} parent=11 // pred_check
          %p283 = pneg %p66
        $region18: #{tpu_custom_call.1} parent=11 // pred_check_branch
          %285 = sbr.rel (%p283) target = $region20
        $region19: #{tpu_custom_call.1} parent=11 // pred_region
          %s287 = ssub.s32 32, 32
          %288 = vsyncadd [#allocation3], %s287
          %s290 = sshll.u32 [#allocation2], 4
          %s291 = int_to_ptr.vmem [resolvable:$true] %s290
          %293 = dma.hbm_to_vmem [thread:$0]  %s1, 32, %s291, [#allocation3]
        $region20: #{tpu_custom_call.1} parent=11 // pred_fallthru
          _
        // Predicated region
        $region21: #{tpu_custom_call.1} parent=11 // pred_check
          %p294 = pneg %p87
        $region22: #{tpu_custom_call.1} parent=11 // pred_check_branch
          %296 = sbr.rel (%p294) target = $region24
        $region23: #{tpu_custom_call.1} parent=11 // pred_region
          %s298 = ssub.s32 32, 32
          %299 = vsyncadd [#allocation6], %s298
          %s301 = sshll.u32 [#allocation5], 4
          %s302 = int_to_ptr.vmem [resolvable:$true] %s301
          %304 = dma.hbm_to_vmem [thread:$0]  %s2, 32, %s302, [#allocation6]
        $region24: #{tpu_custom_call.1} parent=11 // pred_fallthru
          _
        // Predicated region
        $region25: #{tpu_custom_call.1} parent=11 // pred_check
          %p305 = pneg %p108
        $region26: #{tpu_custom_call.1} parent=11 // pred_check_branch
          %307 = sbr.rel (%p305) target = $region28
        $region27: #{tpu_custom_call.1} parent=11 // pred_region
          %s309 = ssub.s32 32, 32
          %310 = vsyncadd [#allocation6], %s309
          %s312 = sshll.u32 [#allocation7], 4
          %s313 = int_to_ptr.vmem [resolvable:$true] %s312
          %315 = dma.hbm_to_vmem [thread:$0]  %s3, 32, %s313, [#allocation6]
        $region28: #{tpu_custom_call.1} parent=11 // pred_fallthru
          _
        // Predicated region
        $region29: #{tpu_custom_call.1} parent=11 // pred_check
          %p316 = pneg %p129
        $region30: #{tpu_custom_call.1} parent=11 // pred_check_branch
          %318 = sbr.rel (%p316) target = $region32
        $region31: #{tpu_custom_call.1} parent=11 // pred_region
          %s320 = ssub.s32 32, 32
          %321 = vsyncadd [#allocation9], %s320
          %s323 = sshll.u32 [#allocation8], 4
          %s324 = int_to_ptr.vmem [resolvable:$true] %s323
          %326 = dma.hbm_to_vmem [thread:$0]  %s4, 32, %s324, [#allocation9]
        $region32: #{tpu_custom_call.1} parent=11 // pred_fallthru
          _
        // Predicated region
        $region33: #{tpu_custom_call.1} parent=11 // pred_check
          %p327 = pneg %p150
        $region34: #{tpu_custom_call.1} parent=11 // pred_check_branch
          %329 = sbr.rel (%p327) target = $region36
        $region35: #{tpu_custom_call.1} parent=11 // pred_region
          %s331 = ssub.s32 16384, 16384
          %332 = vsyncadd [#allocation9], %s331
          %s333 = sshll.u32 [#allocation10], 4
          %s334 = int_to_ptr.vmem [resolvable:$true] %s333
          %339 = dma.hbm_to_vmem [thread:$0]  %s5, 16384, %s334, [#allocation9], 512, 512, 32
        $region36: #{tpu_custom_call.1} parent=11 // pred_fallthru
          _
        // Predicated region
        $region37: #{tpu_custom_call.1} parent=11 // pred_check
          %p340 = pneg %p171
        $region38: #{tpu_custom_call.1} parent=11 // pred_check_branch
          %342 = sbr.rel (%p340) target = $region40
        $region39: #{tpu_custom_call.1} parent=11 // pred_region
          %s344 = ssub.s32 64, 64
          %345 = vsyncadd [#allocation12], %s344
          %s347 = sshll.u32 [#allocation11], 4
          %s348 = int_to_ptr.vmem [resolvable:$true] %s347
          %350 = dma.hbm_to_vmem [thread:$0]  %s6, 64, %s348, [#allocation12]
        $region40: #{tpu_custom_call.1} parent=11 // pred_fallthru
          _
        // Predicated region
        $region41: #{tpu_custom_call.1} parent=11 // pred_check
          %p351 = pneg %p192
        $region42: #{tpu_custom_call.1} parent=11 // pred_check_branch
          %353 = sbr.rel (%p351) target = $region44
        $region43: #{tpu_custom_call.1} parent=11 // pred_region
          %s355 = ssub.s32 1536, 1536
          %356 = vsyncadd [#allocation12], %s355
          %s357 = sshll.u32 [#allocation13], 4
          %s358 = int_to_ptr.vmem [resolvable:$true] %s357
          %363 = dma.hbm_to_vmem [thread:$0]  %s7, 1536, %s358, [#allocation12], 512, 512, 32
        $region44: #{tpu_custom_call.1} parent=11 // pred_fallthru
          _
        // Predicated region
        $region45: #{tpu_custom_call.1} parent=11 // pred_check
          %p364 = pneg %p213
        $region46: #{tpu_custom_call.1} parent=11 // pred_check_branch
          %366 = sbr.rel (%p364) target = $region48
        $region47: #{tpu_custom_call.1} parent=11 // pred_region
          %s368 = ssub.s32 16, 16
          %369 = vsyncadd [#allocation15], %s368
          %s371 = sshll.u32 [#allocation14], 4
          %s372 = int_to_ptr.vmem [resolvable:$true] %s371
          %374 = dma.hbm_to_vmem [thread:$0]  %s8, 16, %s372, [#allocation15]
        $region48: #{tpu_custom_call.1} parent=11 // pred_fallthru
          _
      $region12: #{tpu_custom_call.1} parent=5 // pred_fallthru
        _
      %p375 = scmp.lt.s32.totalorder %s24, 2
      // Predicated region
      $region49: #{tpu_custom_call.1} parent=5 // pred_check
        %p376 = pneg %p375
      $region50: #{tpu_custom_call.1} parent=5 // pred_check_branch
        %378 = sbr.rel (%p376) target = $region52
      $region51: #{tpu_custom_call.1} parent=5 // pred_region
        // Predicated region
        $region53: #{tpu_custom_call.1} parent=51 // pred_check
          %p379 = pneg %p233
        $region54: #{tpu_custom_call.1} parent=51 // pred_check_branch
          %381 = sbr.rel (%p379) target = $region56
        $region55: #{tpu_custom_call.1} parent=51 // pred_region
          %s382 = sand.u32 %s24, 1
          %s383 = scalar_lea.sflag [#allocation3], %s382
          %s384 = sand.u32 %s223, 1
          %s385 = smul.addr %s384, 3072
          %s386 = scalar_lea.vmem [#allocation16], %s385
          %s387 = smul.u32 128, %s24
          %s389 = ssub.s32 49152, 49152
          %390 = vsyncadd %s383, %s389
          %s391 = smul.addr %s387, 128
          %s392 = scalar_lea.hbm %s9, %s391
          %s393 = sshll.u32 %s386, 4
          %s394 = int_to_ptr.vmem [resolvable:$true] %s393
          %399 = dma.hbm_to_vmem [thread:$0]  %s392, 49152, %s394, %s383, 32768, 16384, 1024
        $region56: #{tpu_custom_call.1} parent=51 // pred_fallthru
          _
      $region52: #{tpu_custom_call.1} parent=5 // pred_fallthru
        _
      %p400 = scmp.le.s32.totalorder 1, %s24
      %p401 = scmp.lt.s32.totalorder %s24, 3
      %p402 = pnand %p400, %p401
      %p403 = pneg %p402
      // Predicated region
      $region57: #{tpu_custom_call.1} parent=5 // pred_check
        _
      $region58: #{tpu_custom_call.1} parent=5 // pred_check_branch
        %405 = sbr.rel (%p402) target = $region60
      $region59: #{tpu_custom_call.1} parent=5 // pred_region
        %s406 = ssub.s32 %s24, 1
        // Predicated region
        $region61: #{tpu_custom_call.1} parent=59 // pred_check
          %p407 = pneg %p66
        $region62: #{tpu_custom_call.1} parent=59 // pred_check_branch
          %409 = sbr.rel (%p407) target = $region64
        $region63: #{tpu_custom_call.1} parent=59 // pred_region
          %410 = dma.done [#allocation3], 32
        $region64: #{tpu_custom_call.1} parent=59 // pred_fallthru
          _
        // Predicated region
        $region65: #{tpu_custom_call.1} parent=59 // pred_check
          %p411 = pneg %p87
        $region66: #{tpu_custom_call.1} parent=59 // pred_check_branch
          %413 = sbr.rel (%p411) target = $region68
        $region67: #{tpu_custom_call.1} parent=59 // pred_region
          %414 = dma.done [#allocation6], 32
        $region68: #{tpu_custom_call.1} parent=59 // pred_fallthru
          _
        // Predicated region
        $region69: #{tpu_custom_call.1} parent=59 // pred_check
          %p415 = pneg %p108
        $region70: #{tpu_custom_call.1} parent=59 // pred_check_branch
          %417 = sbr.rel (%p415) target = $region72
        $region71: #{tpu_custom_call.1} parent=59 // pred_region
          %418 = dma.done [#allocation6], 32
        $region72: #{tpu_custom_call.1} parent=59 // pred_fallthru
          _
        // Predicated region
        $region73: #{tpu_custom_call.1} parent=59 // pred_check
          %p419 = pneg %p129
        $region74: #{tpu_custom_call.1} parent=59 // pred_check_branch
          %421 = sbr.rel (%p419) target = $region76
        $region75: #{tpu_custom_call.1} parent=59 // pred_region
          %422 = dma.done [#allocation9], 32
        $region76: #{tpu_custom_call.1} parent=59 // pred_fallthru
          _
        // Predicated region
        $region77: #{tpu_custom_call.1} parent=59 // pred_check
          %p423 = pneg %p150
        $region78: #{tpu_custom_call.1} parent=59 // pred_check_branch
          %425 = sbr.rel (%p423) target = $region80
        $region79: #{tpu_custom_call.1} parent=59 // pred_region
          %426 = dma.done [#allocation9], 16384
        $region80: #{tpu_custom_call.1} parent=59 // pred_fallthru
          _
        // Predicated region
        $region81: #{tpu_custom_call.1} parent=59 // pred_check
          %p427 = pneg %p171
        $region82: #{tpu_custom_call.1} parent=59 // pred_check_branch
          %429 = sbr.rel (%p427) target = $region84
        $region83: #{tpu_custom_call.1} parent=59 // pred_region
          %430 = dma.done [#allocation12], 64
        $region84: #{tpu_custom_call.1} parent=59 // pred_fallthru
          _
        // Predicated region
        $region85: #{tpu_custom_call.1} parent=59 // pred_check
          %p431 = pneg %p192
        $region86: #{tpu_custom_call.1} parent=59 // pred_check_branch
          %433 = sbr.rel (%p431) target = $region88
        $region87: #{tpu_custom_call.1} parent=59 // pred_region
          %434 = dma.done [#allocation12], 1536
        $region88: #{tpu_custom_call.1} parent=59 // pred_fallthru
          _
        // Predicated region
        $region89: #{tpu_custom_call.1} parent=59 // pred_check
          %p435 = pneg %p213
        $region90: #{tpu_custom_call.1} parent=59 // pred_check_branch
          %437 = sbr.rel (%p435) target = $region92
        $region91: #{tpu_custom_call.1} parent=59 // pred_region
          %438 = dma.done [#allocation15], 16
        $region92: #{tpu_custom_call.1} parent=59 // pred_fallthru
          _
        %s439 = sand.u32 %s29, 1
        %s440 = scalar_lea.sflag [#allocation3], %s439
        %s441 = sand.u32 %s226, 1
        %s442 = smul.addr %s441, 3072
        %s443 = scalar_lea.vmem [#allocation16], %s442
        // Predicated region
        $region93: #{tpu_custom_call.1} parent=59 // pred_check
          %p444 = pneg %p239
        $region94: #{tpu_custom_call.1} parent=59 // pred_check_branch
          %446 = sbr.rel (%p444) target = $region96
        $region95: #{tpu_custom_call.1} parent=59 // pred_region
          %447 = dma.done %s440, 49152
        $region96: #{tpu_custom_call.1} parent=59 // pred_fallthru
          _
        %p448 = pneg %p45
        %p449 = pneg %p42
        %p450 = pneg %p66
        %p451 = pneg %p63
        %p452 = pneg %p87
        %p453 = pneg %p84
        %p454 = pneg %p108
        %p455 = pneg %p105
        %p456 = pneg %p129
        %p457 = pneg %p126
        %p458 = pneg %p150
        %p459 = pneg %p147
        %p460 = pneg %p171
        %p461 = pneg %p168
        %p462 = pneg %p192
        %p463 = pneg %p189
        %p464 = pneg %p213
        %p465 = pneg %p210
        %s466 = sand.u32 %s29, 1
        %s467 = scalar_lea.sflag [#allocation3], %s466
        %s468 = sand.u32 %s226, 1
        %s469 = smul.addr %s468, 3072
        %s470 = scalar_lea.vmem [#allocation16], %s469
        %p471 = pneg %p239
        %p472 = pneg %p236
        %p473 = pneg %p265
        %p474 = pneg %p262
        %s475 = sand.u32 %s252, 1
        %s476 = scalar_lea.sflag [#allocation4], %s475
        %s477 = sand.u32 %s252, 1
        %s478 = smul.addr %s477, 256
        %s479 = scalar_lea.vmem [#allocation17], %s478
        %s480 = smul.u32 128, %s29
        %s481 = smul.u32 128, %s29
        %v482 = vld [vmem:[%s0] sm:$0x3]
        %v483 = vld [vmem:[#allocation2] sm:$0x3]
        %485 = vset.pattern.permute.xlu0 0
        %486 = vperm.xlu0 %485, %v482
        %v487 = vpop.permute.xlu0 %486
        %v490 = vlaneseq
        %v491 = vshrl.u32 %v490, 7
        %v492 = vsub.s32 0, %v491
        %v493 = vrot.slane %v483, %v492
        %v494 = vlaneseq
        %v495 = vshrl.u32 %v494, 7
        %v496 = vsub.s32 1, %v495
        %v497 = vrot.slane %v483, %v496
        %v500 = vmul.f32 %v487, %v493
        %v501 = vmul.f32 %v487, %v497
        %v502 = vld [vmem:[#allocation5] sm:$0x3]
        %v504 = vlaneseq
        %v505 = vshrl.u32 %v504, 7
        %v506 = vsub.s32 0, %v505
        %v507 = vrot.slane %v502, %v506
        %v508 = vlaneseq
        %v509 = vshrl.u32 %v508, 7
        %v510 = vsub.s32 1, %v509
        %v511 = vrot.slane %v502, %v510
        %v514 = vadd.f32 %v500, %v507
        %v515 = vadd.f32 %v501, %v511
        %vm516 = vcmask 1041408
        %v517 = vsel %vm516, %v514, 0.0
        %v518 = vsel %vm516, %v515, 0.0
        %v519 = vadd.f32 %v517, %v518
        %520 = vadd.xlane.f32.xlu0 %v519
        %v521 = vpop.xlane.xlu0 %520
        %v522 = vrcp.pop 256.0
        %v523 = vmul.f32 %v521, %v522
        %v524 = vsub.f32 %v514, %v523
        %v525 = vsub.f32 %v515, %v523
        %v526 = vmul.f32 %v524, %v524
        %v527 = vmul.f32 %v525, %v525
        %v528 = vsel %vm516, %v526, 0.0
        %v529 = vsel %vm516, %v527, 0.0
        %v530 = vadd.f32 %v528, %v529
        %531 = vadd.xlane.f32.xlu0 %v530
        %v532 = vpop.xlane.xlu0 %531
        %v533 = vmul.f32 %v532, %v522
        %v534 = vadd.f32 %v533, 1e-05
        %v535 = vrsqrt.pop %v534
        %v536 = vmul.f32 %v534, %v535
        %vm537 = vcmp.eq.f32.partialorder %v534, inf
        %v538 = vsel %vm537, %v534, %v536
        %vm539 = vcmp.eq.f32.partialorder %v534, 0.0
        %v540 = vand.u32 %v534, 2147483648
        %v541 = vsel %vm539, %v540, %v538
        %v542 = vrcp.pop %v541
        %v543 = vmul.f32 %v524, %v542
        %v544 = vmul.f32 %v525, %v542
        %v545 = vld [vmem:[#allocation7] sm:$0x3]
        %v547 = vlaneseq
        %v548 = vshrl.u32 %v547, 7
        %v549 = vsub.s32 0, %v548
        %v550 = vrot.slane %v545, %v549
        %v551 = vlaneseq
        %v552 = vshrl.u32 %v551, 7
        %v553 = vsub.s32 1, %v552
        %v554 = vrot.slane %v545, %v553
        %v557 = vmul.f32 %v543, %v550
        %v558 = vmul.f32 %v544, %v554
        %v559 = vld [vmem:[#allocation8] sm:$0x3]
        %v561 = vlaneseq
        %v562 = vshrl.u32 %v561, 7
        %v563 = vsub.s32 0, %v562
        %v564 = vrot.slane %v559, %v563
        %v565 = vlaneseq
        %v566 = vshrl.u32 %v565, 7
        %v567 = vsub.s32 1, %v566
        %v568 = vrot.slane %v559, %v567
        %v571 = vadd.f32 %v557, %v564
        %v572 = vadd.f32 %v558, %v568
        %v573 = vmax.f32 %v571, 0.0
        %v574 = vmax.f32 %v572, 0.0
        %v575 = vld [vmem:[#allocation10] sm:$0xff]
        %v576 = vld [vmem:[#allocation10 + $0x8] sm:$0xff]
        %v577 = vld [vmem:[#allocation10 + $0x10] sm:$0xff]
        %v578 = vld [vmem:[#allocation10 + $0x18] sm:$0xff]
        %v579 = vld [vmem:[#allocation10 + $0x20] sm:$0xff]
        %v580 = vld [vmem:[#allocation10 + $0x28] sm:$0xff]
        %v581 = vld [vmem:[#allocation10 + $0x30] sm:$0xff]
        %v582 = vld [vmem:[#allocation10 + $0x38] sm:$0xff]
        %v583 = vld [vmem:[#allocation10 + $0x40] sm:$0xff]
        %v584 = vld [vmem:[#allocation10 + $0x48] sm:$0xff]
        %v585 = vld [vmem:[#allocation10 + $0x50] sm:$0xff]
        %v586 = vld [vmem:[#allocation10 + $0x58] sm:$0xff]
        %v587 = vld [vmem:[#allocation10 + $0x60] sm:$0xff]
        %v588 = vld [vmem:[#allocation10 + $0x68] sm:$0xff]
        %v589 = vld [vmem:[#allocation10 + $0x70] sm:$0xff]
        %v590 = vld [vmem:[#allocation10 + $0x78] sm:$0xff]
        %v591 = vld [vmem:[#allocation10 + $0x80] sm:$0xff]
        %v592 = vld [vmem:[#allocation10 + $0x88] sm:$0xff]
        %v593 = vld [vmem:[#allocation10 + $0x90] sm:$0xff]
        %v594 = vld [vmem:[#allocation10 + $0x98] sm:$0xff]
        %v595 = vld [vmem:[#allocation10 + $0xa0] sm:$0xff]
        %v596 = vld [vmem:[#allocation10 + $0xa8] sm:$0xff]
        %v597 = vld [vmem:[#allocation10 + $0xb0] sm:$0xff]
        %v598 = vld [vmem:[#allocation10 + $0xb8] sm:$0xff]
        %v599 = vld [vmem:[#allocation10 + $0xc0] sm:$0xff]
        %v600 = vld [vmem:[#allocation10 + $0xc8] sm:$0xff]
        %v601 = vld [vmem:[#allocation10 + $0xd0] sm:$0xff]
        %v602 = vld [vmem:[#allocation10 + $0xd8] sm:$0xff]
        %v603 = vld [vmem:[#allocation10 + $0xe0] sm:$0xff]
        %v604 = vld [vmem:[#allocation10 + $0xe8] sm:$0xff]
        %v605 = vld [vmem:[#allocation10 + $0xf0] sm:$0xff]
        %v606 = vld [vmem:[#allocation10 + $0xf8] sm:$0xff]
        %v607 = vld [vmem:[#allocation10 + $0x100] sm:$0xff]
        %v608 = vld [vmem:[#allocation10 + $0x108] sm:$0xff]
        %v609 = vld [vmem:[#allocation10 + $0x110] sm:$0xff]
        %v610 = vld [vmem:[#allocation10 + $0x118] sm:$0xff]
        %v611 = vld [vmem:[#allocation10 + $0x120] sm:$0xff]
        %v612 = vld [vmem:[#allocation10 + $0x128] sm:$0xff]
        %v613 = vld [vmem:[#allocation10 + $0x130] sm:$0xff]
        %v614 = vld [vmem:[#allocation10 + $0x138] sm:$0xff]
        %v615 = vld [vmem:[#allocation10 + $0x140] sm:$0xff]
        %v616 = vld [vmem:[#allocation10 + $0x148] sm:$0xff]
        %v617 = vld [vmem:[#allocation10 + $0x150] sm:$0xff]
        %v618 = vld [vmem:[#allocation10 + $0x158] sm:$0xff]
        %v619 = vld [vmem:[#allocation10 + $0x160] sm:$0xff]
        %v620 = vld [vmem:[#allocation10 + $0x168] sm:$0xff]
        %v621 = vld [vmem:[#allocation10 + $0x170] sm:$0xff]
        %v622 = vld [vmem:[#allocation10 + $0x178] sm:$0xff]
        %v623 = vld [vmem:[#allocation10 + $0x180] sm:$0xff]
        %v624 = vld [vmem:[#allocation10 + $0x188] sm:$0xff]
        %v625 = vld [vmem:[#allocation10 + $0x190] sm:$0xff]
        %v626 = vld [vmem:[#allocation10 + $0x198] sm:$0xff]
        %v627 = vld [vmem:[#allocation10 + $0x1a0] sm:$0xff]
        %v628 = vld [vmem:[#allocation10 + $0x1a8] sm:$0xff]
        %v629 = vld [vmem:[#allocation10 + $0x1b0] sm:$0xff]
        %v630 = vld [vmem:[#allocation10 + $0x1b8] sm:$0xff]
        %v631 = vld [vmem:[#allocation10 + $0x1c0] sm:$0xff]
        %v632 = vld [vmem:[#allocation10 + $0x1c8] sm:$0xff]
        %v633 = vld [vmem:[#allocation10 + $0x1d0] sm:$0xff]
        %v634 = vld [vmem:[#allocation10 + $0x1d8] sm:$0xff]
        %v635 = vld [vmem:[#allocation10 + $0x1e0] sm:$0xff]
        %v636 = vld [vmem:[#allocation10 + $0x1e8] sm:$0xff]
        %v637 = vld [vmem:[#allocation10 + $0x1f0] sm:$0xff]
        %v638 = vld [vmem:[#allocation10 + $0x1f8] sm:$0xff]
        %v639 = vld [vmem:[#allocation10 + $0x200] sm:$0xff]
        %v640 = vld [vmem:[#allocation10 + $0x208] sm:$0xff]
        %v641 = vld [vmem:[#allocation10 + $0x210] sm:$0xff]
        %v642 = vld [vmem:[#allocation10 + $0x218] sm:$0xff]
        %v643 = vld [vmem:[#allocation10 + $0x220] sm:$0xff]
        %v644 = vld [vmem:[#allocation10 + $0x228] sm:$0xff]
        %v645 = vld [vmem:[#allocation10 + $0x230] sm:$0xff]
        %v646 = vld [vmem:[#allocation10 + $0x238] sm:$0xff]
        %v647 = vld [vmem:[#allocation10 + $0x240] sm:$0xff]
        %v648 = vld [vmem:[#allocation10 + $0x248] sm:$0xff]
        %v649 = vld [vmem:[#allocation10 + $0x250] sm:$0xff]
        %v650 = vld [vmem:[#allocation10 + $0x258] sm:$0xff]
        %v651 = vld [vmem:[#allocation10 + $0x260] sm:$0xff]
        %v652 = vld [vmem:[#allocation10 + $0x268] sm:$0xff]
        %v653 = vld [vmem:[#allocation10 + $0x270] sm:$0xff]
        %v654 = vld [vmem:[#allocation10 + $0x278] sm:$0xff]
        %v655 = vld [vmem:[#allocation10 + $0x280] sm:$0xff]
        %v656 = vld [vmem:[#allocation10 + $0x288] sm:$0xff]
        %v657 = vld [vmem:[#allocation10 + $0x290] sm:$0xff]
        %v658 = vld [vmem:[#allocation10 + $0x298] sm:$0xff]
        %v659 = vld [vmem:[#allocation10 + $0x2a0] sm:$0xff]
        %v660 = vld [vmem:[#allocation10 + $0x2a8] sm:$0xff]
        %v661 = vld [vmem:[#allocation10 + $0x2b0] sm:$0xff]
        %v662 = vld [vmem:[#allocation10 + $0x2b8] sm:$0xff]
        %v663 = vld [vmem:[#allocation10 + $0x2c0] sm:$0xff]
        %v664 = vld [vmem:[#allocation10 + $0x2c8] sm:$0xff]
        %v665 = vld [vmem:[#allocation10 + $0x2d0] sm:$0xff]
        %v666 = vld [vmem:[#allocation10 + $0x2d8] sm:$0xff]
        %v667 = vld [vmem:[#allocation10 + $0x2e0] sm:$0xff]
        %v668 = vld [vmem:[#allocation10 + $0x2e8] sm:$0xff]
        %v669 = vld [vmem:[#allocation10 + $0x2f0] sm:$0xff]
        %v670 = vld [vmem:[#allocation10 + $0x2f8] sm:$0xff]
        %v671 = vld [vmem:[#allocation10 + $0x300] sm:$0xff]
        %v672 = vld [vmem:[#allocation10 + $0x308] sm:$0xff]
        %v673 = vld [vmem:[#allocation10 + $0x310] sm:$0xff]
        %v674 = vld [vmem:[#allocation10 + $0x318] sm:$0xff]
        %v675 = vld [vmem:[#allocation10 + $0x320] sm:$0xff]
        %v676 = vld [vmem:[#allocation10 + $0x328] sm:$0xff]
        %v677 = vld [vmem:[#allocation10 + $0x330] sm:$0xff]
        %v678 = vld [vmem:[#allocation10 + $0x338] sm:$0xff]
        %v679 = vld [vmem:[#allocation10 + $0x340] sm:$0xff]
        %v680 = vld [vmem:[#allocation10 + $0x348] sm:$0xff]
        %v681 = vld [vmem:[#allocation10 + $0x350] sm:$0xff]
        %v682 = vld [vmem:[#allocation10 + $0x358] sm:$0xff]
        %v683 = vld [vmem:[#allocation10 + $0x360] sm:$0xff]
        %v684 = vld [vmem:[#allocation10 + $0x368] sm:$0xff]
        %v685 = vld [vmem:[#allocation10 + $0x370] sm:$0xff]
        %v686 = vld [vmem:[#allocation10 + $0x378] sm:$0xff]
        %v687 = vld [vmem:[#allocation10 + $0x380] sm:$0xff]
        %v688 = vld [vmem:[#allocation10 + $0x388] sm:$0xff]
        %v689 = vld [vmem:[#allocation10 + $0x390] sm:$0xff]
        %v690 = vld [vmem:[#allocation10 + $0x398] sm:$0xff]
        %v691 = vld [vmem:[#allocation10 + $0x3a0] sm:$0xff]
        %v692 = vld [vmem:[#allocation10 + $0x3a8] sm:$0xff]
        %v693 = vld [vmem:[#allocation10 + $0x3b0] sm:$0xff]
        %v694 = vld [vmem:[#allocation10 + $0x3b8] sm:$0xff]
        %v695 = vld [vmem:[#allocation10 + $0x3c0] sm:$0xff]
        %v696 = vld [vmem:[#allocation10 + $0x3c8] sm:$0xff]
        %v697 = vld [vmem:[#allocation10 + $0x3d0] sm:$0xff]
        %v698 = vld [vmem:[#allocation10 + $0x3d8] sm:$0xff]
        %v699 = vld [vmem:[#allocation10 + $0x3e0] sm:$0xff]
        %v700 = vld [vmem:[#allocation10 + $0x3e8] sm:$0xff]
        %v701 = vld [vmem:[#allocation10 + $0x3f0] sm:$0xff]
        %v702 = vld [vmem:[#allocation10 + $0x3f8] sm:$0xff]
        %v703 = vld [vmem:[#allocation11] sm:$0xf]
        %v705 = vlaneseq
        %v706 = vshrl.u32 %v705, 7
        %v707 = vsub.s32 0, %v706
        %v708 = vrot.slane %v703, %v707
        %v709 = vlaneseq
        %v710 = vshrl.u32 %v709, 7
        %v711 = vsub.s32 1, %v710
        %v712 = vrot.slane %v703, %v711
        %v713 = vlaneseq
        %v714 = vshrl.u32 %v713, 7
        %v715 = vsub.s32 2, %v714
        %v716 = vrot.slane %v703, %v715
        %v717 = vlaneseq
        %v718 = vshrl.u32 %v717, 7
        %v719 = vsub.s32 3, %v718
        %v720 = vrot.slane %v703, %v719
        %725 = vmatprep.subr.mxu0 %v576
        %726 = vmatpush1.msra.mxu0 %v575
        %727 = vmatprep.subr.mxu0 %v580
        %728 = vmatpush1.msra.mxu0 %v579
        %729 = vmatprep.subr.mxu0 %v584
        %730 = vmatpush1.msra.mxu0 %v583
        %731 = vmatprep.subr.mxu0 %v588
        %732 = vmatpush1.msra.mxu0 %v587
        %733 = vmatprep.subr.mxu0 %v592
        %734 = vmatpush1.msra.mxu0 %v591
        %735 = vmatprep.subr.mxu0 %v596
        %736 = vmatpush1.msra.mxu0 %v595
        %737 = vmatprep.subr.mxu0 %v600
        %738 = vmatpush1.msra.mxu0 %v599
        %739 = vmatprep.subr.mxu0 %v604
        %740 = vmatpush1.msra.mxu0 %v603
        %741 = vmatprep.subr.mxu0 %v608
        %742 = vmatpush1.msra.mxu0 %v607
        %743 = vmatprep.subr.mxu0 %v612
        %744 = vmatpush1.msra.mxu0 %v611
        %745 = vmatprep.subr.mxu0 %v616
        %746 = vmatpush1.msra.mxu0 %v615
        %747 = vmatprep.subr.mxu0 %v620
        %748 = vmatpush1.msra.mxu0 %v619
        %749 = vmatprep.subr.mxu0 %v624
        %750 = vmatpush1.msra.mxu0 %v623
        %751 = vmatprep.subr.mxu0 %v628
        %752 = vmatpush1.msra.mxu0 %v627
        %753 = vmatprep.subr.mxu0 %v632
        %754 = vmatpush1.msra.mxu0 %v631
        %755 = vmatprep.subr.mxu0 %v636
        %756 = vmatpush1.msra.mxu0 %v635
        %757 = vmatprep.subr.mxu0 %v640
        %758 = vmatpush1.msra.mxu0 %v639
        %759 = vmatprep.subr.mxu0 %v644
        %760 = vmatpush1.msra.mxu0 %v643
        %761 = vmatprep.subr.mxu0 %v648
        %762 = vmatpush1.msra.mxu0 %v647
        %763 = vmatprep.subr.mxu0 %v652
        %764 = vmatpush1.msra.mxu0 %v651
        %765 = vmatprep.subr.mxu0 %v656
        %766 = vmatpush1.msra.mxu0 %v655
        %767 = vmatprep.subr.mxu0 %v660
        %768 = vmatpush1.msra.mxu0 %v659
        %769 = vmatprep.subr.mxu0 %v664
        %770 = vmatpush1.msra.mxu0 %v663
        %771 = vmatprep.subr.mxu0 %v668
        %772 = vmatpush1.msra.mxu0 %v667
        %773 = vmatprep.subr.mxu0 %v672
        %774 = vmatpush1.msra.mxu0 %v671
        %775 = vmatprep.subr.mxu0 %v676
        %776 = vmatpush1.msra.mxu0 %v675
        %777 = vmatprep.subr.mxu0 %v680
        %778 = vmatpush1.msra.mxu0 %v679
        %779 = vmatprep.subr.mxu0 %v684
        %780 = vmatpush1.msra.mxu0 %v683
        %781 = vmatprep.subr.mxu0 %v688
        %782 = vmatpush1.msra.mxu0 %v687
        %783 = vmatprep.subr.mxu0 %v692
        %784 = vmatpush1.msra.mxu0 %v691
        %785 = vmatprep.subr.mxu0 %v696
        %786 = vmatpush1.msra.mxu0 %v695
        %787 = vmatprep.subr.mxu0 %v700
        %788 = vmatpush1.msra.mxu0 %v699
        %789 = vmatprep.mubr.f32.mxu0 %v574
        %790 = vmatmul.mubr.f32.gmra.mrb[0].mxu0 %v573
        %v791 = vpop.f32.mrb[0].mxu0
        %v792 = vadd.f32 %v708, %v791
        %v793 = vpop.f32.mrb[0].mxu0
        %v794 = vadd.f32 %v712, %v793
        %795 = vdwg.mxu0
        %796 = vmatprep.subr.mxu0 %v578
        %797 = vmatpush1.msra.mxu0 %v577
        %798 = vmatprep.subr.mxu0 %v582
        %799 = vmatpush1.msra.mxu0 %v581
        %800 = vmatprep.subr.mxu0 %v586
        %801 = vmatpush1.msra.mxu0 %v585
        %802 = vmatprep.subr.mxu0 %v590
        %803 = vmatpush1.msra.mxu0 %v589
        %804 = vmatprep.subr.mxu0 %v594
        %805 = vmatpush1.msra.mxu0 %v593
        %806 = vmatprep.subr.mxu0 %v598
        %807 = vmatpush1.msra.mxu0 %v597
        %808 = vmatprep.subr.mxu0 %v602
        %809 = vmatpush1.msra.mxu0 %v601
        %810 = vmatprep.subr.mxu0 %v606
        %811 = vmatpush1.msra.mxu0 %v605
        %812 = vmatprep.subr.mxu0 %v610
        %813 = vmatpush1.msra.mxu0 %v609
        %814 = vmatprep.subr.mxu0 %v614
        %815 = vmatpush1.msra.mxu0 %v613
        %816 = vmatprep.subr.mxu0 %v618
        %817 = vmatpush1.msra.mxu0 %v617
        %818 = vmatprep.subr.mxu0 %v622
        %819 = vmatpush1.msra.mxu0 %v621
        %820 = vmatprep.subr.mxu0 %v626
        %821 = vmatpush1.msra.mxu0 %v625
        %822 = vmatprep.subr.mxu0 %v630
        %823 = vmatpush1.msra.mxu0 %v629
        %824 = vmatprep.subr.mxu0 %v634
        %825 = vmatpush1.msra.mxu0 %v633
        %826 = vmatprep.subr.mxu0 %v638
        %827 = vmatpush1.msra.mxu0 %v637
        %828 = vmatprep.subr.mxu0 %v642
        %829 = vmatpush1.msra.mxu0 %v641
        %830 = vmatprep.subr.mxu0 %v646
        %831 = vmatpush1.msra.mxu0 %v645
        %832 = vmatprep.subr.mxu0 %v650
        %833 = vmatpush1.msra.mxu0 %v649
        %834 = vmatprep.subr.mxu0 %v654
        %835 = vmatpush1.msra.mxu0 %v653
        %836 = vmatprep.subr.mxu0 %v658
        %837 = vmatpush1.msra.mxu0 %v657
        %838 = vmatprep.subr.mxu0 %v662
        %839 = vmatpush1.msra.mxu0 %v661
        %840 = vmatprep.subr.mxu0 %v666
        %841 = vmatpush1.msra.mxu0 %v665
        %842 = vmatprep.subr.mxu0 %v670
        %843 = vmatpush1.msra.mxu0 %v669
        %844 = vmatprep.subr.mxu0 %v674
        %845 = vmatpush1.msra.mxu0 %v673
        %846 = vmatprep.subr.mxu0 %v678
        %847 = vmatpush1.msra.mxu0 %v677
        %848 = vmatprep.subr.mxu0 %v682
        %849 = vmatpush1.msra.mxu0 %v681
        %850 = vmatprep.subr.mxu0 %v686
        %851 = vmatpush1.msra.mxu0 %v685
        %852 = vmatprep.subr.mxu0 %v690
        %853 = vmatpush1.msra.mxu0 %v689
        %854 = vmatprep.subr.mxu0 %v694
        %855 = vmatpush1.msra.mxu0 %v693
        %856 = vmatprep.subr.mxu0 %v698
        %857 = vmatpush1.msra.mxu0 %v697
        %858 = vmatprep.subr.mxu0 %v702
        %859 = vmatpush1.msra.mxu0 %v701
        %860 = vmatprep.mubr.f32.mxu0 %v574
        %861 = vmatmul.mubr.f32.gmra.mrb[0].mxu0 %v573
        %v862 = vpop.f32.mrb[0].mxu0
        %v863 = vadd.f32 %v716, %v862
        %v864 = vpop.f32.mrb[0].mxu0
        %v865 = vadd.f32 %v720, %v864
        %866 = vdwg.mxu0
        %v867 = vld [vmem:[#allocation13] sm:$0xff]
        %v868 = vld [vmem:[#allocation13 + $0x8] sm:$0xff]
        %v869 = vld [vmem:[#allocation13 + $0x10] sm:$0xff]
        %v870 = vld [vmem:[#allocation13 + $0x18] sm:$0xff]
        %v871 = vld [vmem:[#allocation13 + $0x20] sm:$0xff]
        %v872 = vld [vmem:[#allocation13 + $0x28] sm:$0xff]
        %v873 = vld [vmem:[#allocation13 + $0x30] sm:$0xff]
        %v874 = vld [vmem:[#allocation13 + $0x38] sm:$0xff]
        %v875 = vld [vmem:[#allocation13 + $0x40] sm:$0xf]
        %v876 = vld [vmem:[#allocation13 + $0x48] sm:$0xf]
        %v877 = vld [vmem:[#allocation13 + $0x50] sm:$0xf]
        %v878 = vld [vmem:[#allocation13 + $0x58] sm:$0xf]
        %879 = vmatprep.subr.mxu0 %v868
        %880 = vmatpush1.xpose.msra.mxu0 %v867
        %881 = vmatprep.subr.mxu0 %v872
        %882 = vmatpush1.xpose.msra.mxu0 %v871
        %883 = vmatprep.subr.mxu0 %v876
        %884 = vmatpush1.xpose.msra.mxu0 %v875
        %885 = vmatprep.subr.mxu0 0.0
        %886 = vmatpush1.xpose.msra.mxu0 0.0
        %887 = vmatprep.subr.mxu0 0.0
        %888 = vmatpush1.xpose.msra.mxu0 0.0
        %889 = vmatprep.subr.mxu0 0.0
        %890 = vmatpush1.xpose.msra.mxu0 0.0
        %891 = vmatprep.subr.mxu0 0.0
        %892 = vmatpush1.xpose.msra.mxu0 0.0
        %893 = vmatprep.subr.mxu0 0.0
        %894 = vmatpush1.xpose.msra.mxu0 0.0
        %895 = vmatprep.subr.mxu0 0.0
        %896 = vmatpush1.xpose.msra.mxu0 0.0
        %897 = vmatprep.subr.mxu0 0.0
        %898 = vmatpush1.xpose.msra.mxu0 0.0
        %899 = vmatprep.subr.mxu0 0.0
        %900 = vmatpush1.xpose.msra.mxu0 0.0
        %901 = vmatprep.subr.mxu0 0.0
        %902 = vmatpush1.xpose.msra.mxu0 0.0
        %903 = vmatprep.subr.mxu0 0.0
        %904 = vmatpush1.xpose.msra.mxu0 0.0
        %905 = vmatprep.subr.mxu0 0.0
        %906 = vmatpush1.xpose.msra.mxu0 0.0
        %907 = vmatprep.subr.mxu0 0.0
        %908 = vmatpush1.xpose.msra.mxu0 0.0
        %909 = vmatprep.subr.mxu0 0.0
        %910 = vmatpush1.xpose.msra.mxu0 0.0
        %911 = vmatprep.subr.mxu0 0.0
        %912 = vmatpush1.xpose.msra.mxu0 0.0
        %913 = vmatprep.subr.mxu0 0.0
        %914 = vmatpush1.xpose.msra.mxu0 0.0
        %915 = vmatprep.subr.mxu0 0.0
        %916 = vmatpush1.xpose.msra.mxu0 0.0
        %917 = vmatprep.subr.mxu0 0.0
        %918 = vmatpush1.xpose.msra.mxu0 0.0
        %919 = vmatprep.subr.mxu0 0.0
        %920 = vmatpush1.xpose.msra.mxu0 0.0
        %921 = vmatprep.subr.mxu0 0.0
        %922 = vmatpush1.xpose.msra.mxu0 0.0
        %923 = vmatprep.subr.mxu0 0.0
        %924 = vmatpush1.xpose.msra.mxu0 0.0
        %925 = vmatprep.subr.mxu0 0.0
        %926 = vmatpush1.xpose.msra.mxu0 0.0
        %927 = vmatprep.subr.mxu0 0.0
        %928 = vmatpush1.xpose.msra.mxu0 0.0
        %929 = vmatprep.subr.mxu0 0.0
        %930 = vmatpush1.xpose.msra.mxu0 0.0
        %931 = vmatprep.subr.mxu0 0.0
        %932 = vmatpush1.xpose.msra.mxu0 0.0
        %933 = vmatprep.subr.mxu0 0.0
        %934 = vmatpush1.xpose.msra.mxu0 0.0
        %935 = vmatprep.subr.mxu0 0.0
        %936 = vmatpush1.xpose.msra.mxu0 0.0
        %937 = vmatprep.subr.mxu0 0.0
        %938 = vmatpush1.xpose.msra.mxu0 0.0
        %939 = vmatprep.subr.mxu0 0.0
        %940 = vmatpush1.xpose.msra.mxu0 0.0
        %941 = vmatprep.subr.mxu0 0.0
        %942 = vmatpush1.xpose.msra.mxu0 0.0
        %943 = vmatprep.mubr.f32.mxu0 %v794
        %944 = vmatmul.mubr.f32.gmra.mrb[0].mxu0 %v792
        %v945 = vpop.f32.mrb[0].mxu0
        %v946 = vadd.f32 0.0, %v945
        %v947 = vpop.f32.mrb[0].mxu0
        %948 = vdwg.mxu0
        %949 = vmatprep.subr.mxu0 %v870
        %950 = vmatpush1.xpose.msra.mxu0 %v869
        %951 = vmatprep.subr.mxu0 %v874
        %952 = vmatpush1.xpose.msra.mxu0 %v873
        %953 = vmatprep.subr.mxu0 %v878
        %954 = vmatpush1.xpose.msra.mxu0 %v877
        %955 = vmatprep.subr.mxu0 0.0
        %956 = vmatpush1.xpose.msra.mxu0 0.0
        %957 = vmatprep.subr.mxu0 0.0
        %958 = vmatpush1.xpose.msra.mxu0 0.0
        %959 = vmatprep.subr.mxu0 0.0
        %960 = vmatpush1.xpose.msra.mxu0 0.0
        %961 = vmatprep.subr.mxu0 0.0
        %962 = vmatpush1.xpose.msra.mxu0 0.0
        %963 = vmatprep.subr.mxu0 0.0
        %964 = vmatpush1.xpose.msra.mxu0 0.0
        %965 = vmatprep.subr.mxu0 0.0
        %966 = vmatpush1.xpose.msra.mxu0 0.0
        %967 = vmatprep.subr.mxu0 0.0
        %968 = vmatpush1.xpose.msra.mxu0 0.0
        %969 = vmatprep.subr.mxu0 0.0
        %970 = vmatpush1.xpose.msra.mxu0 0.0
        %971 = vmatprep.subr.mxu0 0.0
        %972 = vmatpush1.xpose.msra.mxu0 0.0
        %973 = vmatprep.subr.mxu0 0.0
        %974 = vmatpush1.xpose.msra.mxu0 0.0
        %975 = vmatprep.subr.mxu0 0.0
        %976 = vmatpush1.xpose.msra.mxu0 0.0
        %977 = vmatprep.subr.mxu0 0.0
        %978 = vmatpush1.xpose.msra.mxu0 0.0
        %979 = vmatprep.subr.mxu0 0.0
        %980 = vmatpush1.xpose.msra.mxu0 0.0
        %981 = vmatprep.subr.mxu0 0.0
        %982 = vmatpush1.xpose.msra.mxu0 0.0
        %983 = vmatprep.subr.mxu0 0.0
        %984 = vmatpush1.xpose.msra.mxu0 0.0
        %985 = vmatprep.subr.mxu0 0.0
        %986 = vmatpush1.xpose.msra.mxu0 0.0
        %987 = vmatprep.subr.mxu0 0.0
        %988 = vmatpush1.xpose.msra.mxu0 0.0
        %989 = vmatprep.subr.mxu0 0.0
        %990 = vmatpush1.xpose.msra.mxu0 0.0
        %991 = vmatprep.subr.mxu0 0.0
        %992 = vmatpush1.xpose.msra.mxu0 0.0
        %993 = vmatprep.subr.mxu0 0.0
        %994 = vmatpush1.xpose.msra.mxu0 0.0
        %995 = vmatprep.subr.mxu0 0.0
        %996 = vmatpush1.xpose.msra.mxu0 0.0
        %997 = vmatprep.subr.mxu0 0.0
        %998 = vmatpush1.xpose.msra.mxu0 0.0
        %999 = vmatprep.subr.mxu0 0.0
        %1000 = vmatpush1.xpose.msra.mxu0 0.0
        %1001 = vmatprep.subr.mxu0 0.0
        %1002 = vmatpush1.xpose.msra.mxu0 0.0
        %1003 = vmatprep.subr.mxu0 0.0
        %1004 = vmatpush1.xpose.msra.mxu0 0.0
        %1005 = vmatprep.subr.mxu0 0.0
        %1006 = vmatpush1.xpose.msra.mxu0 0.0
        %1007 = vmatprep.subr.mxu0 0.0
        %1008 = vmatpush1.xpose.msra.mxu0 0.0
        %1009 = vmatprep.subr.mxu0 0.0
        %1010 = vmatpush1.xpose.msra.mxu0 0.0
        %1011 = vmatprep.subr.mxu0 0.0
        %1012 = vmatpush1.xpose.msra.mxu0 0.0
        %1013 = vmatprep.mubr.f32.mxu0 %v865
        %1014 = vmatmul.mubr.f32.gmra.mrb[0].mxu0 %v863
        %v1015 = vpop.f32.mrb[0].mxu0
        %v1016 = vadd.f32 %v946, %v1015
        %v1017 = vpop.f32.mrb[0].mxu0
        %1018 = vdwg.mxu0
        %v1019 = vmul.f32 %v792, %v792
        %v1020 = vmul.f32 %v794, %v794
        %v1021 = vmul.f32 %v863, %v863
        %v1022 = vmul.f32 %v865, %v865
        %v1023 = vsel %vm516, %v1019, 0.0
        %v1024 = vsel %vm516, %v1020, 0.0
        %v1025 = vadd.f32 %v1023, %v1024
        %v1026 = vsel %vm516, %v1021, 0.0
        %v1027 = vadd.f32 %v1025, %v1026
        %v1028 = vsel %vm516, %v1022, 0.0
        %v1029 = vadd.f32 %v1027, %v1028
        %1030 = vadd.xlane.f32.xlu0 %v1029
        %v1031 = vpop.xlane.xlu0 %1030
        %v1032 = vrsqrt.pop %v1031
        %v1033 = vmul.f32 %v1031, %v1032
        %vm1034 = vcmp.eq.f32.partialorder %v1031, inf
        %v1035 = vsel %vm1034, %v1031, %v1033
        %vm1036 = vcmp.eq.f32.partialorder %v1031, 0.0
        %v1037 = vand.u32 %v1031, 2147483648
        %v1038 = vsel %vm1036, %v1037, %v1035
        %v1039 = vld [vmem:[#allocation14] sm:$0x1]
        %v1041 = vlaneseq
        %v1042 = vshrl.u32 %v1041, 7
        %v1043 = vsub.s32 0, %v1042
        %v1044 = vrot.slane %v1039, %v1043
        %v1046 = vmul.f32 %v1038, %v1044
        %v1047 = vmax.f32 %v1046, 1e-08
        %v1048 = vrcp.pop %v1047
        %v1049 = vmul.f32 %v1016, %v1048
        %vm1050 = vcmask 1024
        %v1051 = vsel %vm1050, %v482, 0.0
        %v1052 = vrot.slane %v1051, 4
        %v1053 = vadd.f32 %v1051, %v1052
        %v1054 = vrot.slane %v1053, 2
        %v1055 = vadd.f32 %v1053, %v1054
        %v1056 = vrot.slane %v1055, 1
        %v1057 = vadd.f32 %v1055, %v1056
        %v1058 = vrcp.pop 2.0
        %v1059 = vmul.f32 %v1057, %v1058
        %v1060 = vmul.f32 %v1059, 0.5
        %v1061 = vadd.f32 %v1060, 1.0
        %1063 = vset.pattern.permute.xlu0 0
        %1064 = vperm.xlu0 %1063, %v1061
        %v1065 = vpop.permute.xlu0 %1064
        %v1067 = vmul.f32 %v1049, %v1065
        %vm1068 = vcmask 156672
        %v1069 = vsel %vm1068, %v1067, -inf
        %1070 = vmax.xlane.f32.xlu0 %v1069
        %v1071 = vpop.xlane.xlu0 %1070
        %v1072 = vsub.f32 %v1067, %v1071
        %v1073 = vmul.f32 %v1072, 1.442695
        %v1074 = vpow.pop %v1073
        %v1075 = vsel %vm1068, %v1074, 0.0
        %1076 = vadd.xlane.f32.xlu0 %v1075
        %v1077 = vpop.xlane.xlu0 %1076
        %v1078 = vrcp.pop %v1077
        %v1079 = vmul.f32 %v1074, %v1078
        %v1080 = vlaneseq
        %v1081 = vand.u32 %v1080, 127
        %v1082 = vsel %vm1068, %v1079, -inf
        %1083 = vmax.xlane.f32.xlu0 %v1082
        %v1084 = vpop.xlane.xlu0 %1083
        %vm1085 = vcmp.eq.f32.partialorder %v1079, %v1084
        %v1086 = vsel %vm1085, %v1081, 20
        %v1087 = vsel %vm1068, %v1086, 2147483647
        %v1088 = vand.u32 %v1087, 65535
        %v1089 = vshra.s32 %v1087, 16
        %v1090 = vcvt.s32.f32 %v1088
        %v1091 = vcvt.s32.f32 %v1089
        %1092 = vmin.xlane.f32.xlu0 %v1091
        %v1093 = vpop.xlane.xlu0 %1092
        %vm1094 = vcmp.eq.f32.partialorder %v1091, %v1093
        %v1095 = vsel %vm1094, %v1090, inf
        %1096 = vmin.xlane.f32.xlu0 %v1095
        %v1097 = vpop.xlane.xlu0 %1096
        %v1098 = vcvt.f32.s32 %v1097
        %v1099 = vcvt.f32.s32 %v1093
        %v1100 = vshll.u32 %v1099, 16
        %v1101 = vadd.s32 %v1100, %v1098
        %vm1102 = vcmp.eq.s32.totalorder %v1081, %v1101
        %v1103 = vsel %vm1102, -1.0, %v1079
        %v1104 = vsel %vm1068, %v1103, -inf
        %1105 = vmax.xlane.f32.xlu0 %v1104
        %v1106 = vpop.xlane.xlu0 %1105
        %vm1107 = vcmp.eq.f32.partialorder %v1103, %v1106
        %v1108 = vsel %vm1107, %v1081, 20
        %v1109 = vsel %vm1068, %v1108, 2147483647
        %v1110 = vand.u32 %v1109, 65535
        %v1111 = vshra.s32 %v1109, 16
        %v1112 = vcvt.s32.f32 %v1110
        %v1113 = vcvt.s32.f32 %v1111
        %1114 = vmin.xlane.f32.xlu0 %v1113
        %v1115 = vpop.xlane.xlu0 %1114
        %vm1116 = vcmp.eq.f32.partialorder %v1113, %v1115
        %v1117 = vsel %vm1116, %v1112, inf
        %1118 = vmin.xlane.f32.xlu0 %v1117
        %v1119 = vpop.xlane.xlu0 %1118
        %v1120 = vcvt.f32.s32 %v1119
        %v1121 = vcvt.f32.s32 %v1115
        %v1122 = vshll.u32 %v1121, 16
        %v1123 = vadd.s32 %v1122, %v1120
        %vm1124 = vcmp.eq.s32.totalorder %v1081, %v1123
        %vm1125 = vmor %vm1102, %vm1124
        %v1126 = vsel %vm1125, -1.0, %v1079
        %v1127 = vsel %vm1068, %v1126, -inf
        %1128 = vmax.xlane.f32.xlu0 %v1127
        %v1129 = vpop.xlane.xlu0 %1128
        %vm1130 = vcmp.eq.f32.partialorder %v1126, %v1129
        %v1131 = vsel %vm1130, %v1081, 20
        %v1132 = vsel %vm1068, %v1131, 2147483647
        %v1133 = vand.u32 %v1132, 65535
        %v1134 = vshra.s32 %v1132, 16
        %v1135 = vcvt.s32.f32 %v1133
        %v1136 = vcvt.s32.f32 %v1134
        %1137 = vmin.xlane.f32.xlu0 %v1136
        %v1138 = vpop.xlane.xlu0 %1137
        %vm1139 = vcmp.eq.f32.partialorder %v1136, %v1138
        %v1140 = vsel %vm1139, %v1135, inf
        %1141 = vmin.xlane.f32.xlu0 %v1140
        %v1142 = vpop.xlane.xlu0 %1141
        %v1143 = vcvt.f32.s32 %v1142
        %v1144 = vcvt.f32.s32 %v1138
        %v1145 = vshll.u32 %v1144, 16
        %v1146 = vadd.s32 %v1145, %v1143
        %vm1147 = vcmp.eq.s32.totalorder %v1081, %v1146
        %vm1148 = vmor %vm1125, %vm1147
        %v1149 = vsel %vm1148, -1.0, %v1079
        %v1150 = vsel %vm1068, %v1149, -inf
        %1151 = vmax.xlane.f32.xlu0 %v1150
        %v1152 = vpop.xlane.xlu0 %1151
        %vm1153 = vcmp.eq.f32.partialorder %v1149, %v1152
        %v1154 = vsel %vm1153, %v1081, 20
        %v1155 = vsel %vm1068, %v1154, 2147483647
        %v1156 = vand.u32 %v1155, 65535
        %v1157 = vshra.s32 %v1155, 16
        %v1158 = vcvt.s32.f32 %v1156
        %v1159 = vcvt.s32.f32 %v1157
        %1160 = vmin.xlane.f32.xlu0 %v1159
        %v1161 = vpop.xlane.xlu0 %1160
        %vm1162 = vcmp.eq.f32.partialorder %v1159, %v1161
        %v1163 = vsel %vm1162, %v1158, inf
        %1164 = vmin.xlane.f32.xlu0 %v1163
        %v1165 = vpop.xlane.xlu0 %1164
        %v1166 = vcvt.f32.s32 %v1165
        %v1167 = vcvt.f32.s32 %v1161
        %v1168 = vshll.u32 %v1167, 16
        %v1169 = vadd.s32 %v1168, %v1166
        %vm1170 = vcmp.eq.s32.totalorder %v1081, %v1169
        %vm1171 = vmor %vm1148, %vm1170
        %v1172 = vsel %vm1171, -1.0, %v1079
        %v1173 = vsel %vm1068, %v1172, -inf
        %1174 = vmax.xlane.f32.xlu0 %v1173
        %v1175 = vpop.xlane.xlu0 %1174
        %vm1176 = vcmp.eq.f32.partialorder %v1172, %v1175
        %v1177 = vsel %vm1176, %v1081, 20
        %v1178 = vsel %vm1068, %v1177, 2147483647
        %v1179 = vand.u32 %v1178, 65535
        %v1180 = vshra.s32 %v1178, 16
        %v1181 = vcvt.s32.f32 %v1179
        %v1182 = vcvt.s32.f32 %v1180
        %1183 = vmin.xlane.f32.xlu0 %v1182
        %v1184 = vpop.xlane.xlu0 %1183
        %vm1185 = vcmp.eq.f32.partialorder %v1182, %v1184
        %v1186 = vsel %vm1185, %v1181, inf
        %1187 = vmin.xlane.f32.xlu0 %v1186
        %v1188 = vpop.xlane.xlu0 %1187
        %v1189 = vcvt.f32.s32 %v1188
        %v1190 = vcvt.f32.s32 %v1184
        %v1191 = vshll.u32 %v1190, 16
        %v1192 = vadd.s32 %v1191, %v1189
        %vm1193 = vcmp.eq.s32.totalorder %v1081, %v1192
        %vm1194 = vmor %vm1171, %vm1193
        %v1195 = vsel %vm1194, %v1079, 0.0
        %v1196 = vrcp.pop 5.0
        %v1197 = vmul.f32 %v482, %v1196
        %v1198 = vsub.f32 1.0, %v1197
        %v1199 = vmul.f32 %v1198, 59.0
        %v1200 = vadd.f32 %v1199, 5.0
        %v1201 = vcvt.f32.s32.to.zero.pseudo %v1200
        %vm1202 = vcmp.gt.s32.totalorder %v1201, 5
        %v1203 = vsel %vm1202, %v1201, 5
        %vm1204 = vcmp.lt.s32.totalorder %v1203, 64
        %v1205 = vsel %vm1204, %v1203, 64
        %v1206 = vmul.u32 %v1205, 512
        %v1207 = vld [vmem:[%s443] sm:$0xff]
        %v1208 = vld [vmem:[%s443 + $0x8] sm:$0xff]
        %v1209 = vld [vmem:[%s443 + $0x10] sm:$0xff]
        %v1210 = vld [vmem:[%s443 + $0x18] sm:$0xff]
        %v1211 = vld [vmem:[%s443 + $0x20] sm:$0xff]
        %v1212 = vld [vmem:[%s443 + $0x28] sm:$0xff]
        %v1213 = vld [vmem:[%s443 + $0x30] sm:$0xff]
        %v1214 = vld [vmem:[%s443 + $0x38] sm:$0xff]
        %v1215 = vld [vmem:[%s443 + $0x40] sm:$0xff]
        %v1216 = vld [vmem:[%s443 + $0x48] sm:$0xff]
        %v1217 = vld [vmem:[%s443 + $0x50] sm:$0xff]
        %v1218 = vld [vmem:[%s443 + $0x58] sm:$0xff]
        %v1219 = vld [vmem:[%s443 + $0x60] sm:$0xff]
        %v1220 = vld [vmem:[%s443 + $0x68] sm:$0xff]
        %v1221 = vld [vmem:[%s443 + $0x70] sm:$0xff]
        %v1222 = vld [vmem:[%s443 + $0x78] sm:$0xff]
        %v1223 = vld [vmem:[%s443 + $0x80] sm:$0xff]
        %v1224 = vld [vmem:[%s443 + $0x88] sm:$0xff]
        %v1225 = vld [vmem:[%s443 + $0x90] sm:$0xff]
        %v1226 = vld [vmem:[%s443 + $0x98] sm:$0xff]
        %v1227 = vld [vmem:[%s443 + $0xa0] sm:$0xff]
        %v1228 = vld [vmem:[%s443 + $0xa8] sm:$0xff]
        %v1229 = vld [vmem:[%s443 + $0xb0] sm:$0xff]
        %v1230 = vld [vmem:[%s443 + $0xb8] sm:$0xff]
        %v1231 = vld [vmem:[%s443 + $0xc0] sm:$0xff]
        %v1232 = vld [vmem:[%s443 + $0xc8] sm:$0xff]
        %v1233 = vld [vmem:[%s443 + $0xd0] sm:$0xff]
        %v1234 = vld [vmem:[%s443 + $0xd8] sm:$0xff]
        %v1235 = vld [vmem:[%s443 + $0xe0] sm:$0xff]
        %v1236 = vld [vmem:[%s443 + $0xe8] sm:$0xff]
        %v1237 = vld [vmem:[%s443 + $0xf0] sm:$0xff]
        %v1238 = vld [vmem:[%s443 + $0xf8] sm:$0xff]
        %v1239 = vld [vmem:[%s443 + $0x100] sm:$0xff]
        %v1240 = vld [vmem:[%s443 + $0x108] sm:$0xff]
        %v1241 = vld [vmem:[%s443 + $0x110] sm:$0xff]
        %v1242 = vld [vmem:[%s443 + $0x118] sm:$0xff]
        %v1243 = vld [vmem:[%s443 + $0x120] sm:$0xff]
        %v1244 = vld [vmem:[%s443 + $0x128] sm:$0xff]
        %v1245 = vld [vmem:[%s443 + $0x130] sm:$0xff]
        %v1246 = vld [vmem:[%s443 + $0x138] sm:$0xff]
        %v1247 = vld [vmem:[%s443 + $0x140] sm:$0xff]
        %v1248 = vld [vmem:[%s443 + $0x148] sm:$0xff]
        %v1249 = vld [vmem:[%s443 + $0x150] sm:$0xff]
        %v1250 = vld [vmem:[%s443 + $0x158] sm:$0xff]
        %v1251 = vld [vmem:[%s443 + $0x160] sm:$0xff]
        %v1252 = vld [vmem:[%s443 + $0x168] sm:$0xff]
        %v1253 = vld [vmem:[%s443 + $0x170] sm:$0xff]
        %v1254 = vld [vmem:[%s443 + $0x178] sm:$0xff]
        %v1255 = vld [vmem:[%s443 + $0x180] sm:$0xff]
        %v1256 = vld [vmem:[%s443 + $0x188] sm:$0xff]
        %v1257 = vld [vmem:[%s443 + $0x190] sm:$0xff]
        %v1258 = vld [vmem:[%s443 + $0x198] sm:$0xff]
        %v1259 = vld [vmem:[%s443 + $0x1a0] sm:$0xff]
        %v1260 = vld [vmem:[%s443 + $0x1a8] sm:$0xff]
        %v1261 = vld [vmem:[%s443 + $0x1b0] sm:$0xff]
        %v1262 = vld [vmem:[%s443 + $0x1b8] sm:$0xff]
        %v1263 = vld [vmem:[%s443 + $0x1c0] sm:$0xff]
        %v1264 = vld [vmem:[%s443 + $0x1c8] sm:$0xff]
        %v1265 = vld [vmem:[%s443 + $0x1d0] sm:$0xff]
        %v1266 = vld [vmem:[%s443 + $0x1d8] sm:$0xff]
        %v1267 = vld [vmem:[%s443 + $0x1e0] sm:$0xff]
        %v1268 = vld [vmem:[%s443 + $0x1e8] sm:$0xff]
        %v1269 = vld [vmem:[%s443 + $0x1f0] sm:$0xff]
        %v1270 = vld [vmem:[%s443 + $0x1f8] sm:$0xff]
        %v1271 = vld [vmem:[%s443 + $0x200] sm:$0xff]
        %v1272 = vld [vmem:[%s443 + $0x208] sm:$0xff]
        %v1273 = vld [vmem:[%s443 + $0x210] sm:$0xff]
        %v1274 = vld [vmem:[%s443 + $0x218] sm:$0xff]
        %v1275 = vld [vmem:[%s443 + $0x220] sm:$0xff]
        %v1276 = vld [vmem:[%s443 + $0x228] sm:$0xff]
        %v1277 = vld [vmem:[%s443 + $0x230] sm:$0xff]
        %v1278 = vld [vmem:[%s443 + $0x238] sm:$0xff]
        %v1279 = vld [vmem:[%s443 + $0x240] sm:$0xff]
        %v1280 = vld [vmem:[%s443 + $0x248] sm:$0xff]
        %v1281 = vld [vmem:[%s443 + $0x250] sm:$0xff]
        %v1282 = vld [vmem:[%s443 + $0x258] sm:$0xff]
        %v1283 = vld [vmem:[%s443 + $0x260] sm:$0xff]
        %v1284 = vld [vmem:[%s443 + $0x268] sm:$0xff]
        %v1285 = vld [vmem:[%s443 + $0x270] sm:$0xff]
        %v1286 = vld [vmem:[%s443 + $0x278] sm:$0xff]
        %v1287 = vld [vmem:[%s443 + $0x280] sm:$0xff]
        %v1288 = vld [vmem:[%s443 + $0x288] sm:$0xff]
        %v1289 = vld [vmem:[%s443 + $0x290] sm:$0xff]
        %v1290 = vld [vmem:[%s443 + $0x298] sm:$0xff]
        %v1291 = vld [vmem:[%s443 + $0x2a0] sm:$0xff]
        %v1292 = vld [vmem:[%s443 + $0x2a8] sm:$0xff]
        %v1293 = vld [vmem:[%s443 + $0x2b0] sm:$0xff]
        %v1294 = vld [vmem:[%s443 + $0x2b8] sm:$0xff]
        %v1295 = vld [vmem:[%s443 + $0x2c0] sm:$0xff]
        %v1296 = vld [vmem:[%s443 + $0x2c8] sm:$0xff]
        %v1297 = vld [vmem:[%s443 + $0x2d0] sm:$0xff]
        %v1298 = vld [vmem:[%s443 + $0x2d8] sm:$0xff]
        %v1299 = vld [vmem:[%s443 + $0x2e0] sm:$0xff]
        %v1300 = vld [vmem:[%s443 + $0x2e8] sm:$0xff]
        %v1301 = vld [vmem:[%s443 + $0x2f0] sm:$0xff]
        %v1302 = vld [vmem:[%s443 + $0x2f8] sm:$0xff]
        %v1303 = vld [vmem:[%s443 + $0x300] sm:$0xff]
        %v1304 = vld [vmem:[%s443 + $0x308] sm:$0xff]
        %v1305 = vld [vmem:[%s443 + $0x310] sm:$0xff]
        %v1306 = vld [vmem:[%s443 + $0x318] sm:$0xff]
        %v1307 = vld [vmem:[%s443 + $0x320] sm:$0xff]
        %v1308 = vld [vmem:[%s443 + $0x328] sm:$0xff]
        %v1309 = vld [vmem:[%s443 + $0x330] sm:$0xff]
        %v1310 = vld [vmem:[%s443 + $0x338] sm:$0xff]
        %v1311 = vld [vmem:[%s443 + $0x340] sm:$0xff]
        %v1312 = vld [vmem:[%s443 + $0x348] sm:$0xff]
        %v1313 = vld [vmem:[%s443 + $0x350] sm:$0xff]
        %v1314 = vld [vmem:[%s443 + $0x358] sm:$0xff]
        %v1315 = vld [vmem:[%s443 + $0x360] sm:$0xff]
        %v1316 = vld [vmem:[%s443 + $0x368] sm:$0xff]
        %v1317 = vld [vmem:[%s443 + $0x370] sm:$0xff]
        %v1318 = vld [vmem:[%s443 + $0x378] sm:$0xff]
        %v1319 = vld [vmem:[%s443 + $0x380] sm:$0xff]
        %v1320 = vld [vmem:[%s443 + $0x388] sm:$0xff]
        %v1321 = vld [vmem:[%s443 + $0x390] sm:$0xff]
        %v1322 = vld [vmem:[%s443 + $0x398] sm:$0xff]
        %v1323 = vld [vmem:[%s443 + $0x3a0] sm:$0xff]
        %v1324 = vld [vmem:[%s443 + $0x3a8] sm:$0xff]
        %v1325 = vld [vmem:[%s443 + $0x3b0] sm:$0xff]
        %v1326 = vld [vmem:[%s443 + $0x3b8] sm:$0xff]
        %v1327 = vld [vmem:[%s443 + $0x3c0] sm:$0xff]
        %v1328 = vld [vmem:[%s443 + $0x3c8] sm:$0xff]
        %v1329 = vld [vmem:[%s443 + $0x3d0] sm:$0xff]
        %v1330 = vld [vmem:[%s443 + $0x3d8] sm:$0xff]
        %v1331 = vld [vmem:[%s443 + $0x3e0] sm:$0xff]
        %v1332 = vld [vmem:[%s443 + $0x3e8] sm:$0xff]
        %v1333 = vld [vmem:[%s443 + $0x3f0] sm:$0xff]
        %v1334 = vld [vmem:[%s443 + $0x3f8] sm:$0xff]
        %v1335 = vld [vmem:[%s443 + $0x400] sm:$0xff]
        %v1336 = vld [vmem:[%s443 + $0x408] sm:$0xff]
        %v1337 = vld [vmem:[%s443 + $0x410] sm:$0xff]
        %v1338 = vld [vmem:[%s443 + $0x418] sm:$0xff]
        %v1339 = vld [vmem:[%s443 + $0x420] sm:$0xff]
        %v1340 = vld [vmem:[%s443 + $0x428] sm:$0xff]
        %v1341 = vld [vmem:[%s443 + $0x430] sm:$0xff]
        %v1342 = vld [vmem:[%s443 + $0x438] sm:$0xff]
        %v1343 = vld [vmem:[%s443 + $0x440] sm:$0xff]
        %v1344 = vld [vmem:[%s443 + $0x448] sm:$0xff]
        %v1345 = vld [vmem:[%s443 + $0x450] sm:$0xff]
        %v1346 = vld [vmem:[%s443 + $0x458] sm:$0xff]
        %v1347 = vld [vmem:[%s443 + $0x460] sm:$0xff]
        %v1348 = vld [vmem:[%s443 + $0x468] sm:$0xff]
        %v1349 = vld [vmem:[%s443 + $0x470] sm:$0xff]
        %v1350 = vld [vmem:[%s443 + $0x478] sm:$0xff]
        %v1351 = vld [vmem:[%s443 + $0x480] sm:$0xff]
        %v1352 = vld [vmem:[%s443 + $0x488] sm:$0xff]
        %v1353 = vld [vmem:[%s443 + $0x490] sm:$0xff]
        %v1354 = vld [vmem:[%s443 + $0x498] sm:$0xff]
        %v1355 = vld [vmem:[%s443 + $0x4a0] sm:$0xff]
        %v1356 = vld [vmem:[%s443 + $0x4a8] sm:$0xff]
        %v1357 = vld [vmem:[%s443 + $0x4b0] sm:$0xff]
        %v1358 = vld [vmem:[%s443 + $0x4b8] sm:$0xff]
        %v1359 = vld [vmem:[%s443 + $0x4c0] sm:$0xff]
        %v1360 = vld [vmem:[%s443 + $0x4c8] sm:$0xff]
        %v1361 = vld [vmem:[%s443 + $0x4d0] sm:$0xff]
        %v1362 = vld [vmem:[%s443 + $0x4d8] sm:$0xff]
        %v1363 = vld [vmem:[%s443 + $0x4e0] sm:$0xff]
        %v1364 = vld [vmem:[%s443 + $0x4e8] sm:$0xff]
        %v1365 = vld [vmem:[%s443 + $0x4f0] sm:$0xff]
        %v1366 = vld [vmem:[%s443 + $0x4f8] sm:$0xff]
        %v1367 = vld [vmem:[%s443 + $0x500] sm:$0xff]
        %v1368 = vld [vmem:[%s443 + $0x508] sm:$0xff]
        %v1369 = vld [vmem:[%s443 + $0x510] sm:$0xff]
        %v1370 = vld [vmem:[%s443 + $0x518] sm:$0xff]
        %v1371 = vld [vmem:[%s443 + $0x520] sm:$0xff]
        %v1372 = vld [vmem:[%s443 + $0x528] sm:$0xff]
        %v1373 = vld [vmem:[%s443 + $0x530] sm:$0xff]
        %v1374 = vld [vmem:[%s443 + $0x538] sm:$0xff]
        %v1375 = vld [vmem:[%s443 + $0x540] sm:$0xff]
        %v1376 = vld [vmem:[%s443 + $0x548] sm:$0xff]
        %v1377 = vld [vmem:[%s443 + $0x550] sm:$0xff]
        %v1378 = vld [vmem:[%s443 + $0x558] sm:$0xff]
        %v1379 = vld [vmem:[%s443 + $0x560] sm:$0xff]
        %v1380 = vld [vmem:[%s443 + $0x568] sm:$0xff]
        %v1381 = vld [vmem:[%s443 + $0x570] sm:$0xff]
        %v1382 = vld [vmem:[%s443 + $0x578] sm:$0xff]
        %v1383 = vld [vmem:[%s443 + $0x580] sm:$0xff]
        %v1384 = vld [vmem:[%s443 + $0x588] sm:$0xff]
        %v1385 = vld [vmem:[%s443 + $0x590] sm:$0xff]
        %v1386 = vld [vmem:[%s443 + $0x598] sm:$0xff]
        %v1387 = vld [vmem:[%s443 + $0x5a0] sm:$0xff]
        %v1388 = vld [vmem:[%s443 + $0x5a8] sm:$0xff]
        %v1389 = vld [vmem:[%s443 + $0x5b0] sm:$0xff]
        %v1390 = vld [vmem:[%s443 + $0x5b8] sm:$0xff]
        %v1391 = vld [vmem:[%s443 + $0x5c0] sm:$0xff]
        %v1392 = vld [vmem:[%s443 + $0x5c8] sm:$0xff]
        %v1393 = vld [vmem:[%s443 + $0x5d0] sm:$0xff]
        %v1394 = vld [vmem:[%s443 + $0x5d8] sm:$0xff]
        %v1395 = vld [vmem:[%s443 + $0x5e0] sm:$0xff]
        %v1396 = vld [vmem:[%s443 + $0x5e8] sm:$0xff]
        %v1397 = vld [vmem:[%s443 + $0x5f0] sm:$0xff]
        %v1398 = vld [vmem:[%s443 + $0x5f8] sm:$0xff]
        %v1399 = vld [vmem:[%s443 + $0x600] sm:$0xff]
        %v1400 = vld [vmem:[%s443 + $0x608] sm:$0xff]
        %v1401 = vld [vmem:[%s443 + $0x610] sm:$0xff]
        %v1402 = vld [vmem:[%s443 + $0x618] sm:$0xff]
        %v1403 = vld [vmem:[%s443 + $0x620] sm:$0xff]
        %v1404 = vld [vmem:[%s443 + $0x628] sm:$0xff]
        %v1405 = vld [vmem:[%s443 + $0x630] sm:$0xff]
        %v1406 = vld [vmem:[%s443 + $0x638] sm:$0xff]
        %v1407 = vld [vmem:[%s443 + $0x640] sm:$0xff]
        %v1408 = vld [vmem:[%s443 + $0x648] sm:$0xff]
        %v1409 = vld [vmem:[%s443 + $0x650] sm:$0xff]
        %v1410 = vld [vmem:[%s443 + $0x658] sm:$0xff]
        %v1411 = vld [vmem:[%s443 + $0x660] sm:$0xff]
        %v1412 = vld [vmem:[%s443 + $0x668] sm:$0xff]
        %v1413 = vld [vmem:[%s443 + $0x670] sm:$0xff]
        %v1414 = vld [vmem:[%s443 + $0x678] sm:$0xff]
        %v1415 = vld [vmem:[%s443 + $0x680] sm:$0xff]
        %v1416 = vld [vmem:[%s443 + $0x688] sm:$0xff]
        %v1417 = vld [vmem:[%s443 + $0x690] sm:$0xff]
        %v1418 = vld [vmem:[%s443 + $0x698] sm:$0xff]
        %v1419 = vld [vmem:[%s443 + $0x6a0] sm:$0xff]
        %v1420 = vld [vmem:[%s443 + $0x6a8] sm:$0xff]
        %v1421 = vld [vmem:[%s443 + $0x6b0] sm:$0xff]
        %v1422 = vld [vmem:[%s443 + $0x6b8] sm:$0xff]
        %v1423 = vld [vmem:[%s443 + $0x6c0] sm:$0xff]
        %v1424 = vld [vmem:[%s443 + $0x6c8] sm:$0xff]
        %v1425 = vld [vmem:[%s443 + $0x6d0] sm:$0xff]
        %v1426 = vld [vmem:[%s443 + $0x6d8] sm:$0xff]
        %v1427 = vld [vmem:[%s443 + $0x6e0] sm:$0xff]
        %v1428 = vld [vmem:[%s443 + $0x6e8] sm:$0xff]
        %v1429 = vld [vmem:[%s443 + $0x6f0] sm:$0xff]
        %v1430 = vld [vmem:[%s443 + $0x6f8] sm:$0xff]
        %v1431 = vld [vmem:[%s443 + $0x700] sm:$0xff]
        %v1432 = vld [vmem:[%s443 + $0x708] sm:$0xff]
        %v1433 = vld [vmem:[%s443 + $0x710] sm:$0xff]
        %v1434 = vld [vmem:[%s443 + $0x718] sm:$0xff]
        %v1435 = vld [vmem:[%s443 + $0x720] sm:$0xff]
        %v1436 = vld [vmem:[%s443 + $0x728] sm:$0xff]
        %v1437 = vld [vmem:[%s443 + $0x730] sm:$0xff]
        %v1438 = vld [vmem:[%s443 + $0x738] sm:$0xff]
        %v1439 = vld [vmem:[%s443 + $0x740] sm:$0xff]
        %v1440 = vld [vmem:[%s443 + $0x748] sm:$0xff]
        %v1441 = vld [vmem:[%s443 + $0x750] sm:$0xff]
        %v1442 = vld [vmem:[%s443 + $0x758] sm:$0xff]
        %v1443 = vld [vmem:[%s443 + $0x760] sm:$0xff]
        %v1444 = vld [vmem:[%s443 + $0x768] sm:$0xff]
        %v1445 = vld [vmem:[%s443 + $0x770] sm:$0xff]
        %v1446 = vld [vmem:[%s443 + $0x778] sm:$0xff]
        %v1447 = vld [vmem:[%s443 + $0x780] sm:$0xff]
        %v1448 = vld [vmem:[%s443 + $0x788] sm:$0xff]
        %v1449 = vld [vmem:[%s443 + $0x790] sm:$0xff]
        %v1450 = vld [vmem:[%s443 + $0x798] sm:$0xff]
        %v1451 = vld [vmem:[%s443 + $0x7a0] sm:$0xff]
        %v1452 = vld [vmem:[%s443 + $0x7a8] sm:$0xff]
        %v1453 = vld [vmem:[%s443 + $0x7b0] sm:$0xff]
        %v1454 = vld [vmem:[%s443 + $0x7b8] sm:$0xff]
        %v1455 = vld [vmem:[%s443 + $0x7c0] sm:$0xff]
        %v1456 = vld [vmem:[%s443 + $0x7c8] sm:$0xff]
        %v1457 = vld [vmem:[%s443 + $0x7d0] sm:$0xff]
        %v1458 = vld [vmem:[%s443 + $0x7d8] sm:$0xff]
        %v1459 = vld [vmem:[%s443 + $0x7e0] sm:$0xff]
        %v1460 = vld [vmem:[%s443 + $0x7e8] sm:$0xff]
        %v1461 = vld [vmem:[%s443 + $0x7f0] sm:$0xff]
        %v1462 = vld [vmem:[%s443 + $0x7f8] sm:$0xff]
        %v1463 = vld [vmem:[%s443 + $0x800] sm:$0xf]
        %v1464 = vld [vmem:[%s443 + $0x808] sm:$0xf]
        %v1465 = vld [vmem:[%s443 + $0x810] sm:$0xf]
        %v1466 = vld [vmem:[%s443 + $0x818] sm:$0xf]
        %v1467 = vld [vmem:[%s443 + $0x820] sm:$0xf]
        %v1468 = vld [vmem:[%s443 + $0x828] sm:$0xf]
        %v1469 = vld [vmem:[%s443 + $0x830] sm:$0xf]
        %v1470 = vld [vmem:[%s443 + $0x838] sm:$0xf]
        %v1471 = vld [vmem:[%s443 + $0x840] sm:$0xf]
        %v1472 = vld [vmem:[%s443 + $0x848] sm:$0xf]
        %v1473 = vld [vmem:[%s443 + $0x850] sm:$0xf]
        %v1474 = vld [vmem:[%s443 + $0x858] sm:$0xf]
        %v1475 = vld [vmem:[%s443 + $0x860] sm:$0xf]
        %v1476 = vld [vmem:[%s443 + $0x868] sm:$0xf]
        %v1477 = vld [vmem:[%s443 + $0x870] sm:$0xf]
        %v1478 = vld [vmem:[%s443 + $0x878] sm:$0xf]
        %v1479 = vld [vmem:[%s443 + $0x880] sm:$0xf]
        %v1480 = vld [vmem:[%s443 + $0x888] sm:$0xf]
        %v1481 = vld [vmem:[%s443 + $0x890] sm:$0xf]
        %v1482 = vld [vmem:[%s443 + $0x898] sm:$0xf]
        %v1483 = vld [vmem:[%s443 + $0x8a0] sm:$0xf]
        %v1484 = vld [vmem:[%s443 + $0x8a8] sm:$0xf]
        %v1485 = vld [vmem:[%s443 + $0x8b0] sm:$0xf]
        %v1486 = vld [vmem:[%s443 + $0x8b8] sm:$0xf]
        %v1487 = vld [vmem:[%s443 + $0x8c0] sm:$0xf]
        %v1488 = vld [vmem:[%s443 + $0x8c8] sm:$0xf]
        %v1489 = vld [vmem:[%s443 + $0x8d0] sm:$0xf]
        %v1490 = vld [vmem:[%s443 + $0x8d8] sm:$0xf]
        %v1491 = vld [vmem:[%s443 + $0x8e0] sm:$0xf]
        %v1492 = vld [vmem:[%s443 + $0x8e8] sm:$0xf]
        %v1493 = vld [vmem:[%s443 + $0x8f0] sm:$0xf]
        %v1494 = vld [vmem:[%s443 + $0x8f8] sm:$0xf]
        %v1495 = vld [vmem:[%s443 + $0x900] sm:$0xf]
        %v1496 = vld [vmem:[%s443 + $0x908] sm:$0xf]
        %v1497 = vld [vmem:[%s443 + $0x910] sm:$0xf]
        %v1498 = vld [vmem:[%s443 + $0x918] sm:$0xf]
        %v1499 = vld [vmem:[%s443 + $0x920] sm:$0xf]
        %v1500 = vld [vmem:[%s443 + $0x928] sm:$0xf]
        %v1501 = vld [vmem:[%s443 + $0x930] sm:$0xf]
        %v1502 = vld [vmem:[%s443 + $0x938] sm:$0xf]
        %v1503 = vld [vmem:[%s443 + $0x940] sm:$0xf]
        %v1504 = vld [vmem:[%s443 + $0x948] sm:$0xf]
        %v1505 = vld [vmem:[%s443 + $0x950] sm:$0xf]
        %v1506 = vld [vmem:[%s443 + $0x958] sm:$0xf]
        %v1507 = vld [vmem:[%s443 + $0x960] sm:$0xf]
        %v1508 = vld [vmem:[%s443 + $0x968] sm:$0xf]
        %v1509 = vld [vmem:[%s443 + $0x970] sm:$0xf]
        %v1510 = vld [vmem:[%s443 + $0x978] sm:$0xf]
        %v1511 = vld [vmem:[%s443 + $0x980] sm:$0xf]
        %v1512 = vld [vmem:[%s443 + $0x988] sm:$0xf]
        %v1513 = vld [vmem:[%s443 + $0x990] sm:$0xf]
        %v1514 = vld [vmem:[%s443 + $0x998] sm:$0xf]
        %v1515 = vld [vmem:[%s443 + $0x9a0] sm:$0xf]
        %v1516 = vld [vmem:[%s443 + $0x9a8] sm:$0xf]
        %v1517 = vld [vmem:[%s443 + $0x9b0] sm:$0xf]
        %v1518 = vld [vmem:[%s443 + $0x9b8] sm:$0xf]
        %v1519 = vld [vmem:[%s443 + $0x9c0] sm:$0xf]
        %v1520 = vld [vmem:[%s443 + $0x9c8] sm:$0xf]
        %v1521 = vld [vmem:[%s443 + $0x9d0] sm:$0xf]
        %v1522 = vld [vmem:[%s443 + $0x9d8] sm:$0xf]
        %v1523 = vld [vmem:[%s443 + $0x9e0] sm:$0xf]
        %v1524 = vld [vmem:[%s443 + $0x9e8] sm:$0xf]
        %v1525 = vld [vmem:[%s443 + $0x9f0] sm:$0xf]
        %v1526 = vld [vmem:[%s443 + $0x9f8] sm:$0xf]
        %v1527 = vld [vmem:[%s443 + $0xa00] sm:$0xf]
        %v1528 = vld [vmem:[%s443 + $0xa08] sm:$0xf]
        %v1529 = vld [vmem:[%s443 + $0xa10] sm:$0xf]
        %v1530 = vld [vmem:[%s443 + $0xa18] sm:$0xf]
        %v1531 = vld [vmem:[%s443 + $0xa20] sm:$0xf]
        %v1532 = vld [vmem:[%s443 + $0xa28] sm:$0xf]
        %v1533 = vld [vmem:[%s443 + $0xa30] sm:$0xf]
        %v1534 = vld [vmem:[%s443 + $0xa38] sm:$0xf]
        %v1535 = vld [vmem:[%s443 + $0xa40] sm:$0xf]
        %v1536 = vld [vmem:[%s443 + $0xa48] sm:$0xf]
        %v1537 = vld [vmem:[%s443 + $0xa50] sm:$0xf]
        %v1538 = vld [vmem:[%s443 + $0xa58] sm:$0xf]
        %v1539 = vld [vmem:[%s443 + $0xa60] sm:$0xf]
        %v1540 = vld [vmem:[%s443 + $0xa68] sm:$0xf]
        %v1541 = vld [vmem:[%s443 + $0xa70] sm:$0xf]
        %v1542 = vld [vmem:[%s443 + $0xa78] sm:$0xf]
        %v1543 = vld [vmem:[%s443 + $0xa80] sm:$0xf]
        %v1544 = vld [vmem:[%s443 + $0xa88] sm:$0xf]
        %v1545 = vld [vmem:[%s443 + $0xa90] sm:$0xf]
        %v1546 = vld [vmem:[%s443 + $0xa98] sm:$0xf]
        %v1547 = vld [vmem:[%s443 + $0xaa0] sm:$0xf]
        %v1548 = vld [vmem:[%s443 + $0xaa8] sm:$0xf]
        %v1549 = vld [vmem:[%s443 + $0xab0] sm:$0xf]
        %v1550 = vld [vmem:[%s443 + $0xab8] sm:$0xf]
        %v1551 = vld [vmem:[%s443 + $0xac0] sm:$0xf]
        %v1552 = vld [vmem:[%s443 + $0xac8] sm:$0xf]
        %v1553 = vld [vmem:[%s443 + $0xad0] sm:$0xf]
        %v1554 = vld [vmem:[%s443 + $0xad8] sm:$0xf]
        %v1555 = vld [vmem:[%s443 + $0xae0] sm:$0xf]
        %v1556 = vld [vmem:[%s443 + $0xae8] sm:$0xf]
        %v1557 = vld [vmem:[%s443 + $0xaf0] sm:$0xf]
        %v1558 = vld [vmem:[%s443 + $0xaf8] sm:$0xf]
        %v1559 = vld [vmem:[%s443 + $0xb00] sm:$0xf]
        %v1560 = vld [vmem:[%s443 + $0xb08] sm:$0xf]
        %v1561 = vld [vmem:[%s443 + $0xb10] sm:$0xf]
        %v1562 = vld [vmem:[%s443 + $0xb18] sm:$0xf]
        %v1563 = vld [vmem:[%s443 + $0xb20] sm:$0xf]
        %v1564 = vld [vmem:[%s443 + $0xb28] sm:$0xf]
        %v1565 = vld [vmem:[%s443 + $0xb30] sm:$0xf]
        %v1566 = vld [vmem:[%s443 + $0xb38] sm:$0xf]
        %v1567 = vld [vmem:[%s443 + $0xb40] sm:$0xf]
        %v1568 = vld [vmem:[%s443 + $0xb48] sm:$0xf]
        %v1569 = vld [vmem:[%s443 + $0xb50] sm:$0xf]
        %v1570 = vld [vmem:[%s443 + $0xb58] sm:$0xf]
        %v1571 = vld [vmem:[%s443 + $0xb60] sm:$0xf]
        %v1572 = vld [vmem:[%s443 + $0xb68] sm:$0xf]
        %v1573 = vld [vmem:[%s443 + $0xb70] sm:$0xf]
        %v1574 = vld [vmem:[%s443 + $0xb78] sm:$0xf]
        %v1575 = vld [vmem:[%s443 + $0xb80] sm:$0xf]
        %v1576 = vld [vmem:[%s443 + $0xb88] sm:$0xf]
        %v1577 = vld [vmem:[%s443 + $0xb90] sm:$0xf]
        %v1578 = vld [vmem:[%s443 + $0xb98] sm:$0xf]
        %v1579 = vld [vmem:[%s443 + $0xba0] sm:$0xf]
        %v1580 = vld [vmem:[%s443 + $0xba8] sm:$0xf]
        %v1581 = vld [vmem:[%s443 + $0xbb0] sm:$0xf]
        %v1582 = vld [vmem:[%s443 + $0xbb8] sm:$0xf]
        %v1583 = vld [vmem:[%s443 + $0xbc0] sm:$0xf]
        %v1584 = vld [vmem:[%s443 + $0xbc8] sm:$0xf]
        %v1585 = vld [vmem:[%s443 + $0xbd0] sm:$0xf]
        %v1586 = vld [vmem:[%s443 + $0xbd8] sm:$0xf]
        %v1587 = vld [vmem:[%s443 + $0xbe0] sm:$0xf]
        %v1588 = vld [vmem:[%s443 + $0xbe8] sm:$0xf]
        %v1589 = vld [vmem:[%s443 + $0xbf0] sm:$0xf]
        %v1590 = vld [vmem:[%s443 + $0xbf8] sm:$0xf]
        %vm1591 = vcmask 162816
        %v1593 = vsel %vm1591, %v1195, 0
        %vm1595 = vcmask 1043456
        %v1597 = vsel %vm1595, %v1463, 0
        %v1600 = vsel %vm1595, %v1464, 0
        %v1603 = vsel %vm1595, %v1465, 0
        %v1606 = vsel %vm1595, %v1466, 0
        %v1609 = vsel %vm1595, %v1467, 0
        %v1612 = vsel %vm1595, %v1468, 0
        %v1615 = vsel %vm1595, %v1469, 0
        %v1618 = vsel %vm1595, %v1470, 0
        %v1621 = vsel %vm1595, %v1471, 0
        %v1624 = vsel %vm1595, %v1472, 0
        %v1627 = vsel %vm1595, %v1473, 0
        %v1630 = vsel %vm1595, %v1474, 0
        %v1633 = vsel %vm1595, %v1475, 0
        %v1636 = vsel %vm1595, %v1476, 0
        %v1639 = vsel %vm1595, %v1477, 0
        %v1642 = vsel %vm1595, %v1478, 0
        %v1645 = vsel %vm1595, %v1479, 0
        %v1648 = vsel %vm1595, %v1480, 0
        %v1651 = vsel %vm1595, %v1481, 0
        %v1654 = vsel %vm1595, %v1482, 0
        %v1657 = vsel %vm1595, %v1483, 0
        %v1660 = vsel %vm1595, %v1484, 0
        %v1663 = vsel %vm1595, %v1485, 0
        %v1666 = vsel %vm1595, %v1486, 0
        %v1669 = vsel %vm1595, %v1487, 0
        %v1672 = vsel %vm1595, %v1488, 0
        %v1675 = vsel %vm1595, %v1489, 0
        %v1678 = vsel %vm1595, %v1490, 0
        %v1681 = vsel %vm1595, %v1491, 0
        %v1684 = vsel %vm1595, %v1492, 0
        %v1687 = vsel %vm1595, %v1493, 0
        %v1690 = vsel %vm1595, %v1494, 0
        %v1693 = vsel %vm1595, %v1495, 0
        %v1696 = vsel %vm1595, %v1496, 0
        %v1699 = vsel %vm1595, %v1497, 0
        %v1702 = vsel %vm1595, %v1498, 0
        %v1705 = vsel %vm1595, %v1499, 0
        %v1708 = vsel %vm1595, %v1500, 0
        %v1711 = vsel %vm1595, %v1501, 0
        %v1714 = vsel %vm1595, %v1502, 0
        %v1717 = vsel %vm1595, %v1503, 0
        %v1720 = vsel %vm1595, %v1504, 0
        %v1723 = vsel %vm1595, %v1505, 0
        %v1726 = vsel %vm1595, %v1506, 0
        %v1729 = vsel %vm1595, %v1507, 0
        %v1732 = vsel %vm1595, %v1508, 0
        %v1735 = vsel %vm1595, %v1509, 0
        %v1738 = vsel %vm1595, %v1510, 0
        %v1741 = vsel %vm1595, %v1511, 0
        %v1744 = vsel %vm1595, %v1512, 0
        %v1747 = vsel %vm1595, %v1513, 0
        %v1750 = vsel %vm1595, %v1514, 0
        %v1753 = vsel %vm1595, %v1515, 0
        %v1756 = vsel %vm1595, %v1516, 0
        %v1759 = vsel %vm1595, %v1517, 0
        %v1762 = vsel %vm1595, %v1518, 0
        %v1765 = vsel %vm1595, %v1519, 0
        %v1768 = vsel %vm1595, %v1520, 0
        %v1771 = vsel %vm1595, %v1521, 0
        %v1774 = vsel %vm1595, %v1522, 0
        %v1777 = vsel %vm1595, %v1523, 0
        %v1780 = vsel %vm1595, %v1524, 0
        %v1783 = vsel %vm1595, %v1525, 0
        %v1786 = vsel %vm1595, %v1526, 0
        %v1789 = vsel %vm1595, %v1527, 0
        %v1792 = vsel %vm1595, %v1528, 0
        %v1795 = vsel %vm1595, %v1529, 0
        %v1798 = vsel %vm1595, %v1530, 0
        %v1801 = vsel %vm1595, %v1531, 0
        %v1804 = vsel %vm1595, %v1532, 0
        %v1807 = vsel %vm1595, %v1533, 0
        %v1810 = vsel %vm1595, %v1534, 0
        %v1813 = vsel %vm1595, %v1535, 0
        %v1816 = vsel %vm1595, %v1536, 0
        %v1819 = vsel %vm1595, %v1537, 0
        %v1822 = vsel %vm1595, %v1538, 0
        %v1825 = vsel %vm1595, %v1539, 0
        %v1828 = vsel %vm1595, %v1540, 0
        %v1831 = vsel %vm1595, %v1541, 0
        %v1834 = vsel %vm1595, %v1542, 0
        %v1837 = vsel %vm1595, %v1543, 0
        %v1840 = vsel %vm1595, %v1544, 0
        %v1843 = vsel %vm1595, %v1545, 0
        %v1846 = vsel %vm1595, %v1546, 0
        %v1849 = vsel %vm1595, %v1547, 0
        %v1852 = vsel %vm1595, %v1548, 0
        %v1855 = vsel %vm1595, %v1549, 0
        %v1858 = vsel %vm1595, %v1550, 0
        %v1861 = vsel %vm1595, %v1551, 0
        %v1864 = vsel %vm1595, %v1552, 0
        %v1867 = vsel %vm1595, %v1553, 0
        %v1870 = vsel %vm1595, %v1554, 0
        %v1873 = vsel %vm1595, %v1555, 0
        %v1876 = vsel %vm1595, %v1556, 0
        %v1879 = vsel %vm1595, %v1557, 0
        %v1882 = vsel %vm1595, %v1558, 0
        %v1885 = vsel %vm1595, %v1559, 0
        %v1888 = vsel %vm1595, %v1560, 0
        %v1891 = vsel %vm1595, %v1561, 0
        %v1894 = vsel %vm1595, %v1562, 0
        %v1897 = vsel %vm1595, %v1563, 0
        %v1900 = vsel %vm1595, %v1564, 0
        %v1903 = vsel %vm1595, %v1565, 0
        %v1906 = vsel %vm1595, %v1566, 0
        %v1909 = vsel %vm1595, %v1567, 0
        %v1912 = vsel %vm1595, %v1568, 0
        %v1915 = vsel %vm1595, %v1569, 0
        %v1918 = vsel %vm1595, %v1570, 0
        %v1921 = vsel %vm1595, %v1571, 0
        %v1924 = vsel %vm1595, %v1572, 0
        %v1927 = vsel %vm1595, %v1573, 0
        %v1930 = vsel %vm1595, %v1574, 0
        %v1933 = vsel %vm1595, %v1575, 0
        %v1936 = vsel %vm1595, %v1576, 0
        %v1939 = vsel %vm1595, %v1577, 0
        %v1942 = vsel %vm1595, %v1578, 0
        %v1945 = vsel %vm1595, %v1579, 0
        %v1948 = vsel %vm1595, %v1580, 0
        %v1951 = vsel %vm1595, %v1581, 0
        %v1954 = vsel %vm1595, %v1582, 0
        %v1957 = vsel %vm1595, %v1583, 0
        %v1960 = vsel %vm1595, %v1584, 0
        %v1963 = vsel %vm1595, %v1585, 0
        %v1966 = vsel %vm1595, %v1586, 0
        %v1969 = vsel %vm1595, %v1587, 0
        %v1972 = vsel %vm1595, %v1588, 0
        %v1975 = vsel %vm1595, %v1589, 0
        %v1978 = vsel %vm1595, %v1590, 0
        %1980 = vmatprep.subr.mxu0 %v1208
        %1981 = vmatpush1.msra.mxu0 %v1207
        %1982 = vmatprep.subr.mxu0 %v1336
        %1983 = vmatpush1.msra.mxu0 %v1335
        %1984 = vmatprep.subr.mxu0 %v1600
        %1985 = vmatpush1.msra.mxu0 %v1597
        %1986 = vmatprep.subr.mxu0 0.0
        %1987 = vmatpush1.msra.mxu0 0.0
        %1988 = vmatprep.subr.mxu0 0.0
        %1989 = vmatpush1.msra.mxu0 0.0
        %1990 = vmatprep.subr.mxu0 0.0
        %1991 = vmatpush1.msra.mxu0 0.0
        %1992 = vmatprep.subr.mxu0 0.0
        %1993 = vmatpush1.msra.mxu0 0.0
        %1994 = vmatprep.subr.mxu0 0.0
        %1995 = vmatpush1.msra.mxu0 0.0
        %1996 = vmatprep.subr.mxu0 0.0
        %1997 = vmatpush1.msra.mxu0 0.0
        %1998 = vmatprep.subr.mxu0 0.0
        %1999 = vmatpush1.msra.mxu0 0.0
        %2000 = vmatprep.subr.mxu0 0.0
        %2001 = vmatpush1.msra.mxu0 0.0
        %2002 = vmatprep.subr.mxu0 0.0
        %2003 = vmatpush1.msra.mxu0 0.0
        %2004 = vmatprep.subr.mxu0 0.0
        %2005 = vmatpush1.msra.mxu0 0.0
        %2006 = vmatprep.subr.mxu0 0.0
        %2007 = vmatpush1.msra.mxu0 0.0
        %2008 = vmatprep.subr.mxu0 0.0
        %2009 = vmatpush1.msra.mxu0 0.0
        %2010 = vmatprep.subr.mxu0 0.0
        %2011 = vmatpush1.msra.mxu0 0.0
        %2012 = vmatprep.subr.mxu0 0.0
        %2013 = vmatpush1.msra.mxu0 0.0
        %2014 = vmatprep.subr.mxu0 0.0
        %2015 = vmatpush1.msra.mxu0 0.0
        %2016 = vmatprep.subr.mxu0 0.0
        %2017 = vmatpush1.msra.mxu0 0.0
        %2018 = vmatprep.subr.mxu0 0.0
        %2019 = vmatpush1.msra.mxu0 0.0
        %2020 = vmatprep.subr.mxu0 0.0
        %2021 = vmatpush1.msra.mxu0 0.0
        %2022 = vmatprep.subr.mxu0 0.0
        %2023 = vmatpush1.msra.mxu0 0.0
        %2024 = vmatprep.subr.mxu0 0.0
        %2025 = vmatpush1.msra.mxu0 0.0
        %2026 = vmatprep.subr.mxu0 0.0
        %2027 = vmatpush1.msra.mxu0 0.0
        %2028 = vmatprep.subr.mxu0 0.0
        %2029 = vmatpush1.msra.mxu0 0.0
        %2030 = vmatprep.subr.mxu0 0.0
        %2031 = vmatpush1.msra.mxu0 0.0
        %2032 = vmatprep.subr.mxu0 0.0
        %2033 = vmatpush1.msra.mxu0 0.0
        %2034 = vmatprep.subr.mxu0 0.0
        %2035 = vmatpush1.msra.mxu0 0.0
        %2036 = vmatprep.subr.mxu0 0.0
        %2037 = vmatpush1.msra.mxu0 0.0
        %2038 = vmatprep.subr.mxu0 0.0
        %2039 = vmatpush1.msra.mxu0 0.0
        %2040 = vmatprep.subr.mxu0 0.0
        %2041 = vmatpush1.msra.mxu0 0.0
        %2042 = vmatprep.subr.mxu0 0.0
        %2043 = vmatpush1.msra.mxu0 0.0
        %2044 = vmatprep.mubr.f32.mxu0 0.0
        %2045 = vmatmul.mubr.f32.gmra.mrb[0].mxu0 %v1593
        %v2046 = vpop.f32.mrb[0].mxu0
        %v2047 = vadd.f32 0.0, %v2046
        %v2048 = vpop.f32.mrb[0].mxu0
        %v2049 = vadd.f32 0.0, %v2048
        %2050 = vdwg.mxu0
        %2051 = vmatprep.subr.mxu0 %v1210
        %2052 = vmatpush1.msra.mxu0 %v1209
        %2053 = vmatprep.subr.mxu0 %v1338
        %2054 = vmatpush1.msra.mxu0 %v1337
        %2055 = vmatprep.subr.mxu0 %v1606
        %2056 = vmatpush1.msra.mxu0 %v1603
        %2057 = vmatprep.subr.mxu0 0.0
        %2058 = vmatpush1.msra.mxu0 0.0
        %2059 = vmatprep.subr.mxu0 0.0
        %2060 = vmatpush1.msra.mxu0 0.0
        %2061 = vmatprep.subr.mxu0 0.0
        %2062 = vmatpush1.msra.mxu0 0.0
        %2063 = vmatprep.subr.mxu0 0.0
        %2064 = vmatpush1.msra.mxu0 0.0
        %2065 = vmatprep.subr.mxu0 0.0
        %2066 = vmatpush1.msra.mxu0 0.0
        %2067 = vmatprep.subr.mxu0 0.0
        %2068 = vmatpush1.msra.mxu0 0.0
        %2069 = vmatprep.subr.mxu0 0.0
        %2070 = vmatpush1.msra.mxu0 0.0
        %2071 = vmatprep.subr.mxu0 0.0
        %2072 = vmatpush1.msra.mxu0 0.0
        %2073 = vmatprep.subr.mxu0 0.0
        %2074 = vmatpush1.msra.mxu0 0.0
        %2075 = vmatprep.subr.mxu0 0.0
        %2076 = vmatpush1.msra.mxu0 0.0
        %2077 = vmatprep.subr.mxu0 0.0
        %2078 = vmatpush1.msra.mxu0 0.0
        %2079 = vmatprep.subr.mxu0 0.0
        %2080 = vmatpush1.msra.mxu0 0.0
        %2081 = vmatprep.subr.mxu0 0.0
        %2082 = vmatpush1.msra.mxu0 0.0
        %2083 = vmatprep.subr.mxu0 0.0
        %2084 = vmatpush1.msra.mxu0 0.0
        %2085 = vmatprep.subr.mxu0 0.0
        %2086 = vmatpush1.msra.mxu0 0.0
        %2087 = vmatprep.subr.mxu0 0.0
        %2088 = vmatpush1.msra.mxu0 0.0
        %2089 = vmatprep.subr.mxu0 0.0
        %2090 = vmatpush1.msra.mxu0 0.0
        %2091 = vmatprep.subr.mxu0 0.0
        %2092 = vmatpush1.msra.mxu0 0.0
        %2093 = vmatprep.subr.mxu0 0.0
        %2094 = vmatpush1.msra.mxu0 0.0
        %2095 = vmatprep.subr.mxu0 0.0
        %2096 = vmatpush1.msra.mxu0 0.0
        %2097 = vmatprep.subr.mxu0 0.0
        %2098 = vmatpush1.msra.mxu0 0.0
        %2099 = vmatprep.subr.mxu0 0.0
        %2100 = vmatpush1.msra.mxu0 0.0
        %2101 = vmatprep.subr.mxu0 0.0
        %2102 = vmatpush1.msra.mxu0 0.0
        %2103 = vmatprep.subr.mxu0 0.0
        %2104 = vmatpush1.msra.mxu0 0.0
        %2105 = vmatprep.subr.mxu0 0.0
        %2106 = vmatpush1.msra.mxu0 0.0
        %2107 = vmatprep.subr.mxu0 0.0
        %2108 = vmatpush1.msra.mxu0 0.0
        %2109 = vmatprep.subr.mxu0 0.0
        %2110 = vmatpush1.msra.mxu0 0.0
        %2111 = vmatprep.subr.mxu0 0.0
        %2112 = vmatpush1.msra.mxu0 0.0
        %2113 = vmatprep.subr.mxu0 0.0
        %2114 = vmatpush1.msra.mxu0 0.0
        %2115 = vmatprep.mubr.f32.mxu0 0.0
        %2116 = vmatmul.mubr.f32.gmra.mrb[0].mxu0 %v1593
        %v2117 = vpop.f32.mrb[0].mxu0
        %v2118 = vadd.f32 0.0, %v2117
        %v2119 = vpop.f32.mrb[0].mxu0
        %v2120 = vadd.f32 0.0, %v2119
        %2121 = vdwg.mxu0
        %2122 = vmatprep.subr.mxu0 %v1212
        %2123 = vmatpush1.msra.mxu0 %v1211
        %2124 = vmatprep.subr.mxu0 %v1340
        %2125 = vmatpush1.msra.mxu0 %v1339
        %2126 = vmatprep.subr.mxu0 %v1612
        %2127 = vmatpush1.msra.mxu0 %v1609
        %2128 = vmatprep.subr.mxu0 0.0
        %2129 = vmatpush1.msra.mxu0 0.0
        %2130 = vmatprep.subr.mxu0 0.0
        %2131 = vmatpush1.msra.mxu0 0.0
        %2132 = vmatprep.subr.mxu0 0.0
        %2133 = vmatpush1.msra.mxu0 0.0
        %2134 = vmatprep.subr.mxu0 0.0
        %2135 = vmatpush1.msra.mxu0 0.0
        %2136 = vmatprep.subr.mxu0 0.0
        %2137 = vmatpush1.msra.mxu0 0.0
        %2138 = vmatprep.subr.mxu0 0.0
        %2139 = vmatpush1.msra.mxu0 0.0
        %2140 = vmatprep.subr.mxu0 0.0
        %2141 = vmatpush1.msra.mxu0 0.0
        %2142 = vmatprep.subr.mxu0 0.0
        %2143 = vmatpush1.msra.mxu0 0.0
        %2144 = vmatprep.subr.mxu0 0.0
        %2145 = vmatpush1.msra.mxu0 0.0
        %2146 = vmatprep.subr.mxu0 0.0
        %2147 = vmatpush1.msra.mxu0 0.0
        %2148 = vmatprep.subr.mxu0 0.0
        %2149 = vmatpush1.msra.mxu0 0.0
        %2150 = vmatprep.subr.mxu0 0.0
        %2151 = vmatpush1.msra.mxu0 0.0
        %2152 = vmatprep.subr.mxu0 0.0
        %2153 = vmatpush1.msra.mxu0 0.0
        %2154 = vmatprep.subr.mxu0 0.0
        %2155 = vmatpush1.msra.mxu0 0.0
        %2156 = vmatprep.subr.mxu0 0.0
        %2157 = vmatpush1.msra.mxu0 0.0
        %2158 = vmatprep.subr.mxu0 0.0
        %2159 = vmatpush1.msra.mxu0 0.0
        %2160 = vmatprep.subr.mxu0 0.0
        %2161 = vmatpush1.msra.mxu0 0.0
        %2162 = vmatprep.subr.mxu0 0.0
        %2163 = vmatpush1.msra.mxu0 0.0
        %2164 = vmatprep.subr.mxu0 0.0
        %2165 = vmatpush1.msra.mxu0 0.0
        %2166 = vmatprep.subr.mxu0 0.0
        %2167 = vmatpush1.msra.mxu0 0.0
        %2168 = vmatprep.subr.mxu0 0.0
        %2169 = vmatpush1.msra.mxu0 0.0
        %2170 = vmatprep.subr.mxu0 0.0
        %2171 = vmatpush1.msra.mxu0 0.0
        %2172 = vmatprep.subr.mxu0 0.0
        %2173 = vmatpush1.msra.mxu0 0.0
        %2174 = vmatprep.subr.mxu0 0.0
        %2175 = vmatpush1.msra.mxu0 0.0
        %2176 = vmatprep.subr.mxu0 0.0
        %2177 = vmatpush1.msra.mxu0 0.0
        %2178 = vmatprep.subr.mxu0 0.0
        %2179 = vmatpush1.msra.mxu0 0.0
        %2180 = vmatprep.subr.mxu0 0.0
        %2181 = vmatpush1.msra.mxu0 0.0
        %2182 = vmatprep.subr.mxu0 0.0
        %2183 = vmatpush1.msra.mxu0 0.0
        %2184 = vmatprep.subr.mxu0 0.0
        %2185 = vmatpush1.msra.mxu0 0.0
        %2186 = vmatprep.mubr.f32.mxu0 0.0
        %2187 = vmatmul.mubr.f32.gmra.mrb[0].mxu0 %v1593
        %v2188 = vpop.f32.mrb[0].mxu0
        %v2189 = vadd.f32 0.0, %v2188
        %v2190 = vpop.f32.mrb[0].mxu0
        %v2191 = vadd.f32 0.0, %v2190
        %2192 = vdwg.mxu0
        %2193 = vmatprep.subr.mxu0 %v1214
        %2194 = vmatpush1.msra.mxu0 %v1213
        %2195 = vmatprep.subr.mxu0 %v1342
        %2196 = vmatpush1.msra.mxu0 %v1341
        %2197 = vmatprep.subr.mxu0 %v1618
        %2198 = vmatpush1.msra.mxu0 %v1615
        %2199 = vmatprep.subr.mxu0 0.0
        %2200 = vmatpush1.msra.mxu0 0.0
        %2201 = vmatprep.subr.mxu0 0.0
        %2202 = vmatpush1.msra.mxu0 0.0
        %2203 = vmatprep.subr.mxu0 0.0
        %2204 = vmatpush1.msra.mxu0 0.0
        %2205 = vmatprep.subr.mxu0 0.0
        %2206 = vmatpush1.msra.mxu0 0.0
        %2207 = vmatprep.subr.mxu0 0.0
        %2208 = vmatpush1.msra.mxu0 0.0
        %2209 = vmatprep.subr.mxu0 0.0
        %2210 = vmatpush1.msra.mxu0 0.0
        %2211 = vmatprep.subr.mxu0 0.0
        %2212 = vmatpush1.msra.mxu0 0.0
        %2213 = vmatprep.subr.mxu0 0.0
        %2214 = vmatpush1.msra.mxu0 0.0
        %2215 = vmatprep.subr.mxu0 0.0
        %2216 = vmatpush1.msra.mxu0 0.0
        %2217 = vmatprep.subr.mxu0 0.0
        %2218 = vmatpush1.msra.mxu0 0.0
        %2219 = vmatprep.subr.mxu0 0.0
        %2220 = vmatpush1.msra.mxu0 0.0
        %2221 = vmatprep.subr.mxu0 0.0
        %2222 = vmatpush1.msra.mxu0 0.0
        %2223 = vmatprep.subr.mxu0 0.0
        %2224 = vmatpush1.msra.mxu0 0.0
        %2225 = vmatprep.subr.mxu0 0.0
        %2226 = vmatpush1.msra.mxu0 0.0
        %2227 = vmatprep.subr.mxu0 0.0
        %2228 = vmatpush1.msra.mxu0 0.0
        %2229 = vmatprep.subr.mxu0 0.0
        %2230 = vmatpush1.msra.mxu0 0.0
        %2231 = vmatprep.subr.mxu0 0.0
        %2232 = vmatpush1.msra.mxu0 0.0
        %2233 = vmatprep.subr.mxu0 0.0
        %2234 = vmatpush1.msra.mxu0 0.0
        %2235 = vmatprep.subr.mxu0 0.0
        %2236 = vmatpush1.msra.mxu0 0.0
        %2237 = vmatprep.subr.mxu0 0.0
        %2238 = vmatpush1.msra.mxu0 0.0
        %2239 = vmatprep.subr.mxu0 0.0
        %2240 = vmatpush1.msra.mxu0 0.0
        %2241 = vmatprep.subr.mxu0 0.0
        %2242 = vmatpush1.msra.mxu0 0.0
        %2243 = vmatprep.subr.mxu0 0.0
        %2244 = vmatpush1.msra.mxu0 0.0
        %2245 = vmatprep.subr.mxu0 0.0
        %2246 = vmatpush1.msra.mxu0 0.0
        %2247 = vmatprep.subr.mxu0 0.0
        %2248 = vmatpush1.msra.mxu0 0.0
        %2249 = vmatprep.subr.mxu0 0.0
        %2250 = vmatpush1.msra.mxu0 0.0
        %2251 = vmatprep.subr.mxu0 0.0
        %2252 = vmatpush1.msra.mxu0 0.0
        %2253 = vmatprep.subr.mxu0 0.0
        %2254 = vmatpush1.msra.mxu0 0.0
        %2255 = vmatprep.subr.mxu0 0.0
        %2256 = vmatpush1.msra.mxu0 0.0
        %2257 = vmatprep.mubr.f32.mxu0 0.0
        %2258 = vmatmul.mubr.f32.gmra.mrb[0].mxu0 %v1593
        %v2259 = vpop.f32.mrb[0].mxu0
        %v2260 = vadd.f32 0.0, %v2259
        %v2261 = vpop.f32.mrb[0].mxu0
        %v2262 = vadd.f32 0.0, %v2261
        %2263 = vdwg.mxu0
        %2264 = vmatprep.subr.mxu0 %v1216
        %2265 = vmatpush1.msra.mxu0 %v1215
        %2266 = vmatprep.subr.mxu0 %v1344
        %2267 = vmatpush1.msra.mxu0 %v1343
        %2268 = vmatprep.subr.mxu0 %v1624
        %2269 = vmatpush1.msra.mxu0 %v1621
        %2270 = vmatprep.subr.mxu0 0.0
        %2271 = vmatpush1.msra.mxu0 0.0
        %2272 = vmatprep.subr.mxu0 0.0
        %2273 = vmatpush1.msra.mxu0 0.0
        %2274 = vmatprep.subr.mxu0 0.0
        %2275 = vmatpush1.msra.mxu0 0.0
        %2276 = vmatprep.subr.mxu0 0.0
        %2277 = vmatpush1.msra.mxu0 0.0
        %2278 = vmatprep.subr.mxu0 0.0
        %2279 = vmatpush1.msra.mxu0 0.0
        %2280 = vmatprep.subr.mxu0 0.0
        %2281 = vmatpush1.msra.mxu0 0.0
        %2282 = vmatprep.subr.mxu0 0.0
        %2283 = vmatpush1.msra.mxu0 0.0
        %2284 = vmatprep.subr.mxu0 0.0
        %2285 = vmatpush1.msra.mxu0 0.0
        %2286 = vmatprep.subr.mxu0 0.0
        %2287 = vmatpush1.msra.mxu0 0.0
        %2288 = vmatprep.subr.mxu0 0.0
        %2289 = vmatpush1.msra.mxu0 0.0
        %2290 = vmatprep.subr.mxu0 0.0
        %2291 = vmatpush1.msra.mxu0 0.0
        %2292 = vmatprep.subr.mxu0 0.0
        %2293 = vmatpush1.msra.mxu0 0.0
        %2294 = vmatprep.subr.mxu0 0.0
        %2295 = vmatpush1.msra.mxu0 0.0
        %2296 = vmatprep.subr.mxu0 0.0
        %2297 = vmatpush1.msra.mxu0 0.0
        %2298 = vmatprep.subr.mxu0 0.0
        %2299 = vmatpush1.msra.mxu0 0.0
        %2300 = vmatprep.subr.mxu0 0.0
        %2301 = vmatpush1.msra.mxu0 0.0
        %2302 = vmatprep.subr.mxu0 0.0
        %2303 = vmatpush1.msra.mxu0 0.0
        %2304 = vmatprep.subr.mxu0 0.0
        %2305 = vmatpush1.msra.mxu0 0.0
        %2306 = vmatprep.subr.mxu0 0.0
        %2307 = vmatpush1.msra.mxu0 0.0
        %2308 = vmatprep.subr.mxu0 0.0
        %2309 = vmatpush1.msra.mxu0 0.0
        %2310 = vmatprep.subr.mxu0 0.0
        %2311 = vmatpush1.msra.mxu0 0.0
        %2312 = vmatprep.subr.mxu0 0.0
        %2313 = vmatpush1.msra.mxu0 0.0
        %2314 = vmatprep.subr.mxu0 0.0
        %2315 = vmatpush1.msra.mxu0 0.0
        %2316 = vmatprep.subr.mxu0 0.0
        %2317 = vmatpush1.msra.mxu0 0.0
        %2318 = vmatprep.subr.mxu0 0.0
        %2319 = vmatpush1.msra.mxu0 0.0
        %2320 = vmatprep.subr.mxu0 0.0
        %2321 = vmatpush1.msra.mxu0 0.0
        %2322 = vmatprep.subr.mxu0 0.0
        %2323 = vmatpush1.msra.mxu0 0.0
        %2324 = vmatprep.subr.mxu0 0.0
        %2325 = vmatpush1.msra.mxu0 0.0
        %2326 = vmatprep.subr.mxu0 0.0
        %2327 = vmatpush1.msra.mxu0 0.0
        %2328 = vmatprep.mubr.f32.mxu0 0.0
        %2329 = vmatmul.mubr.f32.gmra.mrb[0].mxu0 %v1593
        %v2330 = vpop.f32.mrb[0].mxu0
        %v2331 = vadd.f32 0.0, %v2330
        %v2332 = vpop.f32.mrb[0].mxu0
        %v2333 = vadd.f32 0.0, %v2332
        %2334 = vdwg.mxu0
        %2335 = vmatprep.subr.mxu0 %v1218
        %2336 = vmatpush1.msra.mxu0 %v1217
        %2337 = vmatprep.subr.mxu0 %v1346
        %2338 = vmatpush1.msra.mxu0 %v1345
        %2339 = vmatprep.subr.mxu0 %v1630
        %2340 = vmatpush1.msra.mxu0 %v1627
        %2341 = vmatprep.subr.mxu0 0.0
        %2342 = vmatpush1.msra.mxu0 0.0
        %2343 = vmatprep.subr.mxu0 0.0
        %2344 = vmatpush1.msra.mxu0 0.0
        %2345 = vmatprep.subr.mxu0 0.0
        %2346 = vmatpush1.msra.mxu0 0.0
        %2347 = vmatprep.subr.mxu0 0.0
        %2348 = vmatpush1.msra.mxu0 0.0
        %2349 = vmatprep.subr.mxu0 0.0
        %2350 = vmatpush1.msra.mxu0 0.0
        %2351 = vmatprep.subr.mxu0 0.0
        %2352 = vmatpush1.msra.mxu0 0.0
        %2353 = vmatprep.subr.mxu0 0.0
        %2354 = vmatpush1.msra.mxu0 0.0
        %2355 = vmatprep.subr.mxu0 0.0
        %2356 = vmatpush1.msra.mxu0 0.0
        %2357 = vmatprep.subr.mxu0 0.0
        %2358 = vmatpush1.msra.mxu0 0.0
        %2359 = vmatprep.subr.mxu0 0.0
        %2360 = vmatpush1.msra.mxu0 0.0
        %2361 = vmatprep.subr.mxu0 0.0
        %2362 = vmatpush1.msra.mxu0 0.0
        %2363 = vmatprep.subr.mxu0 0.0
        %2364 = vmatpush1.msra.mxu0 0.0
        %2365 = vmatprep.subr.mxu0 0.0
        %2366 = vmatpush1.msra.mxu0 0.0
        %2367 = vmatprep.subr.mxu0 0.0
        %2368 = vmatpush1.msra.mxu0 0.0
        %2369 = vmatprep.subr.mxu0 0.0
        %2370 = vmatpush1.msra.mxu0 0.0
        %2371 = vmatprep.subr.mxu0 0.0
        %2372 = vmatpush1.msra.mxu0 0.0
        %2373 = vmatprep.subr.mxu0 0.0
        %2374 = vmatpush1.msra.mxu0 0.0
        %2375 = vmatprep.subr.mxu0 0.0
        %2376 = vmatpush1.msra.mxu0 0.0
        %2377 = vmatprep.subr.mxu0 0.0
        %2378 = vmatpush1.msra.mxu0 0.0
        %2379 = vmatprep.subr.mxu0 0.0
        %2380 = vmatpush1.msra.mxu0 0.0
        %2381 = vmatprep.subr.mxu0 0.0
        %2382 = vmatpush1.msra.mxu0 0.0
        %2383 = vmatprep.subr.mxu0 0.0
        %2384 = vmatpush1.msra.mxu0 0.0
        %2385 = vmatprep.subr.mxu0 0.0
        %2386 = vmatpush1.msra.mxu0 0.0
        %2387 = vmatprep.subr.mxu0 0.0
        %2388 = vmatpush1.msra.mxu0 0.0
        %2389 = vmatprep.subr.mxu0 0.0
        %2390 = vmatpush1.msra.mxu0 0.0
        %2391 = vmatprep.subr.mxu0 0.0
        %2392 = vmatpush1.msra.mxu0 0.0
        %2393 = vmatprep.subr.mxu0 0.0
        %2394 = vmatpush1.msra.mxu0 0.0
        %2395 = vmatprep.subr.mxu0 0.0
        %2396 = vmatpush1.msra.mxu0 0.0
        %2397 = vmatprep.subr.mxu0 0.0
        %2398 = vmatpush1.msra.mxu0 0.0
        %2399 = vmatprep.mubr.f32.mxu0 0.0
        %2400 = vmatmul.mubr.f32.gmra.mrb[0].mxu0 %v1593
        %v2401 = vpop.f32.mrb[0].mxu0
        %v2402 = vadd.f32 0.0, %v2401
        %v2403 = vpop.f32.mrb[0].mxu0
        %v2404 = vadd.f32 0.0, %v2403
        %2405 = vdwg.mxu0
        %2406 = vmatprep.subr.mxu0 %v1220
        %2407 = vmatpush1.msra.mxu0 %v1219
        %2408 = vmatprep.subr.mxu0 %v1348
        %2409 = vmatpush1.msra.mxu0 %v1347
        %2410 = vmatprep.subr.mxu0 %v1636
        %2411 = vmatpush1.msra.mxu0 %v1633
        %2412 = vmatprep.subr.mxu0 0.0
        %2413 = vmatpush1.msra.mxu0 0.0
        %2414 = vmatprep.subr.mxu0 0.0
        %2415 = vmatpush1.msra.mxu0 0.0
        %2416 = vmatprep.subr.mxu0 0.0
        %2417 = vmatpush1.msra.mxu0 0.0
        %2418 = vmatprep.subr.mxu0 0.0
        %2419 = vmatpush1.msra.mxu0 0.0
        %2420 = vmatprep.subr.mxu0 0.0
        %2421 = vmatpush1.msra.mxu0 0.0
        %2422 = vmatprep.subr.mxu0 0.0
        %2423 = vmatpush1.msra.mxu0 0.0
        %2424 = vmatprep.subr.mxu0 0.0
        %2425 = vmatpush1.msra.mxu0 0.0
        %2426 = vmatprep.subr.mxu0 0.0
        %2427 = vmatpush1.msra.mxu0 0.0
        %2428 = vmatprep.subr.mxu0 0.0
        %2429 = vmatpush1.msra.mxu0 0.0
        %2430 = vmatprep.subr.mxu0 0.0
        %2431 = vmatpush1.msra.mxu0 0.0
        %2432 = vmatprep.subr.mxu0 0.0
        %2433 = vmatpush1.msra.mxu0 0.0
        %2434 = vmatprep.subr.mxu0 0.0
        %2435 = vmatpush1.msra.mxu0 0.0
        %2436 = vmatprep.subr.mxu0 0.0
        %2437 = vmatpush1.msra.mxu0 0.0
        %2438 = vmatprep.subr.mxu0 0.0
        %2439 = vmatpush1.msra.mxu0 0.0
        %2440 = vmatprep.subr.mxu0 0.0
        %2441 = vmatpush1.msra.mxu0 0.0
        %2442 = vmatprep.subr.mxu0 0.0
        %2443 = vmatpush1.msra.mxu0 0.0
        %2444 = vmatprep.subr.mxu0 0.0
        %2445 = vmatpush1.msra.mxu0 0.0
        %2446 = vmatprep.subr.mxu0 0.0
        %2447 = vmatpush1.msra.mxu0 0.0
        %2448 = vmatprep.subr.mxu0 0.0
        %2449 = vmatpush1.msra.mxu0 0.0
        %2450 = vmatprep.subr.mxu0 0.0
        %2451 = vmatpush1.msra.mxu0 0.0
        %2452 = vmatprep.subr.mxu0 0.0
        %2453 = vmatpush1.msra.mxu0 0.0
        %2454 = vmatprep.subr.mxu0 0.0
        %2455 = vmatpush1.msra.mxu0 0.0
        %2456 = vmatprep.subr.mxu0 0.0
        %2457 = vmatpush1.msra.mxu0 0.0
        %2458 = vmatprep.subr.mxu0 0.0
        %2459 = vmatpush1.msra.mxu0 0.0
        %2460 = vmatprep.subr.mxu0 0.0
        %2461 = vmatpush1.msra.mxu0 0.0
        %2462 = vmatprep.subr.mxu0 0.0
        %2463 = vmatpush1.msra.mxu0 0.0
        %2464 = vmatprep.subr.mxu0 0.0
        %2465 = vmatpush1.msra.mxu0 0.0
        %2466 = vmatprep.subr.mxu0 0.0
        %2467 = vmatpush1.msra.mxu0 0.0
        %2468 = vmatprep.subr.mxu0 0.0
        %2469 = vmatpush1.msra.mxu0 0.0
        %2470 = vmatprep.mubr.f32.mxu0 0.0
        %2471 = vmatmul.mubr.f32.gmra.mrb[0].mxu0 %v1593
        %v2472 = vpop.f32.mrb[0].mxu0
        %v2473 = vadd.f32 0.0, %v2472
        %v2474 = vpop.f32.mrb[0].mxu0
        %v2475 = vadd.f32 0.0, %v2474
        %2476 = vdwg.mxu0
        %2477 = vmatprep.subr.mxu0 %v1222
        %2478 = vmatpush1.msra.mxu0 %v1221
        %2479 = vmatprep.subr.mxu0 %v1350
        %2480 = vmatpush1.msra.mxu0 %v1349
        %2481 = vmatprep.subr.mxu0 %v1642
        %2482 = vmatpush1.msra.mxu0 %v1639
        %2483 = vmatprep.subr.mxu0 0.0
        %2484 = vmatpush1.msra.mxu0 0.0
        %2485 = vmatprep.subr.mxu0 0.0
        %2486 = vmatpush1.msra.mxu0 0.0
        %2487 = vmatprep.subr.mxu0 0.0
        %2488 = vmatpush1.msra.mxu0 0.0
        %2489 = vmatprep.subr.mxu0 0.0
        %2490 = vmatpush1.msra.mxu0 0.0
        %2491 = vmatprep.subr.mxu0 0.0
        %2492 = vmatpush1.msra.mxu0 0.0
        %2493 = vmatprep.subr.mxu0 0.0
        %2494 = vmatpush1.msra.mxu0 0.0
        %2495 = vmatprep.subr.mxu0 0.0
        %2496 = vmatpush1.msra.mxu0 0.0
        %2497 = vmatprep.subr.mxu0 0.0
        %2498 = vmatpush1.msra.mxu0 0.0
        %2499 = vmatprep.subr.mxu0 0.0
        %2500 = vmatpush1.msra.mxu0 0.0
        %2501 = vmatprep.subr.mxu0 0.0
        %2502 = vmatpush1.msra.mxu0 0.0
        %2503 = vmatprep.subr.mxu0 0.0
        %2504 = vmatpush1.msra.mxu0 0.0
        %2505 = vmatprep.subr.mxu0 0.0
        %2506 = vmatpush1.msra.mxu0 0.0
        %2507 = vmatprep.subr.mxu0 0.0
        %2508 = vmatpush1.msra.mxu0 0.0
        %2509 = vmatprep.subr.mxu0 0.0
        %2510 = vmatpush1.msra.mxu0 0.0
        %2511 = vmatprep.subr.mxu0 0.0
        %2512 = vmatpush1.msra.mxu0 0.0
        %2513 = vmatprep.subr.mxu0 0.0
        %2514 = vmatpush1.msra.mxu0 0.0
        %2515 = vmatprep.subr.mxu0 0.0
        %2516 = vmatpush1.msra.mxu0 0.0
        %2517 = vmatprep.subr.mxu0 0.0
        %2518 = vmatpush1.msra.mxu0 0.0
        %2519 = vmatprep.subr.mxu0 0.0
        %2520 = vmatpush1.msra.mxu0 0.0
        %2521 = vmatprep.subr.mxu0 0.0
        %2522 = vmatpush1.msra.mxu0 0.0
        %2523 = vmatprep.subr.mxu0 0.0
        %2524 = vmatpush1.msra.mxu0 0.0
        %2525 = vmatprep.subr.mxu0 0.0
        %2526 = vmatpush1.msra.mxu0 0.0
        %2527 = vmatprep.subr.mxu0 0.0
        %2528 = vmatpush1.msra.mxu0 0.0
        %2529 = vmatprep.subr.mxu0 0.0
        %2530 = vmatpush1.msra.mxu0 0.0
        %2531 = vmatprep.subr.mxu0 0.0
        %2532 = vmatpush1.msra.mxu0 0.0
        %2533 = vmatprep.subr.mxu0 0.0
        %2534 = vmatpush1.msra.mxu0 0.0
        %2535 = vmatprep.subr.mxu0 0.0
        %2536 = vmatpush1.msra.mxu0 0.0
        %2537 = vmatprep.subr.mxu0 0.0
        %2538 = vmatpush1.msra.mxu0 0.0
        %2539 = vmatprep.subr.mxu0 0.0
        %2540 = vmatpush1.msra.mxu0 0.0
        %2541 = vmatprep.mubr.f32.mxu0 0.0
        %2542 = vmatmul.mubr.f32.gmra.mrb[0].mxu0 %v1593
        %v2543 = vpop.f32.mrb[0].mxu0
        %v2544 = vadd.f32 0.0, %v2543
        %v2545 = vpop.f32.mrb[0].mxu0
        %v2546 = vadd.f32 0.0, %v2545
        %2547 = vdwg.mxu0
        %2548 = vmatprep.subr.mxu0 %v1224
        %2549 = vmatpush1.msra.mxu0 %v1223
        %2550 = vmatprep.subr.mxu0 %v1352
        %2551 = vmatpush1.msra.mxu0 %v1351
        %2552 = vmatprep.subr.mxu0 %v1648
        %2553 = vmatpush1.msra.mxu0 %v1645
        %2554 = vmatprep.subr.mxu0 0.0
        %2555 = vmatpush1.msra.mxu0 0.0
        %2556 = vmatprep.subr.mxu0 0.0
        %2557 = vmatpush1.msra.mxu0 0.0
        %2558 = vmatprep.subr.mxu0 0.0
        %2559 = vmatpush1.msra.mxu0 0.0
        %2560 = vmatprep.subr.mxu0 0.0
        %2561 = vmatpush1.msra.mxu0 0.0
        %2562 = vmatprep.subr.mxu0 0.0
        %2563 = vmatpush1.msra.mxu0 0.0
        %2564 = vmatprep.subr.mxu0 0.0
        %2565 = vmatpush1.msra.mxu0 0.0
        %2566 = vmatprep.subr.mxu0 0.0
        %2567 = vmatpush1.msra.mxu0 0.0
        %2568 = vmatprep.subr.mxu0 0.0
        %2569 = vmatpush1.msra.mxu0 0.0
        %2570 = vmatprep.subr.mxu0 0.0
        %2571 = vmatpush1.msra.mxu0 0.0
        %2572 = vmatprep.subr.mxu0 0.0
        %2573 = vmatpush1.msra.mxu0 0.0
        %2574 = vmatprep.subr.mxu0 0.0
        %2575 = vmatpush1.msra.mxu0 0.0
        %2576 = vmatprep.subr.mxu0 0.0
        %2577 = vmatpush1.msra.mxu0 0.0
        %2578 = vmatprep.subr.mxu0 0.0
        %2579 = vmatpush1.msra.mxu0 0.0
        %2580 = vmatprep.subr.mxu0 0.0
        %2581 = vmatpush1.msra.mxu0 0.0
        %2582 = vmatprep.subr.mxu0 0.0
        %2583 = vmatpush1.msra.mxu0 0.0
        %2584 = vmatprep.subr.mxu0 0.0
        %2585 = vmatpush1.msra.mxu0 0.0
        %2586 = vmatprep.subr.mxu0 0.0
        %2587 = vmatpush1.msra.mxu0 0.0
        %2588 = vmatprep.subr.mxu0 0.0
        %2589 = vmatpush1.msra.mxu0 0.0
        %2590 = vmatprep.subr.mxu0 0.0
        %2591 = vmatpush1.msra.mxu0 0.0
        %2592 = vmatprep.subr.mxu0 0.0
        %2593 = vmatpush1.msra.mxu0 0.0
        %2594 = vmatprep.subr.mxu0 0.0
        %2595 = vmatpush1.msra.mxu0 0.0
        %2596 = vmatprep.subr.mxu0 0.0
        %2597 = vmatpush1.msra.mxu0 0.0
        %2598 = vmatprep.subr.mxu0 0.0
        %2599 = vmatpush1.msra.mxu0 0.0
        %2600 = vmatprep.subr.mxu0 0.0
        %2601 = vmatpush1.msra.mxu0 0.0
        %2602 = vmatprep.subr.mxu0 0.0
        %2603 = vmatpush1.msra.mxu0 0.0
        %2604 = vmatprep.subr.mxu0 0.0
        %2605 = vmatpush1.msra.mxu0 0.0
        %2606 = vmatprep.subr.mxu0 0.0
        %2607 = vmatpush1.msra.mxu0 0.0
        %2608 = vmatprep.subr.mxu0 0.0
        %2609 = vmatpush1.msra.mxu0 0.0
        %2610 = vmatprep.subr.mxu0 0.0
        %2611 = vmatpush1.msra.mxu0 0.0
        %2612 = vmatprep.mubr.f32.mxu0 0.0
        %2613 = vmatmul.mubr.f32.gmra.mrb[0].mxu0 %v1593
        %v2614 = vpop.f32.mrb[0].mxu0
        %v2615 = vadd.f32 0.0, %v2614
        %v2616 = vpop.f32.mrb[0].mxu0
        %v2617 = vadd.f32 0.0, %v2616
        %2618 = vdwg.mxu0
        %2619 = vmatprep.subr.mxu0 %v1226
        %2620 = vmatpush1.msra.mxu0 %v1225
        %2621 = vmatprep.subr.mxu0 %v1354
        %2622 = vmatpush1.msra.mxu0 %v1353
        %2623 = vmatprep.subr.mxu0 %v1654
        %2624 = vmatpush1.msra.mxu0 %v1651
        %2625 = vmatprep.subr.mxu0 0.0
        %2626 = vmatpush1.msra.mxu0 0.0
        %2627 = vmatprep.subr.mxu0 0.0
        %2628 = vmatpush1.msra.mxu0 0.0
        %2629 = vmatprep.subr.mxu0 0.0
        %2630 = vmatpush1.msra.mxu0 0.0
        %2631 = vmatprep.subr.mxu0 0.0
        %2632 = vmatpush1.msra.mxu0 0.0
        %2633 = vmatprep.subr.mxu0 0.0
        %2634 = vmatpush1.msra.mxu0 0.0
        %2635 = vmatprep.subr.mxu0 0.0
        %2636 = vmatpush1.msra.mxu0 0.0
        %2637 = vmatprep.subr.mxu0 0.0
        %2638 = vmatpush1.msra.mxu0 0.0
        %2639 = vmatprep.subr.mxu0 0.0
        %2640 = vmatpush1.msra.mxu0 0.0
        %2641 = vmatprep.subr.mxu0 0.0
        %2642 = vmatpush1.msra.mxu0 0.0
        %2643 = vmatprep.subr.mxu0 0.0
        %2644 = vmatpush1.msra.mxu0 0.0
        %2645 = vmatprep.subr.mxu0 0.0
        %2646 = vmatpush1.msra.mxu0 0.0
        %2647 = vmatprep.subr.mxu0 0.0
        %2648 = vmatpush1.msra.mxu0 0.0
        %2649 = vmatprep.subr.mxu0 0.0
        %2650 = vmatpush1.msra.mxu0 0.0
        %2651 = vmatprep.subr.mxu0 0.0
        %2652 = vmatpush1.msra.mxu0 0.0
        %2653 = vmatprep.subr.mxu0 0.0
        %2654 = vmatpush1.msra.mxu0 0.0
        %2655 = vmatprep.subr.mxu0 0.0
        %2656 = vmatpush1.msra.mxu0 0.0
        %2657 = vmatprep.subr.mxu0 0.0
        %2658 = vmatpush1.msra.mxu0 0.0
        %2659 = vmatprep.subr.mxu0 0.0
        %2660 = vmatpush1.msra.mxu0 0.0
        %2661 = vmatprep.subr.mxu0 0.0
        %2662 = vmatpush1.msra.mxu0 0.0
        %2663 = vmatprep.subr.mxu0 0.0
        %2664 = vmatpush1.msra.mxu0 0.0
        %2665 = vmatprep.subr.mxu0 0.0
        %2666 = vmatpush1.msra.mxu0 0.0
        %2667 = vmatprep.subr.mxu0 0.0
        %2668 = vmatpush1.msra.mxu0 0.0
        %2669 = vmatprep.subr.mxu0 0.0
        %2670 = vmatpush1.msra.mxu0 0.0
        %2671 = vmatprep.subr.mxu0 0.0
        %2672 = vmatpush1.msra.mxu0 0.0
        %2673 = vmatprep.subr.mxu0 0.0
        %2674 = vmatpush1.msra.mxu0 0.0
        %2675 = vmatprep.subr.mxu0 0.0
        %2676 = vmatpush1.msra.mxu0 0.0
        %2677 = vmatprep.subr.mxu0 0.0
        %2678 = vmatpush1.msra.mxu0 0.0
        %2679 = vmatprep.subr.mxu0 0.0
        %2680 = vmatpush1.msra.mxu0 0.0
        %2681 = vmatprep.subr.mxu0 0.0
        %2682 = vmatpush1.msra.mxu0 0.0
        %2683 = vmatprep.mubr.f32.mxu0 0.0
        %2684 = vmatmul.mubr.f32.gmra.mrb[0].mxu0 %v1593
        %v2685 = vpop.f32.mrb[0].mxu0
        %v2686 = vadd.f32 0.0, %v2685
        %v2687 = vpop.f32.mrb[0].mxu0
        %v2688 = vadd.f32 0.0, %v2687
        %2689 = vdwg.mxu0
        %2690 = vmatprep.subr.mxu0 %v1228
        %2691 = vmatpush1.msra.mxu0 %v1227
        %2692 = vmatprep.subr.mxu0 %v1356
        %2693 = vmatpush1.msra.mxu0 %v1355
        %2694 = vmatprep.subr.mxu0 %v1660
        %2695 = vmatpush1.msra.mxu0 %v1657
        %2696 = vmatprep.subr.mxu0 0.0
        %2697 = vmatpush1.msra.mxu0 0.0
        %2698 = vmatprep.subr.mxu0 0.0
        %2699 = vmatpush1.msra.mxu0 0.0
        %2700 = vmatprep.subr.mxu0 0.0
        %2701 = vmatpush1.msra.mxu0 0.0
        %2702 = vmatprep.subr.mxu0 0.0
        %2703 = vmatpush1.msra.mxu0 0.0
        %2704 = vmatprep.subr.mxu0 0.0
        %2705 = vmatpush1.msra.mxu0 0.0
        %2706 = vmatprep.subr.mxu0 0.0
        %2707 = vmatpush1.msra.mxu0 0.0
        %2708 = vmatprep.subr.mxu0 0.0
        %2709 = vmatpush1.msra.mxu0 0.0
        %2710 = vmatprep.subr.mxu0 0.0
        %2711 = vmatpush1.msra.mxu0 0.0
        %2712 = vmatprep.subr.mxu0 0.0
        %2713 = vmatpush1.msra.mxu0 0.0
        %2714 = vmatprep.subr.mxu0 0.0
        %2715 = vmatpush1.msra.mxu0 0.0
        %2716 = vmatprep.subr.mxu0 0.0
        %2717 = vmatpush1.msra.mxu0 0.0
        %2718 = vmatprep.subr.mxu0 0.0
        %2719 = vmatpush1.msra.mxu0 0.0
        %2720 = vmatprep.subr.mxu0 0.0
        %2721 = vmatpush1.msra.mxu0 0.0
        %2722 = vmatprep.subr.mxu0 0.0
        %2723 = vmatpush1.msra.mxu0 0.0
        %2724 = vmatprep.subr.mxu0 0.0
        %2725 = vmatpush1.msra.mxu0 0.0
        %2726 = vmatprep.subr.mxu0 0.0
        %2727 = vmatpush1.msra.mxu0 0.0
        %2728 = vmatprep.subr.mxu0 0.0
        %2729 = vmatpush1.msra.mxu0 0.0
        %2730 = vmatprep.subr.mxu0 0.0
        %2731 = vmatpush1.msra.mxu0 0.0
        %2732 = vmatprep.subr.mxu0 0.0
        %2733 = vmatpush1.msra.mxu0 0.0
        %2734 = vmatprep.subr.mxu0 0.0
        %2735 = vmatpush1.msra.mxu0 0.0
        %2736 = vmatprep.subr.mxu0 0.0
        %2737 = vmatpush1.msra.mxu0 0.0
        %2738 = vmatprep.subr.mxu0 0.0
        %2739 = vmatpush1.msra.mxu0 0.0
        %2740 = vmatprep.subr.mxu0 0.0
        %2741 = vmatpush1.msra.mxu0 0.0
        %2742 = vmatprep.subr.mxu0 0.0
        %2743 = vmatpush1.msra.mxu0 0.0
        %2744 = vmatprep.subr.mxu0 0.0
        %2745 = vmatpush1.msra.mxu0 0.0
        %2746 = vmatprep.subr.mxu0 0.0
        %2747 = vmatpush1.msra.mxu0 0.0
        %2748 = vmatprep.subr.mxu0 0.0
        %2749 = vmatpush1.msra.mxu0 0.0
        %2750 = vmatprep.subr.mxu0 0.0
        %2751 = vmatpush1.msra.mxu0 0.0
        %2752 = vmatprep.subr.mxu0 0.0
        %2753 = vmatpush1.msra.mxu0 0.0
        %2754 = vmatprep.mubr.f32.mxu0 0.0
        %2755 = vmatmul.mubr.f32.gmra.mrb[0].mxu0 %v1593
        %v2756 = vpop.f32.mrb[0].mxu0
        %v2757 = vadd.f32 0.0, %v2756
        %v2758 = vpop.f32.mrb[0].mxu0
        %v2759 = vadd.f32 0.0, %v2758
        %2760 = vdwg.mxu0
        %2761 = vmatprep.subr.mxu0 %v1230
        %2762 = vmatpush1.msra.mxu0 %v1229
        %2763 = vmatprep.subr.mxu0 %v1358
        %2764 = vmatpush1.msra.mxu0 %v1357
        %2765 = vmatprep.subr.mxu0 %v1666
        %2766 = vmatpush1.msra.mxu0 %v1663
        %2767 = vmatprep.subr.mxu0 0.0
        %2768 = vmatpush1.msra.mxu0 0.0
        %2769 = vmatprep.subr.mxu0 0.0
        %2770 = vmatpush1.msra.mxu0 0.0
        %2771 = vmatprep.subr.mxu0 0.0
        %2772 = vmatpush1.msra.mxu0 0.0
        %2773 = vmatprep.subr.mxu0 0.0
        %2774 = vmatpush1.msra.mxu0 0.0
        %2775 = vmatprep.subr.mxu0 0.0
        %2776 = vmatpush1.msra.mxu0 0.0
        %2777 = vmatprep.subr.mxu0 0.0
        %2778 = vmatpush1.msra.mxu0 0.0
        %2779 = vmatprep.subr.mxu0 0.0
        %2780 = vmatpush1.msra.mxu0 0.0
        %2781 = vmatprep.subr.mxu0 0.0
        %2782 = vmatpush1.msra.mxu0 0.0
        %2783 = vmatprep.subr.mxu0 0.0
        %2784 = vmatpush1.msra.mxu0 0.0
        %2785 = vmatprep.subr.mxu0 0.0
        %2786 = vmatpush1.msra.mxu0 0.0
        %2787 = vmatprep.subr.mxu0 0.0
        %2788 = vmatpush1.msra.mxu0 0.0
        %2789 = vmatprep.subr.mxu0 0.0
        %2790 = vmatpush1.msra.mxu0 0.0
        %2791 = vmatprep.subr.mxu0 0.0
        %2792 = vmatpush1.msra.mxu0 0.0
        %2793 = vmatprep.subr.mxu0 0.0
        %2794 = vmatpush1.msra.mxu0 0.0
        %2795 = vmatprep.subr.mxu0 0.0
        %2796 = vmatpush1.msra.mxu0 0.0
        %2797 = vmatprep.subr.mxu0 0.0
        %2798 = vmatpush1.msra.mxu0 0.0
        %2799 = vmatprep.subr.mxu0 0.0
        %2800 = vmatpush1.msra.mxu0 0.0
        %2801 = vmatprep.subr.mxu0 0.0
        %2802 = vmatpush1.msra.mxu0 0.0
        %2803 = vmatprep.subr.mxu0 0.0
        %2804 = vmatpush1.msra.mxu0 0.0
        %2805 = vmatprep.subr.mxu0 0.0
        %2806 = vmatpush1.msra.mxu0 0.0
        %2807 = vmatprep.subr.mxu0 0.0
        %2808 = vmatpush1.msra.mxu0 0.0
        %2809 = vmatprep.subr.mxu0 0.0
        %2810 = vmatpush1.msra.mxu0 0.0
        %2811 = vmatprep.subr.mxu0 0.0
        %2812 = vmatpush1.msra.mxu0 0.0
        %2813 = vmatprep.subr.mxu0 0.0
        %2814 = vmatpush1.msra.mxu0 0.0
        %2815 = vmatprep.subr.mxu0 0.0
        %2816 = vmatpush1.msra.mxu0 0.0
        %2817 = vmatprep.subr.mxu0 0.0
        %2818 = vmatpush1.msra.mxu0 0.0
        %2819 = vmatprep.subr.mxu0 0.0
        %2820 = vmatpush1.msra.mxu0 0.0
        %2821 = vmatprep.subr.mxu0 0.0
        %2822 = vmatpush1.msra.mxu0 0.0
        %2823 = vmatprep.subr.mxu0 0.0
        %2824 = vmatpush1.msra.mxu0 0.0
        %2825 = vmatprep.mubr.f32.mxu0 0.0
        %2826 = vmatmul.mubr.f32.gmra.mrb[0].mxu0 %v1593
        %v2827 = vpop.f32.mrb[0].mxu0
        %v2828 = vadd.f32 0.0, %v2827
        %v2829 = vpop.f32.mrb[0].mxu0
        %v2830 = vadd.f32 0.0, %v2829
        %2831 = vdwg.mxu0
        %2832 = vmatprep.subr.mxu0 %v1232
        %2833 = vmatpush1.msra.mxu0 %v1231
        %2834 = vmatprep.subr.mxu0 %v1360
        %2835 = vmatpush1.msra.mxu0 %v1359
        %2836 = vmatprep.subr.mxu0 %v1672
        %2837 = vmatpush1.msra.mxu0 %v1669
        %2838 = vmatprep.subr.mxu0 0.0
        %2839 = vmatpush1.msra.mxu0 0.0
        %2840 = vmatprep.subr.mxu0 0.0
        %2841 = vmatpush1.msra.mxu0 0.0
        %2842 = vmatprep.subr.mxu0 0.0
        %2843 = vmatpush1.msra.mxu0 0.0
        %2844 = vmatprep.subr.mxu0 0.0
        %2845 = vmatpush1.msra.mxu0 0.0
        %2846 = vmatprep.subr.mxu0 0.0
        %2847 = vmatpush1.msra.mxu0 0.0
        %2848 = vmatprep.subr.mxu0 0.0
        %2849 = vmatpush1.msra.mxu0 0.0
        %2850 = vmatprep.subr.mxu0 0.0
        %2851 = vmatpush1.msra.mxu0 0.0
        %2852 = vmatprep.subr.mxu0 0.0
        %2853 = vmatpush1.msra.mxu0 0.0
        %2854 = vmatprep.subr.mxu0 0.0
        %2855 = vmatpush1.msra.mxu0 0.0
        %2856 = vmatprep.subr.mxu0 0.0
        %2857 = vmatpush1.msra.mxu0 0.0
        %2858 = vmatprep.subr.mxu0 0.0
        %2859 = vmatpush1.msra.mxu0 0.0
        %2860 = vmatprep.subr.mxu0 0.0
        %2861 = vmatpush1.msra.mxu0 0.0
        %2862 = vmatprep.subr.mxu0 0.0
        %2863 = vmatpush1.msra.mxu0 0.0
        %2864 = vmatprep.subr.mxu0 0.0
        %2865 = vmatpush1.msra.mxu0 0.0
        %2866 = vmatprep.subr.mxu0 0.0
        %2867 = vmatpush1.msra.mxu0 0.0
        %2868 = vmatprep.subr.mxu0 0.0
        %2869 = vmatpush1.msra.mxu0 0.0
        %2870 = vmatprep.subr.mxu0 0.0
        %2871 = vmatpush1.msra.mxu0 0.0
        %2872 = vmatprep.subr.mxu0 0.0
        %2873 = vmatpush1.msra.mxu0 0.0
        %2874 = vmatprep.subr.mxu0 0.0
        %2875 = vmatpush1.msra.mxu0 0.0
        %2876 = vmatprep.subr.mxu0 0.0
        %2877 = vmatpush1.msra.mxu0 0.0
        %2878 = vmatprep.subr.mxu0 0.0
        %2879 = vmatpush1.msra.mxu0 0.0
        %2880 = vmatprep.subr.mxu0 0.0
        %2881 = vmatpush1.msra.mxu0 0.0
        %2882 = vmatprep.subr.mxu0 0.0
        %2883 = vmatpush1.msra.mxu0 0.0
        %2884 = vmatprep.subr.mxu0 0.0
        %2885 = vmatpush1.msra.mxu0 0.0
        %2886 = vmatprep.subr.mxu0 0.0
        %2887 = vmatpush1.msra.mxu0 0.0
        %2888 = vmatprep.subr.mxu0 0.0
        %2889 = vmatpush1.msra.mxu0 0.0
        %2890 = vmatprep.subr.mxu0 0.0
        %2891 = vmatpush1.msra.mxu0 0.0
        %2892 = vmatprep.subr.mxu0 0.0
        %2893 = vmatpush1.msra.mxu0 0.0
        %2894 = vmatprep.subr.mxu0 0.0
        %2895 = vmatpush1.msra.mxu0 0.0
        %2896 = vmatprep.mubr.f32.mxu0 0.0
        %2897 = vmatmul.mubr.f32.gmra.mrb[0].mxu0 %v1593
        %v2898 = vpop.f32.mrb[0].mxu0
        %v2899 = vadd.f32 0.0, %v2898
        %v2900 = vpop.f32.mrb[0].mxu0
        %v2901 = vadd.f32 0.0, %v2900
        %2902 = vdwg.mxu0
        %2903 = vmatprep.subr.mxu0 %v1234
        %2904 = vmatpush1.msra.mxu0 %v1233
        %2905 = vmatprep.subr.mxu0 %v1362
        %2906 = vmatpush1.msra.mxu0 %v1361
        %2907 = vmatprep.subr.mxu0 %v1678
        %2908 = vmatpush1.msra.mxu0 %v1675
        %2909 = vmatprep.subr.mxu0 0.0
        %2910 = vmatpush1.msra.mxu0 0.0
        %2911 = vmatprep.subr.mxu0 0.0
        %2912 = vmatpush1.msra.mxu0 0.0
        %2913 = vmatprep.subr.mxu0 0.0
        %2914 = vmatpush1.msra.mxu0 0.0
        %2915 = vmatprep.subr.mxu0 0.0
        %2916 = vmatpush1.msra.mxu0 0.0
        %2917 = vmatprep.subr.mxu0 0.0
        %2918 = vmatpush1.msra.mxu0 0.0
        %2919 = vmatprep.subr.mxu0 0.0
        %2920 = vmatpush1.msra.mxu0 0.0
        %2921 = vmatprep.subr.mxu0 0.0
        %2922 = vmatpush1.msra.mxu0 0.0
        %2923 = vmatprep.subr.mxu0 0.0
        %2924 = vmatpush1.msra.mxu0 0.0
        %2925 = vmatprep.subr.mxu0 0.0
        %2926 = vmatpush1.msra.mxu0 0.0
        %2927 = vmatprep.subr.mxu0 0.0
        %2928 = vmatpush1.msra.mxu0 0.0
        %2929 = vmatprep.subr.mxu0 0.0
        %2930 = vmatpush1.msra.mxu0 0.0
        %2931 = vmatprep.subr.mxu0 0.0
        %2932 = vmatpush1.msra.mxu0 0.0
        %2933 = vmatprep.subr.mxu0 0.0
        %2934 = vmatpush1.msra.mxu0 0.0
        %2935 = vmatprep.subr.mxu0 0.0
        %2936 = vmatpush1.msra.mxu0 0.0
        %2937 = vmatprep.subr.mxu0 0.0
        %2938 = vmatpush1.msra.mxu0 0.0
        %2939 = vmatprep.subr.mxu0 0.0
        %2940 = vmatpush1.msra.mxu0 0.0
        %2941 = vmatprep.subr.mxu0 0.0
        %2942 = vmatpush1.msra.mxu0 0.0
        %2943 = vmatprep.subr.mxu0 0.0
        %2944 = vmatpush1.msra.mxu0 0.0
        %2945 = vmatprep.subr.mxu0 0.0
        %2946 = vmatpush1.msra.mxu0 0.0
        %2947 = vmatprep.subr.mxu0 0.0
        %2948 = vmatpush1.msra.mxu0 0.0
        %2949 = vmatprep.subr.mxu0 0.0
        %2950 = vmatpush1.msra.mxu0 0.0
        %2951 = vmatprep.subr.mxu0 0.0
        %2952 = vmatpush1.msra.mxu0 0.0
        %2953 = vmatprep.subr.mxu0 0.0
        %2954 = vmatpush1.msra.mxu0 0.0
        %2955 = vmatprep.subr.mxu0 0.0
        %2956 = vmatpush1.msra.mxu0 0.0
        %2957 = vmatprep.subr.mxu0 0.0
        %2958 = vmatpush1.msra.mxu0 0.0
        %2959 = vmatprep.subr.mxu0 0.0
        %2960 = vmatpush1.msra.mxu0 0.0
        %2961 = vmatprep.subr.mxu0 0.0
        %2962 = vmatpush1.msra.mxu0 0.0
        %2963 = vmatprep.subr.mxu0 0.0
        %2964 = vmatpush1.msra.mxu0 0.0
        %2965 = vmatprep.subr.mxu0 0.0
        %2966 = vmatpush1.msra.mxu0 0.0
        %2967 = vmatprep.mubr.f32.mxu0 0.0
        %2968 = vmatmul.mubr.f32.gmra.mrb[0].mxu0 %v1593
        %v2969 = vpop.f32.mrb[0].mxu0
        %v2970 = vadd.f32 0.0, %v2969
        %v2971 = vpop.f32.mrb[0].mxu0
        %v2972 = vadd.f32 0.0, %v2971
        %2973 = vdwg.mxu0
        %2974 = vmatprep.subr.mxu0 %v1236
        %2975 = vmatpush1.msra.mxu0 %v1235
        %2976 = vmatprep.subr.mxu0 %v1364
        %2977 = vmatpush1.msra.mxu0 %v1363
        %2978 = vmatprep.subr.mxu0 %v1684
        %2979 = vmatpush1.msra.mxu0 %v1681
        %2980 = vmatprep.subr.mxu0 0.0
        %2981 = vmatpush1.msra.mxu0 0.0
        %2982 = vmatprep.subr.mxu0 0.0
        %2983 = vmatpush1.msra.mxu0 0.0
        %2984 = vmatprep.subr.mxu0 0.0
        %2985 = vmatpush1.msra.mxu0 0.0
        %2986 = vmatprep.subr.mxu0 0.0
        %2987 = vmatpush1.msra.mxu0 0.0
        %2988 = vmatprep.subr.mxu0 0.0
        %2989 = vmatpush1.msra.mxu0 0.0
        %2990 = vmatprep.subr.mxu0 0.0
        %2991 = vmatpush1.msra.mxu0 0.0
        %2992 = vmatprep.subr.mxu0 0.0
        %2993 = vmatpush1.msra.mxu0 0.0
        %2994 = vmatprep.subr.mxu0 0.0
        %2995 = vmatpush1.msra.mxu0 0.0
        %2996 = vmatprep.subr.mxu0 0.0
        %2997 = vmatpush1.msra.mxu0 0.0
        %2998 = vmatprep.subr.mxu0 0.0
        %2999 = vmatpush1.msra.mxu0 0.0
        %3000 = vmatprep.subr.mxu0 0.0
        %3001 = vmatpush1.msra.mxu0 0.0
        %3002 = vmatprep.subr.mxu0 0.0
        %3003 = vmatpush1.msra.mxu0 0.0
        %3004 = vmatprep.subr.mxu0 0.0
        %3005 = vmatpush1.msra.mxu0 0.0
        %3006 = vmatprep.subr.mxu0 0.0
        %3007 = vmatpush1.msra.mxu0 0.0
        %3008 = vmatprep.subr.mxu0 0.0
        %3009 = vmatpush1.msra.mxu0 0.0
        %3010 = vmatprep.subr.mxu0 0.0
        %3011 = vmatpush1.msra.mxu0 0.0
        %3012 = vmatprep.subr.mxu0 0.0
        %3013 = vmatpush1.msra.mxu0 0.0
        %3014 = vmatprep.subr.mxu0 0.0
        %3015 = vmatpush1.msra.mxu0 0.0
        %3016 = vmatprep.subr.mxu0 0.0
        %3017 = vmatpush1.msra.mxu0 0.0
        %3018 = vmatprep.subr.mxu0 0.0
        %3019 = vmatpush1.msra.mxu0 0.0
        %3020 = vmatprep.subr.mxu0 0.0
        %3021 = vmatpush1.msra.mxu0 0.0
        %3022 = vmatprep.subr.mxu0 0.0
        %3023 = vmatpush1.msra.mxu0 0.0
        %3024 = vmatprep.subr.mxu0 0.0
        %3025 = vmatpush1.msra.mxu0 0.0
        %3026 = vmatprep.subr.mxu0 0.0
        %3027 = vmatpush1.msra.mxu0 0.0
        %3028 = vmatprep.subr.mxu0 0.0
        %3029 = vmatpush1.msra.mxu0 0.0
        %3030 = vmatprep.subr.mxu0 0.0
        %3031 = vmatpush1.msra.mxu0 0.0
        %3032 = vmatprep.subr.mxu0 0.0
        %3033 = vmatpush1.msra.mxu0 0.0
        %3034 = vmatprep.subr.mxu0 0.0
        %3035 = vmatpush1.msra.mxu0 0.0
        %3036 = vmatprep.subr.mxu0 0.0
        %3037 = vmatpush1.msra.mxu0 0.0
        %3038 = vmatprep.mubr.f32.mxu0 0.0
        %3039 = vmatmul.mubr.f32.gmra.mrb[0].mxu0 %v1593
        %v3040 = vpop.f32.mrb[0].mxu0
        %v3041 = vadd.f32 0.0, %v3040
        %v3042 = vpop.f32.mrb[0].mxu0
        %v3043 = vadd.f32 0.0, %v3042
        %3044 = vdwg.mxu0
        %3045 = vmatprep.subr.mxu0 %v1238
        %3046 = vmatpush1.msra.mxu0 %v1237
        %3047 = vmatprep.subr.mxu0 %v1366
        %3048 = vmatpush1.msra.mxu0 %v1365
        %3049 = vmatprep.subr.mxu0 %v1690
        %3050 = vmatpush1.msra.mxu0 %v1687
        %3051 = vmatprep.subr.mxu0 0.0
        %3052 = vmatpush1.msra.mxu0 0.0
        %3053 = vmatprep.subr.mxu0 0.0
        %3054 = vmatpush1.msra.mxu0 0.0
        %3055 = vmatprep.subr.mxu0 0.0
        %3056 = vmatpush1.msra.mxu0 0.0
        %3057 = vmatprep.subr.mxu0 0.0
        %3058 = vmatpush1.msra.mxu0 0.0
        %3059 = vmatprep.subr.mxu0 0.0
        %3060 = vmatpush1.msra.mxu0 0.0
        %3061 = vmatprep.subr.mxu0 0.0
        %3062 = vmatpush1.msra.mxu0 0.0
        %3063 = vmatprep.subr.mxu0 0.0
        %3064 = vmatpush1.msra.mxu0 0.0
        %3065 = vmatprep.subr.mxu0 0.0
        %3066 = vmatpush1.msra.mxu0 0.0
        %3067 = vmatprep.subr.mxu0 0.0
        %3068 = vmatpush1.msra.mxu0 0.0
        %3069 = vmatprep.subr.mxu0 0.0
        %3070 = vmatpush1.msra.mxu0 0.0
        %3071 = vmatprep.subr.mxu0 0.0
        %3072 = vmatpush1.msra.mxu0 0.0
        %3073 = vmatprep.subr.mxu0 0.0
        %3074 = vmatpush1.msra.mxu0 0.0
        %3075 = vmatprep.subr.mxu0 0.0
        %3076 = vmatpush1.msra.mxu0 0.0
        %3077 = vmatprep.subr.mxu0 0.0
        %3078 = vmatpush1.msra.mxu0 0.0
        %3079 = vmatprep.subr.mxu0 0.0
        %3080 = vmatpush1.msra.mxu0 0.0
        %3081 = vmatprep.subr.mxu0 0.0
        %3082 = vmatpush1.msra.mxu0 0.0
        %3083 = vmatprep.subr.mxu0 0.0
        %3084 = vmatpush1.msra.mxu0 0.0
        %3085 = vmatprep.subr.mxu0 0.0
        %3086 = vmatpush1.msra.mxu0 0.0
        %3087 = vmatprep.subr.mxu0 0.0
        %3088 = vmatpush1.msra.mxu0 0.0
        %3089 = vmatprep.subr.mxu0 0.0
        %3090 = vmatpush1.msra.mxu0 0.0
        %3091 = vmatprep.subr.mxu0 0.0
        %3092 = vmatpush1.msra.mxu0 0.0
        %3093 = vmatprep.subr.mxu0 0.0
        %3094 = vmatpush1.msra.mxu0 0.0
        %3095 = vmatprep.subr.mxu0 0.0
        %3096 = vmatpush1.msra.mxu0 0.0
        %3097 = vmatprep.subr.mxu0 0.0
        %3098 = vmatpush1.msra.mxu0 0.0
        %3099 = vmatprep.subr.mxu0 0.0
        %3100 = vmatpush1.msra.mxu0 0.0
        %3101 = vmatprep.subr.mxu0 0.0
        %3102 = vmatpush1.msra.mxu0 0.0
        %3103 = vmatprep.subr.mxu0 0.0
        %3104 = vmatpush1.msra.mxu0 0.0
        %3105 = vmatprep.subr.mxu0 0.0
        %3106 = vmatpush1.msra.mxu0 0.0
        %3107 = vmatprep.subr.mxu0 0.0
        %3108 = vmatpush1.msra.mxu0 0.0
        %3109 = vmatprep.mubr.f32.mxu0 0.0
        %3110 = vmatmul.mubr.f32.gmra.mrb[0].mxu0 %v1593
        %v3111 = vpop.f32.mrb[0].mxu0
        %v3112 = vadd.f32 0.0, %v3111
        %v3113 = vpop.f32.mrb[0].mxu0
        %v3114 = vadd.f32 0.0, %v3113
        %3115 = vdwg.mxu0
        %3116 = vmatprep.subr.mxu0 %v1240
        %3117 = vmatpush1.msra.mxu0 %v1239
        %3118 = vmatprep.subr.mxu0 %v1368
        %3119 = vmatpush1.msra.mxu0 %v1367
        %3120 = vmatprep.subr.mxu0 %v1696
        %3121 = vmatpush1.msra.mxu0 %v1693
        %3122 = vmatprep.subr.mxu0 0.0
        %3123 = vmatpush1.msra.mxu0 0.0
        %3124 = vmatprep.subr.mxu0 0.0
        %3125 = vmatpush1.msra.mxu0 0.0
        %3126 = vmatprep.subr.mxu0 0.0
        %3127 = vmatpush1.msra.mxu0 0.0
        %3128 = vmatprep.subr.mxu0 0.0
        %3129 = vmatpush1.msra.mxu0 0.0
        %3130 = vmatprep.subr.mxu0 0.0
        %3131 = vmatpush1.msra.mxu0 0.0
        %3132 = vmatprep.subr.mxu0 0.0
        %3133 = vmatpush1.msra.mxu0 0.0
        %3134 = vmatprep.subr.mxu0 0.0
        %3135 = vmatpush1.msra.mxu0 0.0
        %3136 = vmatprep.subr.mxu0 0.0
        %3137 = vmatpush1.msra.mxu0 0.0
        %3138 = vmatprep.subr.mxu0 0.0
        %3139 = vmatpush1.msra.mxu0 0.0
        %3140 = vmatprep.subr.mxu0 0.0
        %3141 = vmatpush1.msra.mxu0 0.0
        %3142 = vmatprep.subr.mxu0 0.0
        %3143 = vmatpush1.msra.mxu0 0.0
        %3144 = vmatprep.subr.mxu0 0.0
        %3145 = vmatpush1.msra.mxu0 0.0
        %3146 = vmatprep.subr.mxu0 0.0
        %3147 = vmatpush1.msra.mxu0 0.0
        %3148 = vmatprep.subr.mxu0 0.0
        %3149 = vmatpush1.msra.mxu0 0.0
        %3150 = vmatprep.subr.mxu0 0.0
        %3151 = vmatpush1.msra.mxu0 0.0
        %3152 = vmatprep.subr.mxu0 0.0
        %3153 = vmatpush1.msra.mxu0 0.0
        %3154 = vmatprep.subr.mxu0 0.0
        %3155 = vmatpush1.msra.mxu0 0.0
        %3156 = vmatprep.subr.mxu0 0.0
        %3157 = vmatpush1.msra.mxu0 0.0
        %3158 = vmatprep.subr.mxu0 0.0
        %3159 = vmatpush1.msra.mxu0 0.0
        %3160 = vmatprep.subr.mxu0 0.0
        %3161 = vmatpush1.msra.mxu0 0.0
        %3162 = vmatprep.subr.mxu0 0.0
        %3163 = vmatpush1.msra.mxu0 0.0
        %3164 = vmatprep.subr.mxu0 0.0
        %3165 = vmatpush1.msra.mxu0 0.0
        %3166 = vmatprep.subr.mxu0 0.0
        %3167 = vmatpush1.msra.mxu0 0.0
        %3168 = vmatprep.subr.mxu0 0.0
        %3169 = vmatpush1.msra.mxu0 0.0
        %3170 = vmatprep.subr.mxu0 0.0
        %3171 = vmatpush1.msra.mxu0 0.0
        %3172 = vmatprep.subr.mxu0 0.0
        %3173 = vmatpush1.msra.mxu0 0.0
        %3174 = vmatprep.subr.mxu0 0.0
        %3175 = vmatpush1.msra.mxu0 0.0
        %3176 = vmatprep.subr.mxu0 0.0
        %3177 = vmatpush1.msra.mxu0 0.0
        %3178 = vmatprep.subr.mxu0 0.0
        %3179 = vmatpush1.msra.mxu0 0.0
        %3180 = vmatprep.mubr.f32.mxu0 0.0
        %3181 = vmatmul.mubr.f32.gmra.mrb[0].mxu0 %v1593
        %v3182 = vpop.f32.mrb[0].mxu0
        %v3183 = vadd.f32 0.0, %v3182
        %v3184 = vpop.f32.mrb[0].mxu0
        %v3185 = vadd.f32 0.0, %v3184
        %3186 = vdwg.mxu0
        %3187 = vmatprep.subr.mxu0 %v1242
        %3188 = vmatpush1.msra.mxu0 %v1241
        %3189 = vmatprep.subr.mxu0 %v1370
        %3190 = vmatpush1.msra.mxu0 %v1369
        %3191 = vmatprep.subr.mxu0 %v1702
        %3192 = vmatpush1.msra.mxu0 %v1699
        %3193 = vmatprep.subr.mxu0 0.0
        %3194 = vmatpush1.msra.mxu0 0.0
        %3195 = vmatprep.subr.mxu0 0.0
        %3196 = vmatpush1.msra.mxu0 0.0
        %3197 = vmatprep.subr.mxu0 0.0
        %3198 = vmatpush1.msra.mxu0 0.0
        %3199 = vmatprep.subr.mxu0 0.0
        %3200 = vmatpush1.msra.mxu0 0.0
        %3201 = vmatprep.subr.mxu0 0.0
        %3202 = vmatpush1.msra.mxu0 0.0
        %3203 = vmatprep.subr.mxu0 0.0
        %3204 = vmatpush1.msra.mxu0 0.0
        %3205 = vmatprep.subr.mxu0 0.0
        %3206 = vmatpush1.msra.mxu0 0.0
        %3207 = vmatprep.subr.mxu0 0.0
        %3208 = vmatpush1.msra.mxu0 0.0
        %3209 = vmatprep.subr.mxu0 0.0
        %3210 = vmatpush1.msra.mxu0 0.0
        %3211 = vmatprep.subr.mxu0 0.0
        %3212 = vmatpush1.msra.mxu0 0.0
        %3213 = vmatprep.subr.mxu0 0.0
        %3214 = vmatpush1.msra.mxu0 0.0
        %3215 = vmatprep.subr.mxu0 0.0
        %3216 = vmatpush1.msra.mxu0 0.0
        %3217 = vmatprep.subr.mxu0 0.0
        %3218 = vmatpush1.msra.mxu0 0.0
        %3219 = vmatprep.subr.mxu0 0.0
        %3220 = vmatpush1.msra.mxu0 0.0
        %3221 = vmatprep.subr.mxu0 0.0
        %3222 = vmatpush1.msra.mxu0 0.0
        %3223 = vmatprep.subr.mxu0 0.0
        %3224 = vmatpush1.msra.mxu0 0.0
        %3225 = vmatprep.subr.mxu0 0.0
        %3226 = vmatpush1.msra.mxu0 0.0
        %3227 = vmatprep.subr.mxu0 0.0
        %3228 = vmatpush1.msra.mxu0 0.0
        %3229 = vmatprep.subr.mxu0 0.0
        %3230 = vmatpush1.msra.mxu0 0.0
        %3231 = vmatprep.subr.mxu0 0.0
        %3232 = vmatpush1.msra.mxu0 0.0
        %3233 = vmatprep.subr.mxu0 0.0
        %3234 = vmatpush1.msra.mxu0 0.0
        %3235 = vmatprep.subr.mxu0 0.0
        %3236 = vmatpush1.msra.mxu0 0.0
        %3237 = vmatprep.subr.mxu0 0.0
        %3238 = vmatpush1.msra.mxu0 0.0
        %3239 = vmatprep.subr.mxu0 0.0
        %3240 = vmatpush1.msra.mxu0 0.0
        %3241 = vmatprep.subr.mxu0 0.0
        %3242 = vmatpush1.msra.mxu0 0.0
        %3243 = vmatprep.subr.mxu0 0.0
        %3244 = vmatpush1.msra.mxu0 0.0
        %3245 = vmatprep.subr.mxu0 0.0
        %3246 = vmatpush1.msra.mxu0 0.0
        %3247 = vmatprep.subr.mxu0 0.0
        %3248 = vmatpush1.msra.mxu0 0.0
        %3249 = vmatprep.subr.mxu0 0.0
        %3250 = vmatpush1.msra.mxu0 0.0
        %3251 = vmatprep.mubr.f32.mxu0 0.0
        %3252 = vmatmul.mubr.f32.gmra.mrb[0].mxu0 %v1593
        %v3253 = vpop.f32.mrb[0].mxu0
        %v3254 = vadd.f32 0.0, %v3253
        %v3255 = vpop.f32.mrb[0].mxu0
        %v3256 = vadd.f32 0.0, %v3255
        %3257 = vdwg.mxu0
        %3258 = vmatprep.subr.mxu0 %v1244
        %3259 = vmatpush1.msra.mxu0 %v1243
        %3260 = vmatprep.subr.mxu0 %v1372
        %3261 = vmatpush1.msra.mxu0 %v1371
        %3262 = vmatprep.subr.mxu0 %v1708
        %3263 = vmatpush1.msra.mxu0 %v1705
        %3264 = vmatprep.subr.mxu0 0.0
        %3265 = vmatpush1.msra.mxu0 0.0
        %3266 = vmatprep.subr.mxu0 0.0
        %3267 = vmatpush1.msra.mxu0 0.0
        %3268 = vmatprep.subr.mxu0 0.0
        %3269 = vmatpush1.msra.mxu0 0.0
        %3270 = vmatprep.subr.mxu0 0.0
        %3271 = vmatpush1.msra.mxu0 0.0
        %3272 = vmatprep.subr.mxu0 0.0
        %3273 = vmatpush1.msra.mxu0 0.0
        %3274 = vmatprep.subr.mxu0 0.0
        %3275 = vmatpush1.msra.mxu0 0.0
        %3276 = vmatprep.subr.mxu0 0.0
        %3277 = vmatpush1.msra.mxu0 0.0
        %3278 = vmatprep.subr.mxu0 0.0
        %3279 = vmatpush1.msra.mxu0 0.0
        %3280 = vmatprep.subr.mxu0 0.0
        %3281 = vmatpush1.msra.mxu0 0.0
        %3282 = vmatprep.subr.mxu0 0.0
        %3283 = vmatpush1.msra.mxu0 0.0
        %3284 = vmatprep.subr.mxu0 0.0
        %3285 = vmatpush1.msra.mxu0 0.0
        %3286 = vmatprep.subr.mxu0 0.0
        %3287 = vmatpush1.msra.mxu0 0.0
        %3288 = vmatprep.subr.mxu0 0.0
        %3289 = vmatpush1.msra.mxu0 0.0
        %3290 = vmatprep.subr.mxu0 0.0
        %3291 = vmatpush1.msra.mxu0 0.0
        %3292 = vmatprep.subr.mxu0 0.0
        %3293 = vmatpush1.msra.mxu0 0.0
        %3294 = vmatprep.subr.mxu0 0.0
        %3295 = vmatpush1.msra.mxu0 0.0
        %3296 = vmatprep.subr.mxu0 0.0
        %3297 = vmatpush1.msra.mxu0 0.0
        %3298 = vmatprep.subr.mxu0 0.0
        %3299 = vmatpush1.msra.mxu0 0.0
        %3300 = vmatprep.subr.mxu0 0.0
        %3301 = vmatpush1.msra.mxu0 0.0
        %3302 = vmatprep.subr.mxu0 0.0
        %3303 = vmatpush1.msra.mxu0 0.0
        %3304 = vmatprep.subr.mxu0 0.0
        %3305 = vmatpush1.msra.mxu0 0.0
        %3306 = vmatprep.subr.mxu0 0.0
        %3307 = vmatpush1.msra.mxu0 0.0
        %3308 = vmatprep.subr.mxu0 0.0
        %3309 = vmatpush1.msra.mxu0 0.0
        %3310 = vmatprep.subr.mxu0 0.0
        %3311 = vmatpush1.msra.mxu0 0.0
        %3312 = vmatprep.subr.mxu0 0.0
        %3313 = vmatpush1.msra.mxu0 0.0
        %3314 = vmatprep.subr.mxu0 0.0
        %3315 = vmatpush1.msra.mxu0 0.0
        %3316 = vmatprep.subr.mxu0 0.0
        %3317 = vmatpush1.msra.mxu0 0.0
        %3318 = vmatprep.subr.mxu0 0.0
        %3319 = vmatpush1.msra.mxu0 0.0
        %3320 = vmatprep.subr.mxu0 0.0
        %3321 = vmatpush1.msra.mxu0 0.0
        %3322 = vmatprep.mubr.f32.mxu0 0.0
        %3323 = vmatmul.mubr.f32.gmra.mrb[0].mxu0 %v1593
        %v3324 = vpop.f32.mrb[0].mxu0
        %v3325 = vadd.f32 0.0, %v3324
        %v3326 = vpop.f32.mrb[0].mxu0
        %v3327 = vadd.f32 0.0, %v3326
        %3328 = vdwg.mxu0
        %3329 = vmatprep.subr.mxu0 %v1246
        %3330 = vmatpush1.msra.mxu0 %v1245
        %3331 = vmatprep.subr.mxu0 %v1374
        %3332 = vmatpush1.msra.mxu0 %v1373
        %3333 = vmatprep.subr.mxu0 %v1714
        %3334 = vmatpush1.msra.mxu0 %v1711
        %3335 = vmatprep.subr.mxu0 0.0
        %3336 = vmatpush1.msra.mxu0 0.0
        %3337 = vmatprep.subr.mxu0 0.0
        %3338 = vmatpush1.msra.mxu0 0.0
        %3339 = vmatprep.subr.mxu0 0.0
        %3340 = vmatpush1.msra.mxu0 0.0
        %3341 = vmatprep.subr.mxu0 0.0
        %3342 = vmatpush1.msra.mxu0 0.0
        %3343 = vmatprep.subr.mxu0 0.0
        %3344 = vmatpush1.msra.mxu0 0.0
        %3345 = vmatprep.subr.mxu0 0.0
        %3346 = vmatpush1.msra.mxu0 0.0
        %3347 = vmatprep.subr.mxu0 0.0
        %3348 = vmatpush1.msra.mxu0 0.0
        %3349 = vmatprep.subr.mxu0 0.0
        %3350 = vmatpush1.msra.mxu0 0.0
        %3351 = vmatprep.subr.mxu0 0.0
        %3352 = vmatpush1.msra.mxu0 0.0
        %3353 = vmatprep.subr.mxu0 0.0
        %3354 = vmatpush1.msra.mxu0 0.0
        %3355 = vmatprep.subr.mxu0 0.0
        %3356 = vmatpush1.msra.mxu0 0.0
        %3357 = vmatprep.subr.mxu0 0.0
        %3358 = vmatpush1.msra.mxu0 0.0
        %3359 = vmatprep.subr.mxu0 0.0
        %3360 = vmatpush1.msra.mxu0 0.0
        %3361 = vmatprep.subr.mxu0 0.0
        %3362 = vmatpush1.msra.mxu0 0.0
        %3363 = vmatprep.subr.mxu0 0.0
        %3364 = vmatpush1.msra.mxu0 0.0
        %3365 = vmatprep.subr.mxu0 0.0
        %3366 = vmatpush1.msra.mxu0 0.0
        %3367 = vmatprep.subr.mxu0 0.0
        %3368 = vmatpush1.msra.mxu0 0.0
        %3369 = vmatprep.subr.mxu0 0.0
        %3370 = vmatpush1.msra.mxu0 0.0
        %3371 = vmatprep.subr.mxu0 0.0
        %3372 = vmatpush1.msra.mxu0 0.0
        %3373 = vmatprep.subr.mxu0 0.0
        %3374 = vmatpush1.msra.mxu0 0.0
        %3375 = vmatprep.subr.mxu0 0.0
        %3376 = vmatpush1.msra.mxu0 0.0
        %3377 = vmatprep.subr.mxu0 0.0
        %3378 = vmatpush1.msra.mxu0 0.0
        %3379 = vmatprep.subr.mxu0 0.0
        %3380 = vmatpush1.msra.mxu0 0.0
        %3381 = vmatprep.subr.mxu0 0.0
        %3382 = vmatpush1.msra.mxu0 0.0
        %3383 = vmatprep.subr.mxu0 0.0
        %3384 = vmatpush1.msra.mxu0 0.0
        %3385 = vmatprep.subr.mxu0 0.0
        %3386 = vmatpush1.msra.mxu0 0.0
        %3387 = vmatprep.subr.mxu0 0.0
        %3388 = vmatpush1.msra.mxu0 0.0
        %3389 = vmatprep.subr.mxu0 0.0
        %3390 = vmatpush1.msra.mxu0 0.0
        %3391 = vmatprep.subr.mxu0 0.0
        %3392 = vmatpush1.msra.mxu0 0.0
        %3393 = vmatprep.mubr.f32.mxu0 0.0
        %3394 = vmatmul.mubr.f32.gmra.mrb[0].mxu0 %v1593
        %v3395 = vpop.f32.mrb[0].mxu0
        %v3396 = vadd.f32 0.0, %v3395
        %v3397 = vpop.f32.mrb[0].mxu0
        %v3398 = vadd.f32 0.0, %v3397
        %3399 = vdwg.mxu0
        %3400 = vmatprep.subr.mxu0 %v1248
        %3401 = vmatpush1.msra.mxu0 %v1247
        %3402 = vmatprep.subr.mxu0 %v1376
        %3403 = vmatpush1.msra.mxu0 %v1375
        %3404 = vmatprep.subr.mxu0 %v1720
        %3405 = vmatpush1.msra.mxu0 %v1717
        %3406 = vmatprep.subr.mxu0 0.0
        %3407 = vmatpush1.msra.mxu0 0.0
        %3408 = vmatprep.subr.mxu0 0.0
        %3409 = vmatpush1.msra.mxu0 0.0
        %3410 = vmatprep.subr.mxu0 0.0
        %3411 = vmatpush1.msra.mxu0 0.0
        %3412 = vmatprep.subr.mxu0 0.0
        %3413 = vmatpush1.msra.mxu0 0.0
        %3414 = vmatprep.subr.mxu0 0.0
        %3415 = vmatpush1.msra.mxu0 0.0
        %3416 = vmatprep.subr.mxu0 0.0
        %3417 = vmatpush1.msra.mxu0 0.0
        %3418 = vmatprep.subr.mxu0 0.0
        %3419 = vmatpush1.msra.mxu0 0.0
        %3420 = vmatprep.subr.mxu0 0.0
        %3421 = vmatpush1.msra.mxu0 0.0
        %3422 = vmatprep.subr.mxu0 0.0
        %3423 = vmatpush1.msra.mxu0 0.0
        %3424 = vmatprep.subr.mxu0 0.0
        %3425 = vmatpush1.msra.mxu0 0.0
        %3426 = vmatprep.subr.mxu0 0.0
        %3427 = vmatpush1.msra.mxu0 0.0
        %3428 = vmatprep.subr.mxu0 0.0
        %3429 = vmatpush1.msra.mxu0 0.0
        %3430 = vmatprep.subr.mxu0 0.0
        %3431 = vmatpush1.msra.mxu0 0.0
        %3432 = vmatprep.subr.mxu0 0.0
        %3433 = vmatpush1.msra.mxu0 0.0
        %3434 = vmatprep.subr.mxu0 0.0
        %3435 = vmatpush1.msra.mxu0 0.0
        %3436 = vmatprep.subr.mxu0 0.0
        %3437 = vmatpush1.msra.mxu0 0.0
        %3438 = vmatprep.subr.mxu0 0.0
        %3439 = vmatpush1.msra.mxu0 0.0
        %3440 = vmatprep.subr.mxu0 0.0
        %3441 = vmatpush1.msra.mxu0 0.0
        %3442 = vmatprep.subr.mxu0 0.0
        %3443 = vmatpush1.msra.mxu0 0.0
        %3444 = vmatprep.subr.mxu0 0.0
        %3445 = vmatpush1.msra.mxu0 0.0
        %3446 = vmatprep.subr.mxu0 0.0
        %3447 = vmatpush1.msra.mxu0 0.0
        %3448 = vmatprep.subr.mxu0 0.0
        %3449 = vmatpush1.msra.mxu0 0.0
        %3450 = vmatprep.subr.mxu0 0.0
        %3451 = vmatpush1.msra.mxu0 0.0
        %3452 = vmatprep.subr.mxu0 0.0
        %3453 = vmatpush1.msra.mxu0 0.0
        %3454 = vmatprep.subr.mxu0 0.0
        %3455 = vmatpush1.msra.mxu0 0.0
        %3456 = vmatprep.subr.mxu0 0.0
        %3457 = vmatpush1.msra.mxu0 0.0
        %3458 = vmatprep.subr.mxu0 0.0
        %3459 = vmatpush1.msra.mxu0 0.0
        %3460 = vmatprep.subr.mxu0 0.0
        %3461 = vmatpush1.msra.mxu0 0.0
        %3462 = vmatprep.subr.mxu0 0.0
        %3463 = vmatpush1.msra.mxu0 0.0
        %3464 = vmatprep.mubr.f32.mxu0 0.0
        %3465 = vmatmul.mubr.f32.gmra.mrb[0].mxu0 %v1593
        %v3466 = vpop.f32.mrb[0].mxu0
        %v3467 = vadd.f32 0.0, %v3466
        %v3468 = vpop.f32.mrb[0].mxu0
        %v3469 = vadd.f32 0.0, %v3468
        %3470 = vdwg.mxu0
        %3471 = vmatprep.subr.mxu0 %v1250
        %3472 = vmatpush1.msra.mxu0 %v1249
        %3473 = vmatprep.subr.mxu0 %v1378
        %3474 = vmatpush1.msra.mxu0 %v1377
        %3475 = vmatprep.subr.mxu0 %v1726
        %3476 = vmatpush1.msra.mxu0 %v1723
        %3477 = vmatprep.subr.mxu0 0.0
        %3478 = vmatpush1.msra.mxu0 0.0
        %3479 = vmatprep.subr.mxu0 0.0
        %3480 = vmatpush1.msra.mxu0 0.0
        %3481 = vmatprep.subr.mxu0 0.0
        %3482 = vmatpush1.msra.mxu0 0.0
        %3483 = vmatprep.subr.mxu0 0.0
        %3484 = vmatpush1.msra.mxu0 0.0
        %3485 = vmatprep.subr.mxu0 0.0
        %3486 = vmatpush1.msra.mxu0 0.0
        %3487 = vmatprep.subr.mxu0 0.0
        %3488 = vmatpush1.msra.mxu0 0.0
        %3489 = vmatprep.subr.mxu0 0.0
        %3490 = vmatpush1.msra.mxu0 0.0
        %3491 = vmatprep.subr.mxu0 0.0
        %3492 = vmatpush1.msra.mxu0 0.0
        %3493 = vmatprep.subr.mxu0 0.0
        %3494 = vmatpush1.msra.mxu0 0.0
        %3495 = vmatprep.subr.mxu0 0.0
        %3496 = vmatpush1.msra.mxu0 0.0
        %3497 = vmatprep.subr.mxu0 0.0
        %3498 = vmatpush1.msra.mxu0 0.0
        %3499 = vmatprep.subr.mxu0 0.0
        %3500 = vmatpush1.msra.mxu0 0.0
        %3501 = vmatprep.subr.mxu0 0.0
        %3502 = vmatpush1.msra.mxu0 0.0
        %3503 = vmatprep.subr.mxu0 0.0
        %3504 = vmatpush1.msra.mxu0 0.0
        %3505 = vmatprep.subr.mxu0 0.0
        %3506 = vmatpush1.msra.mxu0 0.0
        %3507 = vmatprep.subr.mxu0 0.0
        %3508 = vmatpush1.msra.mxu0 0.0
        %3509 = vmatprep.subr.mxu0 0.0
        %3510 = vmatpush1.msra.mxu0 0.0
        %3511 = vmatprep.subr.mxu0 0.0
        %3512 = vmatpush1.msra.mxu0 0.0
        %3513 = vmatprep.subr.mxu0 0.0
        %3514 = vmatpush1.msra.mxu0 0.0
        %3515 = vmatprep.subr.mxu0 0.0
        %3516 = vmatpush1.msra.mxu0 0.0
        %3517 = vmatprep.subr.mxu0 0.0
        %3518 = vmatpush1.msra.mxu0 0.0
        %3519 = vmatprep.subr.mxu0 0.0
        %3520 = vmatpush1.msra.mxu0 0.0
        %3521 = vmatprep.subr.mxu0 0.0
        %3522 = vmatpush1.msra.mxu0 0.0
        %3523 = vmatprep.subr.mxu0 0.0
        %3524 = vmatpush1.msra.mxu0 0.0
        %3525 = vmatprep.subr.mxu0 0.0
        %3526 = vmatpush1.msra.mxu0 0.0
        %3527 = vmatprep.subr.mxu0 0.0
        %3528 = vmatpush1.msra.mxu0 0.0
        %3529 = vmatprep.subr.mxu0 0.0
        %3530 = vmatpush1.msra.mxu0 0.0
        %3531 = vmatprep.subr.mxu0 0.0
        %3532 = vmatpush1.msra.mxu0 0.0
        %3533 = vmatprep.subr.mxu0 0.0
        %3534 = vmatpush1.msra.mxu0 0.0
        %3535 = vmatprep.mubr.f32.mxu0 0.0
        %3536 = vmatmul.mubr.f32.gmra.mrb[0].mxu0 %v1593
        %v3537 = vpop.f32.mrb[0].mxu0
        %v3538 = vadd.f32 0.0, %v3537
        %v3539 = vpop.f32.mrb[0].mxu0
        %v3540 = vadd.f32 0.0, %v3539
        %3541 = vdwg.mxu0
        %3542 = vmatprep.subr.mxu0 %v1252
        %3543 = vmatpush1.msra.mxu0 %v1251
        %3544 = vmatprep.subr.mxu0 %v1380
        %3545 = vmatpush1.msra.mxu0 %v1379
        %3546 = vmatprep.subr.mxu0 %v1732
        %3547 = vmatpush1.msra.mxu0 %v1729
        %3548 = vmatprep.subr.mxu0 0.0
        %3549 = vmatpush1.msra.mxu0 0.0
        %3550 = vmatprep.subr.mxu0 0.0
        %3551 = vmatpush1.msra.mxu0 0.0
        %3552 = vmatprep.subr.mxu0 0.0
        %3553 = vmatpush1.msra.mxu0 0.0
        %3554 = vmatprep.subr.mxu0 0.0
        %3555 = vmatpush1.msra.mxu0 0.0
        %3556 = vmatprep.subr.mxu0 0.0
        %3557 = vmatpush1.msra.mxu0 0.0
        %3558 = vmatprep.subr.mxu0 0.0
        %3559 = vmatpush1.msra.mxu0 0.0
        %3560 = vmatprep.subr.mxu0 0.0
        %3561 = vmatpush1.msra.mxu0 0.0
        %3562 = vmatprep.subr.mxu0 0.0
        %3563 = vmatpush1.msra.mxu0 0.0
        %3564 = vmatprep.subr.mxu0 0.0
        %3565 = vmatpush1.msra.mxu0 0.0
        %3566 = vmatprep.subr.mxu0 0.0
        %3567 = vmatpush1.msra.mxu0 0.0
        %3568 = vmatprep.subr.mxu0 0.0
        %3569 = vmatpush1.msra.mxu0 0.0
        %3570 = vmatprep.subr.mxu0 0.0
        %3571 = vmatpush1.msra.mxu0 0.0
        %3572 = vmatprep.subr.mxu0 0.0
        %3573 = vmatpush1.msra.mxu0 0.0
        %3574 = vmatprep.subr.mxu0 0.0
        %3575 = vmatpush1.msra.mxu0 0.0
        %3576 = vmatprep.subr.mxu0 0.0
        %3577 = vmatpush1.msra.mxu0 0.0
        %3578 = vmatprep.subr.mxu0 0.0
        %3579 = vmatpush1.msra.mxu0 0.0
        %3580 = vmatprep.subr.mxu0 0.0
        %3581 = vmatpush1.msra.mxu0 0.0
        %3582 = vmatprep.subr.mxu0 0.0
        %3583 = vmatpush1.msra.mxu0 0.0
        %3584 = vmatprep.subr.mxu0 0.0
        %3585 = vmatpush1.msra.mxu0 0.0
        %3586 = vmatprep.subr.mxu0 0.0
        %3587 = vmatpush1.msra.mxu0 0.0
        %3588 = vmatprep.subr.mxu0 0.0
        %3589 = vmatpush1.msra.mxu0 0.0
        %3590 = vmatprep.subr.mxu0 0.0
        %3591 = vmatpush1.msra.mxu0 0.0
        %3592 = vmatprep.subr.mxu0 0.0
        %3593 = vmatpush1.msra.mxu0 0.0
        %3594 = vmatprep.subr.mxu0 0.0
        %3595 = vmatpush1.msra.mxu0 0.0
        %3596 = vmatprep.subr.mxu0 0.0
        %3597 = vmatpush1.msra.mxu0 0.0
        %3598 = vmatprep.subr.mxu0 0.0
        %3599 = vmatpush1.msra.mxu0 0.0
        %3600 = vmatprep.subr.mxu0 0.0
        %3601 = vmatpush1.msra.mxu0 0.0
        %3602 = vmatprep.subr.mxu0 0.0
        %3603 = vmatpush1.msra.mxu0 0.0
        %3604 = vmatprep.subr.mxu0 0.0
        %3605 = vmatpush1.msra.mxu0 0.0
        %3606 = vmatprep.mubr.f32.mxu0 0.0
        %3607 = vmatmul.mubr.f32.gmra.mrb[0].mxu0 %v1593
        %v3608 = vpop.f32.mrb[0].mxu0
        %v3609 = vadd.f32 0.0, %v3608
        %v3610 = vpop.f32.mrb[0].mxu0
        %v3611 = vadd.f32 0.0, %v3610
        %3612 = vdwg.mxu0
        %3613 = vmatprep.subr.mxu0 %v1254
        %3614 = vmatpush1.msra.mxu0 %v1253
        %3615 = vmatprep.subr.mxu0 %v1382
        %3616 = vmatpush1.msra.mxu0 %v1381
        %3617 = vmatprep.subr.mxu0 %v1738
        %3618 = vmatpush1.msra.mxu0 %v1735
        %3619 = vmatprep.subr.mxu0 0.0
        %3620 = vmatpush1.msra.mxu0 0.0
        %3621 = vmatprep.subr.mxu0 0.0
        %3622 = vmatpush1.msra.mxu0 0.0
        %3623 = vmatprep.subr.mxu0 0.0
        %3624 = vmatpush1.msra.mxu0 0.0
        %3625 = vmatprep.subr.mxu0 0.0
        %3626 = vmatpush1.msra.mxu0 0.0
        %3627 = vmatprep.subr.mxu0 0.0
        %3628 = vmatpush1.msra.mxu0 0.0
        %3629 = vmatprep.subr.mxu0 0.0
        %3630 = vmatpush1.msra.mxu0 0.0
        %3631 = vmatprep.subr.mxu0 0.0
        %3632 = vmatpush1.msra.mxu0 0.0
        %3633 = vmatprep.subr.mxu0 0.0
        %3634 = vmatpush1.msra.mxu0 0.0
        %3635 = vmatprep.subr.mxu0 0.0
        %3636 = vmatpush1.msra.mxu0 0.0
        %3637 = vmatprep.subr.mxu0 0.0
        %3638 = vmatpush1.msra.mxu0 0.0
        %3639 = vmatprep.subr.mxu0 0.0
        %3640 = vmatpush1.msra.mxu0 0.0
        %3641 = vmatprep.subr.mxu0 0.0
        %3642 = vmatpush1.msra.mxu0 0.0
        %3643 = vmatprep.subr.mxu0 0.0
        %3644 = vmatpush1.msra.mxu0 0.0
        %3645 = vmatprep.subr.mxu0 0.0
        %3646 = vmatpush1.msra.mxu0 0.0
        %3647 = vmatprep.subr.mxu0 0.0
        %3648 = vmatpush1.msra.mxu0 0.0
        %3649 = vmatprep.subr.mxu0 0.0
        %3650 = vmatpush1.msra.mxu0 0.0
        %3651 = vmatprep.subr.mxu0 0.0
        %3652 = vmatpush1.msra.mxu0 0.0
        %3653 = vmatprep.subr.mxu0 0.0
        %3654 = vmatpush1.msra.mxu0 0.0
        %3655 = vmatprep.subr.mxu0 0.0
        %3656 = vmatpush1.msra.mxu0 0.0
        %3657 = vmatprep.subr.mxu0 0.0
        %3658 = vmatpush1.msra.mxu0 0.0
        %3659 = vmatprep.subr.mxu0 0.0
        %3660 = vmatpush1.msra.mxu0 0.0
        %3661 = vmatprep.subr.mxu0 0.0
        %3662 = vmatpush1.msra.mxu0 0.0
        %3663 = vmatprep.subr.mxu0 0.0
        %3664 = vmatpush1.msra.mxu0 0.0
        %3665 = vmatprep.subr.mxu0 0.0
        %3666 = vmatpush1.msra.mxu0 0.0
        %3667 = vmatprep.subr.mxu0 0.0
        %3668 = vmatpush1.msra.mxu0 0.0
        %3669 = vmatprep.subr.mxu0 0.0
        %3670 = vmatpush1.msra.mxu0 0.0
        %3671 = vmatprep.subr.mxu0 0.0
        %3672 = vmatpush1.msra.mxu0 0.0
        %3673 = vmatprep.subr.mxu0 0.0
        %3674 = vmatpush1.msra.mxu0 0.0
        %3675 = vmatprep.subr.mxu0 0.0
        %3676 = vmatpush1.msra.mxu0 0.0
        %3677 = vmatprep.mubr.f32.mxu0 0.0
        %3678 = vmatmul.mubr.f32.gmra.mrb[0].mxu0 %v1593
        %v3679 = vpop.f32.mrb[0].mxu0
        %v3680 = vadd.f32 0.0, %v3679
        %v3681 = vpop.f32.mrb[0].mxu0
        %v3682 = vadd.f32 0.0, %v3681
        %3683 = vdwg.mxu0
        %3684 = vmatprep.subr.mxu0 %v1256
        %3685 = vmatpush1.msra.mxu0 %v1255
        %3686 = vmatprep.subr.mxu0 %v1384
        %3687 = vmatpush1.msra.mxu0 %v1383
        %3688 = vmatprep.subr.mxu0 %v1744
        %3689 = vmatpush1.msra.mxu0 %v1741
        %3690 = vmatprep.subr.mxu0 0.0
        %3691 = vmatpush1.msra.mxu0 0.0
        %3692 = vmatprep.subr.mxu0 0.0
        %3693 = vmatpush1.msra.mxu0 0.0
        %3694 = vmatprep.subr.mxu0 0.0
        %3695 = vmatpush1.msra.mxu0 0.0
        %3696 = vmatprep.subr.mxu0 0.0
        %3697 = vmatpush1.msra.mxu0 0.0
        %3698 = vmatprep.subr.mxu0 0.0
        %3699 = vmatpush1.msra.mxu0 0.0
        %3700 = vmatprep.subr.mxu0 0.0
        %3701 = vmatpush1.msra.mxu0 0.0
        %3702 = vmatprep.subr.mxu0 0.0
        %3703 = vmatpush1.msra.mxu0 0.0
        %3704 = vmatprep.subr.mxu0 0.0
        %3705 = vmatpush1.msra.mxu0 0.0
        %3706 = vmatprep.subr.mxu0 0.0
        %3707 = vmatpush1.msra.mxu0 0.0
        %3708 = vmatprep.subr.mxu0 0.0
        %3709 = vmatpush1.msra.mxu0 0.0
        %3710 = vmatprep.subr.mxu0 0.0
        %3711 = vmatpush1.msra.mxu0 0.0
        %3712 = vmatprep.subr.mxu0 0.0
        %3713 = vmatpush1.msra.mxu0 0.0
        %3714 = vmatprep.subr.mxu0 0.0
        %3715 = vmatpush1.msra.mxu0 0.0
        %3716 = vmatprep.subr.mxu0 0.0
        %3717 = vmatpush1.msra.mxu0 0.0
        %3718 = vmatprep.subr.mxu0 0.0
        %3719 = vmatpush1.msra.mxu0 0.0
        %3720 = vmatprep.subr.mxu0 0.0
        %3721 = vmatpush1.msra.mxu0 0.0
        %3722 = vmatprep.subr.mxu0 0.0
        %3723 = vmatpush1.msra.mxu0 0.0
        %3724 = vmatprep.subr.mxu0 0.0
        %3725 = vmatpush1.msra.mxu0 0.0
        %3726 = vmatprep.subr.mxu0 0.0
        %3727 = vmatpush1.msra.mxu0 0.0
        %3728 = vmatprep.subr.mxu0 0.0
        %3729 = vmatpush1.msra.mxu0 0.0
        %3730 = vmatprep.subr.mxu0 0.0
        %3731 = vmatpush1.msra.mxu0 0.0
        %3732 = vmatprep.subr.mxu0 0.0
        %3733 = vmatpush1.msra.mxu0 0.0
        %3734 = vmatprep.subr.mxu0 0.0
        %3735 = vmatpush1.msra.mxu0 0.0
        %3736 = vmatprep.subr.mxu0 0.0
        %3737 = vmatpush1.msra.mxu0 0.0
        %3738 = vmatprep.subr.mxu0 0.0
        %3739 = vmatpush1.msra.mxu0 0.0
        %3740 = vmatprep.subr.mxu0 0.0
        %3741 = vmatpush1.msra.mxu0 0.0
        %3742 = vmatprep.subr.mxu0 0.0
        %3743 = vmatpush1.msra.mxu0 0.0
        %3744 = vmatprep.subr.mxu0 0.0
        %3745 = vmatpush1.msra.mxu0 0.0
        %3746 = vmatprep.subr.mxu0 0.0
        %3747 = vmatpush1.msra.mxu0 0.0
        %3748 = vmatprep.mubr.f32.mxu0 0.0
        %3749 = vmatmul.mubr.f32.gmra.mrb[0].mxu0 %v1593
        %v3750 = vpop.f32.mrb[0].mxu0
        %v3751 = vadd.f32 0.0, %v3750
        %v3752 = vpop.f32.mrb[0].mxu0
        %v3753 = vadd.f32 0.0, %v3752
        %3754 = vdwg.mxu0
        %3755 = vmatprep.subr.mxu0 %v1258
        %3756 = vmatpush1.msra.mxu0 %v1257
        %3757 = vmatprep.subr.mxu0 %v1386
        %3758 = vmatpush1.msra.mxu0 %v1385
        %3759 = vmatprep.subr.mxu0 %v1750
        %3760 = vmatpush1.msra.mxu0 %v1747
        %3761 = vmatprep.subr.mxu0 0.0
        %3762 = vmatpush1.msra.mxu0 0.0
        %3763 = vmatprep.subr.mxu0 0.0
        %3764 = vmatpush1.msra.mxu0 0.0
        %3765 = vmatprep.subr.mxu0 0.0
        %3766 = vmatpush1.msra.mxu0 0.0
        %3767 = vmatprep.subr.mxu0 0.0
        %3768 = vmatpush1.msra.mxu0 0.0
        %3769 = vmatprep.subr.mxu0 0.0
        %3770 = vmatpush1.msra.mxu0 0.0
        %3771 = vmatprep.subr.mxu0 0.0
        %3772 = vmatpush1.msra.mxu0 0.0
        %3773 = vmatprep.subr.mxu0 0.0
        %3774 = vmatpush1.msra.mxu0 0.0
        %3775 = vmatprep.subr.mxu0 0.0
        %3776 = vmatpush1.msra.mxu0 0.0
        %3777 = vmatprep.subr.mxu0 0.0
        %3778 = vmatpush1.msra.mxu0 0.0
        %3779 = vmatprep.subr.mxu0 0.0
        %3780 = vmatpush1.msra.mxu0 0.0
        %3781 = vmatprep.subr.mxu0 0.0
        %3782 = vmatpush1.msra.mxu0 0.0
        %3783 = vmatprep.subr.mxu0 0.0
        %3784 = vmatpush1.msra.mxu0 0.0
        %3785 = vmatprep.subr.mxu0 0.0
        %3786 = vmatpush1.msra.mxu0 0.0
        %3787 = vmatprep.subr.mxu0 0.0
        %3788 = vmatpush1.msra.mxu0 0.0
        %3789 = vmatprep.subr.mxu0 0.0
        %3790 = vmatpush1.msra.mxu0 0.0
        %3791 = vmatprep.subr.mxu0 0.0
        %3792 = vmatpush1.msra.mxu0 0.0
        %3793 = vmatprep.subr.mxu0 0.0
        %3794 = vmatpush1.msra.mxu0 0.0
        %3795 = vmatprep.subr.mxu0 0.0
        %3796 = vmatpush1.msra.mxu0 0.0
        %3797 = vmatprep.subr.mxu0 0.0
        %3798 = vmatpush1.msra.mxu0 0.0
        %3799 = vmatprep.subr.mxu0 0.0
        %3800 = vmatpush1.msra.mxu0 0.0
        %3801 = vmatprep.subr.mxu0 0.0
        %3802 = vmatpush1.msra.mxu0 0.0
        %3803 = vmatprep.subr.mxu0 0.0
        %3804 = vmatpush1.msra.mxu0 0.0
        %3805 = vmatprep.subr.mxu0 0.0
        %3806 = vmatpush1.msra.mxu0 0.0
        %3807 = vmatprep.subr.mxu0 0.0
        %3808 = vmatpush1.msra.mxu0 0.0
        %3809 = vmatprep.subr.mxu0 0.0
        %3810 = vmatpush1.msra.mxu0 0.0
        %3811 = vmatprep.subr.mxu0 0.0
        %3812 = vmatpush1.msra.mxu0 0.0
        %3813 = vmatprep.subr.mxu0 0.0
        %3814 = vmatpush1.msra.mxu0 0.0
        %3815 = vmatprep.subr.mxu0 0.0
        %3816 = vmatpush1.msra.mxu0 0.0
        %3817 = vmatprep.subr.mxu0 0.0
        %3818 = vmatpush1.msra.mxu0 0.0
        %3819 = vmatprep.mubr.f32.mxu0 0.0
        %3820 = vmatmul.mubr.f32.gmra.mrb[0].mxu0 %v1593
        %v3821 = vpop.f32.mrb[0].mxu0
        %v3822 = vadd.f32 0.0, %v3821
        %v3823 = vpop.f32.mrb[0].mxu0
        %v3824 = vadd.f32 0.0, %v3823
        %3825 = vdwg.mxu0
        %3826 = vmatprep.subr.mxu0 %v1260
        %3827 = vmatpush1.msra.mxu0 %v1259
        %3828 = vmatprep.subr.mxu0 %v1388
        %3829 = vmatpush1.msra.mxu0 %v1387
        %3830 = vmatprep.subr.mxu0 %v1756
        %3831 = vmatpush1.msra.mxu0 %v1753
        %3832 = vmatprep.subr.mxu0 0.0
        %3833 = vmatpush1.msra.mxu0 0.0
        %3834 = vmatprep.subr.mxu0 0.0
        %3835 = vmatpush1.msra.mxu0 0.0
        %3836 = vmatprep.subr.mxu0 0.0
        %3837 = vmatpush1.msra.mxu0 0.0
        %3838 = vmatprep.subr.mxu0 0.0
        %3839 = vmatpush1.msra.mxu0 0.0
        %3840 = vmatprep.subr.mxu0 0.0
        %3841 = vmatpush1.msra.mxu0 0.0
        %3842 = vmatprep.subr.mxu0 0.0
        %3843 = vmatpush1.msra.mxu0 0.0
        %3844 = vmatprep.subr.mxu0 0.0
        %3845 = vmatpush1.msra.mxu0 0.0
        %3846 = vmatprep.subr.mxu0 0.0
        %3847 = vmatpush1.msra.mxu0 0.0
        %3848 = vmatprep.subr.mxu0 0.0
        %3849 = vmatpush1.msra.mxu0 0.0
        %3850 = vmatprep.subr.mxu0 0.0
        %3851 = vmatpush1.msra.mxu0 0.0
        %3852 = vmatprep.subr.mxu0 0.0
        %3853 = vmatpush1.msra.mxu0 0.0
        %3854 = vmatprep.subr.mxu0 0.0
        %3855 = vmatpush1.msra.mxu0 0.0
        %3856 = vmatprep.subr.mxu0 0.0
        %3857 = vmatpush1.msra.mxu0 0.0
        %3858 = vmatprep.subr.mxu0 0.0
        %3859 = vmatpush1.msra.mxu0 0.0
        %3860 = vmatprep.subr.mxu0 0.0
        %3861 = vmatpush1.msra.mxu0 0.0
        %3862 = vmatprep.subr.mxu0 0.0
        %3863 = vmatpush1.msra.mxu0 0.0
        %3864 = vmatprep.subr.mxu0 0.0
        %3865 = vmatpush1.msra.mxu0 0.0
        %3866 = vmatprep.subr.mxu0 0.0
        %3867 = vmatpush1.msra.mxu0 0.0
        %3868 = vmatprep.subr.mxu0 0.0
        %3869 = vmatpush1.msra.mxu0 0.0
        %3870 = vmatprep.subr.mxu0 0.0
        %3871 = vmatpush1.msra.mxu0 0.0
        %3872 = vmatprep.subr.mxu0 0.0
        %3873 = vmatpush1.msra.mxu0 0.0
        %3874 = vmatprep.subr.mxu0 0.0
        %3875 = vmatpush1.msra.mxu0 0.0
        %3876 = vmatprep.subr.mxu0 0.0
        %3877 = vmatpush1.msra.mxu0 0.0
        %3878 = vmatprep.subr.mxu0 0.0
        %3879 = vmatpush1.msra.mxu0 0.0
        %3880 = vmatprep.subr.mxu0 0.0
        %3881 = vmatpush1.msra.mxu0 0.0
        %3882 = vmatprep.subr.mxu0 0.0
        %3883 = vmatpush1.msra.mxu0 0.0
        %3884 = vmatprep.subr.mxu0 0.0
        %3885 = vmatpush1.msra.mxu0 0.0
        %3886 = vmatprep.subr.mxu0 0.0
        %3887 = vmatpush1.msra.mxu0 0.0
        %3888 = vmatprep.subr.mxu0 0.0
        %3889 = vmatpush1.msra.mxu0 0.0
        %3890 = vmatprep.mubr.f32.mxu0 0.0
        %3891 = vmatmul.mubr.f32.gmra.mrb[0].mxu0 %v1593
        %v3892 = vpop.f32.mrb[0].mxu0
        %v3893 = vadd.f32 0.0, %v3892
        %v3894 = vpop.f32.mrb[0].mxu0
        %v3895 = vadd.f32 0.0, %v3894
        %3896 = vdwg.mxu0
        %3897 = vmatprep.subr.mxu0 %v1262
        %3898 = vmatpush1.msra.mxu0 %v1261
        %3899 = vmatprep.subr.mxu0 %v1390
        %3900 = vmatpush1.msra.mxu0 %v1389
        %3901 = vmatprep.subr.mxu0 %v1762
        %3902 = vmatpush1.msra.mxu0 %v1759
        %3903 = vmatprep.subr.mxu0 0.0
        %3904 = vmatpush1.msra.mxu0 0.0
        %3905 = vmatprep.subr.mxu0 0.0
        %3906 = vmatpush1.msra.mxu0 0.0
        %3907 = vmatprep.subr.mxu0 0.0
        %3908 = vmatpush1.msra.mxu0 0.0
        %3909 = vmatprep.subr.mxu0 0.0
        %3910 = vmatpush1.msra.mxu0 0.0
        %3911 = vmatprep.subr.mxu0 0.0
        %3912 = vmatpush1.msra.mxu0 0.0
        %3913 = vmatprep.subr.mxu0 0.0
        %3914 = vmatpush1.msra.mxu0 0.0
        %3915 = vmatprep.subr.mxu0 0.0
        %3916 = vmatpush1.msra.mxu0 0.0
        %3917 = vmatprep.subr.mxu0 0.0
        %3918 = vmatpush1.msra.mxu0 0.0
        %3919 = vmatprep.subr.mxu0 0.0
        %3920 = vmatpush1.msra.mxu0 0.0
        %3921 = vmatprep.subr.mxu0 0.0
        %3922 = vmatpush1.msra.mxu0 0.0
        %3923 = vmatprep.subr.mxu0 0.0
        %3924 = vmatpush1.msra.mxu0 0.0
        %3925 = vmatprep.subr.mxu0 0.0
        %3926 = vmatpush1.msra.mxu0 0.0
        %3927 = vmatprep.subr.mxu0 0.0
        %3928 = vmatpush1.msra.mxu0 0.0
        %3929 = vmatprep.subr.mxu0 0.0
        %3930 = vmatpush1.msra.mxu0 0.0
        %3931 = vmatprep.subr.mxu0 0.0
        %3932 = vmatpush1.msra.mxu0 0.0
        %3933 = vmatprep.subr.mxu0 0.0
        %3934 = vmatpush1.msra.mxu0 0.0
        %3935 = vmatprep.subr.mxu0 0.0
        %3936 = vmatpush1.msra.mxu0 0.0
        %3937 = vmatprep.subr.mxu0 0.0
        %3938 = vmatpush1.msra.mxu0 0.0
        %3939 = vmatprep.subr.mxu0 0.0
        %3940 = vmatpush1.msra.mxu0 0.0
        %3941 = vmatprep.subr.mxu0 0.0
        %3942 = vmatpush1.msra.mxu0 0.0
        %3943 = vmatprep.subr.mxu0 0.0
        %3944 = vmatpush1.msra.mxu0 0.0
        %3945 = vmatprep.subr.mxu0 0.0
        %3946 = vmatpush1.msra.mxu0 0.0
        %3947 = vmatprep.subr.mxu0 0.0
        %3948 = vmatpush1.msra.mxu0 0.0
        %3949 = vmatprep.subr.mxu0 0.0
        %3950 = vmatpush1.msra.mxu0 0.0
        %3951 = vmatprep.subr.mxu0 0.0
        %3952 = vmatpush1.msra.mxu0 0.0
        %3953 = vmatprep.subr.mxu0 0.0
        %3954 = vmatpush1.msra.mxu0 0.0
        %3955 = vmatprep.subr.mxu0 0.0
        %3956 = vmatpush1.msra.mxu0 0.0
        %3957 = vmatprep.subr.mxu0 0.0
        %3958 = vmatpush1.msra.mxu0 0.0
        %3959 = vmatprep.subr.mxu0 0.0
        %3960 = vmatpush1.msra.mxu0 0.0
        %3961 = vmatprep.mubr.f32.mxu0 0.0
        %3962 = vmatmul.mubr.f32.gmra.mrb[0].mxu0 %v1593
        %v3963 = vpop.f32.mrb[0].mxu0
        %v3964 = vadd.f32 0.0, %v3963
        %v3965 = vpop.f32.mrb[0].mxu0
        %v3966 = vadd.f32 0.0, %v3965
        %3967 = vdwg.mxu0
        %3968 = vmatprep.subr.mxu0 %v1264
        %3969 = vmatpush1.msra.mxu0 %v1263
        %3970 = vmatprep.subr.mxu0 %v1392
        %3971 = vmatpush1.msra.mxu0 %v1391
        %3972 = vmatprep.subr.mxu0 %v1768
        %3973 = vmatpush1.msra.mxu0 %v1765
        %3974 = vmatprep.subr.mxu0 0.0
        %3975 = vmatpush1.msra.mxu0 0.0
        %3976 = vmatprep.subr.mxu0 0.0
        %3977 = vmatpush1.msra.mxu0 0.0
        %3978 = vmatprep.subr.mxu0 0.0
        %3979 = vmatpush1.msra.mxu0 0.0
        %3980 = vmatprep.subr.mxu0 0.0
        %3981 = vmatpush1.msra.mxu0 0.0
        %3982 = vmatprep.subr.mxu0 0.0
        %3983 = vmatpush1.msra.mxu0 0.0
        %3984 = vmatprep.subr.mxu0 0.0
        %3985 = vmatpush1.msra.mxu0 0.0
        %3986 = vmatprep.subr.mxu0 0.0
        %3987 = vmatpush1.msra.mxu0 0.0
        %3988 = vmatprep.subr.mxu0 0.0
        %3989 = vmatpush1.msra.mxu0 0.0
        %3990 = vmatprep.subr.mxu0 0.0
        %3991 = vmatpush1.msra.mxu0 0.0
        %3992 = vmatprep.subr.mxu0 0.0
        %3993 = vmatpush1.msra.mxu0 0.0
        %3994 = vmatprep.subr.mxu0 0.0
        %3995 = vmatpush1.msra.mxu0 0.0
        %3996 = vmatprep.subr.mxu0 0.0
        %3997 = vmatpush1.msra.mxu0 0.0
        %3998 = vmatprep.subr.mxu0 0.0
        %3999 = vmatpush1.msra.mxu0 0.0
        %4000 = vmatprep.subr.mxu0 0.0
        %4001 = vmatpush1.msra.mxu0 0.0
        %4002 = vmatprep.subr.mxu0 0.0
        %4003 = vmatpush1.msra.mxu0 0.0
        %4004 = vmatprep.subr.mxu0 0.0
        %4005 = vmatpush1.msra.mxu0 0.0
        %4006 = vmatprep.subr.mxu0 0.0
        %4007 = vmatpush1.msra.mxu0 0.0
        %4008 = vmatprep.subr.mxu0 0.0
        %4009 = vmatpush1.msra.mxu0 0.0
        %4010 = vmatprep.subr.mxu0 0.0
        %4011 = vmatpush1.msra.mxu0 0.0
        %4012 = vmatprep.subr.mxu0 0.0
        %4013 = vmatpush1.msra.mxu0 0.0
        %4014 = vmatprep.subr.mxu0 0.0
        %4015 = vmatpush1.msra.mxu0 0.0
        %4016 = vmatprep.subr.mxu0 0.0
        %4017 = vmatpush1.msra.mxu0 0.0
        %4018 = vmatprep.subr.mxu0 0.0
        %4019 = vmatpush1.msra.mxu0 0.0
        %4020 = vmatprep.subr.mxu0 0.0
        %4021 = vmatpush1.msra.mxu0 0.0
        %4022 = vmatprep.subr.mxu0 0.0
        %4023 = vmatpush1.msra.mxu0 0.0
        %4024 = vmatprep.subr.mxu0 0.0
        %4025 = vmatpush1.msra.mxu0 0.0
        %4026 = vmatprep.subr.mxu0 0.0
        %4027 = vmatpush1.msra.mxu0 0.0
        %4028 = vmatprep.subr.mxu0 0.0
        %4029 = vmatpush1.msra.mxu0 0.0
        %4030 = vmatprep.subr.mxu0 0.0
        %4031 = vmatpush1.msra.mxu0 0.0
        %4032 = vmatprep.mubr.f32.mxu0 0.0
        %4033 = vmatmul.mubr.f32.gmra.mrb[0].mxu0 %v1593
        %v4034 = vpop.f32.mrb[0].mxu0
        %v4035 = vadd.f32 0.0, %v4034
        %v4036 = vpop.f32.mrb[0].mxu0
        %v4037 = vadd.f32 0.0, %v4036
        %4038 = vdwg.mxu0
        %4039 = vmatprep.subr.mxu0 %v1266
        %4040 = vmatpush1.msra.mxu0 %v1265
        %4041 = vmatprep.subr.mxu0 %v1394
        %4042 = vmatpush1.msra.mxu0 %v1393
        %4043 = vmatprep.subr.mxu0 %v1774
        %4044 = vmatpush1.msra.mxu0 %v1771
        %4045 = vmatprep.subr.mxu0 0.0
        %4046 = vmatpush1.msra.mxu0 0.0
        %4047 = vmatprep.subr.mxu0 0.0
        %4048 = vmatpush1.msra.mxu0 0.0
        %4049 = vmatprep.subr.mxu0 0.0
        %4050 = vmatpush1.msra.mxu0 0.0
        %4051 = vmatprep.subr.mxu0 0.0
        %4052 = vmatpush1.msra.mxu0 0.0
        %4053 = vmatprep.subr.mxu0 0.0
        %4054 = vmatpush1.msra.mxu0 0.0
        %4055 = vmatprep.subr.mxu0 0.0
        %4056 = vmatpush1.msra.mxu0 0.0
        %4057 = vmatprep.subr.mxu0 0.0
        %4058 = vmatpush1.msra.mxu0 0.0
        %4059 = vmatprep.subr.mxu0 0.0
        %4060 = vmatpush1.msra.mxu0 0.0
        %4061 = vmatprep.subr.mxu0 0.0
        %4062 = vmatpush1.msra.mxu0 0.0
        %4063 = vmatprep.subr.mxu0 0.0
        %4064 = vmatpush1.msra.mxu0 0.0
        %4065 = vmatprep.subr.mxu0 0.0
        %4066 = vmatpush1.msra.mxu0 0.0
        %4067 = vmatprep.subr.mxu0 0.0
        %4068 = vmatpush1.msra.mxu0 0.0
        %4069 = vmatprep.subr.mxu0 0.0
        %4070 = vmatpush1.msra.mxu0 0.0
        %4071 = vmatprep.subr.mxu0 0.0
        %4072 = vmatpush1.msra.mxu0 0.0
        %4073 = vmatprep.subr.mxu0 0.0
        %4074 = vmatpush1.msra.mxu0 0.0
        %4075 = vmatprep.subr.mxu0 0.0
        %4076 = vmatpush1.msra.mxu0 0.0
        %4077 = vmatprep.subr.mxu0 0.0
        %4078 = vmatpush1.msra.mxu0 0.0
        %4079 = vmatprep.subr.mxu0 0.0
        %4080 = vmatpush1.msra.mxu0 0.0
        %4081 = vmatprep.subr.mxu0 0.0
        %4082 = vmatpush1.msra.mxu0 0.0
        %4083 = vmatprep.subr.mxu0 0.0
        %4084 = vmatpush1.msra.mxu0 0.0
        %4085 = vmatprep.subr.mxu0 0.0
        %4086 = vmatpush1.msra.mxu0 0.0
        %4087 = vmatprep.subr.mxu0 0.0
        %4088 = vmatpush1.msra.mxu0 0.0
        %4089 = vmatprep.subr.mxu0 0.0
        %4090 = vmatpush1.msra.mxu0 0.0
        %4091 = vmatprep.subr.mxu0 0.0
        %4092 = vmatpush1.msra.mxu0 0.0
        %4093 = vmatprep.subr.mxu0 0.0
        %4094 = vmatpush1.msra.mxu0 0.0
        %4095 = vmatprep.subr.mxu0 0.0
        %4096 = vmatpush1.msra.mxu0 0.0
        %4097 = vmatprep.subr.mxu0 0.0
        %4098 = vmatpush1.msra.mxu0 0.0
        %4099 = vmatprep.subr.mxu0 0.0
        %4100 = vmatpush1.msra.mxu0 0.0
        %4101 = vmatprep.subr.mxu0 0.0
        %4102 = vmatpush1.msra.mxu0 0.0
        %4103 = vmatprep.mubr.f32.mxu0 0.0
        %4104 = vmatmul.mubr.f32.gmra.mrb[0].mxu0 %v1593
        %v4105 = vpop.f32.mrb[0].mxu0
        %v4106 = vadd.f32 0.0, %v4105
        %v4107 = vpop.f32.mrb[0].mxu0
        %v4108 = vadd.f32 0.0, %v4107
        %4109 = vdwg.mxu0
        %4110 = vmatprep.subr.mxu0 %v1268
        %4111 = vmatpush1.msra.mxu0 %v1267
        %4112 = vmatprep.subr.mxu0 %v1396
        %4113 = vmatpush1.msra.mxu0 %v1395
        %4114 = vmatprep.subr.mxu0 %v1780
        %4115 = vmatpush1.msra.mxu0 %v1777
        %4116 = vmatprep.subr.mxu0 0.0
        %4117 = vmatpush1.msra.mxu0 0.0
        %4118 = vmatprep.subr.mxu0 0.0
        %4119 = vmatpush1.msra.mxu0 0.0
        %4120 = vmatprep.subr.mxu0 0.0
        %4121 = vmatpush1.msra.mxu0 0.0
        %4122 = vmatprep.subr.mxu0 0.0
        %4123 = vmatpush1.msra.mxu0 0.0
        %4124 = vmatprep.subr.mxu0 0.0
        %4125 = vmatpush1.msra.mxu0 0.0
        %4126 = vmatprep.subr.mxu0 0.0
        %4127 = vmatpush1.msra.mxu0 0.0
        %4128 = vmatprep.subr.mxu0 0.0
        %4129 = vmatpush1.msra.mxu0 0.0
        %4130 = vmatprep.subr.mxu0 0.0
        %4131 = vmatpush1.msra.mxu0 0.0
        %4132 = vmatprep.subr.mxu0 0.0
        %4133 = vmatpush1.msra.mxu0 0.0
        %4134 = vmatprep.subr.mxu0 0.0
        %4135 = vmatpush1.msra.mxu0 0.0
        %4136 = vmatprep.subr.mxu0 0.0
        %4137 = vmatpush1.msra.mxu0 0.0
        %4138 = vmatprep.subr.mxu0 0.0
        %4139 = vmatpush1.msra.mxu0 0.0
        %4140 = vmatprep.subr.mxu0 0.0
        %4141 = vmatpush1.msra.mxu0 0.0
        %4142 = vmatprep.subr.mxu0 0.0
        %4143 = vmatpush1.msra.mxu0 0.0
        %4144 = vmatprep.subr.mxu0 0.0
        %4145 = vmatpush1.msra.mxu0 0.0
        %4146 = vmatprep.subr.mxu0 0.0
        %4147 = vmatpush1.msra.mxu0 0.0
        %4148 = vmatprep.subr.mxu0 0.0
        %4149 = vmatpush1.msra.mxu0 0.0
        %4150 = vmatprep.subr.mxu0 0.0
        %4151 = vmatpush1.msra.mxu0 0.0
        %4152 = vmatprep.subr.mxu0 0.0
        %4153 = vmatpush1.msra.mxu0 0.0
        %4154 = vmatprep.subr.mxu0 0.0
        %4155 = vmatpush1.msra.mxu0 0.0
        %4156 = vmatprep.subr.mxu0 0.0
        %4157 = vmatpush1.msra.mxu0 0.0
        %4158 = vmatprep.subr.mxu0 0.0
        %4159 = vmatpush1.msra.mxu0 0.0
        %4160 = vmatprep.subr.mxu0 0.0
        %4161 = vmatpush1.msra.mxu0 0.0
        %4162 = vmatprep.subr.mxu0 0.0
        %4163 = vmatpush1.msra.mxu0 0.0
        %4164 = vmatprep.subr.mxu0 0.0
        %4165 = vmatpush1.msra.mxu0 0.0
        %4166 = vmatprep.subr.mxu0 0.0
        %4167 = vmatpush1.msra.mxu0 0.0
        %4168 = vmatprep.subr.mxu0 0.0
        %4169 = vmatpush1.msra.mxu0 0.0
        %4170 = vmatprep.subr.mxu0 0.0
        %4171 = vmatpush1.msra.mxu0 0.0
        %4172 = vmatprep.subr.mxu0 0.0
        %4173 = vmatpush1.msra.mxu0 0.0
        %4174 = vmatprep.mubr.f32.mxu0 0.0
        %4175 = vmatmul.mubr.f32.gmra.mrb[0].mxu0 %v1593
        %v4176 = vpop.f32.mrb[0].mxu0
        %v4177 = vadd.f32 0.0, %v4176
        %v4178 = vpop.f32.mrb[0].mxu0
        %v4179 = vadd.f32 0.0, %v4178
        %4180 = vdwg.mxu0
        %4181 = vmatprep.subr.mxu0 %v1270
        %4182 = vmatpush1.msra.mxu0 %v1269
        %4183 = vmatprep.subr.mxu0 %v1398
        %4184 = vmatpush1.msra.mxu0 %v1397
        %4185 = vmatprep.subr.mxu0 %v1786
        %4186 = vmatpush1.msra.mxu0 %v1783
        %4187 = vmatprep.subr.mxu0 0.0
        %4188 = vmatpush1.msra.mxu0 0.0
        %4189 = vmatprep.subr.mxu0 0.0
        %4190 = vmatpush1.msra.mxu0 0.0
        %4191 = vmatprep.subr.mxu0 0.0
        %4192 = vmatpush1.msra.mxu0 0.0
        %4193 = vmatprep.subr.mxu0 0.0
        %4194 = vmatpush1.msra.mxu0 0.0
        %4195 = vmatprep.subr.mxu0 0.0
        %4196 = vmatpush1.msra.mxu0 0.0
        %4197 = vmatprep.subr.mxu0 0.0
        %4198 = vmatpush1.msra.mxu0 0.0
        %4199 = vmatprep.subr.mxu0 0.0
        %4200 = vmatpush1.msra.mxu0 0.0
        %4201 = vmatprep.subr.mxu0 0.0
        %4202 = vmatpush1.msra.mxu0 0.0
        %4203 = vmatprep.subr.mxu0 0.0
        %4204 = vmatpush1.msra.mxu0 0.0
        %4205 = vmatprep.subr.mxu0 0.0
        %4206 = vmatpush1.msra.mxu0 0.0
        %4207 = vmatprep.subr.mxu0 0.0
        %4208 = vmatpush1.msra.mxu0 0.0
        %4209 = vmatprep.subr.mxu0 0.0
        %4210 = vmatpush1.msra.mxu0 0.0
        %4211 = vmatprep.subr.mxu0 0.0
        %4212 = vmatpush1.msra.mxu0 0.0
        %4213 = vmatprep.subr.mxu0 0.0
        %4214 = vmatpush1.msra.mxu0 0.0
        %4215 = vmatprep.subr.mxu0 0.0
        %4216 = vmatpush1.msra.mxu0 0.0
        %4217 = vmatprep.subr.mxu0 0.0
        %4218 = vmatpush1.msra.mxu0 0.0
        %4219 = vmatprep.subr.mxu0 0.0
        %4220 = vmatpush1.msra.mxu0 0.0
        %4221 = vmatprep.subr.mxu0 0.0
        %4222 = vmatpush1.msra.mxu0 0.0
        %4223 = vmatprep.subr.mxu0 0.0
        %4224 = vmatpush1.msra.mxu0 0.0
        %4225 = vmatprep.subr.mxu0 0.0
        %4226 = vmatpush1.msra.mxu0 0.0
        %4227 = vmatprep.subr.mxu0 0.0
        %4228 = vmatpush1.msra.mxu0 0.0
        %4229 = vmatprep.subr.mxu0 0.0
        %4230 = vmatpush1.msra.mxu0 0.0
        %4231 = vmatprep.subr.mxu0 0.0
        %4232 = vmatpush1.msra.mxu0 0.0
        %4233 = vmatprep.subr.mxu0 0.0
        %4234 = vmatpush1.msra.mxu0 0.0
        %4235 = vmatprep.subr.mxu0 0.0
        %4236 = vmatpush1.msra.mxu0 0.0
        %4237 = vmatprep.subr.mxu0 0.0
        %4238 = vmatpush1.msra.mxu0 0.0
        %4239 = vmatprep.subr.mxu0 0.0
        %4240 = vmatpush1.msra.mxu0 0.0
        %4241 = vmatprep.subr.mxu0 0.0
        %4242 = vmatpush1.msra.mxu0 0.0
        %4243 = vmatprep.subr.mxu0 0.0
        %4244 = vmatpush1.msra.mxu0 0.0
        %4245 = vmatprep.mubr.f32.mxu0 0.0
        %4246 = vmatmul.mubr.f32.gmra.mrb[0].mxu0 %v1593
        %v4247 = vpop.f32.mrb[0].mxu0
        %v4248 = vadd.f32 0.0, %v4247
        %v4249 = vpop.f32.mrb[0].mxu0
        %v4250 = vadd.f32 0.0, %v4249
        %4251 = vdwg.mxu0
        %4252 = vmatprep.subr.mxu0 %v1272
        %4253 = vmatpush1.msra.mxu0 %v1271
        %4254 = vmatprep.subr.mxu0 %v1400
        %4255 = vmatpush1.msra.mxu0 %v1399
        %4256 = vmatprep.subr.mxu0 %v1792
        %4257 = vmatpush1.msra.mxu0 %v1789
        %4258 = vmatprep.subr.mxu0 0.0
        %4259 = vmatpush1.msra.mxu0 0.0
        %4260 = vmatprep.subr.mxu0 0.0
        %4261 = vmatpush1.msra.mxu0 0.0
        %4262 = vmatprep.subr.mxu0 0.0
        %4263 = vmatpush1.msra.mxu0 0.0
        %4264 = vmatprep.subr.mxu0 0.0
        %4265 = vmatpush1.msra.mxu0 0.0
        %4266 = vmatprep.subr.mxu0 0.0
        %4267 = vmatpush1.msra.mxu0 0.0
        %4268 = vmatprep.subr.mxu0 0.0
        %4269 = vmatpush1.msra.mxu0 0.0
        %4270 = vmatprep.subr.mxu0 0.0
        %4271 = vmatpush1.msra.mxu0 0.0
        %4272 = vmatprep.subr.mxu0 0.0
        %4273 = vmatpush1.msra.mxu0 0.0
        %4274 = vmatprep.subr.mxu0 0.0
        %4275 = vmatpush1.msra.mxu0 0.0
        %4276 = vmatprep.subr.mxu0 0.0
        %4277 = vmatpush1.msra.mxu0 0.0
        %4278 = vmatprep.subr.mxu0 0.0
        %4279 = vmatpush1.msra.mxu0 0.0
        %4280 = vmatprep.subr.mxu0 0.0
        %4281 = vmatpush1.msra.mxu0 0.0
        %4282 = vmatprep.subr.mxu0 0.0
        %4283 = vmatpush1.msra.mxu0 0.0
        %4284 = vmatprep.subr.mxu0 0.0
        %4285 = vmatpush1.msra.mxu0 0.0
        %4286 = vmatprep.subr.mxu0 0.0
        %4287 = vmatpush1.msra.mxu0 0.0
        %4288 = vmatprep.subr.mxu0 0.0
        %4289 = vmatpush1.msra.mxu0 0.0
        %4290 = vmatprep.subr.mxu0 0.0
        %4291 = vmatpush1.msra.mxu0 0.0
        %4292 = vmatprep.subr.mxu0 0.0
        %4293 = vmatpush1.msra.mxu0 0.0
        %4294 = vmatprep.subr.mxu0 0.0
        %4295 = vmatpush1.msra.mxu0 0.0
        %4296 = vmatprep.subr.mxu0 0.0
        %4297 = vmatpush1.msra.mxu0 0.0
        %4298 = vmatprep.subr.mxu0 0.0
        %4299 = vmatpush1.msra.mxu0 0.0
        %4300 = vmatprep.subr.mxu0 0.0
        %4301 = vmatpush1.msra.mxu0 0.0
        %4302 = vmatprep.subr.mxu0 0.0
        %4303 = vmatpush1.msra.mxu0 0.0
        %4304 = vmatprep.subr.mxu0 0.0
        %4305 = vmatpush1.msra.mxu0 0.0
        %4306 = vmatprep.subr.mxu0 0.0
        %4307 = vmatpush1.msra.mxu0 0.0
        %4308 = vmatprep.subr.mxu0 0.0
        %4309 = vmatpush1.msra.mxu0 0.0
        %4310 = vmatprep.subr.mxu0 0.0
        %4311 = vmatpush1.msra.mxu0 0.0
        %4312 = vmatprep.subr.mxu0 0.0
        %4313 = vmatpush1.msra.mxu0 0.0
        %4314 = vmatprep.subr.mxu0 0.0
        %4315 = vmatpush1.msra.mxu0 0.0
        %4316 = vmatprep.mubr.f32.mxu0 0.0
        %4317 = vmatmul.mubr.f32.gmra.mrb[0].mxu0 %v1593
        %v4318 = vpop.f32.mrb[0].mxu0
        %v4319 = vadd.f32 0.0, %v4318
        %v4320 = vpop.f32.mrb[0].mxu0
        %v4321 = vadd.f32 0.0, %v4320
        %4322 = vdwg.mxu0
        %4323 = vmatprep.subr.mxu0 %v1274
        %4324 = vmatpush1.msra.mxu0 %v1273
        %4325 = vmatprep.subr.mxu0 %v1402
        %4326 = vmatpush1.msra.mxu0 %v1401
        %4327 = vmatprep.subr.mxu0 %v1798
        %4328 = vmatpush1.msra.mxu0 %v1795
        %4329 = vmatprep.subr.mxu0 0.0
        %4330 = vmatpush1.msra.mxu0 0.0
        %4331 = vmatprep.subr.mxu0 0.0
        %4332 = vmatpush1.msra.mxu0 0.0
        %4333 = vmatprep.subr.mxu0 0.0
        %4334 = vmatpush1.msra.mxu0 0.0
        %4335 = vmatprep.subr.mxu0 0.0
        %4336 = vmatpush1.msra.mxu0 0.0
        %4337 = vmatprep.subr.mxu0 0.0
        %4338 = vmatpush1.msra.mxu0 0.0
        %4339 = vmatprep.subr.mxu0 0.0
        %4340 = vmatpush1.msra.mxu0 0.0
        %4341 = vmatprep.subr.mxu0 0.0
        %4342 = vmatpush1.msra.mxu0 0.0
        %4343 = vmatprep.subr.mxu0 0.0
        %4344 = vmatpush1.msra.mxu0 0.0
        %4345 = vmatprep.subr.mxu0 0.0
        %4346 = vmatpush1.msra.mxu0 0.0
        %4347 = vmatprep.subr.mxu0 0.0
        %4348 = vmatpush1.msra.mxu0 0.0
        %4349 = vmatprep.subr.mxu0 0.0
        %4350 = vmatpush1.msra.mxu0 0.0
        %4351 = vmatprep.subr.mxu0 0.0
        %4352 = vmatpush1.msra.mxu0 0.0
        %4353 = vmatprep.subr.mxu0 0.0
        %4354 = vmatpush1.msra.mxu0 0.0
        %4355 = vmatprep.subr.mxu0 0.0
        %4356 = vmatpush1.msra.mxu0 0.0
        %4357 = vmatprep.subr.mxu0 0.0
        %4358 = vmatpush1.msra.mxu0 0.0
        %4359 = vmatprep.subr.mxu0 0.0
        %4360 = vmatpush1.msra.mxu0 0.0
        %4361 = vmatprep.subr.mxu0 0.0
        %4362 = vmatpush1.msra.mxu0 0.0
        %4363 = vmatprep.subr.mxu0 0.0
        %4364 = vmatpush1.msra.mxu0 0.0
        %4365 = vmatprep.subr.mxu0 0.0
        %4366 = vmatpush1.msra.mxu0 0.0
        %4367 = vmatprep.subr.mxu0 0.0
        %4368 = vmatpush1.msra.mxu0 0.0
        %4369 = vmatprep.subr.mxu0 0.0
        %4370 = vmatpush1.msra.mxu0 0.0
        %4371 = vmatprep.subr.mxu0 0.0
        %4372 = vmatpush1.msra.mxu0 0.0
        %4373 = vmatprep.subr.mxu0 0.0
        %4374 = vmatpush1.msra.mxu0 0.0
        %4375 = vmatprep.subr.mxu0 0.0
        %4376 = vmatpush1.msra.mxu0 0.0
        %4377 = vmatprep.subr.mxu0 0.0
        %4378 = vmatpush1.msra.mxu0 0.0
        %4379 = vmatprep.subr.mxu0 0.0
        %4380 = vmatpush1.msra.mxu0 0.0
        %4381 = vmatprep.subr.mxu0 0.0
        %4382 = vmatpush1.msra.mxu0 0.0
        %4383 = vmatprep.subr.mxu0 0.0
        %4384 = vmatpush1.msra.mxu0 0.0
        %4385 = vmatprep.subr.mxu0 0.0
        %4386 = vmatpush1.msra.mxu0 0.0
        %4387 = vmatprep.mubr.f32.mxu0 0.0
        %4388 = vmatmul.mubr.f32.gmra.mrb[0].mxu0 %v1593
        %v4389 = vpop.f32.mrb[0].mxu0
        %v4390 = vadd.f32 0.0, %v4389
        %v4391 = vpop.f32.mrb[0].mxu0
        %v4392 = vadd.f32 0.0, %v4391
        %4393 = vdwg.mxu0
        %4394 = vmatprep.subr.mxu0 %v1276
        %4395 = vmatpush1.msra.mxu0 %v1275
        %4396 = vmatprep.subr.mxu0 %v1404
        %4397 = vmatpush1.msra.mxu0 %v1403
        %4398 = vmatprep.subr.mxu0 %v1804
        %4399 = vmatpush1.msra.mxu0 %v1801
        %4400 = vmatprep.subr.mxu0 0.0
        %4401 = vmatpush1.msra.mxu0 0.0
        %4402 = vmatprep.subr.mxu0 0.0
        %4403 = vmatpush1.msra.mxu0 0.0
        %4404 = vmatprep.subr.mxu0 0.0
        %4405 = vmatpush1.msra.mxu0 0.0
        %4406 = vmatprep.subr.mxu0 0.0
        %4407 = vmatpush1.msra.mxu0 0.0
        %4408 = vmatprep.subr.mxu0 0.0
        %4409 = vmatpush1.msra.mxu0 0.0
        %4410 = vmatprep.subr.mxu0 0.0
        %4411 = vmatpush1.msra.mxu0 0.0
        %4412 = vmatprep.subr.mxu0 0.0
        %4413 = vmatpush1.msra.mxu0 0.0
        %4414 = vmatprep.subr.mxu0 0.0
        %4415 = vmatpush1.msra.mxu0 0.0
        %4416 = vmatprep.subr.mxu0 0.0
        %4417 = vmatpush1.msra.mxu0 0.0
        %4418 = vmatprep.subr.mxu0 0.0
        %4419 = vmatpush1.msra.mxu0 0.0
        %4420 = vmatprep.subr.mxu0 0.0
        %4421 = vmatpush1.msra.mxu0 0.0
        %4422 = vmatprep.subr.mxu0 0.0
        %4423 = vmatpush1.msra.mxu0 0.0
        %4424 = vmatprep.subr.mxu0 0.0
        %4425 = vmatpush1.msra.mxu0 0.0
        %4426 = vmatprep.subr.mxu0 0.0
        %4427 = vmatpush1.msra.mxu0 0.0
        %4428 = vmatprep.subr.mxu0 0.0
        %4429 = vmatpush1.msra.mxu0 0.0
        %4430 = vmatprep.subr.mxu0 0.0
        %4431 = vmatpush1.msra.mxu0 0.0
        %4432 = vmatprep.subr.mxu0 0.0
        %4433 = vmatpush1.msra.mxu0 0.0
        %4434 = vmatprep.subr.mxu0 0.0
        %4435 = vmatpush1.msra.mxu0 0.0
        %4436 = vmatprep.subr.mxu0 0.0
        %4437 = vmatpush1.msra.mxu0 0.0
        %4438 = vmatprep.subr.mxu0 0.0
        %4439 = vmatpush1.msra.mxu0 0.0
        %4440 = vmatprep.subr.mxu0 0.0
        %4441 = vmatpush1.msra.mxu0 0.0
        %4442 = vmatprep.subr.mxu0 0.0
        %4443 = vmatpush1.msra.mxu0 0.0
        %4444 = vmatprep.subr.mxu0 0.0
        %4445 = vmatpush1.msra.mxu0 0.0
        %4446 = vmatprep.subr.mxu0 0.0
        %4447 = vmatpush1.msra.mxu0 0.0
        %4448 = vmatprep.subr.mxu0 0.0
        %4449 = vmatpush1.msra.mxu0 0.0
        %4450 = vmatprep.subr.mxu0 0.0
        %4451 = vmatpush1.msra.mxu0 0.0
        %4452 = vmatprep.subr.mxu0 0.0
        %4453 = vmatpush1.msra.mxu0 0.0
        %4454 = vmatprep.subr.mxu0 0.0
        %4455 = vmatpush1.msra.mxu0 0.0
        %4456 = vmatprep.subr.mxu0 0.0
        %4457 = vmatpush1.msra.mxu0 0.0
        %4458 = vmatprep.mubr.f32.mxu0 0.0
        %4459 = vmatmul.mubr.f32.gmra.mrb[0].mxu0 %v1593
        %v4460 = vpop.f32.mrb[0].mxu0
        %v4461 = vadd.f32 0.0, %v4460
        %v4462 = vpop.f32.mrb[0].mxu0
        %v4463 = vadd.f32 0.0, %v4462
        %4464 = vdwg.mxu0
        %4465 = vmatprep.subr.mxu0 %v1278
        %4466 = vmatpush1.msra.mxu0 %v1277
        %4467 = vmatprep.subr.mxu0 %v1406
        %4468 = vmatpush1.msra.mxu0 %v1405
        %4469 = vmatprep.subr.mxu0 %v1810
        %4470 = vmatpush1.msra.mxu0 %v1807
        %4471 = vmatprep.subr.mxu0 0.0
        %4472 = vmatpush1.msra.mxu0 0.0
        %4473 = vmatprep.subr.mxu0 0.0
        %4474 = vmatpush1.msra.mxu0 0.0
        %4475 = vmatprep.subr.mxu0 0.0
        %4476 = vmatpush1.msra.mxu0 0.0
        %4477 = vmatprep.subr.mxu0 0.0
        %4478 = vmatpush1.msra.mxu0 0.0
        %4479 = vmatprep.subr.mxu0 0.0
        %4480 = vmatpush1.msra.mxu0 0.0
        %4481 = vmatprep.subr.mxu0 0.0
        %4482 = vmatpush1.msra.mxu0 0.0
        %4483 = vmatprep.subr.mxu0 0.0
        %4484 = vmatpush1.msra.mxu0 0.0
        %4485 = vmatprep.subr.mxu0 0.0
        %4486 = vmatpush1.msra.mxu0 0.0
        %4487 = vmatprep.subr.mxu0 0.0
        %4488 = vmatpush1.msra.mxu0 0.0
        %4489 = vmatprep.subr.mxu0 0.0
        %4490 = vmatpush1.msra.mxu0 0.0
        %4491 = vmatprep.subr.mxu0 0.0
        %4492 = vmatpush1.msra.mxu0 0.0
        %4493 = vmatprep.subr.mxu0 0.0
        %4494 = vmatpush1.msra.mxu0 0.0
        %4495 = vmatprep.subr.mxu0 0.0
        %4496 = vmatpush1.msra.mxu0 0.0
        %4497 = vmatprep.subr.mxu0 0.0
        %4498 = vmatpush1.msra.mxu0 0.0
        %4499 = vmatprep.subr.mxu0 0.0
        %4500 = vmatpush1.msra.mxu0 0.0
        %4501 = vmatprep.subr.mxu0 0.0
        %4502 = vmatpush1.msra.mxu0 0.0
        %4503 = vmatprep.subr.mxu0 0.0
        %4504 = vmatpush1.msra.mxu0 0.0
        %4505 = vmatprep.subr.mxu0 0.0
        %4506 = vmatpush1.msra.mxu0 0.0
        %4507 = vmatprep.subr.mxu0 0.0
        %4508 = vmatpush1.msra.mxu0 0.0
        %4509 = vmatprep.subr.mxu0 0.0
        %4510 = vmatpush1.msra.mxu0 0.0
        %4511 = vmatprep.subr.mxu0 0.0
        %4512 = vmatpush1.msra.mxu0 0.0
        %4513 = vmatprep.subr.mxu0 0.0
        %4514 = vmatpush1.msra.mxu0 0.0
        %4515 = vmatprep.subr.mxu0 0.0
        %4516 = vmatpush1.msra.mxu0 0.0
        %4517 = vmatprep.subr.mxu0 0.0
        %4518 = vmatpush1.msra.mxu0 0.0
        %4519 = vmatprep.subr.mxu0 0.0
        %4520 = vmatpush1.msra.mxu0 0.0
        %4521 = vmatprep.subr.mxu0 0.0
        %4522 = vmatpush1.msra.mxu0 0.0
        %4523 = vmatprep.subr.mxu0 0.0
        %4524 = vmatpush1.msra.mxu0 0.0
        %4525 = vmatprep.subr.mxu0 0.0
        %4526 = vmatpush1.msra.mxu0 0.0
        %4527 = vmatprep.subr.mxu0 0.0
        %4528 = vmatpush1.msra.mxu0 0.0
        %4529 = vmatprep.mubr.f32.mxu0 0.0
        %4530 = vmatmul.mubr.f32.gmra.mrb[0].mxu0 %v1593
        %v4531 = vpop.f32.mrb[0].mxu0
        %v4532 = vadd.f32 0.0, %v4531
        %v4533 = vpop.f32.mrb[0].mxu0
        %v4534 = vadd.f32 0.0, %v4533
        %4535 = vdwg.mxu0
        %4536 = vmatprep.subr.mxu0 %v1280
        %4537 = vmatpush1.msra.mxu0 %v1279
        %4538 = vmatprep.subr.mxu0 %v1408
        %4539 = vmatpush1.msra.mxu0 %v1407
        %4540 = vmatprep.subr.mxu0 %v1816
        %4541 = vmatpush1.msra.mxu0 %v1813
        %4542 = vmatprep.subr.mxu0 0.0
        %4543 = vmatpush1.msra.mxu0 0.0
        %4544 = vmatprep.subr.mxu0 0.0
        %4545 = vmatpush1.msra.mxu0 0.0
        %4546 = vmatprep.subr.mxu0 0.0
        %4547 = vmatpush1.msra.mxu0 0.0
        %4548 = vmatprep.subr.mxu0 0.0
        %4549 = vmatpush1.msra.mxu0 0.0
        %4550 = vmatprep.subr.mxu0 0.0
        %4551 = vmatpush1.msra.mxu0 0.0
        %4552 = vmatprep.subr.mxu0 0.0
        %4553 = vmatpush1.msra.mxu0 0.0
        %4554 = vmatprep.subr.mxu0 0.0
        %4555 = vmatpush1.msra.mxu0 0.0
        %4556 = vmatprep.subr.mxu0 0.0
        %4557 = vmatpush1.msra.mxu0 0.0
        %4558 = vmatprep.subr.mxu0 0.0
        %4559 = vmatpush1.msra.mxu0 0.0
        %4560 = vmatprep.subr.mxu0 0.0
        %4561 = vmatpush1.msra.mxu0 0.0
        %4562 = vmatprep.subr.mxu0 0.0
        %4563 = vmatpush1.msra.mxu0 0.0
        %4564 = vmatprep.subr.mxu0 0.0
        %4565 = vmatpush1.msra.mxu0 0.0
        %4566 = vmatprep.subr.mxu0 0.0
        %4567 = vmatpush1.msra.mxu0 0.0
        %4568 = vmatprep.subr.mxu0 0.0
        %4569 = vmatpush1.msra.mxu0 0.0
        %4570 = vmatprep.subr.mxu0 0.0
        %4571 = vmatpush1.msra.mxu0 0.0
        %4572 = vmatprep.subr.mxu0 0.0
        %4573 = vmatpush1.msra.mxu0 0.0
        %4574 = vmatprep.subr.mxu0 0.0
        %4575 = vmatpush1.msra.mxu0 0.0
        %4576 = vmatprep.subr.mxu0 0.0
        %4577 = vmatpush1.msra.mxu0 0.0
        %4578 = vmatprep.subr.mxu0 0.0
        %4579 = vmatpush1.msra.mxu0 0.0
        %4580 = vmatprep.subr.mxu0 0.0
        %4581 = vmatpush1.msra.mxu0 0.0
        %4582 = vmatprep.subr.mxu0 0.0
        %4583 = vmatpush1.msra.mxu0 0.0
        %4584 = vmatprep.subr.mxu0 0.0
        %4585 = vmatpush1.msra.mxu0 0.0
        %4586 = vmatprep.subr.mxu0 0.0
        %4587 = vmatpush1.msra.mxu0 0.0
        %4588 = vmatprep.subr.mxu0 0.0
        %4589 = vmatpush1.msra.mxu0 0.0
        %4590 = vmatprep.subr.mxu0 0.0
        %4591 = vmatpush1.msra.mxu0 0.0
        %4592 = vmatprep.subr.mxu0 0.0
        %4593 = vmatpush1.msra.mxu0 0.0
        %4594 = vmatprep.subr.mxu0 0.0
        %4595 = vmatpush1.msra.mxu0 0.0
        %4596 = vmatprep.subr.mxu0 0.0
        %4597 = vmatpush1.msra.mxu0 0.0
        %4598 = vmatprep.subr.mxu0 0.0
        %4599 = vmatpush1.msra.mxu0 0.0
        %4600 = vmatprep.mubr.f32.mxu0 0.0
        %4601 = vmatmul.mubr.f32.gmra.mrb[0].mxu0 %v1593
        %v4602 = vpop.f32.mrb[0].mxu0
        %v4603 = vadd.f32 0.0, %v4602
        %v4604 = vpop.f32.mrb[0].mxu0
        %v4605 = vadd.f32 0.0, %v4604
        %4606 = vdwg.mxu0
        %4607 = vmatprep.subr.mxu0 %v1282
        %4608 = vmatpush1.msra.mxu0 %v1281
        %4609 = vmatprep.subr.mxu0 %v1410
        %4610 = vmatpush1.msra.mxu0 %v1409
        %4611 = vmatprep.subr.mxu0 %v1822
        %4612 = vmatpush1.msra.mxu0 %v1819
        %4613 = vmatprep.subr.mxu0 0.0
        %4614 = vmatpush1.msra.mxu0 0.0
        %4615 = vmatprep.subr.mxu0 0.0
        %4616 = vmatpush1.msra.mxu0 0.0
        %4617 = vmatprep.subr.mxu0 0.0
        %4618 = vmatpush1.msra.mxu0 0.0
        %4619 = vmatprep.subr.mxu0 0.0
        %4620 = vmatpush1.msra.mxu0 0.0
        %4621 = vmatprep.subr.mxu0 0.0
        %4622 = vmatpush1.msra.mxu0 0.0
        %4623 = vmatprep.subr.mxu0 0.0
        %4624 = vmatpush1.msra.mxu0 0.0
        %4625 = vmatprep.subr.mxu0 0.0
        %4626 = vmatpush1.msra.mxu0 0.0
        %4627 = vmatprep.subr.mxu0 0.0
        %4628 = vmatpush1.msra.mxu0 0.0
        %4629 = vmatprep.subr.mxu0 0.0
        %4630 = vmatpush1.msra.mxu0 0.0
        %4631 = vmatprep.subr.mxu0 0.0
        %4632 = vmatpush1.msra.mxu0 0.0
        %4633 = vmatprep.subr.mxu0 0.0
        %4634 = vmatpush1.msra.mxu0 0.0
        %4635 = vmatprep.subr.mxu0 0.0
        %4636 = vmatpush1.msra.mxu0 0.0
        %4637 = vmatprep.subr.mxu0 0.0
        %4638 = vmatpush1.msra.mxu0 0.0
        %4639 = vmatprep.subr.mxu0 0.0
        %4640 = vmatpush1.msra.mxu0 0.0
        %4641 = vmatprep.subr.mxu0 0.0
        %4642 = vmatpush1.msra.mxu0 0.0
        %4643 = vmatprep.subr.mxu0 0.0
        %4644 = vmatpush1.msra.mxu0 0.0
        %4645 = vmatprep.subr.mxu0 0.0
        %4646 = vmatpush1.msra.mxu0 0.0
        %4647 = vmatprep.subr.mxu0 0.0
        %4648 = vmatpush1.msra.mxu0 0.0
        %4649 = vmatprep.subr.mxu0 0.0
        %4650 = vmatpush1.msra.mxu0 0.0
        %4651 = vmatprep.subr.mxu0 0.0
        %4652 = vmatpush1.msra.mxu0 0.0
        %4653 = vmatprep.subr.mxu0 0.0
        %4654 = vmatpush1.msra.mxu0 0.0
        %4655 = vmatprep.subr.mxu0 0.0
        %4656 = vmatpush1.msra.mxu0 0.0
        %4657 = vmatprep.subr.mxu0 0.0
        %4658 = vmatpush1.msra.mxu0 0.0
        %4659 = vmatprep.subr.mxu0 0.0
        %4660 = vmatpush1.msra.mxu0 0.0
        %4661 = vmatprep.subr.mxu0 0.0
        %4662 = vmatpush1.msra.mxu0 0.0
        %4663 = vmatprep.subr.mxu0 0.0
        %4664 = vmatpush1.msra.mxu0 0.0
        %4665 = vmatprep.subr.mxu0 0.0
        %4666 = vmatpush1.msra.mxu0 0.0
        %4667 = vmatprep.subr.mxu0 0.0
        %4668 = vmatpush1.msra.mxu0 0.0
        %4669 = vmatprep.subr.mxu0 0.0
        %4670 = vmatpush1.msra.mxu0 0.0
        %4671 = vmatprep.mubr.f32.mxu0 0.0
        %4672 = vmatmul.mubr.f32.gmra.mrb[0].mxu0 %v1593
        %v4673 = vpop.f32.mrb[0].mxu0
        %v4674 = vadd.f32 0.0, %v4673
        %v4675 = vpop.f32.mrb[0].mxu0
        %v4676 = vadd.f32 0.0, %v4675
        %4677 = vdwg.mxu0
        %4678 = vmatprep.subr.mxu0 %v1284
        %4679 = vmatpush1.msra.mxu0 %v1283
        %4680 = vmatprep.subr.mxu0 %v1412
        %4681 = vmatpush1.msra.mxu0 %v1411
        %4682 = vmatprep.subr.mxu0 %v1828
        %4683 = vmatpush1.msra.mxu0 %v1825
        %4684 = vmatprep.subr.mxu0 0.0
        %4685 = vmatpush1.msra.mxu0 0.0
        %4686 = vmatprep.subr.mxu0 0.0
        %4687 = vmatpush1.msra.mxu0 0.0
        %4688 = vmatprep.subr.mxu0 0.0
        %4689 = vmatpush1.msra.mxu0 0.0
        %4690 = vmatprep.subr.mxu0 0.0
        %4691 = vmatpush1.msra.mxu0 0.0
        %4692 = vmatprep.subr.mxu0 0.0
        %4693 = vmatpush1.msra.mxu0 0.0
        %4694 = vmatprep.subr.mxu0 0.0
        %4695 = vmatpush1.msra.mxu0 0.0
        %4696 = vmatprep.subr.mxu0 0.0
        %4697 = vmatpush1.msra.mxu0 0.0
        %4698 = vmatprep.subr.mxu0 0.0
        %4699 = vmatpush1.msra.mxu0 0.0
        %4700 = vmatprep.subr.mxu0 0.0
        %4701 = vmatpush1.msra.mxu0 0.0
        %4702 = vmatprep.subr.mxu0 0.0
        %4703 = vmatpush1.msra.mxu0 0.0
        %4704 = vmatprep.subr.mxu0 0.0
        %4705 = vmatpush1.msra.mxu0 0.0
        %4706 = vmatprep.subr.mxu0 0.0
        %4707 = vmatpush1.msra.mxu0 0.0
        %4708 = vmatprep.subr.mxu0 0.0
        %4709 = vmatpush1.msra.mxu0 0.0
        %4710 = vmatprep.subr.mxu0 0.0
        %4711 = vmatpush1.msra.mxu0 0.0
        %4712 = vmatprep.subr.mxu0 0.0
        %4713 = vmatpush1.msra.mxu0 0.0
        %4714 = vmatprep.subr.mxu0 0.0
        %4715 = vmatpush1.msra.mxu0 0.0
        %4716 = vmatprep.subr.mxu0 0.0
        %4717 = vmatpush1.msra.mxu0 0.0
        %4718 = vmatprep.subr.mxu0 0.0
        %4719 = vmatpush1.msra.mxu0 0.0
        %4720 = vmatprep.subr.mxu0 0.0
        %4721 = vmatpush1.msra.mxu0 0.0
        %4722 = vmatprep.subr.mxu0 0.0
        %4723 = vmatpush1.msra.mxu0 0.0
        %4724 = vmatprep.subr.mxu0 0.0
        %4725 = vmatpush1.msra.mxu0 0.0
        %4726 = vmatprep.subr.mxu0 0.0
        %4727 = vmatpush1.msra.mxu0 0.0
        %4728 = vmatprep.subr.mxu0 0.0
        %4729 = vmatpush1.msra.mxu0 0.0
        %4730 = vmatprep.subr.mxu0 0.0
        %4731 = vmatpush1.msra.mxu0 0.0
        %4732 = vmatprep.subr.mxu0 0.0
        %4733 = vmatpush1.msra.mxu0 0.0
        %4734 = vmatprep.subr.mxu0 0.0
        %4735 = vmatpush1.msra.mxu0 0.0
        %4736 = vmatprep.subr.mxu0 0.0
        %4737 = vmatpush1.msra.mxu0 0.0
        %4738 = vmatprep.subr.mxu0 0.0
        %4739 = vmatpush1.msra.mxu0 0.0
        %4740 = vmatprep.subr.mxu0 0.0
        %4741 = vmatpush1.msra.mxu0 0.0
        %4742 = vmatprep.mubr.f32.mxu0 0.0
        %4743 = vmatmul.mubr.f32.gmra.mrb[0].mxu0 %v1593
        %v4744 = vpop.f32.mrb[0].mxu0
        %v4745 = vadd.f32 0.0, %v4744
        %v4746 = vpop.f32.mrb[0].mxu0
        %v4747 = vadd.f32 0.0, %v4746
        %4748 = vdwg.mxu0
        %4749 = vmatprep.subr.mxu0 %v1286
        %4750 = vmatpush1.msra.mxu0 %v1285
        %4751 = vmatprep.subr.mxu0 %v1414
        %4752 = vmatpush1.msra.mxu0 %v1413
        %4753 = vmatprep.subr.mxu0 %v1834
        %4754 = vmatpush1.msra.mxu0 %v1831
        %4755 = vmatprep.subr.mxu0 0.0
        %4756 = vmatpush1.msra.mxu0 0.0
        %4757 = vmatprep.subr.mxu0 0.0
        %4758 = vmatpush1.msra.mxu0 0.0
        %4759 = vmatprep.subr.mxu0 0.0
        %4760 = vmatpush1.msra.mxu0 0.0
        %4761 = vmatprep.subr.mxu0 0.0
        %4762 = vmatpush1.msra.mxu0 0.0
        %4763 = vmatprep.subr.mxu0 0.0
        %4764 = vmatpush1.msra.mxu0 0.0
        %4765 = vmatprep.subr.mxu0 0.0
        %4766 = vmatpush1.msra.mxu0 0.0
        %4767 = vmatprep.subr.mxu0 0.0
        %4768 = vmatpush1.msra.mxu0 0.0
        %4769 = vmatprep.subr.mxu0 0.0
        %4770 = vmatpush1.msra.mxu0 0.0
        %4771 = vmatprep.subr.mxu0 0.0
        %4772 = vmatpush1.msra.mxu0 0.0
        %4773 = vmatprep.subr.mxu0 0.0
        %4774 = vmatpush1.msra.mxu0 0.0
        %4775 = vmatprep.subr.mxu0 0.0
        %4776 = vmatpush1.msra.mxu0 0.0
        %4777 = vmatprep.subr.mxu0 0.0
        %4778 = vmatpush1.msra.mxu0 0.0
        %4779 = vmatprep.subr.mxu0 0.0
        %4780 = vmatpush1.msra.mxu0 0.0
        %4781 = vmatprep.subr.mxu0 0.0
        %4782 = vmatpush1.msra.mxu0 0.0
        %4783 = vmatprep.subr.mxu0 0.0
        %4784 = vmatpush1.msra.mxu0 0.0
        %4785 = vmatprep.subr.mxu0 0.0
        %4786 = vmatpush1.msra.mxu0 0.0
        %4787 = vmatprep.subr.mxu0 0.0
        %4788 = vmatpush1.msra.mxu0 0.0
        %4789 = vmatprep.subr.mxu0 0.0
        %4790 = vmatpush1.msra.mxu0 0.0
        %4791 = vmatprep.subr.mxu0 0.0
        %4792 = vmatpush1.msra.mxu0 0.0
        %4793 = vmatprep.subr.mxu0 0.0
        %4794 = vmatpush1.msra.mxu0 0.0
        %4795 = vmatprep.subr.mxu0 0.0
        %4796 = vmatpush1.msra.mxu0 0.0
        %4797 = vmatprep.subr.mxu0 0.0
        %4798 = vmatpush1.msra.mxu0 0.0
        %4799 = vmatprep.subr.mxu0 0.0
        %4800 = vmatpush1.msra.mxu0 0.0
        %4801 = vmatprep.subr.mxu0 0.0
        %4802 = vmatpush1.msra.mxu0 0.0
        %4803 = vmatprep.subr.mxu0 0.0
        %4804 = vmatpush1.msra.mxu0 0.0
        %4805 = vmatprep.subr.mxu0 0.0
        %4806 = vmatpush1.msra.mxu0 0.0
        %4807 = vmatprep.subr.mxu0 0.0
        %4808 = vmatpush1.msra.mxu0 0.0
        %4809 = vmatprep.subr.mxu0 0.0
        %4810 = vmatpush1.msra.mxu0 0.0
        %4811 = vmatprep.subr.mxu0 0.0
        %4812 = vmatpush1.msra.mxu0 0.0
        %4813 = vmatprep.mubr.f32.mxu0 0.0
        %4814 = vmatmul.mubr.f32.gmra.mrb[0].mxu0 %v1593
        %v4815 = vpop.f32.mrb[0].mxu0
        %v4816 = vadd.f32 0.0, %v4815
        %v4817 = vpop.f32.mrb[0].mxu0
        %v4818 = vadd.f32 0.0, %v4817
        %4819 = vdwg.mxu0
        %4820 = vmatprep.subr.mxu0 %v1288
        %4821 = vmatpush1.msra.mxu0 %v1287
        %4822 = vmatprep.subr.mxu0 %v1416
        %4823 = vmatpush1.msra.mxu0 %v1415
        %4824 = vmatprep.subr.mxu0 %v1840
        %4825 = vmatpush1.msra.mxu0 %v1837
        %4826 = vmatprep.subr.mxu0 0.0
        %4827 = vmatpush1.msra.mxu0 0.0
        %4828 = vmatprep.subr.mxu0 0.0
        %4829 = vmatpush1.msra.mxu0 0.0
        %4830 = vmatprep.subr.mxu0 0.0
        %4831 = vmatpush1.msra.mxu0 0.0
        %4832 = vmatprep.subr.mxu0 0.0
        %4833 = vmatpush1.msra.mxu0 0.0
        %4834 = vmatprep.subr.mxu0 0.0
        %4835 = vmatpush1.msra.mxu0 0.0
        %4836 = vmatprep.subr.mxu0 0.0
        %4837 = vmatpush1.msra.mxu0 0.0
        %4838 = vmatprep.subr.mxu0 0.0
        %4839 = vmatpush1.msra.mxu0 0.0
        %4840 = vmatprep.subr.mxu0 0.0
        %4841 = vmatpush1.msra.mxu0 0.0
        %4842 = vmatprep.subr.mxu0 0.0
        %4843 = vmatpush1.msra.mxu0 0.0
        %4844 = vmatprep.subr.mxu0 0.0
        %4845 = vmatpush1.msra.mxu0 0.0
        %4846 = vmatprep.subr.mxu0 0.0
        %4847 = vmatpush1.msra.mxu0 0.0
        %4848 = vmatprep.subr.mxu0 0.0
        %4849 = vmatpush1.msra.mxu0 0.0
        %4850 = vmatprep.subr.mxu0 0.0
        %4851 = vmatpush1.msra.mxu0 0.0
        %4852 = vmatprep.subr.mxu0 0.0
        %4853 = vmatpush1.msra.mxu0 0.0
        %4854 = vmatprep.subr.mxu0 0.0
        %4855 = vmatpush1.msra.mxu0 0.0
        %4856 = vmatprep.subr.mxu0 0.0
        %4857 = vmatpush1.msra.mxu0 0.0
        %4858 = vmatprep.subr.mxu0 0.0
        %4859 = vmatpush1.msra.mxu0 0.0
        %4860 = vmatprep.subr.mxu0 0.0
        %4861 = vmatpush1.msra.mxu0 0.0
        %4862 = vmatprep.subr.mxu0 0.0
        %4863 = vmatpush1.msra.mxu0 0.0
        %4864 = vmatprep.subr.mxu0 0.0
        %4865 = vmatpush1.msra.mxu0 0.0
        %4866 = vmatprep.subr.mxu0 0.0
        %4867 = vmatpush1.msra.mxu0 0.0
        %4868 = vmatprep.subr.mxu0 0.0
        %4869 = vmatpush1.msra.mxu0 0.0
        %4870 = vmatprep.subr.mxu0 0.0
        %4871 = vmatpush1.msra.mxu0 0.0
        %4872 = vmatprep.subr.mxu0 0.0
        %4873 = vmatpush1.msra.mxu0 0.0
        %4874 = vmatprep.subr.mxu0 0.0
        %4875 = vmatpush1.msra.mxu0 0.0
        %4876 = vmatprep.subr.mxu0 0.0
        %4877 = vmatpush1.msra.mxu0 0.0
        %4878 = vmatprep.subr.mxu0 0.0
        %4879 = vmatpush1.msra.mxu0 0.0
        %4880 = vmatprep.subr.mxu0 0.0
        %4881 = vmatpush1.msra.mxu0 0.0
        %4882 = vmatprep.subr.mxu0 0.0
        %4883 = vmatpush1.msra.mxu0 0.0
        %4884 = vmatprep.mubr.f32.mxu0 0.0
        %4885 = vmatmul.mubr.f32.gmra.mrb[0].mxu0 %v1593
        %v4886 = vpop.f32.mrb[0].mxu0
        %v4887 = vadd.f32 0.0, %v4886
        %v4888 = vpop.f32.mrb[0].mxu0
        %v4889 = vadd.f32 0.0, %v4888
        %4890 = vdwg.mxu0
        %4891 = vmatprep.subr.mxu0 %v1290
        %4892 = vmatpush1.msra.mxu0 %v1289
        %4893 = vmatprep.subr.mxu0 %v1418
        %4894 = vmatpush1.msra.mxu0 %v1417
        %4895 = vmatprep.subr.mxu0 %v1846
        %4896 = vmatpush1.msra.mxu0 %v1843
        %4897 = vmatprep.subr.mxu0 0.0
        %4898 = vmatpush1.msra.mxu0 0.0
        %4899 = vmatprep.subr.mxu0 0.0
        %4900 = vmatpush1.msra.mxu0 0.0
        %4901 = vmatprep.subr.mxu0 0.0
        %4902 = vmatpush1.msra.mxu0 0.0
        %4903 = vmatprep.subr.mxu0 0.0
        %4904 = vmatpush1.msra.mxu0 0.0
        %4905 = vmatprep.subr.mxu0 0.0
        %4906 = vmatpush1.msra.mxu0 0.0
        %4907 = vmatprep.subr.mxu0 0.0
        %4908 = vmatpush1.msra.mxu0 0.0
        %4909 = vmatprep.subr.mxu0 0.0
        %4910 = vmatpush1.msra.mxu0 0.0
        %4911 = vmatprep.subr.mxu0 0.0
        %4912 = vmatpush1.msra.mxu0 0.0
        %4913 = vmatprep.subr.mxu0 0.0
        %4914 = vmatpush1.msra.mxu0 0.0
        %4915 = vmatprep.subr.mxu0 0.0
        %4916 = vmatpush1.msra.mxu0 0.0
        %4917 = vmatprep.subr.mxu0 0.0
        %4918 = vmatpush1.msra.mxu0 0.0
        %4919 = vmatprep.subr.mxu0 0.0
        %4920 = vmatpush1.msra.mxu0 0.0
        %4921 = vmatprep.subr.mxu0 0.0
        %4922 = vmatpush1.msra.mxu0 0.0
        %4923 = vmatprep.subr.mxu0 0.0
        %4924 = vmatpush1.msra.mxu0 0.0
        %4925 = vmatprep.subr.mxu0 0.0
        %4926 = vmatpush1.msra.mxu0 0.0
        %4927 = vmatprep.subr.mxu0 0.0
        %4928 = vmatpush1.msra.mxu0 0.0
        %4929 = vmatprep.subr.mxu0 0.0
        %4930 = vmatpush1.msra.mxu0 0.0
        %4931 = vmatprep.subr.mxu0 0.0
        %4932 = vmatpush1.msra.mxu0 0.0
        %4933 = vmatprep.subr.mxu0 0.0
        %4934 = vmatpush1.msra.mxu0 0.0
        %4935 = vmatprep.subr.mxu0 0.0
        %4936 = vmatpush1.msra.mxu0 0.0
        %4937 = vmatprep.subr.mxu0 0.0
        %4938 = vmatpush1.msra.mxu0 0.0
        %4939 = vmatprep.subr.mxu0 0.0
        %4940 = vmatpush1.msra.mxu0 0.0
        %4941 = vmatprep.subr.mxu0 0.0
        %4942 = vmatpush1.msra.mxu0 0.0
        %4943 = vmatprep.subr.mxu0 0.0
        %4944 = vmatpush1.msra.mxu0 0.0
        %4945 = vmatprep.subr.mxu0 0.0
        %4946 = vmatpush1.msra.mxu0 0.0
        %4947 = vmatprep.subr.mxu0 0.0
        %4948 = vmatpush1.msra.mxu0 0.0
        %4949 = vmatprep.subr.mxu0 0.0
        %4950 = vmatpush1.msra.mxu0 0.0
        %4951 = vmatprep.subr.mxu0 0.0
        %4952 = vmatpush1.msra.mxu0 0.0
        %4953 = vmatprep.subr.mxu0 0.0
        %4954 = vmatpush1.msra.mxu0 0.0
        %4955 = vmatprep.mubr.f32.mxu0 0.0
        %4956 = vmatmul.mubr.f32.gmra.mrb[0].mxu0 %v1593
        %v4957 = vpop.f32.mrb[0].mxu0
        %v4958 = vadd.f32 0.0, %v4957
        %v4959 = vpop.f32.mrb[0].mxu0
        %v4960 = vadd.f32 0.0, %v4959
        %4961 = vdwg.mxu0
        %4962 = vmatprep.subr.mxu0 %v1292
        %4963 = vmatpush1.msra.mxu0 %v1291
        %4964 = vmatprep.subr.mxu0 %v1420
        %4965 = vmatpush1.msra.mxu0 %v1419
        %4966 = vmatprep.subr.mxu0 %v1852
        %4967 = vmatpush1.msra.mxu0 %v1849
        %4968 = vmatprep.subr.mxu0 0.0
        %4969 = vmatpush1.msra.mxu0 0.0
        %4970 = vmatprep.subr.mxu0 0.0
        %4971 = vmatpush1.msra.mxu0 0.0
        %4972 = vmatprep.subr.mxu0 0.0
        %4973 = vmatpush1.msra.mxu0 0.0
        %4974 = vmatprep.subr.mxu0 0.0
        %4975 = vmatpush1.msra.mxu0 0.0
        %4976 = vmatprep.subr.mxu0 0.0
        %4977 = vmatpush1.msra.mxu0 0.0
        %4978 = vmatprep.subr.mxu0 0.0
        %4979 = vmatpush1.msra.mxu0 0.0
        %4980 = vmatprep.subr.mxu0 0.0
        %4981 = vmatpush1.msra.mxu0 0.0
        %4982 = vmatprep.subr.mxu0 0.0
        %4983 = vmatpush1.msra.mxu0 0.0
        %4984 = vmatprep.subr.mxu0 0.0
        %4985 = vmatpush1.msra.mxu0 0.0
        %4986 = vmatprep.subr.mxu0 0.0
        %4987 = vmatpush1.msra.mxu0 0.0
        %4988 = vmatprep.subr.mxu0 0.0
        %4989 = vmatpush1.msra.mxu0 0.0
        %4990 = vmatprep.subr.mxu0 0.0
        %4991 = vmatpush1.msra.mxu0 0.0
        %4992 = vmatprep.subr.mxu0 0.0
        %4993 = vmatpush1.msra.mxu0 0.0
        %4994 = vmatprep.subr.mxu0 0.0
        %4995 = vmatpush1.msra.mxu0 0.0
        %4996 = vmatprep.subr.mxu0 0.0
        %4997 = vmatpush1.msra.mxu0 0.0
        %4998 = vmatprep.subr.mxu0 0.0
        %4999 = vmatpush1.msra.mxu0 0.0
        %5000 = vmatprep.subr.mxu0 0.0
        %5001 = vmatpush1.msra.mxu0 0.0
        %5002 = vmatprep.subr.mxu0 0.0
        %5003 = vmatpush1.msra.mxu0 0.0
        %5004 = vmatprep.subr.mxu0 0.0
        %5005 = vmatpush1.msra.mxu0 0.0
        %5006 = vmatprep.subr.mxu0 0.0
        %5007 = vmatpush1.msra.mxu0 0.0
        %5008 = vmatprep.subr.mxu0 0.0
        %5009 = vmatpush1.msra.mxu0 0.0
        %5010 = vmatprep.subr.mxu0 0.0
        %5011 = vmatpush1.msra.mxu0 0.0
        %5012 = vmatprep.subr.mxu0 0.0
        %5013 = vmatpush1.msra.mxu0 0.0
        %5014 = vmatprep.subr.mxu0 0.0
        %5015 = vmatpush1.msra.mxu0 0.0
        %5016 = vmatprep.subr.mxu0 0.0
        %5017 = vmatpush1.msra.mxu0 0.0
        %5018 = vmatprep.subr.mxu0 0.0
        %5019 = vmatpush1.msra.mxu0 0.0
        %5020 = vmatprep.subr.mxu0 0.0
        %5021 = vmatpush1.msra.mxu0 0.0
        %5022 = vmatprep.subr.mxu0 0.0
        %5023 = vmatpush1.msra.mxu0 0.0
        %5024 = vmatprep.subr.mxu0 0.0
        %5025 = vmatpush1.msra.mxu0 0.0
        %5026 = vmatprep.mubr.f32.mxu0 0.0
        %5027 = vmatmul.mubr.f32.gmra.mrb[0].mxu0 %v1593
        %v5028 = vpop.f32.mrb[0].mxu0
        %v5029 = vadd.f32 0.0, %v5028
        %v5030 = vpop.f32.mrb[0].mxu0
        %v5031 = vadd.f32 0.0, %v5030
        %5032 = vdwg.mxu0
        %5033 = vmatprep.subr.mxu0 %v1294
        %5034 = vmatpush1.msra.mxu0 %v1293
        %5035 = vmatprep.subr.mxu0 %v1422
        %5036 = vmatpush1.msra.mxu0 %v1421
        %5037 = vmatprep.subr.mxu0 %v1858
        %5038 = vmatpush1.msra.mxu0 %v1855
        %5039 = vmatprep.subr.mxu0 0.0
        %5040 = vmatpush1.msra.mxu0 0.0
        %5041 = vmatprep.subr.mxu0 0.0
        %5042 = vmatpush1.msra.mxu0 0.0
        %5043 = vmatprep.subr.mxu0 0.0
        %5044 = vmatpush1.msra.mxu0 0.0
        %5045 = vmatprep.subr.mxu0 0.0
        %5046 = vmatpush1.msra.mxu0 0.0
        %5047 = vmatprep.subr.mxu0 0.0
        %5048 = vmatpush1.msra.mxu0 0.0
        %5049 = vmatprep.subr.mxu0 0.0
        %5050 = vmatpush1.msra.mxu0 0.0
        %5051 = vmatprep.subr.mxu0 0.0
        %5052 = vmatpush1.msra.mxu0 0.0
        %5053 = vmatprep.subr.mxu0 0.0
        %5054 = vmatpush1.msra.mxu0 0.0
        %5055 = vmatprep.subr.mxu0 0.0
        %5056 = vmatpush1.msra.mxu0 0.0
        %5057 = vmatprep.subr.mxu0 0.0
        %5058 = vmatpush1.msra.mxu0 0.0
        %5059 = vmatprep.subr.mxu0 0.0
        %5060 = vmatpush1.msra.mxu0 0.0
        %5061 = vmatprep.subr.mxu0 0.0
        %5062 = vmatpush1.msra.mxu0 0.0
        %5063 = vmatprep.subr.mxu0 0.0
        %5064 = vmatpush1.msra.mxu0 0.0
        %5065 = vmatprep.subr.mxu0 0.0
        %5066 = vmatpush1.msra.mxu0 0.0
        %5067 = vmatprep.subr.mxu0 0.0
        %5068 = vmatpush1.msra.mxu0 0.0
        %5069 = vmatprep.subr.mxu0 0.0
        %5070 = vmatpush1.msra.mxu0 0.0
        %5071 = vmatprep.subr.mxu0 0.0
        %5072 = vmatpush1.msra.mxu0 0.0
        %5073 = vmatprep.subr.mxu0 0.0
        %5074 = vmatpush1.msra.mxu0 0.0
        %5075 = vmatprep.subr.mxu0 0.0
        %5076 = vmatpush1.msra.mxu0 0.0
        %5077 = vmatprep.subr.mxu0 0.0
        %5078 = vmatpush1.msra.mxu0 0.0
        %5079 = vmatprep.subr.mxu0 0.0
        %5080 = vmatpush1.msra.mxu0 0.0
        %5081 = vmatprep.subr.mxu0 0.0
        %5082 = vmatpush1.msra.mxu0 0.0
        %5083 = vmatprep.subr.mxu0 0.0
        %5084 = vmatpush1.msra.mxu0 0.0
        %5085 = vmatprep.subr.mxu0 0.0
        %5086 = vmatpush1.msra.mxu0 0.0
        %5087 = vmatprep.subr.mxu0 0.0
        %5088 = vmatpush1.msra.mxu0 0.0
        %5089 = vmatprep.subr.mxu0 0.0
        %5090 = vmatpush1.msra.mxu0 0.0
        %5091 = vmatprep.subr.mxu0 0.0
        %5092 = vmatpush1.msra.mxu0 0.0
        %5093 = vmatprep.subr.mxu0 0.0
        %5094 = vmatpush1.msra.mxu0 0.0
        %5095 = vmatprep.subr.mxu0 0.0
        %5096 = vmatpush1.msra.mxu0 0.0
        %5097 = vmatprep.mubr.f32.mxu0 0.0
        %5098 = vmatmul.mubr.f32.gmra.mrb[0].mxu0 %v1593
        %v5099 = vpop.f32.mrb[0].mxu0
        %v5100 = vadd.f32 0.0, %v5099
        %v5101 = vpop.f32.mrb[0].mxu0
        %v5102 = vadd.f32 0.0, %v5101
        %5103 = vdwg.mxu0
        %5104 = vmatprep.subr.mxu0 %v1296
        %5105 = vmatpush1.msra.mxu0 %v1295
        %5106 = vmatprep.subr.mxu0 %v1424
        %5107 = vmatpush1.msra.mxu0 %v1423
        %5108 = vmatprep.subr.mxu0 %v1864
        %5109 = vmatpush1.msra.mxu0 %v1861
        %5110 = vmatprep.subr.mxu0 0.0
        %5111 = vmatpush1.msra.mxu0 0.0
        %5112 = vmatprep.subr.mxu0 0.0
        %5113 = vmatpush1.msra.mxu0 0.0
        %5114 = vmatprep.subr.mxu0 0.0
        %5115 = vmatpush1.msra.mxu0 0.0
        %5116 = vmatprep.subr.mxu0 0.0
        %5117 = vmatpush1.msra.mxu0 0.0
        %5118 = vmatprep.subr.mxu0 0.0
        %5119 = vmatpush1.msra.mxu0 0.0
        %5120 = vmatprep.subr.mxu0 0.0
        %5121 = vmatpush1.msra.mxu0 0.0
        %5122 = vmatprep.subr.mxu0 0.0
        %5123 = vmatpush1.msra.mxu0 0.0
        %5124 = vmatprep.subr.mxu0 0.0
        %5125 = vmatpush1.msra.mxu0 0.0
        %5126 = vmatprep.subr.mxu0 0.0
        %5127 = vmatpush1.msra.mxu0 0.0
        %5128 = vmatprep.subr.mxu0 0.0
        %5129 = vmatpush1.msra.mxu0 0.0
        %5130 = vmatprep.subr.mxu0 0.0
        %5131 = vmatpush1.msra.mxu0 0.0
        %5132 = vmatprep.subr.mxu0 0.0
        %5133 = vmatpush1.msra.mxu0 0.0
        %5134 = vmatprep.subr.mxu0 0.0
        %5135 = vmatpush1.msra.mxu0 0.0
        %5136 = vmatprep.subr.mxu0 0.0
        %5137 = vmatpush1.msra.mxu0 0.0
        %5138 = vmatprep.subr.mxu0 0.0
        %5139 = vmatpush1.msra.mxu0 0.0
        %5140 = vmatprep.subr.mxu0 0.0
        %5141 = vmatpush1.msra.mxu0 0.0
        %5142 = vmatprep.subr.mxu0 0.0
        %5143 = vmatpush1.msra.mxu0 0.0
        %5144 = vmatprep.subr.mxu0 0.0
        %5145 = vmatpush1.msra.mxu0 0.0
        %5146 = vmatprep.subr.mxu0 0.0
        %5147 = vmatpush1.msra.mxu0 0.0
        %5148 = vmatprep.subr.mxu0 0.0
        %5149 = vmatpush1.msra.mxu0 0.0
        %5150 = vmatprep.subr.mxu0 0.0
        %5151 = vmatpush1.msra.mxu0 0.0
        %5152 = vmatprep.subr.mxu0 0.0
        %5153 = vmatpush1.msra.mxu0 0.0
        %5154 = vmatprep.subr.mxu0 0.0
        %5155 = vmatpush1.msra.mxu0 0.0
        %5156 = vmatprep.subr.mxu0 0.0
        %5157 = vmatpush1.msra.mxu0 0.0
        %5158 = vmatprep.subr.mxu0 0.0
        %5159 = vmatpush1.msra.mxu0 0.0
        %5160 = vmatprep.subr.mxu0 0.0
        %5161 = vmatpush1.msra.mxu0 0.0
        %5162 = vmatprep.subr.mxu0 0.0
        %5163 = vmatpush1.msra.mxu0 0.0
        %5164 = vmatprep.subr.mxu0 0.0
        %5165 = vmatpush1.msra.mxu0 0.0
        %5166 = vmatprep.subr.mxu0 0.0
        %5167 = vmatpush1.msra.mxu0 0.0
        %5168 = vmatprep.mubr.f32.mxu0 0.0
        %5169 = vmatmul.mubr.f32.gmra.mrb[0].mxu0 %v1593
        %v5170 = vpop.f32.mrb[0].mxu0
        %v5171 = vadd.f32 0.0, %v5170
        %v5172 = vpop.f32.mrb[0].mxu0
        %v5173 = vadd.f32 0.0, %v5172
        %5174 = vdwg.mxu0
        %5175 = vmatprep.subr.mxu0 %v1298
        %5176 = vmatpush1.msra.mxu0 %v1297
        %5177 = vmatprep.subr.mxu0 %v1426
        %5178 = vmatpush1.msra.mxu0 %v1425
        %5179 = vmatprep.subr.mxu0 %v1870
        %5180 = vmatpush1.msra.mxu0 %v1867
        %5181 = vmatprep.subr.mxu0 0.0
        %5182 = vmatpush1.msra.mxu0 0.0
        %5183 = vmatprep.subr.mxu0 0.0
        %5184 = vmatpush1.msra.mxu0 0.0
        %5185 = vmatprep.subr.mxu0 0.0
        %5186 = vmatpush1.msra.mxu0 0.0
        %5187 = vmatprep.subr.mxu0 0.0
        %5188 = vmatpush1.msra.mxu0 0.0
        %5189 = vmatprep.subr.mxu0 0.0
        %5190 = vmatpush1.msra.mxu0 0.0
        %5191 = vmatprep.subr.mxu0 0.0
        %5192 = vmatpush1.msra.mxu0 0.0
        %5193 = vmatprep.subr.mxu0 0.0
        %5194 = vmatpush1.msra.mxu0 0.0
        %5195 = vmatprep.subr.mxu0 0.0
        %5196 = vmatpush1.msra.mxu0 0.0
        %5197 = vmatprep.subr.mxu0 0.0
        %5198 = vmatpush1.msra.mxu0 0.0
        %5199 = vmatprep.subr.mxu0 0.0
        %5200 = vmatpush1.msra.mxu0 0.0
        %5201 = vmatprep.subr.mxu0 0.0
        %5202 = vmatpush1.msra.mxu0 0.0
        %5203 = vmatprep.subr.mxu0 0.0
        %5204 = vmatpush1.msra.mxu0 0.0
        %5205 = vmatprep.subr.mxu0 0.0
        %5206 = vmatpush1.msra.mxu0 0.0
        %5207 = vmatprep.subr.mxu0 0.0
        %5208 = vmatpush1.msra.mxu0 0.0
        %5209 = vmatprep.subr.mxu0 0.0
        %5210 = vmatpush1.msra.mxu0 0.0
        %5211 = vmatprep.subr.mxu0 0.0
        %5212 = vmatpush1.msra.mxu0 0.0
        %5213 = vmatprep.subr.mxu0 0.0
        %5214 = vmatpush1.msra.mxu0 0.0
        %5215 = vmatprep.subr.mxu0 0.0
        %5216 = vmatpush1.msra.mxu0 0.0
        %5217 = vmatprep.subr.mxu0 0.0
        %5218 = vmatpush1.msra.mxu0 0.0
        %5219 = vmatprep.subr.mxu0 0.0
        %5220 = vmatpush1.msra.mxu0 0.0
        %5221 = vmatprep.subr.mxu0 0.0
        %5222 = vmatpush1.msra.mxu0 0.0
        %5223 = vmatprep.subr.mxu0 0.0
        %5224 = vmatpush1.msra.mxu0 0.0
        %5225 = vmatprep.subr.mxu0 0.0
        %5226 = vmatpush1.msra.mxu0 0.0
        %5227 = vmatprep.subr.mxu0 0.0
        %5228 = vmatpush1.msra.mxu0 0.0
        %5229 = vmatprep.subr.mxu0 0.0
        %5230 = vmatpush1.msra.mxu0 0.0
        %5231 = vmatprep.subr.mxu0 0.0
        %5232 = vmatpush1.msra.mxu0 0.0
        %5233 = vmatprep.subr.mxu0 0.0
        %5234 = vmatpush1.msra.mxu0 0.0
        %5235 = vmatprep.subr.mxu0 0.0
        %5236 = vmatpush1.msra.mxu0 0.0
        %5237 = vmatprep.subr.mxu0 0.0
        %5238 = vmatpush1.msra.mxu0 0.0
        %5239 = vmatprep.mubr.f32.mxu0 0.0
        %5240 = vmatmul.mubr.f32.gmra.mrb[0].mxu0 %v1593
        %v5241 = vpop.f32.mrb[0].mxu0
        %v5242 = vadd.f32 0.0, %v5241
        %v5243 = vpop.f32.mrb[0].mxu0
        %v5244 = vadd.f32 0.0, %v5243
        %5245 = vdwg.mxu0
        %5246 = vmatprep.subr.mxu0 %v1300
        %5247 = vmatpush1.msra.mxu0 %v1299
        %5248 = vmatprep.subr.mxu0 %v1428
        %5249 = vmatpush1.msra.mxu0 %v1427
        %5250 = vmatprep.subr.mxu0 %v1876
        %5251 = vmatpush1.msra.mxu0 %v1873
        %5252 = vmatprep.subr.mxu0 0.0
        %5253 = vmatpush1.msra.mxu0 0.0
        %5254 = vmatprep.subr.mxu0 0.0
        %5255 = vmatpush1.msra.mxu0 0.0
        %5256 = vmatprep.subr.mxu0 0.0
        %5257 = vmatpush1.msra.mxu0 0.0
        %5258 = vmatprep.subr.mxu0 0.0
        %5259 = vmatpush1.msra.mxu0 0.0
        %5260 = vmatprep.subr.mxu0 0.0
        %5261 = vmatpush1.msra.mxu0 0.0
        %5262 = vmatprep.subr.mxu0 0.0
        %5263 = vmatpush1.msra.mxu0 0.0
        %5264 = vmatprep.subr.mxu0 0.0
        %5265 = vmatpush1.msra.mxu0 0.0
        %5266 = vmatprep.subr.mxu0 0.0
        %5267 = vmatpush1.msra.mxu0 0.0
        %5268 = vmatprep.subr.mxu0 0.0
        %5269 = vmatpush1.msra.mxu0 0.0
        %5270 = vmatprep.subr.mxu0 0.0
        %5271 = vmatpush1.msra.mxu0 0.0
        %5272 = vmatprep.subr.mxu0 0.0
        %5273 = vmatpush1.msra.mxu0 0.0
        %5274 = vmatprep.subr.mxu0 0.0
        %5275 = vmatpush1.msra.mxu0 0.0
        %5276 = vmatprep.subr.mxu0 0.0
        %5277 = vmatpush1.msra.mxu0 0.0
        %5278 = vmatprep.subr.mxu0 0.0
        %5279 = vmatpush1.msra.mxu0 0.0
        %5280 = vmatprep.subr.mxu0 0.0
        %5281 = vmatpush1.msra.mxu0 0.0
        %5282 = vmatprep.subr.mxu0 0.0
        %5283 = vmatpush1.msra.mxu0 0.0
        %5284 = vmatprep.subr.mxu0 0.0
        %5285 = vmatpush1.msra.mxu0 0.0
        %5286 = vmatprep.subr.mxu0 0.0
        %5287 = vmatpush1.msra.mxu0 0.0
        %5288 = vmatprep.subr.mxu0 0.0
        %5289 = vmatpush1.msra.mxu0 0.0
        %5290 = vmatprep.subr.mxu0 0.0
        %5291 = vmatpush1.msra.mxu0 0.0
        %5292 = vmatprep.subr.mxu0 0.0
        %5293 = vmatpush1.msra.mxu0 0.0
        %5294 = vmatprep.subr.mxu0 0.0
        %5295 = vmatpush1.msra.mxu0 0.0
        %5296 = vmatprep.subr.mxu0 0.0
        %5297 = vmatpush1.msra.mxu0 0.0
        %5298 = vmatprep.subr.mxu0 0.0
        %5299 = vmatpush1.msra.mxu0 0.0
        %5300 = vmatprep.subr.mxu0 0.0
        %5301 = vmatpush1.msra.mxu0 0.0
        %5302 = vmatprep.subr.mxu0 0.0
        %5303 = vmatpush1.msra.mxu0 0.0
        %5304 = vmatprep.subr.mxu0 0.0
        %5305 = vmatpush1.msra.mxu0 0.0
        %5306 = vmatprep.subr.mxu0 0.0
        %5307 = vmatpush1.msra.mxu0 0.0
        %5308 = vmatprep.subr.mxu0 0.0
        %5309 = vmatpush1.msra.mxu0 0.0
        %5310 = vmatprep.mubr.f32.mxu0 0.0
        %5311 = vmatmul.mubr.f32.gmra.mrb[0].mxu0 %v1593
        %v5312 = vpop.f32.mrb[0].mxu0
        %v5313 = vadd.f32 0.0, %v5312
        %v5314 = vpop.f32.mrb[0].mxu0
        %v5315 = vadd.f32 0.0, %v5314
        %5316 = vdwg.mxu0
        %5317 = vmatprep.subr.mxu0 %v1302
        %5318 = vmatpush1.msra.mxu0 %v1301
        %5319 = vmatprep.subr.mxu0 %v1430
        %5320 = vmatpush1.msra.mxu0 %v1429
        %5321 = vmatprep.subr.mxu0 %v1882
        %5322 = vmatpush1.msra.mxu0 %v1879
        %5323 = vmatprep.subr.mxu0 0.0
        %5324 = vmatpush1.msra.mxu0 0.0
        %5325 = vmatprep.subr.mxu0 0.0
        %5326 = vmatpush1.msra.mxu0 0.0
        %5327 = vmatprep.subr.mxu0 0.0
        %5328 = vmatpush1.msra.mxu0 0.0
        %5329 = vmatprep.subr.mxu0 0.0
        %5330 = vmatpush1.msra.mxu0 0.0
        %5331 = vmatprep.subr.mxu0 0.0
        %5332 = vmatpush1.msra.mxu0 0.0
        %5333 = vmatprep.subr.mxu0 0.0
        %5334 = vmatpush1.msra.mxu0 0.0
        %5335 = vmatprep.subr.mxu0 0.0
        %5336 = vmatpush1.msra.mxu0 0.0
        %5337 = vmatprep.subr.mxu0 0.0
        %5338 = vmatpush1.msra.mxu0 0.0
        %5339 = vmatprep.subr.mxu0 0.0
        %5340 = vmatpush1.msra.mxu0 0.0
        %5341 = vmatprep.subr.mxu0 0.0
        %5342 = vmatpush1.msra.mxu0 0.0
        %5343 = vmatprep.subr.mxu0 0.0
        %5344 = vmatpush1.msra.mxu0 0.0
        %5345 = vmatprep.subr.mxu0 0.0
        %5346 = vmatpush1.msra.mxu0 0.0
        %5347 = vmatprep.subr.mxu0 0.0
        %5348 = vmatpush1.msra.mxu0 0.0
        %5349 = vmatprep.subr.mxu0 0.0
        %5350 = vmatpush1.msra.mxu0 0.0
        %5351 = vmatprep.subr.mxu0 0.0
        %5352 = vmatpush1.msra.mxu0 0.0
        %5353 = vmatprep.subr.mxu0 0.0
        %5354 = vmatpush1.msra.mxu0 0.0
        %5355 = vmatprep.subr.mxu0 0.0
        %5356 = vmatpush1.msra.mxu0 0.0
        %5357 = vmatprep.subr.mxu0 0.0
        %5358 = vmatpush1.msra.mxu0 0.0
        %5359 = vmatprep.subr.mxu0 0.0
        %5360 = vmatpush1.msra.mxu0 0.0
        %5361 = vmatprep.subr.mxu0 0.0
        %5362 = vmatpush1.msra.mxu0 0.0
        %5363 = vmatprep.subr.mxu0 0.0
        %5364 = vmatpush1.msra.mxu0 0.0
        %5365 = vmatprep.subr.mxu0 0.0
        %5366 = vmatpush1.msra.mxu0 0.0
        %5367 = vmatprep.subr.mxu0 0.0
        %5368 = vmatpush1.msra.mxu0 0.0
        %5369 = vmatprep.subr.mxu0 0.0
        %5370 = vmatpush1.msra.mxu0 0.0
        %5371 = vmatprep.subr.mxu0 0.0
        %5372 = vmatpush1.msra.mxu0 0.0
        %5373 = vmatprep.subr.mxu0 0.0
        %5374 = vmatpush1.msra.mxu0 0.0
        %5375 = vmatprep.subr.mxu0 0.0
        %5376 = vmatpush1.msra.mxu0 0.0
        %5377 = vmatprep.subr.mxu0 0.0
        %5378 = vmatpush1.msra.mxu0 0.0
        %5379 = vmatprep.subr.mxu0 0.0
        %5380 = vmatpush1.msra.mxu0 0.0
        %5381 = vmatprep.mubr.f32.mxu0 0.0
        %5382 = vmatmul.mubr.f32.gmra.mrb[0].mxu0 %v1593
        %v5383 = vpop.f32.mrb[0].mxu0
        %v5384 = vadd.f32 0.0, %v5383
        %v5385 = vpop.f32.mrb[0].mxu0
        %v5386 = vadd.f32 0.0, %v5385
        %5387 = vdwg.mxu0
        %5388 = vmatprep.subr.mxu0 %v1304
        %5389 = vmatpush1.msra.mxu0 %v1303
        %5390 = vmatprep.subr.mxu0 %v1432
        %5391 = vmatpush1.msra.mxu0 %v1431
        %5392 = vmatprep.subr.mxu0 %v1888
        %5393 = vmatpush1.msra.mxu0 %v1885
        %5394 = vmatprep.subr.mxu0 0.0
        %5395 = vmatpush1.msra.mxu0 0.0
        %5396 = vmatprep.subr.mxu0 0.0
        %5397 = vmatpush1.msra.mxu0 0.0
        %5398 = vmatprep.subr.mxu0 0.0
        %5399 = vmatpush1.msra.mxu0 0.0
        %5400 = vmatprep.subr.mxu0 0.0
        %5401 = vmatpush1.msra.mxu0 0.0
        %5402 = vmatprep.subr.mxu0 0.0
        %5403 = vmatpush1.msra.mxu0 0.0
        %5404 = vmatprep.subr.mxu0 0.0
        %5405 = vmatpush1.msra.mxu0 0.0
        %5406 = vmatprep.subr.mxu0 0.0
        %5407 = vmatpush1.msra.mxu0 0.0
        %5408 = vmatprep.subr.mxu0 0.0
        %5409 = vmatpush1.msra.mxu0 0.0
        %5410 = vmatprep.subr.mxu0 0.0
        %5411 = vmatpush1.msra.mxu0 0.0
        %5412 = vmatprep.subr.mxu0 0.0
        %5413 = vmatpush1.msra.mxu0 0.0
        %5414 = vmatprep.subr.mxu0 0.0
        %5415 = vmatpush1.msra.mxu0 0.0
        %5416 = vmatprep.subr.mxu0 0.0
        %5417 = vmatpush1.msra.mxu0 0.0
        %5418 = vmatprep.subr.mxu0 0.0
        %5419 = vmatpush1.msra.mxu0 0.0
        %5420 = vmatprep.subr.mxu0 0.0
        %5421 = vmatpush1.msra.mxu0 0.0
        %5422 = vmatprep.subr.mxu0 0.0
        %5423 = vmatpush1.msra.mxu0 0.0
        %5424 = vmatprep.subr.mxu0 0.0
        %5425 = vmatpush1.msra.mxu0 0.0
        %5426 = vmatprep.subr.mxu0 0.0
        %5427 = vmatpush1.msra.mxu0 0.0
        %5428 = vmatprep.subr.mxu0 0.0
        %5429 = vmatpush1.msra.mxu0 0.0
        %5430 = vmatprep.subr.mxu0 0.0
        %5431 = vmatpush1.msra.mxu0 0.0
        %5432 = vmatprep.subr.mxu0 0.0
        %5433 = vmatpush1.msra.mxu0 0.0
        %5434 = vmatprep.subr.mxu0 0.0
        %5435 = vmatpush1.msra.mxu0 0.0
        %5436 = vmatprep.subr.mxu0 0.0
        %5437 = vmatpush1.msra.mxu0 0.0
        %5438 = vmatprep.subr.mxu0 0.0
        %5439 = vmatpush1.msra.mxu0 0.0
        %5440 = vmatprep.subr.mxu0 0.0
        %5441 = vmatpush1.msra.mxu0 0.0
        %5442 = vmatprep.subr.mxu0 0.0
        %5443 = vmatpush1.msra.mxu0 0.0
        %5444 = vmatprep.subr.mxu0 0.0
        %5445 = vmatpush1.msra.mxu0 0.0
        %5446 = vmatprep.subr.mxu0 0.0
        %5447 = vmatpush1.msra.mxu0 0.0
        %5448 = vmatprep.subr.mxu0 0.0
        %5449 = vmatpush1.msra.mxu0 0.0
        %5450 = vmatprep.subr.mxu0 0.0
        %5451 = vmatpush1.msra.mxu0 0.0
        %5452 = vmatprep.mubr.f32.mxu0 0.0
        %5453 = vmatmul.mubr.f32.gmra.mrb[0].mxu0 %v1593
        %v5454 = vpop.f32.mrb[0].mxu0
        %v5455 = vadd.f32 0.0, %v5454
        %v5456 = vpop.f32.mrb[0].mxu0
        %v5457 = vadd.f32 0.0, %v5456
        %5458 = vdwg.mxu0
        %5459 = vmatprep.subr.mxu0 %v1306
        %5460 = vmatpush1.msra.mxu0 %v1305
        %5461 = vmatprep.subr.mxu0 %v1434
        %5462 = vmatpush1.msra.mxu0 %v1433
        %5463 = vmatprep.subr.mxu0 %v1894
        %5464 = vmatpush1.msra.mxu0 %v1891
        %5465 = vmatprep.subr.mxu0 0.0
        %5466 = vmatpush1.msra.mxu0 0.0
        %5467 = vmatprep.subr.mxu0 0.0
        %5468 = vmatpush1.msra.mxu0 0.0
        %5469 = vmatprep.subr.mxu0 0.0
        %5470 = vmatpush1.msra.mxu0 0.0
        %5471 = vmatprep.subr.mxu0 0.0
        %5472 = vmatpush1.msra.mxu0 0.0
        %5473 = vmatprep.subr.mxu0 0.0
        %5474 = vmatpush1.msra.mxu0 0.0
        %5475 = vmatprep.subr.mxu0 0.0
        %5476 = vmatpush1.msra.mxu0 0.0
        %5477 = vmatprep.subr.mxu0 0.0
        %5478 = vmatpush1.msra.mxu0 0.0
        %5479 = vmatprep.subr.mxu0 0.0
        %5480 = vmatpush1.msra.mxu0 0.0
        %5481 = vmatprep.subr.mxu0 0.0
        %5482 = vmatpush1.msra.mxu0 0.0
        %5483 = vmatprep.subr.mxu0 0.0
        %5484 = vmatpush1.msra.mxu0 0.0
        %5485 = vmatprep.subr.mxu0 0.0
        %5486 = vmatpush1.msra.mxu0 0.0
        %5487 = vmatprep.subr.mxu0 0.0
        %5488 = vmatpush1.msra.mxu0 0.0
        %5489 = vmatprep.subr.mxu0 0.0
        %5490 = vmatpush1.msra.mxu0 0.0
        %5491 = vmatprep.subr.mxu0 0.0
        %5492 = vmatpush1.msra.mxu0 0.0
        %5493 = vmatprep.subr.mxu0 0.0
        %5494 = vmatpush1.msra.mxu0 0.0
        %5495 = vmatprep.subr.mxu0 0.0
        %5496 = vmatpush1.msra.mxu0 0.0
        %5497 = vmatprep.subr.mxu0 0.0
        %5498 = vmatpush1.msra.mxu0 0.0
        %5499 = vmatprep.subr.mxu0 0.0
        %5500 = vmatpush1.msra.mxu0 0.0
        %5501 = vmatprep.subr.mxu0 0.0
        %5502 = vmatpush1.msra.mxu0 0.0
        %5503 = vmatprep.subr.mxu0 0.0
        %5504 = vmatpush1.msra.mxu0 0.0
        %5505 = vmatprep.subr.mxu0 0.0
        %5506 = vmatpush1.msra.mxu0 0.0
        %5507 = vmatprep.subr.mxu0 0.0
        %5508 = vmatpush1.msra.mxu0 0.0
        %5509 = vmatprep.subr.mxu0 0.0
        %5510 = vmatpush1.msra.mxu0 0.0
        %5511 = vmatprep.subr.mxu0 0.0
        %5512 = vmatpush1.msra.mxu0 0.0
        %5513 = vmatprep.subr.mxu0 0.0
        %5514 = vmatpush1.msra.mxu0 0.0
        %5515 = vmatprep.subr.mxu0 0.0
        %5516 = vmatpush1.msra.mxu0 0.0
        %5517 = vmatprep.subr.mxu0 0.0
        %5518 = vmatpush1.msra.mxu0 0.0
        %5519 = vmatprep.subr.mxu0 0.0
        %5520 = vmatpush1.msra.mxu0 0.0
        %5521 = vmatprep.subr.mxu0 0.0
        %5522 = vmatpush1.msra.mxu0 0.0
        %5523 = vmatprep.mubr.f32.mxu0 0.0
        %5524 = vmatmul.mubr.f32.gmra.mrb[0].mxu0 %v1593
        %v5525 = vpop.f32.mrb[0].mxu0
        %v5526 = vadd.f32 0.0, %v5525
        %v5527 = vpop.f32.mrb[0].mxu0
        %v5528 = vadd.f32 0.0, %v5527
        %5529 = vdwg.mxu0
        %5530 = vmatprep.subr.mxu0 %v1308
        %5531 = vmatpush1.msra.mxu0 %v1307
        %5532 = vmatprep.subr.mxu0 %v1436
        %5533 = vmatpush1.msra.mxu0 %v1435
        %5534 = vmatprep.subr.mxu0 %v1900
        %5535 = vmatpush1.msra.mxu0 %v1897
        %5536 = vmatprep.subr.mxu0 0.0
        %5537 = vmatpush1.msra.mxu0 0.0
        %5538 = vmatprep.subr.mxu0 0.0
        %5539 = vmatpush1.msra.mxu0 0.0
        %5540 = vmatprep.subr.mxu0 0.0
        %5541 = vmatpush1.msra.mxu0 0.0
        %5542 = vmatprep.subr.mxu0 0.0
        %5543 = vmatpush1.msra.mxu0 0.0
        %5544 = vmatprep.subr.mxu0 0.0
        %5545 = vmatpush1.msra.mxu0 0.0
        %5546 = vmatprep.subr.mxu0 0.0
        %5547 = vmatpush1.msra.mxu0 0.0
        %5548 = vmatprep.subr.mxu0 0.0
        %5549 = vmatpush1.msra.mxu0 0.0
        %5550 = vmatprep.subr.mxu0 0.0
        %5551 = vmatpush1.msra.mxu0 0.0
        %5552 = vmatprep.subr.mxu0 0.0
        %5553 = vmatpush1.msra.mxu0 0.0
        %5554 = vmatprep.subr.mxu0 0.0
        %5555 = vmatpush1.msra.mxu0 0.0
        %5556 = vmatprep.subr.mxu0 0.0
        %5557 = vmatpush1.msra.mxu0 0.0
        %5558 = vmatprep.subr.mxu0 0.0
        %5559 = vmatpush1.msra.mxu0 0.0
        %5560 = vmatprep.subr.mxu0 0.0
        %5561 = vmatpush1.msra.mxu0 0.0
        %5562 = vmatprep.subr.mxu0 0.0
        %5563 = vmatpush1.msra.mxu0 0.0
        %5564 = vmatprep.subr.mxu0 0.0
        %5565 = vmatpush1.msra.mxu0 0.0
        %5566 = vmatprep.subr.mxu0 0.0
        %5567 = vmatpush1.msra.mxu0 0.0
        %5568 = vmatprep.subr.mxu0 0.0
        %5569 = vmatpush1.msra.mxu0 0.0
        %5570 = vmatprep.subr.mxu0 0.0
        %5571 = vmatpush1.msra.mxu0 0.0
        %5572 = vmatprep.subr.mxu0 0.0
        %5573 = vmatpush1.msra.mxu0 0.0
        %5574 = vmatprep.subr.mxu0 0.0
        %5575 = vmatpush1.msra.mxu0 0.0
        %5576 = vmatprep.subr.mxu0 0.0
        %5577 = vmatpush1.msra.mxu0 0.0
        %5578 = vmatprep.subr.mxu0 0.0
        %5579 = vmatpush1.msra.mxu0 0.0
        %5580 = vmatprep.subr.mxu0 0.0
        %5581 = vmatpush1.msra.mxu0 0.0
        %5582 = vmatprep.subr.mxu0 0.0
        %5583 = vmatpush1.msra.mxu0 0.0
        %5584 = vmatprep.subr.mxu0 0.0
        %5585 = vmatpush1.msra.mxu0 0.0
        %5586 = vmatprep.subr.mxu0 0.0
        %5587 = vmatpush1.msra.mxu0 0.0
        %5588 = vmatprep.subr.mxu0 0.0
        %5589 = vmatpush1.msra.mxu0 0.0
        %5590 = vmatprep.subr.mxu0 0.0
        %5591 = vmatpush1.msra.mxu0 0.0
        %5592 = vmatprep.subr.mxu0 0.0
        %5593 = vmatpush1.msra.mxu0 0.0
        %5594 = vmatprep.mubr.f32.mxu0 0.0
        %5595 = vmatmul.mubr.f32.gmra.mrb[0].mxu0 %v1593
        %v5596 = vpop.f32.mrb[0].mxu0
        %v5597 = vadd.f32 0.0, %v5596
        %v5598 = vpop.f32.mrb[0].mxu0
        %v5599 = vadd.f32 0.0, %v5598
        %5600 = vdwg.mxu0
        %5601 = vmatprep.subr.mxu0 %v1310
        %5602 = vmatpush1.msra.mxu0 %v1309
        %5603 = vmatprep.subr.mxu0 %v1438
        %5604 = vmatpush1.msra.mxu0 %v1437
        %5605 = vmatprep.subr.mxu0 %v1906
        %5606 = vmatpush1.msra.mxu0 %v1903
        %5607 = vmatprep.subr.mxu0 0.0
        %5608 = vmatpush1.msra.mxu0 0.0
        %5609 = vmatprep.subr.mxu0 0.0
        %5610 = vmatpush1.msra.mxu0 0.0
        %5611 = vmatprep.subr.mxu0 0.0
        %5612 = vmatpush1.msra.mxu0 0.0
        %5613 = vmatprep.subr.mxu0 0.0
        %5614 = vmatpush1.msra.mxu0 0.0
        %5615 = vmatprep.subr.mxu0 0.0
        %5616 = vmatpush1.msra.mxu0 0.0
        %5617 = vmatprep.subr.mxu0 0.0
        %5618 = vmatpush1.msra.mxu0 0.0
        %5619 = vmatprep.subr.mxu0 0.0
        %5620 = vmatpush1.msra.mxu0 0.0
        %5621 = vmatprep.subr.mxu0 0.0
        %5622 = vmatpush1.msra.mxu0 0.0
        %5623 = vmatprep.subr.mxu0 0.0
        %5624 = vmatpush1.msra.mxu0 0.0
        %5625 = vmatprep.subr.mxu0 0.0
        %5626 = vmatpush1.msra.mxu0 0.0
        %5627 = vmatprep.subr.mxu0 0.0
        %5628 = vmatpush1.msra.mxu0 0.0
        %5629 = vmatprep.subr.mxu0 0.0
        %5630 = vmatpush1.msra.mxu0 0.0
        %5631 = vmatprep.subr.mxu0 0.0
        %5632 = vmatpush1.msra.mxu0 0.0
        %5633 = vmatprep.subr.mxu0 0.0
        %5634 = vmatpush1.msra.mxu0 0.0
        %5635 = vmatprep.subr.mxu0 0.0
        %5636 = vmatpush1.msra.mxu0 0.0
        %5637 = vmatprep.subr.mxu0 0.0
        %5638 = vmatpush1.msra.mxu0 0.0
        %5639 = vmatprep.subr.mxu0 0.0
        %5640 = vmatpush1.msra.mxu0 0.0
        %5641 = vmatprep.subr.mxu0 0.0
        %5642 = vmatpush1.msra.mxu0 0.0
        %5643 = vmatprep.subr.mxu0 0.0
        %5644 = vmatpush1.msra.mxu0 0.0
        %5645 = vmatprep.subr.mxu0 0.0
        %5646 = vmatpush1.msra.mxu0 0.0
        %5647 = vmatprep.subr.mxu0 0.0
        %5648 = vmatpush1.msra.mxu0 0.0
        %5649 = vmatprep.subr.mxu0 0.0
        %5650 = vmatpush1.msra.mxu0 0.0
        %5651 = vmatprep.subr.mxu0 0.0
        %5652 = vmatpush1.msra.mxu0 0.0
        %5653 = vmatprep.subr.mxu0 0.0
        %5654 = vmatpush1.msra.mxu0 0.0
        %5655 = vmatprep.subr.mxu0 0.0
        %5656 = vmatpush1.msra.mxu0 0.0
        %5657 = vmatprep.subr.mxu0 0.0
        %5658 = vmatpush1.msra.mxu0 0.0
        %5659 = vmatprep.subr.mxu0 0.0
        %5660 = vmatpush1.msra.mxu0 0.0
        %5661 = vmatprep.subr.mxu0 0.0
        %5662 = vmatpush1.msra.mxu0 0.0
        %5663 = vmatprep.subr.mxu0 0.0
        %5664 = vmatpush1.msra.mxu0 0.0
        %5665 = vmatprep.mubr.f32.mxu0 0.0
        %5666 = vmatmul.mubr.f32.gmra.mrb[0].mxu0 %v1593
        %v5667 = vpop.f32.mrb[0].mxu0
        %v5668 = vadd.f32 0.0, %v5667
        %v5669 = vpop.f32.mrb[0].mxu0
        %v5670 = vadd.f32 0.0, %v5669
        %5671 = vdwg.mxu0
        %5672 = vmatprep.subr.mxu0 %v1312
        %5673 = vmatpush1.msra.mxu0 %v1311
        %5674 = vmatprep.subr.mxu0 %v1440
        %5675 = vmatpush1.msra.mxu0 %v1439
        %5676 = vmatprep.subr.mxu0 %v1912
        %5677 = vmatpush1.msra.mxu0 %v1909
        %5678 = vmatprep.subr.mxu0 0.0
        %5679 = vmatpush1.msra.mxu0 0.0
        %5680 = vmatprep.subr.mxu0 0.0
        %5681 = vmatpush1.msra.mxu0 0.0
        %5682 = vmatprep.subr.mxu0 0.0
        %5683 = vmatpush1.msra.mxu0 0.0
        %5684 = vmatprep.subr.mxu0 0.0
        %5685 = vmatpush1.msra.mxu0 0.0
        %5686 = vmatprep.subr.mxu0 0.0
        %5687 = vmatpush1.msra.mxu0 0.0
        %5688 = vmatprep.subr.mxu0 0.0
        %5689 = vmatpush1.msra.mxu0 0.0
        %5690 = vmatprep.subr.mxu0 0.0
        %5691 = vmatpush1.msra.mxu0 0.0
        %5692 = vmatprep.subr.mxu0 0.0
        %5693 = vmatpush1.msra.mxu0 0.0
        %5694 = vmatprep.subr.mxu0 0.0
        %5695 = vmatpush1.msra.mxu0 0.0
        %5696 = vmatprep.subr.mxu0 0.0
        %5697 = vmatpush1.msra.mxu0 0.0
        %5698 = vmatprep.subr.mxu0 0.0
        %5699 = vmatpush1.msra.mxu0 0.0
        %5700 = vmatprep.subr.mxu0 0.0
        %5701 = vmatpush1.msra.mxu0 0.0
        %5702 = vmatprep.subr.mxu0 0.0
        %5703 = vmatpush1.msra.mxu0 0.0
        %5704 = vmatprep.subr.mxu0 0.0
        %5705 = vmatpush1.msra.mxu0 0.0
        %5706 = vmatprep.subr.mxu0 0.0
        %5707 = vmatpush1.msra.mxu0 0.0
        %5708 = vmatprep.subr.mxu0 0.0
        %5709 = vmatpush1.msra.mxu0 0.0
        %5710 = vmatprep.subr.mxu0 0.0
        %5711 = vmatpush1.msra.mxu0 0.0
        %5712 = vmatprep.subr.mxu0 0.0
        %5713 = vmatpush1.msra.mxu0 0.0
        %5714 = vmatprep.subr.mxu0 0.0
        %5715 = vmatpush1.msra.mxu0 0.0
        %5716 = vmatprep.subr.mxu0 0.0
        %5717 = vmatpush1.msra.mxu0 0.0
        %5718 = vmatprep.subr.mxu0 0.0
        %5719 = vmatpush1.msra.mxu0 0.0
        %5720 = vmatprep.subr.mxu0 0.0
        %5721 = vmatpush1.msra.mxu0 0.0
        %5722 = vmatprep.subr.mxu0 0.0
        %5723 = vmatpush1.msra.mxu0 0.0
        %5724 = vmatprep.subr.mxu0 0.0
        %5725 = vmatpush1.msra.mxu0 0.0
        %5726 = vmatprep.subr.mxu0 0.0
        %5727 = vmatpush1.msra.mxu0 0.0
        %5728 = vmatprep.subr.mxu0 0.0
        %5729 = vmatpush1.msra.mxu0 0.0
        %5730 = vmatprep.subr.mxu0 0.0
        %5731 = vmatpush1.msra.mxu0 0.0
        %5732 = vmatprep.subr.mxu0 0.0
        %5733 = vmatpush1.msra.mxu0 0.0
        %5734 = vmatprep.subr.mxu0 0.0
        %5735 = vmatpush1.msra.mxu0 0.0
        %5736 = vmatprep.mubr.f32.mxu0 0.0
        %5737 = vmatmul.mubr.f32.gmra.mrb[0].mxu0 %v1593
        %v5738 = vpop.f32.mrb[0].mxu0
        %v5739 = vadd.f32 0.0, %v5738
        %v5740 = vpop.f32.mrb[0].mxu0
        %v5741 = vadd.f32 0.0, %v5740
        %5742 = vdwg.mxu0
        %5743 = vmatprep.subr.mxu0 %v1314
        %5744 = vmatpush1.msra.mxu0 %v1313
        %5745 = vmatprep.subr.mxu0 %v1442
        %5746 = vmatpush1.msra.mxu0 %v1441
        %5747 = vmatprep.subr.mxu0 %v1918
        %5748 = vmatpush1.msra.mxu0 %v1915
        %5749 = vmatprep.subr.mxu0 0.0
        %5750 = vmatpush1.msra.mxu0 0.0
        %5751 = vmatprep.subr.mxu0 0.0
        %5752 = vmatpush1.msra.mxu0 0.0
        %5753 = vmatprep.subr.mxu0 0.0
        %5754 = vmatpush1.msra.mxu0 0.0
        %5755 = vmatprep.subr.mxu0 0.0
        %5756 = vmatpush1.msra.mxu0 0.0
        %5757 = vmatprep.subr.mxu0 0.0
        %5758 = vmatpush1.msra.mxu0 0.0
        %5759 = vmatprep.subr.mxu0 0.0
        %5760 = vmatpush1.msra.mxu0 0.0
        %5761 = vmatprep.subr.mxu0 0.0
        %5762 = vmatpush1.msra.mxu0 0.0
        %5763 = vmatprep.subr.mxu0 0.0
        %5764 = vmatpush1.msra.mxu0 0.0
        %5765 = vmatprep.subr.mxu0 0.0
        %5766 = vmatpush1.msra.mxu0 0.0
        %5767 = vmatprep.subr.mxu0 0.0
        %5768 = vmatpush1.msra.mxu0 0.0
        %5769 = vmatprep.subr.mxu0 0.0
        %5770 = vmatpush1.msra.mxu0 0.0
        %5771 = vmatprep.subr.mxu0 0.0
        %5772 = vmatpush1.msra.mxu0 0.0
        %5773 = vmatprep.subr.mxu0 0.0
        %5774 = vmatpush1.msra.mxu0 0.0
        %5775 = vmatprep.subr.mxu0 0.0
        %5776 = vmatpush1.msra.mxu0 0.0
        %5777 = vmatprep.subr.mxu0 0.0
        %5778 = vmatpush1.msra.mxu0 0.0
        %5779 = vmatprep.subr.mxu0 0.0
        %5780 = vmatpush1.msra.mxu0 0.0
        %5781 = vmatprep.subr.mxu0 0.0
        %5782 = vmatpush1.msra.mxu0 0.0
        %5783 = vmatprep.subr.mxu0 0.0
        %5784 = vmatpush1.msra.mxu0 0.0
        %5785 = vmatprep.subr.mxu0 0.0
        %5786 = vmatpush1.msra.mxu0 0.0
        %5787 = vmatprep.subr.mxu0 0.0
        %5788 = vmatpush1.msra.mxu0 0.0
        %5789 = vmatprep.subr.mxu0 0.0
        %5790 = vmatpush1.msra.mxu0 0.0
        %5791 = vmatprep.subr.mxu0 0.0
        %5792 = vmatpush1.msra.mxu0 0.0
        %5793 = vmatprep.subr.mxu0 0.0
        %5794 = vmatpush1.msra.mxu0 0.0
        %5795 = vmatprep.subr.mxu0 0.0
        %5796 = vmatpush1.msra.mxu0 0.0
        %5797 = vmatprep.subr.mxu0 0.0
        %5798 = vmatpush1.msra.mxu0 0.0
        %5799 = vmatprep.subr.mxu0 0.0
        %5800 = vmatpush1.msra.mxu0 0.0
        %5801 = vmatprep.subr.mxu0 0.0
        %5802 = vmatpush1.msra.mxu0 0.0
        %5803 = vmatprep.subr.mxu0 0.0
        %5804 = vmatpush1.msra.mxu0 0.0
        %5805 = vmatprep.subr.mxu0 0.0
        %5806 = vmatpush1.msra.mxu0 0.0
        %5807 = vmatprep.mubr.f32.mxu0 0.0
        %5808 = vmatmul.mubr.f32.gmra.mrb[0].mxu0 %v1593
        %v5809 = vpop.f32.mrb[0].mxu0
        %v5810 = vadd.f32 0.0, %v5809
        %v5811 = vpop.f32.mrb[0].mxu0
        %v5812 = vadd.f32 0.0, %v5811
        %5813 = vdwg.mxu0
        %5814 = vmatprep.subr.mxu0 %v1316
        %5815 = vmatpush1.msra.mxu0 %v1315
        %5816 = vmatprep.subr.mxu0 %v1444
        %5817 = vmatpush1.msra.mxu0 %v1443
        %5818 = vmatprep.subr.mxu0 %v1924
        %5819 = vmatpush1.msra.mxu0 %v1921
        %5820 = vmatprep.subr.mxu0 0.0
        %5821 = vmatpush1.msra.mxu0 0.0
        %5822 = vmatprep.subr.mxu0 0.0
        %5823 = vmatpush1.msra.mxu0 0.0
        %5824 = vmatprep.subr.mxu0 0.0
        %5825 = vmatpush1.msra.mxu0 0.0
        %5826 = vmatprep.subr.mxu0 0.0
        %5827 = vmatpush1.msra.mxu0 0.0
        %5828 = vmatprep.subr.mxu0 0.0
        %5829 = vmatpush1.msra.mxu0 0.0
        %5830 = vmatprep.subr.mxu0 0.0
        %5831 = vmatpush1.msra.mxu0 0.0
        %5832 = vmatprep.subr.mxu0 0.0
        %5833 = vmatpush1.msra.mxu0 0.0
        %5834 = vmatprep.subr.mxu0 0.0
        %5835 = vmatpush1.msra.mxu0 0.0
        %5836 = vmatprep.subr.mxu0 0.0
        %5837 = vmatpush1.msra.mxu0 0.0
        %5838 = vmatprep.subr.mxu0 0.0
        %5839 = vmatpush1.msra.mxu0 0.0
        %5840 = vmatprep.subr.mxu0 0.0
        %5841 = vmatpush1.msra.mxu0 0.0
        %5842 = vmatprep.subr.mxu0 0.0
        %5843 = vmatpush1.msra.mxu0 0.0
        %5844 = vmatprep.subr.mxu0 0.0
        %5845 = vmatpush1.msra.mxu0 0.0
        %5846 = vmatprep.subr.mxu0 0.0
        %5847 = vmatpush1.msra.mxu0 0.0
        %5848 = vmatprep.subr.mxu0 0.0
        %5849 = vmatpush1.msra.mxu0 0.0
        %5850 = vmatprep.subr.mxu0 0.0
        %5851 = vmatpush1.msra.mxu0 0.0
        %5852 = vmatprep.subr.mxu0 0.0
        %5853 = vmatpush1.msra.mxu0 0.0
        %5854 = vmatprep.subr.mxu0 0.0
        %5855 = vmatpush1.msra.mxu0 0.0
        %5856 = vmatprep.subr.mxu0 0.0
        %5857 = vmatpush1.msra.mxu0 0.0
        %5858 = vmatprep.subr.mxu0 0.0
        %5859 = vmatpush1.msra.mxu0 0.0
        %5860 = vmatprep.subr.mxu0 0.0
        %5861 = vmatpush1.msra.mxu0 0.0
        %5862 = vmatprep.subr.mxu0 0.0
        %5863 = vmatpush1.msra.mxu0 0.0
        %5864 = vmatprep.subr.mxu0 0.0
        %5865 = vmatpush1.msra.mxu0 0.0
        %5866 = vmatprep.subr.mxu0 0.0
        %5867 = vmatpush1.msra.mxu0 0.0
        %5868 = vmatprep.subr.mxu0 0.0
        %5869 = vmatpush1.msra.mxu0 0.0
        %5870 = vmatprep.subr.mxu0 0.0
        %5871 = vmatpush1.msra.mxu0 0.0
        %5872 = vmatprep.subr.mxu0 0.0
        %5873 = vmatpush1.msra.mxu0 0.0
        %5874 = vmatprep.subr.mxu0 0.0
        %5875 = vmatpush1.msra.mxu0 0.0
        %5876 = vmatprep.subr.mxu0 0.0
        %5877 = vmatpush1.msra.mxu0 0.0
        %5878 = vmatprep.mubr.f32.mxu0 0.0
        %5879 = vmatmul.mubr.f32.gmra.mrb[0].mxu0 %v1593
        %v5880 = vpop.f32.mrb[0].mxu0
        %v5881 = vadd.f32 0.0, %v5880
        %v5882 = vpop.f32.mrb[0].mxu0
        %v5883 = vadd.f32 0.0, %v5882
        %5884 = vdwg.mxu0
        %5885 = vmatprep.subr.mxu0 %v1318
        %5886 = vmatpush1.msra.mxu0 %v1317
        %5887 = vmatprep.subr.mxu0 %v1446
        %5888 = vmatpush1.msra.mxu0 %v1445
        %5889 = vmatprep.subr.mxu0 %v1930
        %5890 = vmatpush1.msra.mxu0 %v1927
        %5891 = vmatprep.subr.mxu0 0.0
        %5892 = vmatpush1.msra.mxu0 0.0
        %5893 = vmatprep.subr.mxu0 0.0
        %5894 = vmatpush1.msra.mxu0 0.0
        %5895 = vmatprep.subr.mxu0 0.0
        %5896 = vmatpush1.msra.mxu0 0.0
        %5897 = vmatprep.subr.mxu0 0.0
        %5898 = vmatpush1.msra.mxu0 0.0
        %5899 = vmatprep.subr.mxu0 0.0
        %5900 = vmatpush1.msra.mxu0 0.0
        %5901 = vmatprep.subr.mxu0 0.0
        %5902 = vmatpush1.msra.mxu0 0.0
        %5903 = vmatprep.subr.mxu0 0.0
        %5904 = vmatpush1.msra.mxu0 0.0
        %5905 = vmatprep.subr.mxu0 0.0
        %5906 = vmatpush1.msra.mxu0 0.0
        %5907 = vmatprep.subr.mxu0 0.0
        %5908 = vmatpush1.msra.mxu0 0.0
        %5909 = vmatprep.subr.mxu0 0.0
        %5910 = vmatpush1.msra.mxu0 0.0
        %5911 = vmatprep.subr.mxu0 0.0
        %5912 = vmatpush1.msra.mxu0 0.0
        %5913 = vmatprep.subr.mxu0 0.0
        %5914 = vmatpush1.msra.mxu0 0.0
        %5915 = vmatprep.subr.mxu0 0.0
        %5916 = vmatpush1.msra.mxu0 0.0
        %5917 = vmatprep.subr.mxu0 0.0
        %5918 = vmatpush1.msra.mxu0 0.0
        %5919 = vmatprep.subr.mxu0 0.0
        %5920 = vmatpush1.msra.mxu0 0.0
        %5921 = vmatprep.subr.mxu0 0.0
        %5922 = vmatpush1.msra.mxu0 0.0
        %5923 = vmatprep.subr.mxu0 0.0
        %5924 = vmatpush1.msra.mxu0 0.0
        %5925 = vmatprep.subr.mxu0 0.0
        %5926 = vmatpush1.msra.mxu0 0.0
        %5927 = vmatprep.subr.mxu0 0.0
        %5928 = vmatpush1.msra.mxu0 0.0
        %5929 = vmatprep.subr.mxu0 0.0
        %5930 = vmatpush1.msra.mxu0 0.0
        %5931 = vmatprep.subr.mxu0 0.0
        %5932 = vmatpush1.msra.mxu0 0.0
        %5933 = vmatprep.subr.mxu0 0.0
        %5934 = vmatpush1.msra.mxu0 0.0
        %5935 = vmatprep.subr.mxu0 0.0
        %5936 = vmatpush1.msra.mxu0 0.0
        %5937 = vmatprep.subr.mxu0 0.0
        %5938 = vmatpush1.msra.mxu0 0.0
        %5939 = vmatprep.subr.mxu0 0.0
        %5940 = vmatpush1.msra.mxu0 0.0
        %5941 = vmatprep.subr.mxu0 0.0
        %5942 = vmatpush1.msra.mxu0 0.0
        %5943 = vmatprep.subr.mxu0 0.0
        %5944 = vmatpush1.msra.mxu0 0.0
        %5945 = vmatprep.subr.mxu0 0.0
        %5946 = vmatpush1.msra.mxu0 0.0
        %5947 = vmatprep.subr.mxu0 0.0
        %5948 = vmatpush1.msra.mxu0 0.0
        %5949 = vmatprep.mubr.f32.mxu0 0.0
        %5950 = vmatmul.mubr.f32.gmra.mrb[0].mxu0 %v1593
        %v5951 = vpop.f32.mrb[0].mxu0
        %v5952 = vadd.f32 0.0, %v5951
        %v5953 = vpop.f32.mrb[0].mxu0
        %v5954 = vadd.f32 0.0, %v5953
        %5955 = vdwg.mxu0
        %5956 = vmatprep.subr.mxu0 %v1320
        %5957 = vmatpush1.msra.mxu0 %v1319
        %5958 = vmatprep.subr.mxu0 %v1448
        %5959 = vmatpush1.msra.mxu0 %v1447
        %5960 = vmatprep.subr.mxu0 %v1936
        %5961 = vmatpush1.msra.mxu0 %v1933
        %5962 = vmatprep.subr.mxu0 0.0
        %5963 = vmatpush1.msra.mxu0 0.0
        %5964 = vmatprep.subr.mxu0 0.0
        %5965 = vmatpush1.msra.mxu0 0.0
        %5966 = vmatprep.subr.mxu0 0.0
        %5967 = vmatpush1.msra.mxu0 0.0
        %5968 = vmatprep.subr.mxu0 0.0
        %5969 = vmatpush1.msra.mxu0 0.0
        %5970 = vmatprep.subr.mxu0 0.0
        %5971 = vmatpush1.msra.mxu0 0.0
        %5972 = vmatprep.subr.mxu0 0.0
        %5973 = vmatpush1.msra.mxu0 0.0
        %5974 = vmatprep.subr.mxu0 0.0
        %5975 = vmatpush1.msra.mxu0 0.0
        %5976 = vmatprep.subr.mxu0 0.0
        %5977 = vmatpush1.msra.mxu0 0.0
        %5978 = vmatprep.subr.mxu0 0.0
        %5979 = vmatpush1.msra.mxu0 0.0
        %5980 = vmatprep.subr.mxu0 0.0
        %5981 = vmatpush1.msra.mxu0 0.0
        %5982 = vmatprep.subr.mxu0 0.0
        %5983 = vmatpush1.msra.mxu0 0.0
        %5984 = vmatprep.subr.mxu0 0.0
        %5985 = vmatpush1.msra.mxu0 0.0
        %5986 = vmatprep.subr.mxu0 0.0
        %5987 = vmatpush1.msra.mxu0 0.0
        %5988 = vmatprep.subr.mxu0 0.0
        %5989 = vmatpush1.msra.mxu0 0.0
        %5990 = vmatprep.subr.mxu0 0.0
        %5991 = vmatpush1.msra.mxu0 0.0
        %5992 = vmatprep.subr.mxu0 0.0
        %5993 = vmatpush1.msra.mxu0 0.0
        %5994 = vmatprep.subr.mxu0 0.0
        %5995 = vmatpush1.msra.mxu0 0.0
        %5996 = vmatprep.subr.mxu0 0.0
        %5997 = vmatpush1.msra.mxu0 0.0
        %5998 = vmatprep.subr.mxu0 0.0
        %5999 = vmatpush1.msra.mxu0 0.0
        %6000 = vmatprep.subr.mxu0 0.0
        %6001 = vmatpush1.msra.mxu0 0.0
        %6002 = vmatprep.subr.mxu0 0.0
        %6003 = vmatpush1.msra.mxu0 0.0
        %6004 = vmatprep.subr.mxu0 0.0
        %6005 = vmatpush1.msra.mxu0 0.0
        %6006 = vmatprep.subr.mxu0 0.0
        %6007 = vmatpush1.msra.mxu0 0.0
        %6008 = vmatprep.subr.mxu0 0.0
        %6009 = vmatpush1.msra.mxu0 0.0
        %6010 = vmatprep.subr.mxu0 0.0
        %6011 = vmatpush1.msra.mxu0 0.0
        %6012 = vmatprep.subr.mxu0 0.0
        %6013 = vmatpush1.msra.mxu0 0.0
        %6014 = vmatprep.subr.mxu0 0.0
        %6015 = vmatpush1.msra.mxu0 0.0
        %6016 = vmatprep.subr.mxu0 0.0
        %6017 = vmatpush1.msra.mxu0 0.0
        %6018 = vmatprep.subr.mxu0 0.0
        %6019 = vmatpush1.msra.mxu0 0.0
        %6020 = vmatprep.mubr.f32.mxu0 0.0
        %6021 = vmatmul.mubr.f32.gmra.mrb[0].mxu0 %v1593
        %v6022 = vpop.f32.mrb[0].mxu0
        %v6023 = vadd.f32 0.0, %v6022
        %v6024 = vpop.f32.mrb[0].mxu0
        %v6025 = vadd.f32 0.0, %v6024
        %6026 = vdwg.mxu0
        %6027 = vmatprep.subr.mxu0 %v1322
        %6028 = vmatpush1.msra.mxu0 %v1321
        %6029 = vmatprep.subr.mxu0 %v1450
        %6030 = vmatpush1.msra.mxu0 %v1449
        %6031 = vmatprep.subr.mxu0 %v1942
        %6032 = vmatpush1.msra.mxu0 %v1939
        %6033 = vmatprep.subr.mxu0 0.0
        %6034 = vmatpush1.msra.mxu0 0.0
        %6035 = vmatprep.subr.mxu0 0.0
        %6036 = vmatpush1.msra.mxu0 0.0
        %6037 = vmatprep.subr.mxu0 0.0
        %6038 = vmatpush1.msra.mxu0 0.0
        %6039 = vmatprep.subr.mxu0 0.0
        %6040 = vmatpush1.msra.mxu0 0.0
        %6041 = vmatprep.subr.mxu0 0.0
        %6042 = vmatpush1.msra.mxu0 0.0
        %6043 = vmatprep.subr.mxu0 0.0
        %6044 = vmatpush1.msra.mxu0 0.0
        %6045 = vmatprep.subr.mxu0 0.0
        %6046 = vmatpush1.msra.mxu0 0.0
        %6047 = vmatprep.subr.mxu0 0.0
        %6048 = vmatpush1.msra.mxu0 0.0
        %6049 = vmatprep.subr.mxu0 0.0
        %6050 = vmatpush1.msra.mxu0 0.0
        %6051 = vmatprep.subr.mxu0 0.0
        %6052 = vmatpush1.msra.mxu0 0.0
        %6053 = vmatprep.subr.mxu0 0.0
        %6054 = vmatpush1.msra.mxu0 0.0
        %6055 = vmatprep.subr.mxu0 0.0
        %6056 = vmatpush1.msra.mxu0 0.0
        %6057 = vmatprep.subr.mxu0 0.0
        %6058 = vmatpush1.msra.mxu0 0.0
        %6059 = vmatprep.subr.mxu0 0.0
        %6060 = vmatpush1.msra.mxu0 0.0
        %6061 = vmatprep.subr.mxu0 0.0
        %6062 = vmatpush1.msra.mxu0 0.0
        %6063 = vmatprep.subr.mxu0 0.0
        %6064 = vmatpush1.msra.mxu0 0.0
        %6065 = vmatprep.subr.mxu0 0.0
        %6066 = vmatpush1.msra.mxu0 0.0
        %6067 = vmatprep.subr.mxu0 0.0
        %6068 = vmatpush1.msra.mxu0 0.0
        %6069 = vmatprep.subr.mxu0 0.0
        %6070 = vmatpush1.msra.mxu0 0.0
        %6071 = vmatprep.subr.mxu0 0.0
        %6072 = vmatpush1.msra.mxu0 0.0
        %6073 = vmatprep.subr.mxu0 0.0
        %6074 = vmatpush1.msra.mxu0 0.0
        %6075 = vmatprep.subr.mxu0 0.0
        %6076 = vmatpush1.msra.mxu0 0.0
        %6077 = vmatprep.subr.mxu0 0.0
        %6078 = vmatpush1.msra.mxu0 0.0
        %6079 = vmatprep.subr.mxu0 0.0
        %6080 = vmatpush1.msra.mxu0 0.0
        %6081 = vmatprep.subr.mxu0 0.0
        %6082 = vmatpush1.msra.mxu0 0.0
        %6083 = vmatprep.subr.mxu0 0.0
        %6084 = vmatpush1.msra.mxu0 0.0
        %6085 = vmatprep.subr.mxu0 0.0
        %6086 = vmatpush1.msra.mxu0 0.0
        %6087 = vmatprep.subr.mxu0 0.0
        %6088 = vmatpush1.msra.mxu0 0.0
        %6089 = vmatprep.subr.mxu0 0.0
        %6090 = vmatpush1.msra.mxu0 0.0
        %6091 = vmatprep.mubr.f32.mxu0 0.0
        %6092 = vmatmul.mubr.f32.gmra.mrb[0].mxu0 %v1593
        %v6093 = vpop.f32.mrb[0].mxu0
        %v6094 = vadd.f32 0.0, %v6093
        %v6095 = vpop.f32.mrb[0].mxu0
        %v6096 = vadd.f32 0.0, %v6095
        %6097 = vdwg.mxu0
        %6098 = vmatprep.subr.mxu0 %v1324
        %6099 = vmatpush1.msra.mxu0 %v1323
        %6100 = vmatprep.subr.mxu0 %v1452
        %6101 = vmatpush1.msra.mxu0 %v1451
        %6102 = vmatprep.subr.mxu0 %v1948
        %6103 = vmatpush1.msra.mxu0 %v1945
        %6104 = vmatprep.subr.mxu0 0.0
        %6105 = vmatpush1.msra.mxu0 0.0
        %6106 = vmatprep.subr.mxu0 0.0
        %6107 = vmatpush1.msra.mxu0 0.0
        %6108 = vmatprep.subr.mxu0 0.0
        %6109 = vmatpush1.msra.mxu0 0.0
        %6110 = vmatprep.subr.mxu0 0.0
        %6111 = vmatpush1.msra.mxu0 0.0
        %6112 = vmatprep.subr.mxu0 0.0
        %6113 = vmatpush1.msra.mxu0 0.0
        %6114 = vmatprep.subr.mxu0 0.0
        %6115 = vmatpush1.msra.mxu0 0.0
        %6116 = vmatprep.subr.mxu0 0.0
        %6117 = vmatpush1.msra.mxu0 0.0
        %6118 = vmatprep.subr.mxu0 0.0
        %6119 = vmatpush1.msra.mxu0 0.0
        %6120 = vmatprep.subr.mxu0 0.0
        %6121 = vmatpush1.msra.mxu0 0.0
        %6122 = vmatprep.subr.mxu0 0.0
        %6123 = vmatpush1.msra.mxu0 0.0
        %6124 = vmatprep.subr.mxu0 0.0
        %6125 = vmatpush1.msra.mxu0 0.0
        %6126 = vmatprep.subr.mxu0 0.0
        %6127 = vmatpush1.msra.mxu0 0.0
        %6128 = vmatprep.subr.mxu0 0.0
        %6129 = vmatpush1.msra.mxu0 0.0
        %6130 = vmatprep.subr.mxu0 0.0
        %6131 = vmatpush1.msra.mxu0 0.0
        %6132 = vmatprep.subr.mxu0 0.0
        %6133 = vmatpush1.msra.mxu0 0.0
        %6134 = vmatprep.subr.mxu0 0.0
        %6135 = vmatpush1.msra.mxu0 0.0
        %6136 = vmatprep.subr.mxu0 0.0
        %6137 = vmatpush1.msra.mxu0 0.0
        %6138 = vmatprep.subr.mxu0 0.0
        %6139 = vmatpush1.msra.mxu0 0.0
        %6140 = vmatprep.subr.mxu0 0.0
        %6141 = vmatpush1.msra.mxu0 0.0
        %6142 = vmatprep.subr.mxu0 0.0
        %6143 = vmatpush1.msra.mxu0 0.0
        %6144 = vmatprep.subr.mxu0 0.0
        %6145 = vmatpush1.msra.mxu0 0.0
        %6146 = vmatprep.subr.mxu0 0.0
        %6147 = vmatpush1.msra.mxu0 0.0
        %6148 = vmatprep.subr.mxu0 0.0
        %6149 = vmatpush1.msra.mxu0 0.0
        %6150 = vmatprep.subr.mxu0 0.0
        %6151 = vmatpush1.msra.mxu0 0.0
        %6152 = vmatprep.subr.mxu0 0.0
        %6153 = vmatpush1.msra.mxu0 0.0
        %6154 = vmatprep.subr.mxu0 0.0
        %6155 = vmatpush1.msra.mxu0 0.0
        %6156 = vmatprep.subr.mxu0 0.0
        %6157 = vmatpush1.msra.mxu0 0.0
        %6158 = vmatprep.subr.mxu0 0.0
        %6159 = vmatpush1.msra.mxu0 0.0
        %6160 = vmatprep.subr.mxu0 0.0
        %6161 = vmatpush1.msra.mxu0 0.0
        %6162 = vmatprep.mubr.f32.mxu0 0.0
        %6163 = vmatmul.mubr.f32.gmra.mrb[0].mxu0 %v1593
        %v6164 = vpop.f32.mrb[0].mxu0
        %v6165 = vadd.f32 0.0, %v6164
        %v6166 = vpop.f32.mrb[0].mxu0
        %v6167 = vadd.f32 0.0, %v6166
        %6168 = vdwg.mxu0
        %6169 = vmatprep.subr.mxu0 %v1326
        %6170 = vmatpush1.msra.mxu0 %v1325
        %6171 = vmatprep.subr.mxu0 %v1454
        %6172 = vmatpush1.msra.mxu0 %v1453
        %6173 = vmatprep.subr.mxu0 %v1954
        %6174 = vmatpush1.msra.mxu0 %v1951
        %6175 = vmatprep.subr.mxu0 0.0
        %6176 = vmatpush1.msra.mxu0 0.0
        %6177 = vmatprep.subr.mxu0 0.0
        %6178 = vmatpush1.msra.mxu0 0.0
        %6179 = vmatprep.subr.mxu0 0.0
        %6180 = vmatpush1.msra.mxu0 0.0
        %6181 = vmatprep.subr.mxu0 0.0
        %6182 = vmatpush1.msra.mxu0 0.0
        %6183 = vmatprep.subr.mxu0 0.0
        %6184 = vmatpush1.msra.mxu0 0.0
        %6185 = vmatprep.subr.mxu0 0.0
        %6186 = vmatpush1.msra.mxu0 0.0
        %6187 = vmatprep.subr.mxu0 0.0
        %6188 = vmatpush1.msra.mxu0 0.0
        %6189 = vmatprep.subr.mxu0 0.0
        %6190 = vmatpush1.msra.mxu0 0.0
        %6191 = vmatprep.subr.mxu0 0.0
        %6192 = vmatpush1.msra.mxu0 0.0
        %6193 = vmatprep.subr.mxu0 0.0
        %6194 = vmatpush1.msra.mxu0 0.0
        %6195 = vmatprep.subr.mxu0 0.0
        %6196 = vmatpush1.msra.mxu0 0.0
        %6197 = vmatprep.subr.mxu0 0.0
        %6198 = vmatpush1.msra.mxu0 0.0
        %6199 = vmatprep.subr.mxu0 0.0
        %6200 = vmatpush1.msra.mxu0 0.0
        %6201 = vmatprep.subr.mxu0 0.0
        %6202 = vmatpush1.msra.mxu0 0.0
        %6203 = vmatprep.subr.mxu0 0.0
        %6204 = vmatpush1.msra.mxu0 0.0
        %6205 = vmatprep.subr.mxu0 0.0
        %6206 = vmatpush1.msra.mxu0 0.0
        %6207 = vmatprep.subr.mxu0 0.0
        %6208 = vmatpush1.msra.mxu0 0.0
        %6209 = vmatprep.subr.mxu0 0.0
        %6210 = vmatpush1.msra.mxu0 0.0
        %6211 = vmatprep.subr.mxu0 0.0
        %6212 = vmatpush1.msra.mxu0 0.0
        %6213 = vmatprep.subr.mxu0 0.0
        %6214 = vmatpush1.msra.mxu0 0.0
        %6215 = vmatprep.subr.mxu0 0.0
        %6216 = vmatpush1.msra.mxu0 0.0
        %6217 = vmatprep.subr.mxu0 0.0
        %6218 = vmatpush1.msra.mxu0 0.0
        %6219 = vmatprep.subr.mxu0 0.0
        %6220 = vmatpush1.msra.mxu0 0.0
        %6221 = vmatprep.subr.mxu0 0.0
        %6222 = vmatpush1.msra.mxu0 0.0
        %6223 = vmatprep.subr.mxu0 0.0
        %6224 = vmatpush1.msra.mxu0 0.0
        %6225 = vmatprep.subr.mxu0 0.0
        %6226 = vmatpush1.msra.mxu0 0.0
        %6227 = vmatprep.subr.mxu0 0.0
        %6228 = vmatpush1.msra.mxu0 0.0
        %6229 = vmatprep.subr.mxu0 0.0
        %6230 = vmatpush1.msra.mxu0 0.0
        %6231 = vmatprep.subr.mxu0 0.0
        %6232 = vmatpush1.msra.mxu0 0.0
        %6233 = vmatprep.mubr.f32.mxu0 0.0
        %6234 = vmatmul.mubr.f32.gmra.mrb[0].mxu0 %v1593
        %v6235 = vpop.f32.mrb[0].mxu0
        %v6236 = vadd.f32 0.0, %v6235
        %v6237 = vpop.f32.mrb[0].mxu0
        %v6238 = vadd.f32 0.0, %v6237
        %6239 = vdwg.mxu0
        %6240 = vmatprep.subr.mxu0 %v1328
        %6241 = vmatpush1.msra.mxu0 %v1327
        %6242 = vmatprep.subr.mxu0 %v1456
        %6243 = vmatpush1.msra.mxu0 %v1455
        %6244 = vmatprep.subr.mxu0 %v1960
        %6245 = vmatpush1.msra.mxu0 %v1957
        %6246 = vmatprep.subr.mxu0 0.0
        %6247 = vmatpush1.msra.mxu0 0.0
        %6248 = vmatprep.subr.mxu0 0.0
        %6249 = vmatpush1.msra.mxu0 0.0
        %6250 = vmatprep.subr.mxu0 0.0
        %6251 = vmatpush1.msra.mxu0 0.0
        %6252 = vmatprep.subr.mxu0 0.0
        %6253 = vmatpush1.msra.mxu0 0.0
        %6254 = vmatprep.subr.mxu0 0.0
        %6255 = vmatpush1.msra.mxu0 0.0
        %6256 = vmatprep.subr.mxu0 0.0
        %6257 = vmatpush1.msra.mxu0 0.0
        %6258 = vmatprep.subr.mxu0 0.0
        %6259 = vmatpush1.msra.mxu0 0.0
        %6260 = vmatprep.subr.mxu0 0.0
        %6261 = vmatpush1.msra.mxu0 0.0
        %6262 = vmatprep.subr.mxu0 0.0
        %6263 = vmatpush1.msra.mxu0 0.0
        %6264 = vmatprep.subr.mxu0 0.0
        %6265 = vmatpush1.msra.mxu0 0.0
        %6266 = vmatprep.subr.mxu0 0.0
        %6267 = vmatpush1.msra.mxu0 0.0
        %6268 = vmatprep.subr.mxu0 0.0
        %6269 = vmatpush1.msra.mxu0 0.0
        %6270 = vmatprep.subr.mxu0 0.0
        %6271 = vmatpush1.msra.mxu0 0.0
        %6272 = vmatprep.subr.mxu0 0.0
        %6273 = vmatpush1.msra.mxu0 0.0
        %6274 = vmatprep.subr.mxu0 0.0
        %6275 = vmatpush1.msra.mxu0 0.0
        %6276 = vmatprep.subr.mxu0 0.0
        %6277 = vmatpush1.msra.mxu0 0.0
        %6278 = vmatprep.subr.mxu0 0.0
        %6279 = vmatpush1.msra.mxu0 0.0
        %6280 = vmatprep.subr.mxu0 0.0
        %6281 = vmatpush1.msra.mxu0 0.0
        %6282 = vmatprep.subr.mxu0 0.0
        %6283 = vmatpush1.msra.mxu0 0.0
        %6284 = vmatprep.subr.mxu0 0.0
        %6285 = vmatpush1.msra.mxu0 0.0
        %6286 = vmatprep.subr.mxu0 0.0
        %6287 = vmatpush1.msra.mxu0 0.0
        %6288 = vmatprep.subr.mxu0 0.0
        %6289 = vmatpush1.msra.mxu0 0.0
        %6290 = vmatprep.subr.mxu0 0.0
        %6291 = vmatpush1.msra.mxu0 0.0
        %6292 = vmatprep.subr.mxu0 0.0
        %6293 = vmatpush1.msra.mxu0 0.0
        %6294 = vmatprep.subr.mxu0 0.0
        %6295 = vmatpush1.msra.mxu0 0.0
        %6296 = vmatprep.subr.mxu0 0.0
        %6297 = vmatpush1.msra.mxu0 0.0
        %6298 = vmatprep.subr.mxu0 0.0
        %6299 = vmatpush1.msra.mxu0 0.0
        %6300 = vmatprep.subr.mxu0 0.0
        %6301 = vmatpush1.msra.mxu0 0.0
        %6302 = vmatprep.subr.mxu0 0.0
        %6303 = vmatpush1.msra.mxu0 0.0
        %6304 = vmatprep.mubr.f32.mxu0 0.0
        %6305 = vmatmul.mubr.f32.gmra.mrb[0].mxu0 %v1593
        %v6306 = vpop.f32.mrb[0].mxu0
        %v6307 = vadd.f32 0.0, %v6306
        %v6308 = vpop.f32.mrb[0].mxu0
        %v6309 = vadd.f32 0.0, %v6308
        %6310 = vdwg.mxu0
        %6311 = vmatprep.subr.mxu0 %v1330
        %6312 = vmatpush1.msra.mxu0 %v1329
        %6313 = vmatprep.subr.mxu0 %v1458
        %6314 = vmatpush1.msra.mxu0 %v1457
        %6315 = vmatprep.subr.mxu0 %v1966
        %6316 = vmatpush1.msra.mxu0 %v1963
        %6317 = vmatprep.subr.mxu0 0.0
        %6318 = vmatpush1.msra.mxu0 0.0
        %6319 = vmatprep.subr.mxu0 0.0
        %6320 = vmatpush1.msra.mxu0 0.0
        %6321 = vmatprep.subr.mxu0 0.0
        %6322 = vmatpush1.msra.mxu0 0.0
        %6323 = vmatprep.subr.mxu0 0.0
        %6324 = vmatpush1.msra.mxu0 0.0
        %6325 = vmatprep.subr.mxu0 0.0
        %6326 = vmatpush1.msra.mxu0 0.0
        %6327 = vmatprep.subr.mxu0 0.0
        %6328 = vmatpush1.msra.mxu0 0.0
        %6329 = vmatprep.subr.mxu0 0.0
        %6330 = vmatpush1.msra.mxu0 0.0
        %6331 = vmatprep.subr.mxu0 0.0
        %6332 = vmatpush1.msra.mxu0 0.0
        %6333 = vmatprep.subr.mxu0 0.0
        %6334 = vmatpush1.msra.mxu0 0.0
        %6335 = vmatprep.subr.mxu0 0.0
        %6336 = vmatpush1.msra.mxu0 0.0
        %6337 = vmatprep.subr.mxu0 0.0
        %6338 = vmatpush1.msra.mxu0 0.0
        %6339 = vmatprep.subr.mxu0 0.0
        %6340 = vmatpush1.msra.mxu0 0.0
        %6341 = vmatprep.subr.mxu0 0.0
        %6342 = vmatpush1.msra.mxu0 0.0
        %6343 = vmatprep.subr.mxu0 0.0
        %6344 = vmatpush1.msra.mxu0 0.0
        %6345 = vmatprep.subr.mxu0 0.0
        %6346 = vmatpush1.msra.mxu0 0.0
        %6347 = vmatprep.subr.mxu0 0.0
        %6348 = vmatpush1.msra.mxu0 0.0
        %6349 = vmatprep.subr.mxu0 0.0
        %6350 = vmatpush1.msra.mxu0 0.0
        %6351 = vmatprep.subr.mxu0 0.0
        %6352 = vmatpush1.msra.mxu0 0.0
        %6353 = vmatprep.subr.mxu0 0.0
        %6354 = vmatpush1.msra.mxu0 0.0
        %6355 = vmatprep.subr.mxu0 0.0
        %6356 = vmatpush1.msra.mxu0 0.0
        %6357 = vmatprep.subr.mxu0 0.0
        %6358 = vmatpush1.msra.mxu0 0.0
        %6359 = vmatprep.subr.mxu0 0.0
        %6360 = vmatpush1.msra.mxu0 0.0
        %6361 = vmatprep.subr.mxu0 0.0
        %6362 = vmatpush1.msra.mxu0 0.0
        %6363 = vmatprep.subr.mxu0 0.0
        %6364 = vmatpush1.msra.mxu0 0.0
        %6365 = vmatprep.subr.mxu0 0.0
        %6366 = vmatpush1.msra.mxu0 0.0
        %6367 = vmatprep.subr.mxu0 0.0
        %6368 = vmatpush1.msra.mxu0 0.0
        %6369 = vmatprep.subr.mxu0 0.0
        %6370 = vmatpush1.msra.mxu0 0.0
        %6371 = vmatprep.subr.mxu0 0.0
        %6372 = vmatpush1.msra.mxu0 0.0
        %6373 = vmatprep.subr.mxu0 0.0
        %6374 = vmatpush1.msra.mxu0 0.0
        %6375 = vmatprep.mubr.f32.mxu0 0.0
        %6376 = vmatmul.mubr.f32.gmra.mrb[0].mxu0 %v1593
        %v6377 = vpop.f32.mrb[0].mxu0
        %v6378 = vadd.f32 0.0, %v6377
        %v6379 = vpop.f32.mrb[0].mxu0
        %v6380 = vadd.f32 0.0, %v6379
        %6381 = vdwg.mxu0
        %6382 = vmatprep.subr.mxu0 %v1332
        %6383 = vmatpush1.msra.mxu0 %v1331
        %6384 = vmatprep.subr.mxu0 %v1460
        %6385 = vmatpush1.msra.mxu0 %v1459
        %6386 = vmatprep.subr.mxu0 %v1972
        %6387 = vmatpush1.msra.mxu0 %v1969
        %6388 = vmatprep.subr.mxu0 0.0
        %6389 = vmatpush1.msra.mxu0 0.0
        %6390 = vmatprep.subr.mxu0 0.0
        %6391 = vmatpush1.msra.mxu0 0.0
        %6392 = vmatprep.subr.mxu0 0.0
        %6393 = vmatpush1.msra.mxu0 0.0
        %6394 = vmatprep.subr.mxu0 0.0
        %6395 = vmatpush1.msra.mxu0 0.0
        %6396 = vmatprep.subr.mxu0 0.0
        %6397 = vmatpush1.msra.mxu0 0.0
        %6398 = vmatprep.subr.mxu0 0.0
        %6399 = vmatpush1.msra.mxu0 0.0
        %6400 = vmatprep.subr.mxu0 0.0
        %6401 = vmatpush1.msra.mxu0 0.0
        %6402 = vmatprep.subr.mxu0 0.0
        %6403 = vmatpush1.msra.mxu0 0.0
        %6404 = vmatprep.subr.mxu0 0.0
        %6405 = vmatpush1.msra.mxu0 0.0
        %6406 = vmatprep.subr.mxu0 0.0
        %6407 = vmatpush1.msra.mxu0 0.0
        %6408 = vmatprep.subr.mxu0 0.0
        %6409 = vmatpush1.msra.mxu0 0.0
        %6410 = vmatprep.subr.mxu0 0.0
        %6411 = vmatpush1.msra.mxu0 0.0
        %6412 = vmatprep.subr.mxu0 0.0
        %6413 = vmatpush1.msra.mxu0 0.0
        %6414 = vmatprep.subr.mxu0 0.0
        %6415 = vmatpush1.msra.mxu0 0.0
        %6416 = vmatprep.subr.mxu0 0.0
        %6417 = vmatpush1.msra.mxu0 0.0
        %6418 = vmatprep.subr.mxu0 0.0
        %6419 = vmatpush1.msra.mxu0 0.0
        %6420 = vmatprep.subr.mxu0 0.0
        %6421 = vmatpush1.msra.mxu0 0.0
        %6422 = vmatprep.subr.mxu0 0.0
        %6423 = vmatpush1.msra.mxu0 0.0
        %6424 = vmatprep.subr.mxu0 0.0
        %6425 = vmatpush1.msra.mxu0 0.0
        %6426 = vmatprep.subr.mxu0 0.0
        %6427 = vmatpush1.msra.mxu0 0.0
        %6428 = vmatprep.subr.mxu0 0.0
        %6429 = vmatpush1.msra.mxu0 0.0
        %6430 = vmatprep.subr.mxu0 0.0
        %6431 = vmatpush1.msra.mxu0 0.0
        %6432 = vmatprep.subr.mxu0 0.0
        %6433 = vmatpush1.msra.mxu0 0.0
        %6434 = vmatprep.subr.mxu0 0.0
        %6435 = vmatpush1.msra.mxu0 0.0
        %6436 = vmatprep.subr.mxu0 0.0
        %6437 = vmatpush1.msra.mxu0 0.0
        %6438 = vmatprep.subr.mxu0 0.0
        %6439 = vmatpush1.msra.mxu0 0.0
        %6440 = vmatprep.subr.mxu0 0.0
        %6441 = vmatpush1.msra.mxu0 0.0
        %6442 = vmatprep.subr.mxu0 0.0
        %6443 = vmatpush1.msra.mxu0 0.0
        %6444 = vmatprep.subr.mxu0 0.0
        %6445 = vmatpush1.msra.mxu0 0.0
        %6446 = vmatprep.mubr.f32.mxu0 0.0
        %6447 = vmatmul.mubr.f32.gmra.mrb[0].mxu0 %v1593
        %v6448 = vpop.f32.mrb[0].mxu0
        %v6449 = vadd.f32 0.0, %v6448
        %v6450 = vpop.f32.mrb[0].mxu0
        %v6451 = vadd.f32 0.0, %v6450
        %6452 = vdwg.mxu0
        %6453 = vmatprep.subr.mxu0 %v1334
        %6454 = vmatpush1.msra.mxu0 %v1333
        %6455 = vmatprep.subr.mxu0 %v1462
        %6456 = vmatpush1.msra.mxu0 %v1461
        %6457 = vmatprep.subr.mxu0 %v1978
        %6458 = vmatpush1.msra.mxu0 %v1975
        %6459 = vmatprep.subr.mxu0 0.0
        %6460 = vmatpush1.msra.mxu0 0.0
        %6461 = vmatprep.subr.mxu0 0.0
        %6462 = vmatpush1.msra.mxu0 0.0
        %6463 = vmatprep.subr.mxu0 0.0
        %6464 = vmatpush1.msra.mxu0 0.0
        %6465 = vmatprep.subr.mxu0 0.0
        %6466 = vmatpush1.msra.mxu0 0.0
        %6467 = vmatprep.subr.mxu0 0.0
        %6468 = vmatpush1.msra.mxu0 0.0
        %6469 = vmatprep.subr.mxu0 0.0
        %6470 = vmatpush1.msra.mxu0 0.0
        %6471 = vmatprep.subr.mxu0 0.0
        %6472 = vmatpush1.msra.mxu0 0.0
        %6473 = vmatprep.subr.mxu0 0.0
        %6474 = vmatpush1.msra.mxu0 0.0
        %6475 = vmatprep.subr.mxu0 0.0
        %6476 = vmatpush1.msra.mxu0 0.0
        %6477 = vmatprep.subr.mxu0 0.0
        %6478 = vmatpush1.msra.mxu0 0.0
        %6479 = vmatprep.subr.mxu0 0.0
        %6480 = vmatpush1.msra.mxu0 0.0
        %6481 = vmatprep.subr.mxu0 0.0
        %6482 = vmatpush1.msra.mxu0 0.0
        %6483 = vmatprep.subr.mxu0 0.0
        %6484 = vmatpush1.msra.mxu0 0.0
        %6485 = vmatprep.subr.mxu0 0.0
        %6486 = vmatpush1.msra.mxu0 0.0
        %6487 = vmatprep.subr.mxu0 0.0
        %6488 = vmatpush1.msra.mxu0 0.0
        %6489 = vmatprep.subr.mxu0 0.0
        %6490 = vmatpush1.msra.mxu0 0.0
        %6491 = vmatprep.subr.mxu0 0.0
        %6492 = vmatpush1.msra.mxu0 0.0
        %6493 = vmatprep.subr.mxu0 0.0
        %6494 = vmatpush1.msra.mxu0 0.0
        %6495 = vmatprep.subr.mxu0 0.0
        %6496 = vmatpush1.msra.mxu0 0.0
        %6497 = vmatprep.subr.mxu0 0.0
        %6498 = vmatpush1.msra.mxu0 0.0
        %6499 = vmatprep.subr.mxu0 0.0
        %6500 = vmatpush1.msra.mxu0 0.0
        %6501 = vmatprep.subr.mxu0 0.0
        %6502 = vmatpush1.msra.mxu0 0.0
        %6503 = vmatprep.subr.mxu0 0.0
        %6504 = vmatpush1.msra.mxu0 0.0
        %6505 = vmatprep.subr.mxu0 0.0
        %6506 = vmatpush1.msra.mxu0 0.0
        %6507 = vmatprep.subr.mxu0 0.0
        %6508 = vmatpush1.msra.mxu0 0.0
        %6509 = vmatprep.subr.mxu0 0.0
        %6510 = vmatpush1.msra.mxu0 0.0
        %6511 = vmatprep.subr.mxu0 0.0
        %6512 = vmatpush1.msra.mxu0 0.0
        %6513 = vmatprep.subr.mxu0 0.0
        %6514 = vmatpush1.msra.mxu0 0.0
        %6515 = vmatprep.subr.mxu0 0.0
        %6516 = vmatpush1.msra.mxu0 0.0
        %6517 = vmatprep.mubr.f32.mxu0 0.0
        %6518 = vmatmul.mubr.f32.gmra.mrb[0].mxu0 %v1593
        %v6519 = vpop.f32.mrb[0].mxu0
        %v6520 = vadd.f32 0.0, %v6519
        %v6521 = vpop.f32.mrb[0].mxu0
        %v6522 = vadd.f32 0.0, %v6521
        %6523 = vdwg.mxu0
        %s6524 = smul.u32 %s29, 16384
        %v6525 = vstv %s6524
        %v6526 = vsub.s32 %v1206, %v6525
        %v6527 = vadd.s32 %v1081, 128
        %v6528 = vadd.s32 %v1081, 256
        %v6529 = vadd.s32 %v1081, 384
        %v6530 = vadd.s32 %v1081, 512
        %v6531 = vadd.s32 %v1081, 640
        %v6532 = vadd.s32 %v1081, 768
        %v6533 = vadd.s32 %v1081, 896
        %v6534 = vadd.s32 %v1081, 1024
        %v6535 = vadd.s32 %v1081, 1152
        %v6536 = vadd.s32 %v1081, 1280
        %v6537 = vadd.s32 %v1081, 1408
        %v6538 = vadd.s32 %v1081, 1536
        %v6539 = vadd.s32 %v1081, 1664
        %v6540 = vadd.s32 %v1081, 1792
        %v6541 = vadd.s32 %v1081, 1920
        %v6542 = vadd.s32 %v1081, 2048
        %v6543 = vadd.s32 %v1081, 2176
        %v6544 = vadd.s32 %v1081, 2304
        %v6545 = vadd.s32 %v1081, 2432
        %v6546 = vadd.s32 %v1081, 2560
        %v6547 = vadd.s32 %v1081, 2688
        %v6548 = vadd.s32 %v1081, 2816
        %v6549 = vadd.s32 %v1081, 2944
        %v6550 = vadd.s32 %v1081, 3072
        %v6551 = vadd.s32 %v1081, 3200
        %v6552 = vadd.s32 %v1081, 3328
        %v6553 = vadd.s32 %v1081, 3456
        %v6554 = vadd.s32 %v1081, 3584
        %v6555 = vadd.s32 %v1081, 3712
        %v6556 = vadd.s32 %v1081, 3840
        %v6557 = vadd.s32 %v1081, 3968
        %v6558 = vadd.s32 %v1081, 4096
        %v6559 = vadd.s32 %v1081, 4224
        %v6560 = vadd.s32 %v1081, 4352
        %v6561 = vadd.s32 %v1081, 4480
        %v6562 = vadd.s32 %v1081, 4608
        %v6563 = vadd.s32 %v1081, 4736
        %v6564 = vadd.s32 %v1081, 4864
        %v6565 = vadd.s32 %v1081, 4992
        %v6566 = vadd.s32 %v1081, 5120
        %v6567 = vadd.s32 %v1081, 5248
        %v6568 = vadd.s32 %v1081, 5376
        %v6569 = vadd.s32 %v1081, 5504
        %v6570 = vadd.s32 %v1081, 5632
        %v6571 = vadd.s32 %v1081, 5760
        %v6572 = vadd.s32 %v1081, 5888
        %v6573 = vadd.s32 %v1081, 6016
        %v6574 = vadd.s32 %v1081, 6144
        %v6575 = vadd.s32 %v1081, 6272
        %v6576 = vadd.s32 %v1081, 6400
        %v6577 = vadd.s32 %v1081, 6528
        %v6578 = vadd.s32 %v1081, 6656
        %v6579 = vadd.s32 %v1081, 6784
        %v6580 = vadd.s32 %v1081, 6912
        %v6581 = vadd.s32 %v1081, 7040
        %v6582 = vadd.s32 %v1081, 7168
        %v6583 = vadd.s32 %v1081, 7296
        %v6584 = vadd.s32 %v1081, 7424
        %v6585 = vadd.s32 %v1081, 7552
        %v6586 = vadd.s32 %v1081, 7680
        %v6587 = vadd.s32 %v1081, 7808
        %v6588 = vadd.s32 %v1081, 7936
        %v6589 = vadd.s32 %v1081, 8064
        %v6590 = vadd.s32 %v1081, 8192
        %v6591 = vadd.s32 %v1081, 8320
        %v6592 = vadd.s32 %v1081, 8448
        %v6593 = vadd.s32 %v1081, 8576
        %v6594 = vadd.s32 %v1081, 8704
        %v6595 = vadd.s32 %v1081, 8832
        %v6596 = vadd.s32 %v1081, 8960
        %v6597 = vadd.s32 %v1081, 9088
        %v6598 = vadd.s32 %v1081, 9216
        %v6599 = vadd.s32 %v1081, 9344
        %v6600 = vadd.s32 %v1081, 9472
        %v6601 = vadd.s32 %v1081, 9600
        %v6602 = vadd.s32 %v1081, 9728
        %v6603 = vadd.s32 %v1081, 9856
        %v6604 = vadd.s32 %v1081, 9984
        %v6605 = vadd.s32 %v1081, 10112
        %v6606 = vadd.s32 %v1081, 10240
        %v6607 = vadd.s32 %v1081, 10368
        %v6608 = vadd.s32 %v1081, 10496
        %v6609 = vadd.s32 %v1081, 10624
        %v6610 = vadd.s32 %v1081, 10752
        %v6611 = vadd.s32 %v1081, 10880
        %v6612 = vadd.s32 %v1081, 11008
        %v6613 = vadd.s32 %v1081, 11136
        %v6614 = vadd.s32 %v1081, 11264
        %v6615 = vadd.s32 %v1081, 11392
        %v6616 = vadd.s32 %v1081, 11520
        %v6617 = vadd.s32 %v1081, 11648
        %v6618 = vadd.s32 %v1081, 11776
        %v6619 = vadd.s32 %v1081, 11904
        %v6620 = vadd.s32 %v1081, 12032
        %v6621 = vadd.s32 %v1081, 12160
        %v6622 = vadd.s32 %v1081, 12288
        %v6623 = vadd.s32 %v1081, 12416
        %v6624 = vadd.s32 %v1081, 12544
        %v6625 = vadd.s32 %v1081, 12672
        %v6626 = vadd.s32 %v1081, 12800
        %v6627 = vadd.s32 %v1081, 12928
        %v6628 = vadd.s32 %v1081, 13056
        %v6629 = vadd.s32 %v1081, 13184
        %v6630 = vadd.s32 %v1081, 13312
        %v6631 = vadd.s32 %v1081, 13440
        %v6632 = vadd.s32 %v1081, 13568
        %v6633 = vadd.s32 %v1081, 13696
        %v6634 = vadd.s32 %v1081, 13824
        %v6635 = vadd.s32 %v1081, 13952
        %v6636 = vadd.s32 %v1081, 14080
        %v6637 = vadd.s32 %v1081, 14208
        %v6638 = vadd.s32 %v1081, 14336
        %v6639 = vadd.s32 %v1081, 14464
        %v6640 = vadd.s32 %v1081, 14592
        %v6641 = vadd.s32 %v1081, 14720
        %v6642 = vadd.s32 %v1081, 14848
        %v6643 = vadd.s32 %v1081, 14976
        %v6644 = vadd.s32 %v1081, 15104
        %v6645 = vadd.s32 %v1081, 15232
        %v6646 = vadd.s32 %v1081, 15360
        %v6647 = vadd.s32 %v1081, 15488
        %v6648 = vadd.s32 %v1081, 15616
        %v6649 = vadd.s32 %v1081, 15744
        %v6650 = vadd.s32 %v1081, 15872
        %v6651 = vadd.s32 %v1081, 16000
        %v6652 = vadd.s32 %v1081, 16128
        %v6653 = vadd.s32 %v1081, 16256
        %6654 = vset.pattern.permute.xlu0 0
        %6655 = vperm.xlu0 %6654, %v6526
        %v6656 = vpop.permute.xlu0 %6655
        %vm6657 = vcmp.lt.s32.totalorder %v1081, %v6656
        %vm6658 = vcmp.lt.s32.totalorder %v6527, %v6656
        %vm6659 = vcmp.lt.s32.totalorder %v6528, %v6656
        %vm6660 = vcmp.lt.s32.totalorder %v6529, %v6656
        %vm6661 = vcmp.lt.s32.totalorder %v6530, %v6656
        %vm6662 = vcmp.lt.s32.totalorder %v6531, %v6656
        %vm6663 = vcmp.lt.s32.totalorder %v6532, %v6656
        %vm6664 = vcmp.lt.s32.totalorder %v6533, %v6656
        %vm6665 = vcmp.lt.s32.totalorder %v6534, %v6656
        %vm6666 = vcmp.lt.s32.totalorder %v6535, %v6656
        %vm6667 = vcmp.lt.s32.totalorder %v6536, %v6656
        %vm6668 = vcmp.lt.s32.totalorder %v6537, %v6656
        %vm6669 = vcmp.lt.s32.totalorder %v6538, %v6656
        %vm6670 = vcmp.lt.s32.totalorder %v6539, %v6656
        %vm6671 = vcmp.lt.s32.totalorder %v6540, %v6656
        %vm6672 = vcmp.lt.s32.totalorder %v6541, %v6656
        %vm6673 = vcmp.lt.s32.totalorder %v6542, %v6656
        %vm6674 = vcmp.lt.s32.totalorder %v6543, %v6656
        %vm6675 = vcmp.lt.s32.totalorder %v6544, %v6656
        %vm6676 = vcmp.lt.s32.totalorder %v6545, %v6656
        %vm6677 = vcmp.lt.s32.totalorder %v6546, %v6656
        %vm6678 = vcmp.lt.s32.totalorder %v6547, %v6656
        %vm6679 = vcmp.lt.s32.totalorder %v6548, %v6656
        %vm6680 = vcmp.lt.s32.totalorder %v6549, %v6656
        %vm6681 = vcmp.lt.s32.totalorder %v6550, %v6656
        %vm6682 = vcmp.lt.s32.totalorder %v6551, %v6656
        %vm6683 = vcmp.lt.s32.totalorder %v6552, %v6656
        %vm6684 = vcmp.lt.s32.totalorder %v6553, %v6656
        %vm6685 = vcmp.lt.s32.totalorder %v6554, %v6656
        %vm6686 = vcmp.lt.s32.totalorder %v6555, %v6656
        %vm6687 = vcmp.lt.s32.totalorder %v6556, %v6656
        %vm6688 = vcmp.lt.s32.totalorder %v6557, %v6656
        %vm6689 = vcmp.lt.s32.totalorder %v6558, %v6656
        %vm6690 = vcmp.lt.s32.totalorder %v6559, %v6656
        %vm6691 = vcmp.lt.s32.totalorder %v6560, %v6656
        %vm6692 = vcmp.lt.s32.totalorder %v6561, %v6656
        %vm6693 = vcmp.lt.s32.totalorder %v6562, %v6656
        %vm6694 = vcmp.lt.s32.totalorder %v6563, %v6656
        %vm6695 = vcmp.lt.s32.totalorder %v6564, %v6656
        %vm6696 = vcmp.lt.s32.totalorder %v6565, %v6656
        %vm6697 = vcmp.lt.s32.totalorder %v6566, %v6656
        %vm6698 = vcmp.lt.s32.totalorder %v6567, %v6656
        %vm6699 = vcmp.lt.s32.totalorder %v6568, %v6656
        %vm6700 = vcmp.lt.s32.totalorder %v6569, %v6656
        %vm6701 = vcmp.lt.s32.totalorder %v6570, %v6656
        %vm6702 = vcmp.lt.s32.totalorder %v6571, %v6656
        %vm6703 = vcmp.lt.s32.totalorder %v6572, %v6656
        %vm6704 = vcmp.lt.s32.totalorder %v6573, %v6656
        %vm6705 = vcmp.lt.s32.totalorder %v6574, %v6656
        %vm6706 = vcmp.lt.s32.totalorder %v6575, %v6656
        %vm6707 = vcmp.lt.s32.totalorder %v6576, %v6656
        %vm6708 = vcmp.lt.s32.totalorder %v6577, %v6656
        %vm6709 = vcmp.lt.s32.totalorder %v6578, %v6656
        %vm6710 = vcmp.lt.s32.totalorder %v6579, %v6656
        %vm6711 = vcmp.lt.s32.totalorder %v6580, %v6656
        %vm6712 = vcmp.lt.s32.totalorder %v6581, %v6656
        %vm6713 = vcmp.lt.s32.totalorder %v6582, %v6656
        %vm6714 = vcmp.lt.s32.totalorder %v6583, %v6656
        %vm6715 = vcmp.lt.s32.totalorder %v6584, %v6656
        %vm6716 = vcmp.lt.s32.totalorder %v6585, %v6656
        %vm6717 = vcmp.lt.s32.totalorder %v6586, %v6656
        %vm6718 = vcmp.lt.s32.totalorder %v6587, %v6656
        %vm6719 = vcmp.lt.s32.totalorder %v6588, %v6656
        %vm6720 = vcmp.lt.s32.totalorder %v6589, %v6656
        %vm6721 = vcmp.lt.s32.totalorder %v6590, %v6656
        %vm6722 = vcmp.lt.s32.totalorder %v6591, %v6656
        %vm6723 = vcmp.lt.s32.totalorder %v6592, %v6656
        %vm6724 = vcmp.lt.s32.totalorder %v6593, %v6656
        %vm6725 = vcmp.lt.s32.totalorder %v6594, %v6656
        %vm6726 = vcmp.lt.s32.totalorder %v6595, %v6656
        %vm6727 = vcmp.lt.s32.totalorder %v6596, %v6656
        %vm6728 = vcmp.lt.s32.totalorder %v6597, %v6656
        %vm6729 = vcmp.lt.s32.totalorder %v6598, %v6656
        %vm6730 = vcmp.lt.s32.totalorder %v6599, %v6656
        %vm6731 = vcmp.lt.s32.totalorder %v6600, %v6656
        %vm6732 = vcmp.lt.s32.totalorder %v6601, %v6656
        %vm6733 = vcmp.lt.s32.totalorder %v6602, %v6656
        %vm6734 = vcmp.lt.s32.totalorder %v6603, %v6656
        %vm6735 = vcmp.lt.s32.totalorder %v6604, %v6656
        %vm6736 = vcmp.lt.s32.totalorder %v6605, %v6656
        %vm6737 = vcmp.lt.s32.totalorder %v6606, %v6656
        %vm6738 = vcmp.lt.s32.totalorder %v6607, %v6656
        %vm6739 = vcmp.lt.s32.totalorder %v6608, %v6656
        %vm6740 = vcmp.lt.s32.totalorder %v6609, %v6656
        %vm6741 = vcmp.lt.s32.totalorder %v6610, %v6656
        %vm6742 = vcmp.lt.s32.totalorder %v6611, %v6656
        %vm6743 = vcmp.lt.s32.totalorder %v6612, %v6656
        %vm6744 = vcmp.lt.s32.totalorder %v6613, %v6656
        %vm6745 = vcmp.lt.s32.totalorder %v6614, %v6656
        %vm6746 = vcmp.lt.s32.totalorder %v6615, %v6656
        %vm6747 = vcmp.lt.s32.totalorder %v6616, %v6656
        %vm6748 = vcmp.lt.s32.totalorder %v6617, %v6656
        %vm6749 = vcmp.lt.s32.totalorder %v6618, %v6656
        %vm6750 = vcmp.lt.s32.totalorder %v6619, %v6656
        %vm6751 = vcmp.lt.s32.totalorder %v6620, %v6656
        %vm6752 = vcmp.lt.s32.totalorder %v6621, %v6656
        %vm6753 = vcmp.lt.s32.totalorder %v6622, %v6656
        %vm6754 = vcmp.lt.s32.totalorder %v6623, %v6656
        %vm6755 = vcmp.lt.s32.totalorder %v6624, %v6656
        %vm6756 = vcmp.lt.s32.totalorder %v6625, %v6656
        %vm6757 = vcmp.lt.s32.totalorder %v6626, %v6656
        %vm6758 = vcmp.lt.s32.totalorder %v6627, %v6656
        %vm6759 = vcmp.lt.s32.totalorder %v6628, %v6656
        %vm6760 = vcmp.lt.s32.totalorder %v6629, %v6656
        %vm6761 = vcmp.lt.s32.totalorder %v6630, %v6656
        %vm6762 = vcmp.lt.s32.totalorder %v6631, %v6656
        %vm6763 = vcmp.lt.s32.totalorder %v6632, %v6656
        %vm6764 = vcmp.lt.s32.totalorder %v6633, %v6656
        %vm6765 = vcmp.lt.s32.totalorder %v6634, %v6656
        %vm6766 = vcmp.lt.s32.totalorder %v6635, %v6656
        %vm6767 = vcmp.lt.s32.totalorder %v6636, %v6656
        %vm6768 = vcmp.lt.s32.totalorder %v6637, %v6656
        %vm6769 = vcmp.lt.s32.totalorder %v6638, %v6656
        %vm6770 = vcmp.lt.s32.totalorder %v6639, %v6656
        %vm6771 = vcmp.lt.s32.totalorder %v6640, %v6656
        %vm6772 = vcmp.lt.s32.totalorder %v6641, %v6656
        %vm6773 = vcmp.lt.s32.totalorder %v6642, %v6656
        %vm6774 = vcmp.lt.s32.totalorder %v6643, %v6656
        %vm6775 = vcmp.lt.s32.totalorder %v6644, %v6656
        %vm6776 = vcmp.lt.s32.totalorder %v6645, %v6656
        %vm6777 = vcmp.lt.s32.totalorder %v6646, %v6656
        %vm6778 = vcmp.lt.s32.totalorder %v6647, %v6656
        %vm6779 = vcmp.lt.s32.totalorder %v6648, %v6656
        %vm6780 = vcmp.lt.s32.totalorder %v6649, %v6656
        %vm6781 = vcmp.lt.s32.totalorder %v6650, %v6656
        %vm6782 = vcmp.lt.s32.totalorder %v6651, %v6656
        %vm6783 = vcmp.lt.s32.totalorder %v6652, %v6656
        %vm6784 = vcmp.lt.s32.totalorder %v6653, %v6656
        %v6785 = vsel %vm6657, %v2047, 0.0
        %v6786 = vsel %vm6658, %v2049, 0.0
        %v6787 = vsel %vm6659, %v2118, 0.0
        %v6788 = vsel %vm6660, %v2120, 0.0
        %v6789 = vsel %vm6661, %v2189, 0.0
        %v6790 = vsel %vm6662, %v2191, 0.0
        %v6791 = vsel %vm6663, %v2260, 0.0
        %v6792 = vsel %vm6664, %v2262, 0.0
        %v6793 = vsel %vm6665, %v2331, 0.0
        %v6794 = vsel %vm6666, %v2333, 0.0
        %v6795 = vsel %vm6667, %v2402, 0.0
        %v6796 = vsel %vm6668, %v2404, 0.0
        %v6797 = vsel %vm6669, %v2473, 0.0
        %v6798 = vsel %vm6670, %v2475, 0.0
        %v6799 = vsel %vm6671, %v2544, 0.0
        %v6800 = vsel %vm6672, %v2546, 0.0
        %v6801 = vsel %vm6673, %v2615, 0.0
        %v6802 = vsel %vm6674, %v2617, 0.0
        %v6803 = vsel %vm6675, %v2686, 0.0
        %v6804 = vsel %vm6676, %v2688, 0.0
        %v6805 = vsel %vm6677, %v2757, 0.0
        %v6806 = vsel %vm6678, %v2759, 0.0
        %v6807 = vsel %vm6679, %v2828, 0.0
        %v6808 = vsel %vm6680, %v2830, 0.0
        %v6809 = vsel %vm6681, %v2899, 0.0
        %v6810 = vsel %vm6682, %v2901, 0.0
        %v6811 = vsel %vm6683, %v2970, 0.0
        %v6812 = vsel %vm6684, %v2972, 0.0
        %v6813 = vsel %vm6685, %v3041, 0.0
        %v6814 = vsel %vm6686, %v3043, 0.0
        %v6815 = vsel %vm6687, %v3112, 0.0
        %v6816 = vsel %vm6688, %v3114, 0.0
        %v6817 = vsel %vm6689, %v3183, 0.0
        %v6818 = vsel %vm6690, %v3185, 0.0
        %v6819 = vsel %vm6691, %v3254, 0.0
        %v6820 = vsel %vm6692, %v3256, 0.0
        %v6821 = vsel %vm6693, %v3325, 0.0
        %v6822 = vsel %vm6694, %v3327, 0.0
        %v6823 = vsel %vm6695, %v3396, 0.0
        %v6824 = vsel %vm6696, %v3398, 0.0
        %v6825 = vsel %vm6697, %v3467, 0.0
        %v6826 = vsel %vm6698, %v3469, 0.0
        %v6827 = vsel %vm6699, %v3538, 0.0
        %v6828 = vsel %vm6700, %v3540, 0.0
        %v6829 = vsel %vm6701, %v3609, 0.0
        %v6830 = vsel %vm6702, %v3611, 0.0
        %v6831 = vsel %vm6703, %v3680, 0.0
        %v6832 = vsel %vm6704, %v3682, 0.0
        %v6833 = vsel %vm6705, %v3751, 0.0
        %v6834 = vsel %vm6706, %v3753, 0.0
        %v6835 = vsel %vm6707, %v3822, 0.0
        %v6836 = vsel %vm6708, %v3824, 0.0
        %v6837 = vsel %vm6709, %v3893, 0.0
        %v6838 = vsel %vm6710, %v3895, 0.0
        %v6839 = vsel %vm6711, %v3964, 0.0
        %v6840 = vsel %vm6712, %v3966, 0.0
        %v6841 = vsel %vm6713, %v4035, 0.0
        %v6842 = vsel %vm6714, %v4037, 0.0
        %v6843 = vsel %vm6715, %v4106, 0.0
        %v6844 = vsel %vm6716, %v4108, 0.0
        %v6845 = vsel %vm6717, %v4177, 0.0
        %v6846 = vsel %vm6718, %v4179, 0.0
        %v6847 = vsel %vm6719, %v4248, 0.0
        %v6848 = vsel %vm6720, %v4250, 0.0
        %v6849 = vsel %vm6721, %v4319, 0.0
        %v6850 = vsel %vm6722, %v4321, 0.0
        %v6851 = vsel %vm6723, %v4390, 0.0
        %v6852 = vsel %vm6724, %v4392, 0.0
        %v6853 = vsel %vm6725, %v4461, 0.0
        %v6854 = vsel %vm6726, %v4463, 0.0
        %v6855 = vsel %vm6727, %v4532, 0.0
        %v6856 = vsel %vm6728, %v4534, 0.0
        %v6857 = vsel %vm6729, %v4603, 0.0
        %v6858 = vsel %vm6730, %v4605, 0.0
        %v6859 = vsel %vm6731, %v4674, 0.0
        %v6860 = vsel %vm6732, %v4676, 0.0
        %v6861 = vsel %vm6733, %v4745, 0.0
        %v6862 = vsel %vm6734, %v4747, 0.0
        %v6863 = vsel %vm6735, %v4816, 0.0
        %v6864 = vsel %vm6736, %v4818, 0.0
        %v6865 = vsel %vm6737, %v4887, 0.0
        %v6866 = vsel %vm6738, %v4889, 0.0
        %v6867 = vsel %vm6739, %v4958, 0.0
        %v6868 = vsel %vm6740, %v4960, 0.0
        %v6869 = vsel %vm6741, %v5029, 0.0
        %v6870 = vsel %vm6742, %v5031, 0.0
        %v6871 = vsel %vm6743, %v5100, 0.0
        %v6872 = vsel %vm6744, %v5102, 0.0
        %v6873 = vsel %vm6745, %v5171, 0.0
        %v6874 = vsel %vm6746, %v5173, 0.0
        %v6875 = vsel %vm6747, %v5242, 0.0
        %v6876 = vsel %vm6748, %v5244, 0.0
        %v6877 = vsel %vm6749, %v5313, 0.0
        %v6878 = vsel %vm6750, %v5315, 0.0
        %v6879 = vsel %vm6751, %v5384, 0.0
        %v6880 = vsel %vm6752, %v5386, 0.0
        %v6881 = vsel %vm6753, %v5455, 0.0
        %v6882 = vsel %vm6754, %v5457, 0.0
        %v6883 = vsel %vm6755, %v5526, 0.0
        %v6884 = vsel %vm6756, %v5528, 0.0
        %v6885 = vsel %vm6757, %v5597, 0.0
        %v6886 = vsel %vm6758, %v5599, 0.0
        %v6887 = vsel %vm6759, %v5668, 0.0
        %v6888 = vsel %vm6760, %v5670, 0.0
        %v6889 = vsel %vm6761, %v5739, 0.0
        %v6890 = vsel %vm6762, %v5741, 0.0
        %v6891 = vsel %vm6763, %v5810, 0.0
        %v6892 = vsel %vm6764, %v5812, 0.0
        %v6893 = vsel %vm6765, %v5881, 0.0
        %v6894 = vsel %vm6766, %v5883, 0.0
        %v6895 = vsel %vm6767, %v5952, 0.0
        %v6896 = vsel %vm6768, %v5954, 0.0
        %v6897 = vsel %vm6769, %v6023, 0.0
        %v6898 = vsel %vm6770, %v6025, 0.0
        %v6899 = vsel %vm6771, %v6094, 0.0
        %v6900 = vsel %vm6772, %v6096, 0.0
        %v6901 = vsel %vm6773, %v6165, 0.0
        %v6902 = vsel %vm6774, %v6167, 0.0
        %v6903 = vsel %vm6775, %v6236, 0.0
        %v6904 = vsel %vm6776, %v6238, 0.0
        %v6905 = vsel %vm6777, %v6307, 0.0
        %v6906 = vsel %vm6778, %v6309, 0.0
        %v6907 = vsel %vm6779, %v6378, 0.0
        %v6908 = vsel %vm6780, %v6380, 0.0
        %v6909 = vsel %vm6781, %v6449, 0.0
        %v6910 = vsel %vm6782, %v6451, 0.0
        %v6911 = vsel %vm6783, %v6520, 0.0
        %v6912 = vsel %vm6784, %v6522, 0.0
        %v7041 = vcombine.low %v6785, %v6786
        %v7042 = vcombine.low %v6787, %v6788
        %v7044 = vunpack.c.l.s4 1983009808
        %v7045 = vunpack.c.0.s8 %v7044
        %v7046 = vlaneseq
        %v7047 = vshrl.u32 %v7046, 7
        %v7048 = vsub.s32 %v7045, %v7047
        %v7049 = vrot.slane %v7041, %v7048
        %v7051 = vunpack.c.l.s4 1983009808
        %v7052 = vunpack.c.0.s8 %v7051
        %v7053 = vlaneseq
        %v7054 = vshrl.u32 %v7053, 7
        %v7055 = vsub.s32 %v7052, %v7054
        %v7056 = vrot.slane %v7042, %v7055
        %v7057 = vcombine.low %v7049, %v7056
        %v7058 = vcombine.low %v6789, %v6790
        %v7059 = vcombine.low %v6791, %v6792
        %v7061 = vunpack.c.l.s4 1983009808
        %v7062 = vunpack.c.0.s8 %v7061
        %v7063 = vlaneseq
        %v7064 = vshrl.u32 %v7063, 7
        %v7065 = vsub.s32 %v7062, %v7064
        %v7066 = vrot.slane %v7058, %v7065
        %v7068 = vunpack.c.l.s4 1983009808
        %v7069 = vunpack.c.0.s8 %v7068
        %v7070 = vlaneseq
        %v7071 = vshrl.u32 %v7070, 7
        %v7072 = vsub.s32 %v7069, %v7071
        %v7073 = vrot.slane %v7059, %v7072
        %v7074 = vcombine.low %v7066, %v7073
        %v7075 = vcombine.low %v6793, %v6794
        %v7076 = vcombine.low %v6795, %v6796
        %v7078 = vunpack.c.l.s4 1983009808
        %v7079 = vunpack.c.0.s8 %v7078
        %v7080 = vlaneseq
        %v7081 = vshrl.u32 %v7080, 7
        %v7082 = vsub.s32 %v7079, %v7081
        %v7083 = vrot.slane %v7075, %v7082
        %v7085 = vunpack.c.l.s4 1983009808
        %v7086 = vunpack.c.0.s8 %v7085
        %v7087 = vlaneseq
        %v7088 = vshrl.u32 %v7087, 7
        %v7089 = vsub.s32 %v7086, %v7088
        %v7090 = vrot.slane %v7076, %v7089
        %v7091 = vcombine.low %v7083, %v7090
        %v7092 = vcombine.low %v6797, %v6798
        %v7093 = vcombine.low %v6799, %v6800
        %v7095 = vunpack.c.l.s4 1983009808
        %v7096 = vunpack.c.0.s8 %v7095
        %v7097 = vlaneseq
        %v7098 = vshrl.u32 %v7097, 7
        %v7099 = vsub.s32 %v7096, %v7098
        %v7100 = vrot.slane %v7092, %v7099
        %v7102 = vunpack.c.l.s4 1983009808
        %v7103 = vunpack.c.0.s8 %v7102
        %v7104 = vlaneseq
        %v7105 = vshrl.u32 %v7104, 7
        %v7106 = vsub.s32 %v7103, %v7105
        %v7107 = vrot.slane %v7093, %v7106
        %v7108 = vcombine.low %v7100, %v7107
        %v7109 = vcombine.low %v6801, %v6802
        %v7110 = vcombine.low %v6803, %v6804
        %v7112 = vunpack.c.l.s4 1983009808
        %v7113 = vunpack.c.0.s8 %v7112
        %v7114 = vlaneseq
        %v7115 = vshrl.u32 %v7114, 7
        %v7116 = vsub.s32 %v7113, %v7115
        %v7117 = vrot.slane %v7109, %v7116
        %v7119 = vunpack.c.l.s4 1983009808
        %v7120 = vunpack.c.0.s8 %v7119
        %v7121 = vlaneseq
        %v7122 = vshrl.u32 %v7121, 7
        %v7123 = vsub.s32 %v7120, %v7122
        %v7124 = vrot.slane %v7110, %v7123
        %v7125 = vcombine.low %v7117, %v7124
        %v7126 = vcombine.low %v6805, %v6806
        %v7127 = vcombine.low %v6807, %v6808
        %v7129 = vunpack.c.l.s4 1983009808
        %v7130 = vunpack.c.0.s8 %v7129
        %v7131 = vlaneseq
        %v7132 = vshrl.u32 %v7131, 7
        %v7133 = vsub.s32 %v7130, %v7132
        %v7134 = vrot.slane %v7126, %v7133
        %v7136 = vunpack.c.l.s4 1983009808
        %v7137 = vunpack.c.0.s8 %v7136
        %v7138 = vlaneseq
        %v7139 = vshrl.u32 %v7138, 7
        %v7140 = vsub.s32 %v7137, %v7139
        %v7141 = vrot.slane %v7127, %v7140
        %v7142 = vcombine.low %v7134, %v7141
        %v7143 = vcombine.low %v6809, %v6810
        %v7144 = vcombine.low %v6811, %v6812
        %v7146 = vunpack.c.l.s4 1983009808
        %v7147 = vunpack.c.0.s8 %v7146
        %v7148 = vlaneseq
        %v7149 = vshrl.u32 %v7148, 7
        %v7150 = vsub.s32 %v7147, %v7149
        %v7151 = vrot.slane %v7143, %v7150
        %v7153 = vunpack.c.l.s4 1983009808
        %v7154 = vunpack.c.0.s8 %v7153
        %v7155 = vlaneseq
        %v7156 = vshrl.u32 %v7155, 7
        %v7157 = vsub.s32 %v7154, %v7156
        %v7158 = vrot.slane %v7144, %v7157
        %v7159 = vcombine.low %v7151, %v7158
        %v7160 = vcombine.low %v6813, %v6814
        %v7161 = vcombine.low %v6815, %v6816
        %v7163 = vunpack.c.l.s4 1983009808
        %v7164 = vunpack.c.0.s8 %v7163
        %v7165 = vlaneseq
        %v7166 = vshrl.u32 %v7165, 7
        %v7167 = vsub.s32 %v7164, %v7166
        %v7168 = vrot.slane %v7160, %v7167
        %v7170 = vunpack.c.l.s4 1983009808
        %v7171 = vunpack.c.0.s8 %v7170
        %v7172 = vlaneseq
        %v7173 = vshrl.u32 %v7172, 7
        %v7174 = vsub.s32 %v7171, %v7173
        %v7175 = vrot.slane %v7161, %v7174
        %v7176 = vcombine.low %v7168, %v7175
        %v7177 = vcombine.low %v6817, %v6818
        %v7178 = vcombine.low %v6819, %v6820
        %v7180 = vunpack.c.l.s4 1983009808
        %v7181 = vunpack.c.0.s8 %v7180
        %v7182 = vlaneseq
        %v7183 = vshrl.u32 %v7182, 7
        %v7184 = vsub.s32 %v7181, %v7183
        %v7185 = vrot.slane %v7177, %v7184
        %v7187 = vunpack.c.l.s4 1983009808
        %v7188 = vunpack.c.0.s8 %v7187
        %v7189 = vlaneseq
        %v7190 = vshrl.u32 %v7189, 7
        %v7191 = vsub.s32 %v7188, %v7190
        %v7192 = vrot.slane %v7178, %v7191
        %v7193 = vcombine.low %v7185, %v7192
        %v7194 = vcombine.low %v6821, %v6822
        %v7195 = vcombine.low %v6823, %v6824
        %v7197 = vunpack.c.l.s4 1983009808
        %v7198 = vunpack.c.0.s8 %v7197
        %v7199 = vlaneseq
        %v7200 = vshrl.u32 %v7199, 7
        %v7201 = vsub.s32 %v7198, %v7200
        %v7202 = vrot.slane %v7194, %v7201
        %v7204 = vunpack.c.l.s4 1983009808
        %v7205 = vunpack.c.0.s8 %v7204
        %v7206 = vlaneseq
        %v7207 = vshrl.u32 %v7206, 7
        %v7208 = vsub.s32 %v7205, %v7207
        %v7209 = vrot.slane %v7195, %v7208
        %v7210 = vcombine.low %v7202, %v7209
        %v7211 = vcombine.low %v6825, %v6826
        %v7212 = vcombine.low %v6827, %v6828
        %v7214 = vunpack.c.l.s4 1983009808
        %v7215 = vunpack.c.0.s8 %v7214
        %v7216 = vlaneseq
        %v7217 = vshrl.u32 %v7216, 7
        %v7218 = vsub.s32 %v7215, %v7217
        %v7219 = vrot.slane %v7211, %v7218
        %v7221 = vunpack.c.l.s4 1983009808
        %v7222 = vunpack.c.0.s8 %v7221
        %v7223 = vlaneseq
        %v7224 = vshrl.u32 %v7223, 7
        %v7225 = vsub.s32 %v7222, %v7224
        %v7226 = vrot.slane %v7212, %v7225
        %v7227 = vcombine.low %v7219, %v7226
        %v7228 = vcombine.low %v6829, %v6830
        %v7229 = vcombine.low %v6831, %v6832
        %v7231 = vunpack.c.l.s4 1983009808
        %v7232 = vunpack.c.0.s8 %v7231
        %v7233 = vlaneseq
        %v7234 = vshrl.u32 %v7233, 7
        %v7235 = vsub.s32 %v7232, %v7234
        %v7236 = vrot.slane %v7228, %v7235
        %v7238 = vunpack.c.l.s4 1983009808
        %v7239 = vunpack.c.0.s8 %v7238
        %v7240 = vlaneseq
        %v7241 = vshrl.u32 %v7240, 7
        %v7242 = vsub.s32 %v7239, %v7241
        %v7243 = vrot.slane %v7229, %v7242
        %v7244 = vcombine.low %v7236, %v7243
        %v7245 = vcombine.low %v6833, %v6834
        %v7246 = vcombine.low %v6835, %v6836
        %v7248 = vunpack.c.l.s4 1983009808
        %v7249 = vunpack.c.0.s8 %v7248
        %v7250 = vlaneseq
        %v7251 = vshrl.u32 %v7250, 7
        %v7252 = vsub.s32 %v7249, %v7251
        %v7253 = vrot.slane %v7245, %v7252
        %v7255 = vunpack.c.l.s4 1983009808
        %v7256 = vunpack.c.0.s8 %v7255
        %v7257 = vlaneseq
        %v7258 = vshrl.u32 %v7257, 7
        %v7259 = vsub.s32 %v7256, %v7258
        %v7260 = vrot.slane %v7246, %v7259
        %v7261 = vcombine.low %v7253, %v7260
        %v7262 = vcombine.low %v6837, %v6838
        %v7263 = vcombine.low %v6839, %v6840
        %v7265 = vunpack.c.l.s4 1983009808
        %v7266 = vunpack.c.0.s8 %v7265
        %v7267 = vlaneseq
        %v7268 = vshrl.u32 %v7267, 7
        %v7269 = vsub.s32 %v7266, %v7268
        %v7270 = vrot.slane %v7262, %v7269
        %v7272 = vunpack.c.l.s4 1983009808
        %v7273 = vunpack.c.0.s8 %v7272
        %v7274 = vlaneseq
        %v7275 = vshrl.u32 %v7274, 7
        %v7276 = vsub.s32 %v7273, %v7275
        %v7277 = vrot.slane %v7263, %v7276
        %v7278 = vcombine.low %v7270, %v7277
        %v7279 = vcombine.low %v6841, %v6842
        %v7280 = vcombine.low %v6843, %v6844
        %v7282 = vunpack.c.l.s4 1983009808
        %v7283 = vunpack.c.0.s8 %v7282
        %v7284 = vlaneseq
        %v7285 = vshrl.u32 %v7284, 7
        %v7286 = vsub.s32 %v7283, %v7285
        %v7287 = vrot.slane %v7279, %v7286
        %v7289 = vunpack.c.l.s4 1983009808
        %v7290 = vunpack.c.0.s8 %v7289
        %v7291 = vlaneseq
        %v7292 = vshrl.u32 %v7291, 7
        %v7293 = vsub.s32 %v7290, %v7292
        %v7294 = vrot.slane %v7280, %v7293
        %v7295 = vcombine.low %v7287, %v7294
        %v7296 = vcombine.low %v6845, %v6846
        %v7297 = vcombine.low %v6847, %v6848
        %v7299 = vunpack.c.l.s4 1983009808
        %v7300 = vunpack.c.0.s8 %v7299
        %v7301 = vlaneseq
        %v7302 = vshrl.u32 %v7301, 7
        %v7303 = vsub.s32 %v7300, %v7302
        %v7304 = vrot.slane %v7296, %v7303
        %v7306 = vunpack.c.l.s4 1983009808
        %v7307 = vunpack.c.0.s8 %v7306
        %v7308 = vlaneseq
        %v7309 = vshrl.u32 %v7308, 7
        %v7310 = vsub.s32 %v7307, %v7309
        %v7311 = vrot.slane %v7297, %v7310
        %v7312 = vcombine.low %v7304, %v7311
        %v7313 = vcombine.low %v6849, %v6850
        %v7314 = vcombine.low %v6851, %v6852
        %v7316 = vunpack.c.l.s4 1983009808
        %v7317 = vunpack.c.0.s8 %v7316
        %v7318 = vlaneseq
        %v7319 = vshrl.u32 %v7318, 7
        %v7320 = vsub.s32 %v7317, %v7319
        %v7321 = vrot.slane %v7313, %v7320
        %v7323 = vunpack.c.l.s4 1983009808
        %v7324 = vunpack.c.0.s8 %v7323
        %v7325 = vlaneseq
        %v7326 = vshrl.u32 %v7325, 7
        %v7327 = vsub.s32 %v7324, %v7326
        %v7328 = vrot.slane %v7314, %v7327
        %v7329 = vcombine.low %v7321, %v7328
        %v7330 = vcombine.low %v6853, %v6854
        %v7331 = vcombine.low %v6855, %v6856
        %v7333 = vunpack.c.l.s4 1983009808
        %v7334 = vunpack.c.0.s8 %v7333
        %v7335 = vlaneseq
        %v7336 = vshrl.u32 %v7335, 7
        %v7337 = vsub.s32 %v7334, %v7336
        %v7338 = vrot.slane %v7330, %v7337
        %v7340 = vunpack.c.l.s4 1983009808
        %v7341 = vunpack.c.0.s8 %v7340
        %v7342 = vlaneseq
        %v7343 = vshrl.u32 %v7342, 7
        %v7344 = vsub.s32 %v7341, %v7343
        %v7345 = vrot.slane %v7331, %v7344
        %v7346 = vcombine.low %v7338, %v7345
        %v7347 = vcombine.low %v6857, %v6858
        %v7348 = vcombine.low %v6859, %v6860
        %v7350 = vunpack.c.l.s4 1983009808
        %v7351 = vunpack.c.0.s8 %v7350
        %v7352 = vlaneseq
        %v7353 = vshrl.u32 %v7352, 7
        %v7354 = vsub.s32 %v7351, %v7353
        %v7355 = vrot.slane %v7347, %v7354
        %v7357 = vunpack.c.l.s4 1983009808
        %v7358 = vunpack.c.0.s8 %v7357
        %v7359 = vlaneseq
        %v7360 = vshrl.u32 %v7359, 7
        %v7361 = vsub.s32 %v7358, %v7360
        %v7362 = vrot.slane %v7348, %v7361
        %v7363 = vcombine.low %v7355, %v7362
        %v7364 = vcombine.low %v6861, %v6862
        %v7365 = vcombine.low %v6863, %v6864
        %v7367 = vunpack.c.l.s4 1983009808
        %v7368 = vunpack.c.0.s8 %v7367
        %v7369 = vlaneseq
        %v7370 = vshrl.u32 %v7369, 7
        %v7371 = vsub.s32 %v7368, %v7370
        %v7372 = vrot.slane %v7364, %v7371
        %v7374 = vunpack.c.l.s4 1983009808
        %v7375 = vunpack.c.0.s8 %v7374
        %v7376 = vlaneseq
        %v7377 = vshrl.u32 %v7376, 7
        %v7378 = vsub.s32 %v7375, %v7377
        %v7379 = vrot.slane %v7365, %v7378
        %v7380 = vcombine.low %v7372, %v7379
        %v7381 = vcombine.low %v6865, %v6866
        %v7382 = vcombine.low %v6867, %v6868
        %v7384 = vunpack.c.l.s4 1983009808
        %v7385 = vunpack.c.0.s8 %v7384
        %v7386 = vlaneseq
        %v7387 = vshrl.u32 %v7386, 7
        %v7388 = vsub.s32 %v7385, %v7387
        %v7389 = vrot.slane %v7381, %v7388
        %v7391 = vunpack.c.l.s4 1983009808
        %v7392 = vunpack.c.0.s8 %v7391
        %v7393 = vlaneseq
        %v7394 = vshrl.u32 %v7393, 7
        %v7395 = vsub.s32 %v7392, %v7394
        %v7396 = vrot.slane %v7382, %v7395
        %v7397 = vcombine.low %v7389, %v7396
        %v7398 = vcombine.low %v6869, %v6870
        %v7399 = vcombine.low %v6871, %v6872
        %v7401 = vunpack.c.l.s4 1983009808
        %v7402 = vunpack.c.0.s8 %v7401
        %v7403 = vlaneseq
        %v7404 = vshrl.u32 %v7403, 7
        %v7405 = vsub.s32 %v7402, %v7404
        %v7406 = vrot.slane %v7398, %v7405
        %v7408 = vunpack.c.l.s4 1983009808
        %v7409 = vunpack.c.0.s8 %v7408
        %v7410 = vlaneseq
        %v7411 = vshrl.u32 %v7410, 7
        %v7412 = vsub.s32 %v7409, %v7411
        %v7413 = vrot.slane %v7399, %v7412
        %v7414 = vcombine.low %v7406, %v7413
        %v7415 = vcombine.low %v6873, %v6874
        %v7416 = vcombine.low %v6875, %v6876
        %v7418 = vunpack.c.l.s4 1983009808
        %v7419 = vunpack.c.0.s8 %v7418
        %v7420 = vlaneseq
        %v7421 = vshrl.u32 %v7420, 7
        %v7422 = vsub.s32 %v7419, %v7421
        %v7423 = vrot.slane %v7415, %v7422
        %v7425 = vunpack.c.l.s4 1983009808
        %v7426 = vunpack.c.0.s8 %v7425
        %v7427 = vlaneseq
        %v7428 = vshrl.u32 %v7427, 7
        %v7429 = vsub.s32 %v7426, %v7428
        %v7430 = vrot.slane %v7416, %v7429
        %v7431 = vcombine.low %v7423, %v7430
        %v7432 = vcombine.low %v6877, %v6878
        %v7433 = vcombine.low %v6879, %v6880
        %v7435 = vunpack.c.l.s4 1983009808
        %v7436 = vunpack.c.0.s8 %v7435
        %v7437 = vlaneseq
        %v7438 = vshrl.u32 %v7437, 7
        %v7439 = vsub.s32 %v7436, %v7438
        %v7440 = vrot.slane %v7432, %v7439
        %v7442 = vunpack.c.l.s4 1983009808
        %v7443 = vunpack.c.0.s8 %v7442
        %v7444 = vlaneseq
        %v7445 = vshrl.u32 %v7444, 7
        %v7446 = vsub.s32 %v7443, %v7445
        %v7447 = vrot.slane %v7433, %v7446
        %v7448 = vcombine.low %v7440, %v7447
        %v7449 = vcombine.low %v6881, %v6882
        %v7450 = vcombine.low %v6883, %v6884
        %v7452 = vunpack.c.l.s4 1983009808
        %v7453 = vunpack.c.0.s8 %v7452
        %v7454 = vlaneseq
        %v7455 = vshrl.u32 %v7454, 7
        %v7456 = vsub.s32 %v7453, %v7455
        %v7457 = vrot.slane %v7449, %v7456
        %v7459 = vunpack.c.l.s4 1983009808
        %v7460 = vunpack.c.0.s8 %v7459
        %v7461 = vlaneseq
        %v7462 = vshrl.u32 %v7461, 7
        %v7463 = vsub.s32 %v7460, %v7462
        %v7464 = vrot.slane %v7450, %v7463
        %v7465 = vcombine.low %v7457, %v7464
        %v7466 = vcombine.low %v6885, %v6886
        %v7467 = vcombine.low %v6887, %v6888
        %v7469 = vunpack.c.l.s4 1983009808
        %v7470 = vunpack.c.0.s8 %v7469
        %v7471 = vlaneseq
        %v7472 = vshrl.u32 %v7471, 7
        %v7473 = vsub.s32 %v7470, %v7472
        %v7474 = vrot.slane %v7466, %v7473
        %v7476 = vunpack.c.l.s4 1983009808
        %v7477 = vunpack.c.0.s8 %v7476
        %v7478 = vlaneseq
        %v7479 = vshrl.u32 %v7478, 7
        %v7480 = vsub.s32 %v7477, %v7479
        %v7481 = vrot.slane %v7467, %v7480
        %v7482 = vcombine.low %v7474, %v7481
        %v7483 = vcombine.low %v6889, %v6890
        %v7484 = vcombine.low %v6891, %v6892
        %v7486 = vunpack.c.l.s4 1983009808
        %v7487 = vunpack.c.0.s8 %v7486
        %v7488 = vlaneseq
        %v7489 = vshrl.u32 %v7488, 7
        %v7490 = vsub.s32 %v7487, %v7489
        %v7491 = vrot.slane %v7483, %v7490
        %v7493 = vunpack.c.l.s4 1983009808
        %v7494 = vunpack.c.0.s8 %v7493
        %v7495 = vlaneseq
        %v7496 = vshrl.u32 %v7495, 7
        %v7497 = vsub.s32 %v7494, %v7496
        %v7498 = vrot.slane %v7484, %v7497
        %v7499 = vcombine.low %v7491, %v7498
        %v7500 = vcombine.low %v6893, %v6894
        %v7501 = vcombine.low %v6895, %v6896
        %v7503 = vunpack.c.l.s4 1983009808
        %v7504 = vunpack.c.0.s8 %v7503
        %v7505 = vlaneseq
        %v7506 = vshrl.u32 %v7505, 7
        %v7507 = vsub.s32 %v7504, %v7506
        %v7508 = vrot.slane %v7500, %v7507
        %v7510 = vunpack.c.l.s4 1983009808
        %v7511 = vunpack.c.0.s8 %v7510
        %v7512 = vlaneseq
        %v7513 = vshrl.u32 %v7512, 7
        %v7514 = vsub.s32 %v7511, %v7513
        %v7515 = vrot.slane %v7501, %v7514
        %v7516 = vcombine.low %v7508, %v7515
        %v7517 = vcombine.low %v6897, %v6898
        %v7518 = vcombine.low %v6899, %v6900
        %v7520 = vunpack.c.l.s4 1983009808
        %v7521 = vunpack.c.0.s8 %v7520
        %v7522 = vlaneseq
        %v7523 = vshrl.u32 %v7522, 7
        %v7524 = vsub.s32 %v7521, %v7523
        %v7525 = vrot.slane %v7517, %v7524
        %v7527 = vunpack.c.l.s4 1983009808
        %v7528 = vunpack.c.0.s8 %v7527
        %v7529 = vlaneseq
        %v7530 = vshrl.u32 %v7529, 7
        %v7531 = vsub.s32 %v7528, %v7530
        %v7532 = vrot.slane %v7518, %v7531
        %v7533 = vcombine.low %v7525, %v7532
        %v7534 = vcombine.low %v6901, %v6902
        %v7535 = vcombine.low %v6903, %v6904
        %v7537 = vunpack.c.l.s4 1983009808
        %v7538 = vunpack.c.0.s8 %v7537
        %v7539 = vlaneseq
        %v7540 = vshrl.u32 %v7539, 7
        %v7541 = vsub.s32 %v7538, %v7540
        %v7542 = vrot.slane %v7534, %v7541
        %v7544 = vunpack.c.l.s4 1983009808
        %v7545 = vunpack.c.0.s8 %v7544
        %v7546 = vlaneseq
        %v7547 = vshrl.u32 %v7546, 7
        %v7548 = vsub.s32 %v7545, %v7547
        %v7549 = vrot.slane %v7535, %v7548
        %v7550 = vcombine.low %v7542, %v7549
        %v7551 = vcombine.low %v6905, %v6906
        %v7552 = vcombine.low %v6907, %v6908
        %v7554 = vunpack.c.l.s4 1983009808
        %v7555 = vunpack.c.0.s8 %v7554
        %v7556 = vlaneseq
        %v7557 = vshrl.u32 %v7556, 7
        %v7558 = vsub.s32 %v7555, %v7557
        %v7559 = vrot.slane %v7551, %v7558
        %v7561 = vunpack.c.l.s4 1983009808
        %v7562 = vunpack.c.0.s8 %v7561
        %v7563 = vlaneseq
        %v7564 = vshrl.u32 %v7563, 7
        %v7565 = vsub.s32 %v7562, %v7564
        %v7566 = vrot.slane %v7552, %v7565
        %v7567 = vcombine.low %v7559, %v7566
        %v7568 = vcombine.low %v6909, %v6910
        %v7569 = vcombine.low %v6911, %v6912
        %v7571 = vunpack.c.l.s4 1983009808
        %v7572 = vunpack.c.0.s8 %v7571
        %v7573 = vlaneseq
        %v7574 = vshrl.u32 %v7573, 7
        %v7575 = vsub.s32 %v7572, %v7574
        %v7576 = vrot.slane %v7568, %v7575
        %v7578 = vunpack.c.l.s4 1983009808
        %v7579 = vunpack.c.0.s8 %v7578
        %v7580 = vlaneseq
        %v7581 = vshrl.u32 %v7580, 7
        %v7582 = vsub.s32 %v7579, %v7581
        %v7583 = vrot.slane %v7569, %v7582
        %v7584 = vcombine.low %v7576, %v7583
        %7617 = vst [vmem:[%s479] sm:$0xff] %v7057
        %7618 = vst [vmem:[%s479 + $0x8] sm:$0xff] %v7074
        %7619 = vst [vmem:[%s479 + $0x10] sm:$0xff] %v7091
        %7620 = vst [vmem:[%s479 + $0x18] sm:$0xff] %v7108
        %7621 = vst [vmem:[%s479 + $0x20] sm:$0xff] %v7125
        %7622 = vst [vmem:[%s479 + $0x28] sm:$0xff] %v7142
        %7623 = vst [vmem:[%s479 + $0x30] sm:$0xff] %v7159
        %7624 = vst [vmem:[%s479 + $0x38] sm:$0xff] %v7176
        %7625 = vst [vmem:[%s479 + $0x40] sm:$0xff] %v7193
        %7626 = vst [vmem:[%s479 + $0x48] sm:$0xff] %v7210
        %7627 = vst [vmem:[%s479 + $0x50] sm:$0xff] %v7227
        %7628 = vst [vmem:[%s479 + $0x58] sm:$0xff] %v7244
        %7629 = vst [vmem:[%s479 + $0x60] sm:$0xff] %v7261
        %7630 = vst [vmem:[%s479 + $0x68] sm:$0xff] %v7278
        %7631 = vst [vmem:[%s479 + $0x70] sm:$0xff] %v7295
        %7632 = vst [vmem:[%s479 + $0x78] sm:$0xff] %v7312
        %7633 = vst [vmem:[%s479 + $0x80] sm:$0xff] %v7329
        %7634 = vst [vmem:[%s479 + $0x88] sm:$0xff] %v7346
        %7635 = vst [vmem:[%s479 + $0x90] sm:$0xff] %v7363
        %7636 = vst [vmem:[%s479 + $0x98] sm:$0xff] %v7380
        %7637 = vst [vmem:[%s479 + $0xa0] sm:$0xff] %v7397
        %7638 = vst [vmem:[%s479 + $0xa8] sm:$0xff] %v7414
        %7639 = vst [vmem:[%s479 + $0xb0] sm:$0xff] %v7431
        %7640 = vst [vmem:[%s479 + $0xb8] sm:$0xff] %v7448
        %7641 = vst [vmem:[%s479 + $0xc0] sm:$0xff] %v7465
        %7642 = vst [vmem:[%s479 + $0xc8] sm:$0xff] %v7482
        %7643 = vst [vmem:[%s479 + $0xd0] sm:$0xff] %v7499
        %7644 = vst [vmem:[%s479 + $0xd8] sm:$0xff] %v7516
        %7645 = vst [vmem:[%s479 + $0xe0] sm:$0xff] %v7533
        %7646 = vst [vmem:[%s479 + $0xe8] sm:$0xff] %v7550
        %7647 = vst [vmem:[%s479 + $0xf0] sm:$0xff] %v7567
        %7648 = vst [vmem:[%s479 + $0xf8] sm:$0xff] %v7584
        %s7649 = sand.u32 %s252, 1
        %s7650 = scalar_lea.sflag [#allocation4], %s7649
        %s7651 = sand.u32 %s252, 1
        %s7652 = smul.addr %s7651, 256
        %s7653 = scalar_lea.vmem [#allocation17], %s7652
        // Predicated region
        $region97: #{tpu_custom_call.1} parent=59 // pred_check
          %p7654 = pneg %p262
        $region98: #{tpu_custom_call.1} parent=59 // pred_check_branch
          %7656 = sbr.rel (%p7654) target = $region100
        $region99: #{tpu_custom_call.1} parent=59 // pred_region
          %s7657 = smul.u32 128, %s29
          %s7659 = ssub.s32 4096, 4096
          %7660 = vsyncadd %s7650, %s7659
          %s7661 = smul.addr %s7657, 32
          %s7662 = scalar_lea.hbm %s10, %s7661
          %s7664 = sshll.u32 %s7653, 4
          %s7665 = int_to_ptr.vmem [resolvable:$true] %s7664
          %7667 = dma.vmem_to_hbm [thread:$0]  %s7665, 4096, %s7662, %s7650
        $region100: #{tpu_custom_call.1} parent=59 // pred_fallthru
          _
      $region60: #{tpu_custom_call.1} parent=5 // pred_fallthru
        _
      %p7668 = scmp.le.s32.totalorder 2, %s24
      // Predicated region
      $region101: #{tpu_custom_call.1} parent=5 // pred_check
        %p7669 = pneg %p7668
      $region102: #{tpu_custom_call.1} parent=5 // pred_check_branch
        %7671 = sbr.rel (%p7669) target = $region104
      $region103: #{tpu_custom_call.1} parent=5 // pred_region
        %s7672 = ssub.s32 %s24, 2
        // Predicated region
        $region105: #{tpu_custom_call.1} parent=103 // pred_check
          %p7673 = pneg %p268
        $region106: #{tpu_custom_call.1} parent=103 // pred_check_branch
          %7675 = sbr.rel (%p7673) target = $region108
        $region107: #{tpu_custom_call.1} parent=103 // pred_region
          %s7676 = sand.u32 %s253, 1
          %s7677 = scalar_lea.sflag [#allocation4], %s7676
          %s7678 = sand.u32 %s253, 1
          %s7679 = smul.addr %s7678, 256
          %s7680 = scalar_lea.vmem [#allocation17], %s7679
          %7681 = dma.done %s7677, 4096
        $region108: #{tpu_custom_call.1} parent=103 // pred_fallthru
          _
      $region104: #{tpu_custom_call.1} parent=5 // pred_fallthru
        _
    $region6: #{tpu_custom_call.1} parent=1 // loop_footer
      %s28 = sadd.s32 1, %s24
    $region7: #{tpu_custom_call.1} parent=1 // loop_footer_branch
      %23 = sbr.rel target = $region3
    $region8: #{tpu_custom_call.1} parent=1 // loop_exit
      _
    %7682 = vsyncpa [#allocation3], 1
    %s7683 = scalar_lea.sflag [#allocation3], 1
    %7684 = vsyncpa %s7683, 1
    %7685 = vsyncpa [#allocation6], 1
    %7686 = vsyncpa [#allocation9], 1
    %7687 = vsyncpa [#allocation12], 1
    %7688 = vsyncpa [#allocation15], 1
    %7689 = vsyncpa [#allocation4], 1
    %s7690 = scalar_lea.sflag [#allocation4], 1
    %7691 = vsyncpa %s7690, 1

</llo_original>
